<compile_context>
chip_gen: v5e
topology: v5e:2x2
jax: 0.10.0
libtpu: 0.0.40
codegen_flags: <defaults>
</compile_context>

<pallas_src>
import math
import functools

import jax
import jax.numpy as jnp
from jax import lax
from jax.experimental import pallas as pl
from jax.experimental.pallas import tpu as pltpu

F32 = jnp.float32
BF16 = jnp.bfloat16


# ----------------------------------------------------------------------------
# small in-kernel helpers
# ----------------------------------------------------------------------------
def _ln(x, eps=1e-6):
    mu = jnp.mean(x, axis=-1, keepdims=True)
    var = jnp.mean((x - mu) ** 2, axis=-1, keepdims=True)
    return (x - mu) * lax.rsqrt(var + eps)


def _wdot(a_f32, w_ref, b_ref=None):
    """f32 activation @ (possibly bf16) weight ref, f32 accumulation."""
    w = w_ref[...]
    acc = jnp.dot(a_f32.astype(w.dtype), w, preferred_element_type=F32)
    if b_ref is not None:
        acc = acc + b_ref[...].astype(F32)
    return acc


# ----------------------------------------------------------------------------
# fused AdaLNSelfAttn block kernel (VAR-style, causal, attn_bias=None)
# ----------------------------------------------------------------------------
def _adaln_block_kernel(x_ref, z_ref,
                        ada_w_ref, ada_b_ref,
                        qkv_w_ref, qkv_b_ref,
                        proj_w_ref, proj_b_ref,
                        fc1_w_ref, fc1_b_ref,
                        fc2_w_ref, fc2_b_ref,
                        o_ref, *, num_heads):
    x = x_ref[...].astype(F32)                       # (Bb, T, W)
    z = z_ref[...].astype(F32)                       # (Bb, 1, D)
    Bb, T, W = x.shape
    D = z.shape[-1]
    H = num_heads
    Dh = W // H
    M = Bb * T
    attn_scale = 1.0 / math.sqrt(Dh)

    # ---- adaLN: gamma1,gamma2,scale1,scale2,shift1,shift2 = Linear(SiLU(z))
    z2 = z.reshape(Bb, D)
    sz = z2 * jax.nn.sigmoid(z2)
    ada = _wdot(sz, ada_w_ref, ada_b_ref)            # (Bb, 6W)
    gamma1 = ada[:, 0 * W:1 * W][:, None, :]
    gamma2 = ada[:, 1 * W:2 * W][:, None, :]
    scale1 = ada[:, 2 * W:3 * W][:, None, :]
    scale2 = ada[:, 3 * W:4 * W][:, None, :]
    shift1 = ada[:, 4 * W:5 * W][:, None, :]
    shift2 = ada[:, 5 * W:6 * W][:, None, :]

    # ---------------- attention branch ----------------
    xm = _ln(x) * (1.0 + scale1) + shift1            # (Bb, T, W)
    qkv = _wdot(xm.reshape(M, W), qkv_w_ref, qkv_b_ref)     # (M, 3W)
    q3 = qkv[:, 0 * W:1 * W].reshape(Bb, T, W)
    k3 = qkv[:, 1 * W:2 * W].reshape(Bb, T, W)
    v3 = qkv[:, 2 * W:3 * W].reshape(Bb, T, W)

    # Head-batched attention without per-head unrolling:
    #   * head_mask[h*T + i, w] = 1 iff lane w belongs to head h
    #   * queries are tiled H times along the sublane axis and masked to their
    #     own head's Dh-lane block -> a single full-width (H*T, W) x (T, W)^T
    #     matmul yields all per-head score rows, and one standard row softmax
    #     (exact per-head max / sum) follows.
    h_idx = lax.broadcasted_iota(jnp.int32, (H, 1), 0)       # (H, 1)
    w_idx = lax.broadcasted_iota(jnp.int32, (1, W), 1)       # (1, W)
    hm2 = (w_idx >= h_idx * Dh) & (w_idx < (h_idx + 1) * Dh)  # (H, W)
    head_mask = jnp.broadcast_to(hm2[:, None, :], (H, T, W)).reshape(H * T, W)

    q_t = jnp.broadcast_to(q3[:, None, :, :], (Bb, H, T, W)).reshape(Bb, H * T, W)
    q_t = jnp.where(head_mask[None], q_t * attn_scale, 0.0).astype(BF16)

    s = jnp.einsum("brw,bjw->brj", q_t, k3.astype(BF16),
                   preferred_element_type=F32)               # (Bb, H*T, T)

    qi = lax.broadcasted_iota(jnp.int32, (T, T), 0)
    kj = lax.broadcasted_iota(jnp.int32, (T, T), 1)
    causal = jnp.broadcast_to((kj <= qi)[None], (H, T, T)).reshape(H * T, T)
    s = jnp.where(causal[None], s, -1e30)
    s = s - jnp.max(s, axis=-1, keepdims=True)
    p = jnp.exp(s)
    # approx reciprocal (EUP) — ~1e-3 rel. err vs exact softmax, fine for loss.
    p = p * pl.reciprocal(jnp.sum(p, axis=-1, keepdims=True), approx=True)

    ctx = jnp.einsum("brj,bjw->brw", p.astype(BF16), v3.astype(BF16),
                     preferred_element_type=F32)             # (Bb, H*T, W)
    ctx = jnp.where(head_mask[None], ctx, 0.0)
    # Collapse the H row-blocks back onto the lane-blocked (Bb, T, W) layout:
    # each head only populates its own Dh lanes, so accumulating the H static
    # slices is exact (cheap VPU adds, no concat / transposes).
    o_ctx = ctx[:, 0:T, :]
    for h in range(1, H):
        o_ctx = o_ctx + ctx[:, h * T:(h + 1) * T, :]

    o = _wdot(o_ctx.reshape(M, W), proj_w_ref, proj_b_ref)   # (M, W)
    x = x + gamma1 * o.reshape(Bb, T, W)

    # ---------------- FFN branch ----------------
    xm2 = _ln(x) * (1.0 + scale2) + shift2
    h1 = _wdot(xm2.reshape(M, W), fc1_w_ref, fc1_b_ref)
    h1 = jax.nn.gelu(h1, approximate=True)                   # nn.GELU('tanh')
    h2 = _wdot(h1, fc2_w_ref, fc2_b_ref)
    x = x + gamma2 * h2.reshape(Bb, T, W)

    o_ref[...] = x.astype(o_ref.dtype)


def _pick_bb(B, T, target_rows=256):
    """Largest divisor of B such that Bb*T <= target_rows (MXU row fill).

    target_rows ~128 is enough on v5e (128-tall MXU); 256 fills v6e/v7x.
    On v7x, keeping Bb <= B/2 preserves >=2 grid steps for megacore when B
    is large enough; at tiny B the single-step grid is unavoidable.
    """
    bb = 1
    for cand in range(1, B + 1):
        if B % cand == 0 and cand * T <= target_rows:
            bb = cand
    return bb


def fused_adaln_block(x, z, p, num_heads, block_batch=None):
    """x: (B, T, W), z: (B, D) -> (B, T, W). One launch per AdaLN block."""
    B, T, W = x.shape
    D = z.shape[-1]
    assert W % num_heads == 0
    Bb = block_batch if block_batch is not None else _pick_bb(B, T)
    assert B % Bb == 0
    z3 = z.reshape(B, 1, D)

    inv2 = lambda shp: pl.BlockSpec(shp, lambda b: (0, 0))
    args = (x, z3,
            p["ada_w"], p["ada_b"], p["qkv_w"], p["qkv_b"],
            p["proj_w"], p["proj_b"], p["fc1_w"], p["fc1_b"],
            p["fc2_w"], p["fc2_b"])

    flops = int(B * (12 * D * W + 24 * T * W * W)
                + 4 * B * num_heads * T * T * W)
    trans = int(B * (num_heads * T * T + 5 * T * W))
    nbytes = sum(int(a.size) * a.dtype.itemsize for a in args) + int(B * T * W * 4)

    # NOTE: if W is scaled up (>=1024), switch the grid-invariant weight specs
    # to pipeline_mode=pl.Buffered(1) to avoid double-buffered weight copies.
    return pl.pallas_call(
        functools.partial(_adaln_block_kernel, num_heads=num_heads),
        out_shape=jax.ShapeDtypeStruct((B, T, W), x.dtype),
        grid=(B // Bb,),
        in_specs=[
            pl.BlockSpec((Bb, T, W), lambda b: (b, 0, 0)),
            pl.BlockSpec((Bb, 1, D), lambda b: (b, 0, 0)),
            inv2((D, 6 * W)), inv2((1, 6 * W)),
            inv2((W, 3 * W)), inv2((1, 3 * W)),
            inv2((W, W)), inv2((1, W)),
            inv2((W, 4 * W)), inv2((1, 4 * W)),
            inv2((4 * W, W)), inv2((1, W)),
        ],
        out_specs=pl.BlockSpec((Bb, T, W), lambda b: (b, 0, 0)),
        compiler_params=pltpu.CompilerParams(
            dimension_semantics=("parallel",)),
        cost_estimate=pl.CostEstimate(flops=flops, transcendentals=trans,
                                      bytes_accessed=nbytes),
    )(*args)


# ----------------------------------------------------------------------------
# fused SimpleMLPAdaLN flow head kernel: embeds + depth ResBlocks + final + MSE
# ----------------------------------------------------------------------------
def _flow_head_kernel(xt_ref, te_ref, cond_ref, y_ref,
                      in_w_ref, in_b_ref,
                      tw1_ref, tb1_ref, tw2_ref, tb2_ref,
                      cw_ref, cb_ref,
                      rada_w_ref, rada_b_ref, rw1_ref, rb1_ref,
                      rw2_ref, rb2_ref,
                      fada_w_ref, fada_b_ref, fw_ref, fb_ref,
                      loss_ref,
                      x_s, y_s,
                      *, batch, seq):
    d = pl.program_id(0)

    # -------- step 0: input / time / cond embeddings --------
    @pl.when(d == 0)
    def _init():
        xt = xt_ref[...].astype(F32)                                  # (M, 1)
        x0 = xt * in_w_ref[...].astype(F32) + in_b_ref[...].astype(F32)
        te = te_ref[...].astype(F32)                                  # (M, 256)
        h = _wdot(te, tw1_ref, tb1_ref)
        h = h * jax.nn.sigmoid(h)
        temb = _wdot(h, tw2_ref, tb2_ref)
        c = _wdot(cond_ref[...].astype(F32), cw_ref, cb_ref)
        y = temb + c
        x_s[...] = x0
        # cache SiLU(y): every ResBlock and the final layer consume SiLU(y),
        # never raw y, so compute it once instead of once per depth step.
        y_s[...] = y * jax.nn.sigmoid(y)

    # -------- ResBlock d (AdaLN-zero MLP block) --------
    # Stacked weights are grid-invariant (resident in VMEM after step 0) and
    # sliced here with the grid index -> no per-depth-step weight DMA.
    x = x_s[...]
    sy = y_s[...]
    C = x.shape[-1]
    wa = rada_w_ref[d]
    ada = jnp.dot(sy.astype(wa.dtype), wa,
                  preferred_element_type=F32) + rada_b_ref[d].astype(F32)
    shift = ada[:, 0 * C:1 * C]
    scale = ada[:, 1 * C:2 * C]
    gate = ada[:, 2 * C:3 * C]
    h = _ln(x) * (1.0 + scale) + shift
    w1 = rw1_ref[d]
    h = jnp.dot(h.astype(w1.dtype), w1,
                preferred_element_type=F32) + rb1_ref[d].astype(F32)
    h = h * jax.nn.sigmoid(h)
    w2 = rw2_ref[d]
    h = jnp.dot(h.astype(w2.dtype), w2,
                preferred_element_type=F32) + rb2_ref[d].astype(F32)
    x_new = x + gate * h
    x_s[...] = x_new

    # -------- last step: final layer + per-sample MSE --------
    @pl.when(d == pl.num_programs(0) - 1)
    def _final():
        ada2 = _wdot(sy, fada_w_ref, fada_b_ref)                      # (M, 2C)
        shift2 = ada2[:, :C]
        scale2 = ada2[:, C:]
        h2 = _ln(x_new) * (1.0 + scale2) + shift2
        vel = _wdot(h2, fw_ref, fb_ref)                               # (M, 1)
        diff = vel - y_ref[...].astype(F32)
        sq = diff * diff                                              # (M, 1)
        Mrows = sq.shape[0]
        # per-sample mean over `seq` consecutive rows via a tiny selection
        # matmul (keeps the width-1 tensor out of a lane-splitting relayout).
        r_idx = lax.broadcasted_iota(jnp.int32, (batch, Mrows), 0)
        c_idx = lax.broadcasted_iota(jnp.int32, (batch, Mrows), 1)
        sel = jnp.where((c_idx >= r_idx * seq) & (c_idx < (r_idx + 1) * seq),
                        1.0 / seq, 0.0).astype(F32)                   # (B, M)
        loss_ref[...] = jnp.dot(sel, sq, preferred_element_type=F32)  # (B, 1)


def fused_flow_head(xt, temb, cond, y, net, *, batch, seq):
    """SimpleMLPAdaLN(xt, t, cond) fused with the rec-loss reduction.

    xt, y: (M, 1); temb: (M, 256); cond: (M, W); returns per-sample (batch, 1).
    """
    M = xt.shape[0]
    assert M == batch * seq
    W = cond.shape[-1]
    Cm = net["t_w2"].shape[0]
    Fdim = temb.shape[-1]
    depth = net["ada_w"].shape[0]

    args = (xt, temb, cond, y,
            net["in_w"], net["in_b"],
            net["t_w1"], net["t_b1"], net["t_w2"], net["t_b2"],
            net["c_w"], net["c_b"],
            net["ada_w"], net["ada_b"], net["w1"], net["b1"],
            net["w2"], net["b2"],
            net["f_ada_w"], net["f_ada_b"], net["f_w"], net["f_b"])

    def inv(shape):   # grid-invariant input: resident across the depth axis
        return pl.BlockSpec(shape, lambda d: (0,) * len(shape))

    in_specs = [
        inv((M, 1)), inv((M, Fdim)), inv((M, W)), inv((M, 1)),
        inv((1, Cm)), inv((1, Cm)),
        inv((Fdim, Cm)), inv((1, Cm)), inv((Cm, Cm)), inv((1, Cm)),
        inv((W, Cm)), inv((1, Cm)),
        # depth-stacked ResBlock weights: full stacks, loaded once, indexed
        # by program_id inside the kernel (no exposed per-step weight DMA).
        inv((depth, Cm, 3 * Cm)), inv((depth, 1, 3 * Cm)),
        inv((depth, Cm, Cm)), inv((depth, 1, Cm)),
        inv((depth, Cm, Cm)), inv((depth, 1, Cm)),
        inv((Cm, 2 * Cm)), inv((1, 2 * Cm)), inv((Cm, 1)), inv((1, 1)),
    ]

    flops = int(M * (2 * Fdim * Cm + 2 * Cm * Cm + 2 * W * Cm)
                + depth * M * (2 * Cm * 3 * Cm + 4 * Cm * Cm)
                + M * (2 * Cm * 2 * Cm + 2 * Cm) + 2 * batch * M)
    trans = int(M * Cm * (depth + 4))
    nbytes = sum(int(a.size) * a.dtype.itemsize for a in args) + batch * 4

    # TODO(synk): on v7x, add a leading "parallel" M-tile axis once batch*seq
    #             gives >=128 rows per tile; at small M the single-core depth
    #             loop with resident weights is already DMA-free.
    return pl.pallas_call(
        functools.partial(_flow_head_kernel, batch=batch, seq=seq),
        out_shape=jax.ShapeDtypeStruct((batch, 1), F32),
        grid=(depth,),
        in_specs=in_specs,
        out_specs=pl.BlockSpec((batch, 1), lambda d: (0, 0)),
        scratch_shapes=[pltpu.VMEM((M, Cm), F32),    # x carried across depth
                        pltpu.VMEM((M, Cm), F32)],   # SiLU(temb + cond_embed)
        compiler_params=pltpu.CompilerParams(
            dimension_semantics=("arbitrary",),
            vmem_limit_bytes=32 * 1024 * 1024),
        cost_estimate=pl.CostEstimate(flops=flops, transcendentals=trans,
                                      bytes_accessed=nbytes),
    )(*args)


# ----------------------------------------------------------------------------
# plain-JAX glue (tiny preamble ops, RNG, sinusoidal embedding)
# ----------------------------------------------------------------------------
def timestep_embedding(t, dim, max_period=10000):
    half = dim // 2
    freqs = jnp.exp(-math.log(max_period) *
                    jnp.arange(half, dtype=jnp.float32) / half)
    args = t[:, None].astype(jnp.float32) * freqs[None, :]
    return jnp.concatenate([jnp.cos(args), jnp.sin(args)], axis=-1)


def arhead_forward(params, z, target, key, num_heads=16, mask=None):
    """ARHead_rect_flow.forward(z, target, mask) -> rec_loss (per-sample)."""
    B, _ = z.shape
    T = target.shape[1]

    # --- inner-AR token sequence (trivial K=1 / elementwise ops, plain JAX) ---
    start = (z @ params["cond_w"] + params["cond_b"])[:, None, :] \
        + params["start_token"]                                      # (B,1,W)
    tok = target[:, :-1, None] * params["inproj_w"][0][None, None, :] \
        + params["inproj_b"]                                         # (B,T-1,W)
    x = jnp.concatenate([start, tok], axis=1) + params["pos_embedding"]

    for bp in params["blocks"]:
        x = fused_adaln_block(x, z, bp, num_heads)                   # (B,T,W)

    # --- rectified-flow training target construction (plain JAX, tiny) ---
    W = x.shape[-1]
    x = x.reshape(B * T, W)
    x1 = target.reshape(B * T, 1)
    k0, k1 = jax.random.split(key)
    x0 = jax.random.normal(k0, x1.shape, x1.dtype)
    t = jax.random.uniform(k1, (B * T,), x1.dtype)       # t sampled per token
    xt = t[:, None] * x1 + (1.0 - t[:, None]) * x0
    y = x1 - x0
    temb = timestep_embedding(t, 256)

    # --- fused flow head: velocity + (velocity - y)^2 per-sample mean ---
    rec_loss = fused_flow_head(xt, temb, x, y, params["net"],
                               batch=B, seq=T)[:, 0]                 # (B,)
    if mask is not None:
        rec_loss = jnp.sum(rec_loss * mask) / jnp.sum(mask)
    return rec_loss


# ----------------------------------------------------------------------------
# deterministic synthetic parameters (shapes follow the module's __init__)
# ----------------------------------------------------------------------------
def init_params(key, *, D, T, W, Cm, inner_depth, head_depth):
    keys = iter(jax.random.split(key, 256))

    def nrm(shape, std=0.02, dtype=F32):
        return (std * jax.random.normal(next(keys), shape, F32)).astype(dtype)

    def zeros(shape, dtype=F32):
        return jnp.zeros(shape, dtype)

    params = {
        "cond_w": nrm((D, W)), "cond_b": zeros((W,)),
        "inproj_w": nrm((1, W)), "inproj_b": zeros((W,)),
        "start_token": nrm((1, 1, W)),
        "pos_embedding": nrm((1, T, W)),
        "blocks": [],
    }
    for _ in range(inner_depth):
        params["blocks"].append({
            "ada_w": nrm((D, 6 * W), dtype=BF16),
            "ada_b": zeros((1, 6 * W)),
            "qkv_w": nrm((W, 3 * W), dtype=BF16),
            # q_bias / zero_k_bias / v_bias are all zero at init
            "qkv_b": zeros((1, 3 * W)),
            "proj_w": (nrm((W, W)) / math.sqrt(2 * inner_depth)).astype(BF16),
            "proj_b": zeros((1, W)),
            "fc1_w": nrm((W, 4 * W), dtype=BF16),
            "fc1_b": zeros((1, 4 * W)),
            "fc2_w": (nrm((4 * W, W)) / math.sqrt(2 * inner_depth)).astype(BF16),
            "fc2_b": zeros((1, W)),
        })
    params["net"] = {
        "in_w": nrm((1, Cm)), "in_b": zeros((1, Cm)),
        "t_w1": nrm((256, Cm), dtype=BF16), "t_b1": zeros((1, Cm)),
        "t_w2": nrm((Cm, Cm), dtype=BF16), "t_b2": zeros((1, Cm)),
        "c_w": nrm((W, Cm), dtype=BF16), "c_b": zeros((1, Cm)),
        # depth-stacked ResBlock weights
        "ada_w": nrm((head_depth, Cm, 3 * Cm), dtype=BF16),
        "ada_b": zeros((head_depth, 1, 3 * Cm)),
        "w1": nrm((head_depth, Cm, Cm), dtype=BF16),
        "b1": zeros((head_depth, 1, Cm)),
        "w2": nrm((head_depth, Cm, Cm), dtype=BF16),
        "b2": zeros((head_depth, 1, Cm)),
        # final layer
        "f_ada_w": nrm((Cm, 2 * Cm), dtype=BF16),
        "f_ada_b": zeros((1, 2 * Cm)),
        "f_w": nrm((Cm, 1), dtype=BF16), "f_b": zeros((1, 1)),
    }
    return params


# ----------------------------------------------------------------------------
# demo
# ----------------------------------------------------------------------------
if __name__ == "__main__":
    # small shapes consistent with the module:
    #   token_embed_dim=16, decoder_embed_dim=64, inner_ar_width=128 (16 heads),
    #   inner_ar_depth=1, head_width=256, head_depth=6, batch=2
    D, T, W, Cm = 64, 16, 128, 256
    inner_depth, head_depth, num_heads = 1, 6, 16
    bsz = 2

    key = jax.random.PRNGKey(0)
    kp, kz, kt, kn = jax.random.split(key, 4)
    params = init_params(kp, D=D, T=T, W=W, Cm=Cm,
                         inner_depth=inner_depth, head_depth=head_depth)

    z = jax.random.normal(kz, (bsz, D), jnp.float32)
    target = jax.random.normal(kt, (bsz, T), jnp.float32)

    fwd = jax.jit(functools.partial(arhead_forward, num_heads=num_heads))
    rec_loss = fwd(params, z, target, kn)
    rec_loss = jax.block_until_ready(rec_loss)

    assert rec_loss.shape == (bsz,)
    assert bool(jnp.all(jnp.isfinite(rec_loss)))
    print("KERNEL_OK")
</pallas_src>

<mosaic_0001>
module attributes {stable_mosaic.version = 11 : i64} {
  func.func @_adaln_block_kernel(%arg0: i32, %arg1: memref<2x16x128xf32, #tpu.memory_space<vmem>>, %arg2: memref<2x1x64xf32, #tpu.memory_space<vmem>>, %arg3: memref<64x768xbf16, #tpu.memory_space<vmem>>, %arg4: memref<1x768xf32, #tpu.memory_space<vmem>>, %arg5: memref<128x384xbf16, #tpu.memory_space<vmem>>, %arg6: memref<1x384xf32, #tpu.memory_space<vmem>>, %arg7: memref<128x128xbf16, #tpu.memory_space<vmem>>, %arg8: memref<1x128xf32, #tpu.memory_space<vmem>>, %arg9: memref<128x512xbf16, #tpu.memory_space<vmem>>, %arg10: memref<1x512xf32, #tpu.memory_space<vmem>>, %arg11: memref<512x128xbf16, #tpu.memory_space<vmem>>, %arg12: memref<1x128xf32, #tpu.memory_space<vmem>>, %arg13: memref<2x16x128xf32, #tpu.memory_space<vmem>>) attributes {dimension_semantics = [#tpu.dimension_semantics<parallel>], iteration_bounds = array<i64: 1>, scalar_prefetch = 0 : i64, scratch_operands = 0 : i64, tpu.core_type = #tpu.core_type<tc>, window_params = [{transform_indices = @transform_0, window_bounds = array<i64: 2, 16, 128>}, {transform_indices = @transform_1, window_bounds = array<i64: 2, 1, 64>}, {pipeline_mode = #tpu.pipeline_mode<synchronous>, transform_indices = @transform_2, window_bounds = array<i64: 64, 768>}, {pipeline_mode = #tpu.pipeline_mode<synchronous>, transform_indices = @transform_3, window_bounds = array<i64: 1, 768>}, {pipeline_mode = #tpu.pipeline_mode<synchronous>, transform_indices = @transform_4, window_bounds = array<i64: 128, 384>}, {pipeline_mode = #tpu.pipeline_mode<synchronous>, transform_indices = @transform_5, window_bounds = array<i64: 1, 384>}, {pipeline_mode = #tpu.pipeline_mode<synchronous>, transform_indices = @transform_6, window_bounds = array<i64: 128, 128>}, {pipeline_mode = #tpu.pipeline_mode<synchronous>, transform_indices = @transform_7, window_bounds = array<i64: 1, 128>}, {pipeline_mode = #tpu.pipeline_mode<synchronous>, transform_indices = @transform_8, window_bounds = array<i64: 128, 512>}, {pipeline_mode = #tpu.pipeline_mode<synchronous>, transform_indices = @transform_9, window_bounds = array<i64: 1, 512>}, {pipeline_mode = #tpu.pipeline_mode<synchronous>, transform_indices = @transform_10, window_bounds = array<i64: 512, 128>}, {pipeline_mode = #tpu.pipeline_mode<synchronous>, transform_indices = @transform_11, window_bounds = array<i64: 1, 128>}, {transform_indices = @transform_12, window_bounds = array<i64: 2, 16, 128>}]} {
    %c0 = arith.constant 0 : index
    %c0_0 = arith.constant 0 : index
    %c0_1 = arith.constant 0 : index
    %0 = vector.load %arg1[%c0, %c0_0, %c0_1] : memref<2x16x128xf32, #tpu.memory_space<vmem>>, vector<2x16x128xf32>
    %c0_2 = arith.constant 0 : index
    %c0_3 = arith.constant 0 : index
    %c0_4 = arith.constant 0 : index
    %1 = vector.load %arg2[%c0_2, %c0_3, %c0_4] : memref<2x1x64xf32, #tpu.memory_space<vmem>>, vector<2x1x64xf32>
    %2 = vector.shape_cast %1 : vector<2x1x64xf32> to vector<2x64xf32>
    %3 = arith.negf %2 : vector<2x64xf32>
    %4 = math.exp %3 : vector<2x64xf32>
    %cst = arith.constant 1.000000e+00 : f32
    %5 = vector.broadcast %cst : f32 to vector<2x64xf32>
    %6 = arith.addf %5, %4 : vector<2x64xf32>
    %7 = arith.divf %5, %6 : vector<2x64xf32>
    %8 = arith.mulf %2, %7 : vector<2x64xf32>
    %c0_5 = arith.constant 0 : index
    %c0_6 = arith.constant 0 : index
    %9 = vector.load %arg3[%c0_5, %c0_6] : memref<64x768xbf16, #tpu.memory_space<vmem>>, vector<64x768xbf16>
    %10 = arith.truncf %8 : vector<2x64xf32> to vector<2x64xbf16>
    %cst_7 = arith.constant dense<0.000000e+00> : vector<2x768xf32>
    %11 = tpu.matmul %10, %9, %cst_7 {dimension_numbers = #tpu.dot_dimension_numbers<[1], [0], [0], [1], [0, 0, 1, 1], [], []>} : vector<2x64xbf16>, vector<64x768xbf16>, vector<2x768xf32> -> vector<2x768xf32>
    %c0_8 = arith.constant 0 : index
    %c0_9 = arith.constant 0 : index
    %12 = vector.load %arg4[%c0_8, %c0_9] : memref<1x768xf32, #tpu.memory_space<vmem>>, vector<1x768xf32>
    %13 = vector.broadcast %12 : vector<1x768xf32> to vector<2x768xf32>
    %14 = arith.addf %11, %13 : vector<2x768xf32>
    %15 = vector.extract_strided_slice %14 {offsets = [0, 0], sizes = [2, 128], strides = [1, 1]} : vector<2x768xf32> to vector<2x128xf32>
    %16 = vector.shape_cast %15 : vector<2x128xf32> to vector<2x1x128xf32>
    %17 = vector.extract_strided_slice %14 {offsets = [0, 128], sizes = [2, 128], strides = [1, 1]} : vector<2x768xf32> to vector<2x128xf32>
    %18 = vector.shape_cast %17 : vector<2x128xf32> to vector<2x1x128xf32>
    %19 = vector.extract_strided_slice %14 {offsets = [0, 256], sizes = [2, 128], strides = [1, 1]} : vector<2x768xf32> to vector<2x128xf32>
    %20 = vector.shape_cast %19 : vector<2x128xf32> to vector<2x1x128xf32>
    %21 = vector.extract_strided_slice %14 {offsets = [0, 384], sizes = [2, 128], strides = [1, 1]} : vector<2x768xf32> to vector<2x128xf32>
    %22 = vector.shape_cast %21 : vector<2x128xf32> to vector<2x1x128xf32>
    %23 = vector.extract_strided_slice %14 {offsets = [0, 512], sizes = [2, 128], strides = [1, 1]} : vector<2x768xf32> to vector<2x128xf32>
    %24 = vector.shape_cast %23 : vector<2x128xf32> to vector<2x1x128xf32>
    %25 = vector.extract_strided_slice %14 {offsets = [0, 640], sizes = [2, 128], strides = [1, 1]} : vector<2x768xf32> to vector<2x128xf32>
    %26 = vector.shape_cast %25 : vector<2x128xf32> to vector<2x1x128xf32>
    %cst_10 = arith.constant dense<0.000000e+00> : vector<2x16xf32>
    %27 = vector.multi_reduction <add>, %0, %cst_10 [2] : vector<2x16x128xf32> to vector<2x16xf32>
    %28 = vector.shape_cast %27 : vector<2x16xf32> to vector<2x16x1xf32>
    %cst_11 = arith.constant 1.280000e+02 : f32
    %29 = vector.broadcast %cst_11 : f32 to vector<2x16x1xf32>
    %30 = arith.divf %28, %29 : vector<2x16x1xf32>
    %31 = vector.broadcast %30 : vector<2x16x1xf32> to vector<2x16x128xf32>
    %32 = arith.subf %0, %31 : vector<2x16x128xf32>
    %33 = arith.mulf %32, %32 : vector<2x16x128xf32>
    %cst_12 = arith.constant dense<0.000000e+00> : vector<2x16xf32>
    %34 = vector.multi_reduction <add>, %33, %cst_12 [2] : vector<2x16x128xf32> to vector<2x16xf32>
    %35 = vector.shape_cast %34 : vector<2x16xf32> to vector<2x16x1xf32>
    %cst_13 = arith.constant 1.280000e+02 : f32
    %36 = vector.broadcast %cst_13 : f32 to vector<2x16x1xf32>
    %37 = arith.divf %35, %36 : vector<2x16x1xf32>
    %38 = vector.broadcast %30 : vector<2x16x1xf32> to vector<2x16x128xf32>
    %39 = arith.subf %0, %38 : vector<2x16x128xf32>
    %cst_14 = arith.constant 9.99999997E-7 : f32
    %40 = vector.broadcast %cst_14 : f32 to vector<2x16x1xf32>
    %41 = arith.addf %37, %40 : vector<2x16x1xf32>
    %42 = math.rsqrt %41 : vector<2x16x1xf32>
    %43 = vector.broadcast %42 : vector<2x16x1xf32> to vector<2x16x128xf32>
    %44 = arith.mulf %39, %43 : vector<2x16x128xf32>
    %cst_15 = arith.constant 1.000000e+00 : f32
    %45 = vector.broadcast %cst_15 : f32 to vector<2x1x128xf32>
    %46 = arith.addf %45, %20 : vector<2x1x128xf32>
    %47 = vector.broadcast %46 : vector<2x1x128xf32> to vector<2x16x128xf32>
    %48 = arith.mulf %44, %47 : vector<2x16x128xf32>
    %49 = vector.broadcast %24 : vector<2x1x128xf32> to vector<2x16x128xf32>
    %50 = arith.addf %48, %49 : vector<2x16x128xf32>
    %51 = vector.shape_cast %50 : vector<2x16x128xf32> to vector<32x128xf32>
    %c0_16 = arith.constant 0 : index
    %c0_17 = arith.constant 0 : index
    %52 = vector.load %arg5[%c0_16, %c0_17] : memref<128x384xbf16, #tpu.memory_space<vmem>>, vector<128x384xbf16>
    %53 = arith.truncf %51 : vector<32x128xf32> to vector<32x128xbf16>
    %cst_18 = arith.constant dense<0.000000e+00> : vector<32x384xf32>
    %54 = tpu.matmul %53, %52, %cst_18 {dimension_numbers = #tpu.dot_dimension_numbers<[1], [0], [0], [1], [0, 0, 1, 1], [], []>} : vector<32x128xbf16>, vector<128x384xbf16>, vector<32x384xf32> -> vector<32x384xf32>
    %c0_19 = arith.constant 0 : index
    %c0_20 = arith.constant 0 : index
    %55 = vector.load %arg6[%c0_19, %c0_20] : memref<1x384xf32, #tpu.memory_space<vmem>>, vector<1x384xf32>
    %56 = vector.broadcast %55 : vector<1x384xf32> to vector<32x384xf32>
    %57 = arith.addf %54, %56 : vector<32x384xf32>
    %58 = vector.extract_strided_slice %57 {offsets = [0, 0], sizes = [32, 128], strides = [1, 1]} : vector<32x384xf32> to vector<32x128xf32>
    %59 = vector.shape_cast %58 : vector<32x128xf32> to vector<2x16x128xf32>
    %60 = vector.extract_strided_slice %57 {offsets = [0, 128], sizes = [32, 128], strides = [1, 1]} : vector<32x384xf32> to vector<32x128xf32>
    %61 = vector.shape_cast %60 : vector<32x128xf32> to vector<2x16x128xf32>
    %62 = vector.extract_strided_slice %57 {offsets = [0, 256], sizes = [32, 128], strides = [1, 1]} : vector<32x384xf32> to vector<32x128xf32>
    %63 = vector.shape_cast %62 : vector<32x128xf32> to vector<2x16x128xf32>
    %64 = tpu.iota {dimensions = array<i32: 0>} : vector<16x1xi32>
    %65 = tpu.iota {dimensions = array<i32: 1>} : vector<1x128xi32>
    %c8_i32 = arith.constant 8 : i32
    %66 = vector.broadcast %c8_i32 : i32 to vector<16x1xi32>
    %67 = arith.muli %64, %66 : vector<16x1xi32>
    %68 = vector.broadcast %65 : vector<1x128xi32> to vector<16x128xi32>
    %69 = vector.broadcast %67 : vector<16x1xi32> to vector<16x128xi32>
    %70 = arith.cmpi sge, %68, %69 : vector<16x128xi32>
    %c1_i32 = arith.constant 1 : i32
    %71 = vector.broadcast %c1_i32 : i32 to vector<16x1xi32>
    %72 = arith.addi %64, %71 : vector<16x1xi32>
    %c8_i32_21 = arith.constant 8 : i32
    %73 = vector.broadcast %c8_i32_21 : i32 to vector<16x1xi32>
    %74 = arith.muli %72, %73 : vector<16x1xi32>
    %75 = vector.broadcast %65 : vector<1x128xi32> to vector<16x128xi32>
    %76 = vector.broadcast %74 : vector<16x1xi32> to vector<16x128xi32>
    %77 = arith.cmpi slt, %75, %76 : vector<16x128xi32>
    %78 = arith.andi %70, %77 : vector<16x128xi1>
    %79 = vector.shape_cast %78 : vector<16x128xi1> to vector<16x1x128xi1>
    %80 = vector.shape_cast %79 : vector<16x1x128xi1> to vector<16x1x128xi1>
    %81 = vector.broadcast %80 : vector<16x1x128xi1> to vector<16x16x128xi1>
    %82 = vector.shape_cast %81 : vector<16x16x128xi1> to vector<256x128xi1>
    %83 = vector.shape_cast %59 : vector<2x16x128xf32> to vector<2x1x16x128xf32>
    %84 = vector.shape_cast %83 : vector<2x1x16x128xf32> to vector<2x1x16x128xf32>
    %85 = vector.broadcast %84 : vector<2x1x16x128xf32> to vector<2x16x16x128xf32>
    %86 = vector.shape_cast %85 : vector<2x16x16x128xf32> to vector<2x256x128xf32>
    %87 = vector.shape_cast %82 : vector<256x128xi1> to vector<1x256x128xi1>
    %cst_22 = arith.constant 0.353553385 : f32
    %88 = vector.broadcast %cst_22 : f32 to vector<2x256x128xf32>
    %89 = arith.mulf %86, %88 : vector<2x256x128xf32>
    %cst_23 = arith.constant 0.000000e+00 : f32
    %90 = vector.shape_cast %87 : vector<1x256x128xi1> to vector<1x256x128xi1>
    %91 = vector.broadcast %90 : vector<1x256x128xi1> to vector<2x256x128xi1>
    %92 = vector.broadcast %cst_23 : f32 to vector<2x256x128xf32>
    %93 = arith.select %91, %89, %92 : vector<2x256x128xi1>, vector<2x256x128xf32>
    %94 = arith.truncf %93 : vector<2x256x128xf32> to vector<2x256x128xbf16>
    %95 = arith.truncf %61 : vector<2x16x128xf32> to vector<2x16x128xbf16>
    "tpu.trace_start"() <{level = 10 : i32, message = "brw,bjw->brj"}> : () -> ()
    %cst_24 = arith.constant dense<0.000000e+00> : vector<2x256x16xf32>
    %96 = tpu.matmul %94, %95, %cst_24 {dimension_numbers = #tpu.dot_dimension_numbers<[2], [2], [1], [1], [0, 0, 0, 1, 1, 1], [0], [0]>} : vector<2x256x128xbf16>, vector<2x16x128xbf16>, vector<2x256x16xf32> -> vector<2x256x16xf32>
    "tpu.trace_stop"() : () -> ()
    %97 = tpu.iota {dimensions = array<i32: 0>} : vector<16x16xi32>
    %98 = tpu.iota {dimensions = array<i32: 1>} : vector<16x16xi32>
    %99 = arith.cmpi sle, %98, %97 : vector<16x16xi32>
    %100 = vector.shape_cast %99 : vector<16x16xi1> to vector<1x16x16xi1>
    %101 = vector.shape_cast %100 : vector<1x16x16xi1> to vector<1x16x16xi1>
    %102 = vector.broadcast %101 : vector<1x16x16xi1> to vector<16x16x16xi1>
    %103 = vector.shape_cast %102 : vector<16x16x16xi1> to vector<256x16xi1>
    %104 = vector.shape_cast %103 : vector<256x16xi1> to vector<1x256x16xi1>
    %cst_25 = arith.constant -1.000000e+30 : f32
    %105 = vector.shape_cast %104 : vector<1x256x16xi1> to vector<1x256x16xi1>
    %106 = vector.broadcast %105 : vector<1x256x16xi1> to vector<2x256x16xi1>
    %107 = vector.broadcast %cst_25 : f32 to vector<2x256x16xf32>
    %108 = arith.select %106, %96, %107 : vector<2x256x16xi1>, vector<2x256x16xf32>
    %cst_26 = arith.constant dense<0xFF800000> : vector<2x256xf32>
    %109 = vector.multi_reduction <maximumf>, %108, %cst_26 [2] : vector<2x256x16xf32> to vector<2x256xf32>
    %110 = vector.shape_cast %109 : vector<2x256xf32> to vector<2x256x1xf32>
    %111 = vector.broadcast %110 : vector<2x256x1xf32> to vector<2x256x16xf32>
    %112 = arith.subf %108, %111 : vector<2x256x16xf32>
    %113 = math.exp %112 : vector<2x256x16xf32>
    %cst_27 = arith.constant dense<0.000000e+00> : vector<2x256xf32>
    %114 = vector.multi_reduction <add>, %113, %cst_27 [2] : vector<2x256x16xf32> to vector<2x256xf32>
    %115 = vector.shape_cast %114 : vector<2x256xf32> to vector<2x256x1xf32>
    %116 = tpu.reciprocal %115 {approx = true} : vector<2x256x1xf32> -> vector<2x256x1xf32>
    %117 = vector.broadcast %116 : vector<2x256x1xf32> to vector<2x256x16xf32>
    %118 = arith.mulf %113, %117 : vector<2x256x16xf32>
    %119 = arith.truncf %118 : vector<2x256x16xf32> to vector<2x256x16xbf16>
    %120 = arith.truncf %63 : vector<2x16x128xf32> to vector<2x16x128xbf16>
    "tpu.trace_start"() <{level = 10 : i32, message = "brj,bjw->brw"}> : () -> ()
    %cst_28 = arith.constant dense<0.000000e+00> : vector<2x256x128xf32>
    %121 = tpu.matmul %119, %120, %cst_28 {dimension_numbers = #tpu.dot_dimension_numbers<[2], [1], [1], [2], [0, 0, 0, 1, 1, 2], [0], [0]>} : vector<2x256x16xbf16>, vector<2x16x128xbf16>, vector<2x256x128xf32> -> vector<2x256x128xf32>
    "tpu.trace_stop"() : () -> ()
    %122 = vector.shape_cast %82 : vector<256x128xi1> to vector<1x256x128xi1>
    %cst_29 = arith.constant 0.000000e+00 : f32
    %123 = vector.shape_cast %122 : vector<1x256x128xi1> to vector<1x256x128xi1>
    %124 = vector.broadcast %123 : vector<1x256x128xi1> to vector<2x256x128xi1>
    %125 = vector.broadcast %cst_29 : f32 to vector<2x256x128xf32>
    %126 = arith.select %124, %121, %125 : vector<2x256x128xi1>, vector<2x256x128xf32>
    %127 = vector.extract_strided_slice %126 {offsets = [0, 0, 0], sizes = [2, 16, 128], strides = [1, 1, 1]} : vector<2x256x128xf32> to vector<2x16x128xf32>
    %128 = vector.extract_strided_slice %126 {offsets = [0, 16, 0], sizes = [2, 16, 128], strides = [1, 1, 1]} : vector<2x256x128xf32> to vector<2x16x128xf32>
    %129 = arith.addf %127, %128 : vector<2x16x128xf32>
    %130 = vector.extract_strided_slice %126 {offsets = [0, 32, 0], sizes = [2, 16, 128], strides = [1, 1, 1]} : vector<2x256x128xf32> to vector<2x16x128xf32>
    %131 = arith.addf %129, %130 : vector<2x16x128xf32>
    %132 = vector.extract_strided_slice %126 {offsets = [0, 48, 0], sizes = [2, 16, 128], strides = [1, 1, 1]} : vector<2x256x128xf32> to vector<2x16x128xf32>
    %133 = arith.addf %131, %132 : vector<2x16x128xf32>
    %134 = vector.extract_strided_slice %126 {offsets = [0, 64, 0], sizes = [2, 16, 128], strides = [1, 1, 1]} : vector<2x256x128xf32> to vector<2x16x128xf32>
    %135 = arith.addf %133, %134 : vector<2x16x128xf32>
    %136 = vector.extract_strided_slice %126 {offsets = [0, 80, 0], sizes = [2, 16, 128], strides = [1, 1, 1]} : vector<2x256x128xf32> to vector<2x16x128xf32>
    %137 = arith.addf %135, %136 : vector<2x16x128xf32>
    %138 = vector.extract_strided_slice %126 {offsets = [0, 96, 0], sizes = [2, 16, 128], strides = [1, 1, 1]} : vector<2x256x128xf32> to vector<2x16x128xf32>
    %139 = arith.addf %137, %138 : vector<2x16x128xf32>
    %140 = vector.extract_strided_slice %126 {offsets = [0, 112, 0], sizes = [2, 16, 128], strides = [1, 1, 1]} : vector<2x256x128xf32> to vector<2x16x128xf32>
    %141 = arith.addf %139, %140 : vector<2x16x128xf32>
    %142 = vector.extract_strided_slice %126 {offsets = [0, 128, 0], sizes = [2, 16, 128], strides = [1, 1, 1]} : vector<2x256x128xf32> to vector<2x16x128xf32>
    %143 = arith.addf %141, %142 : vector<2x16x128xf32>
    %144 = vector.extract_strided_slice %126 {offsets = [0, 144, 0], sizes = [2, 16, 128], strides = [1, 1, 1]} : vector<2x256x128xf32> to vector<2x16x128xf32>
    %145 = arith.addf %143, %144 : vector<2x16x128xf32>
    %146 = vector.extract_strided_slice %126 {offsets = [0, 160, 0], sizes = [2, 16, 128], strides = [1, 1, 1]} : vector<2x256x128xf32> to vector<2x16x128xf32>
    %147 = arith.addf %145, %146 : vector<2x16x128xf32>
    %148 = vector.extract_strided_slice %126 {offsets = [0, 176, 0], sizes = [2, 16, 128], strides = [1, 1, 1]} : vector<2x256x128xf32> to vector<2x16x128xf32>
    %149 = arith.addf %147, %148 : vector<2x16x128xf32>
    %150 = vector.extract_strided_slice %126 {offsets = [0, 192, 0], sizes = [2, 16, 128], strides = [1, 1, 1]} : vector<2x256x128xf32> to vector<2x16x128xf32>
    %151 = arith.addf %149, %150 : vector<2x16x128xf32>
    %152 = vector.extract_strided_slice %126 {offsets = [0, 208, 0], sizes = [2, 16, 128], strides = [1, 1, 1]} : vector<2x256x128xf32> to vector<2x16x128xf32>
    %153 = arith.addf %151, %152 : vector<2x16x128xf32>
    %154 = vector.extract_strided_slice %126 {offsets = [0, 224, 0], sizes = [2, 16, 128], strides = [1, 1, 1]} : vector<2x256x128xf32> to vector<2x16x128xf32>
    %155 = arith.addf %153, %154 : vector<2x16x128xf32>
    %156 = vector.extract_strided_slice %126 {offsets = [0, 240, 0], sizes = [2, 16, 128], strides = [1, 1, 1]} : vector<2x256x128xf32> to vector<2x16x128xf32>
    %157 = arith.addf %155, %156 : vector<2x16x128xf32>
    %158 = vector.shape_cast %157 : vector<2x16x128xf32> to vector<32x128xf32>
    %c0_30 = arith.constant 0 : index
    %c0_31 = arith.constant 0 : index
    %159 = vector.load %arg7[%c0_30, %c0_31] : memref<128x128xbf16, #tpu.memory_space<vmem>>, vector<128x128xbf16>
    %160 = arith.truncf %158 : vector<32x128xf32> to vector<32x128xbf16>
    %cst_32 = arith.constant dense<0.000000e+00> : vector<32x128xf32>
    %161 = tpu.matmul %160, %159, %cst_32 {dimension_numbers = #tpu.dot_dimension_numbers<[1], [0], [0], [1], [0, 0, 1, 1], [], []>} : vector<32x128xbf16>, vector<128x128xbf16>, vector<32x128xf32> -> vector<32x128xf32>
    %c0_33 = arith.constant 0 : index
    %c0_34 = arith.constant 0 : index
    %162 = vector.load %arg8[%c0_33, %c0_34] : memref<1x128xf32, #tpu.memory_space<vmem>>, vector<1x128xf32>
    %163 = vector.broadcast %162 : vector<1x128xf32> to vector<32x128xf32>
    %164 = arith.addf %161, %163 : vector<32x128xf32>
    %165 = vector.shape_cast %164 : vector<32x128xf32> to vector<2x16x128xf32>
    %166 = vector.broadcast %16 : vector<2x1x128xf32> to vector<2x16x128xf32>
    %167 = arith.mulf %166, %165 : vector<2x16x128xf32>
    %168 = arith.addf %0, %167 : vector<2x16x128xf32>
    %cst_35 = arith.constant dense<0.000000e+00> : vector<2x16xf32>
    %169 = vector.multi_reduction <add>, %168, %cst_35 [2] : vector<2x16x128xf32> to vector<2x16xf32>
    %170 = vector.shape_cast %169 : vector<2x16xf32> to vector<2x16x1xf32>
    %cst_36 = arith.constant 1.280000e+02 : f32
    %171 = vector.broadcast %cst_36 : f32 to vector<2x16x1xf32>
    %172 = arith.divf %170, %171 : vector<2x16x1xf32>
    %173 = vector.broadcast %172 : vector<2x16x1xf32> to vector<2x16x128xf32>
    %174 = arith.subf %168, %173 : vector<2x16x128xf32>
    %175 = arith.mulf %174, %174 : vector<2x16x128xf32>
    %cst_37 = arith.constant dense<0.000000e+00> : vector<2x16xf32>
    %176 = vector.multi_reduction <add>, %175, %cst_37 [2] : vector<2x16x128xf32> to vector<2x16xf32>
    %177 = vector.shape_cast %176 : vector<2x16xf32> to vector<2x16x1xf32>
    %cst_38 = arith.constant 1.280000e+02 : f32
    %178 = vector.broadcast %cst_38 : f32 to vector<2x16x1xf32>
    %179 = arith.divf %177, %178 : vector<2x16x1xf32>
    %180 = vector.broadcast %172 : vector<2x16x1xf32> to vector<2x16x128xf32>
    %181 = arith.subf %168, %180 : vector<2x16x128xf32>
    %cst_39 = arith.constant 9.99999997E-7 : f32
    %182 = vector.broadcast %cst_39 : f32 to vector<2x16x1xf32>
    %183 = arith.addf %179, %182 : vector<2x16x1xf32>
    %184 = math.rsqrt %183 : vector<2x16x1xf32>
    %185 = vector.broadcast %184 : vector<2x16x1xf32> to vector<2x16x128xf32>
    %186 = arith.mulf %181, %185 : vector<2x16x128xf32>
    %cst_40 = arith.constant 1.000000e+00 : f32
    %187 = vector.broadcast %cst_40 : f32 to vector<2x1x128xf32>
    %188 = arith.addf %187, %22 : vector<2x1x128xf32>
    %189 = vector.broadcast %188 : vector<2x1x128xf32> to vector<2x16x128xf32>
    %190 = arith.mulf %186, %189 : vector<2x16x128xf32>
    %191 = vector.broadcast %26 : vector<2x1x128xf32> to vector<2x16x128xf32>
    %192 = arith.addf %190, %191 : vector<2x16x128xf32>
    %193 = vector.shape_cast %192 : vector<2x16x128xf32> to vector<32x128xf32>
    %c0_41 = arith.constant 0 : index
    %c0_42 = arith.constant 0 : index
    %194 = vector.load %arg9[%c0_41, %c0_42] : memref<128x512xbf16, #tpu.memory_space<vmem>>, vector<128x512xbf16>
    %195 = arith.truncf %193 : vector<32x128xf32> to vector<32x128xbf16>
    %cst_43 = arith.constant dense<0.000000e+00> : vector<32x512xf32>
    %196 = tpu.matmul %195, %194, %cst_43 {dimension_numbers = #tpu.dot_dimension_numbers<[1], [0], [0], [1], [0, 0, 1, 1], [], []>} : vector<32x128xbf16>, vector<128x512xbf16>, vector<32x512xf32> -> vector<32x512xf32>
    %c0_44 = arith.constant 0 : index
    %c0_45 = arith.constant 0 : index
    %197 = vector.load %arg10[%c0_44, %c0_45] : memref<1x512xf32, #tpu.memory_space<vmem>>, vector<1x512xf32>
    %198 = vector.broadcast %197 : vector<1x512xf32> to vector<32x512xf32>
    %199 = arith.addf %196, %198 : vector<32x512xf32>
    %200 = arith.mulf %199, %199 : vector<32x512xf32>
    %201 = arith.mulf %199, %200 : vector<32x512xf32>
    %cst_46 = arith.constant 4.471500e-02 : f32
    %202 = vector.broadcast %cst_46 : f32 to vector<32x512xf32>
    %203 = arith.mulf %202, %201 : vector<32x512xf32>
    %204 = arith.addf %199, %203 : vector<32x512xf32>
    %cst_47 = arith.constant 0.797884583 : f32
    %205 = vector.broadcast %cst_47 : f32 to vector<32x512xf32>
    %206 = arith.mulf %205, %204 : vector<32x512xf32>
    %207 = math.tanh %206 : vector<32x512xf32>
    %cst_48 = arith.constant 1.000000e+00 : f32
    %208 = vector.broadcast %cst_48 : f32 to vector<32x512xf32>
    %209 = arith.addf %208, %207 : vector<32x512xf32>
    %cst_49 = arith.constant 5.000000e-01 : f32
    %210 = vector.broadcast %cst_49 : f32 to vector<32x512xf32>
    %211 = arith.mulf %210, %209 : vector<32x512xf32>
    %212 = arith.mulf %199, %211 : vector<32x512xf32>
    %c0_50 = arith.constant 0 : index
    %c0_51 = arith.constant 0 : index
    %213 = vector.load %arg11[%c0_50, %c0_51] : memref<512x128xbf16, #tpu.memory_space<vmem>>, vector<512x128xbf16>
    %214 = arith.truncf %212 : vector<32x512xf32> to vector<32x512xbf16>
    %cst_52 = arith.constant dense<0.000000e+00> : vector<32x128xf32>
    %215 = tpu.matmul %214, %213, %cst_52 {dimension_numbers = #tpu.dot_dimension_numbers<[1], [0], [0], [1], [0, 0, 1, 1], [], []>} : vector<32x512xbf16>, vector<512x128xbf16>, vector<32x128xf32> -> vector<32x128xf32>
    %c0_53 = arith.constant 0 : index
    %c0_54 = arith.constant 0 : index
    %216 = vector.load %arg12[%c0_53, %c0_54] : memref<1x128xf32, #tpu.memory_space<vmem>>, vector<1x128xf32>
    %217 = vector.broadcast %216 : vector<1x128xf32> to vector<32x128xf32>
    %218 = arith.addf %215, %217 : vector<32x128xf32>
    %219 = vector.shape_cast %218 : vector<32x128xf32> to vector<2x16x128xf32>
    %220 = vector.broadcast %18 : vector<2x1x128xf32> to vector<2x16x128xf32>
    %221 = arith.mulf %220, %219 : vector<2x16x128xf32>
    %222 = arith.addf %168, %221 : vector<2x16x128xf32>
    %c0_55 = arith.constant 0 : index
    %c0_56 = arith.constant 0 : index
    %c0_57 = arith.constant 0 : index
    %223 = vector.load %arg13[%c0_55, %c0_56, %c0_57] : memref<2x16x128xf32, #tpu.memory_space<vmem>>, vector<2x16x128xf32>
    tpu.vector_store %arg13[%c0_55, %c0_56, %c0_57], %222 {strides = array<i32>} : memref<2x16x128xf32, #tpu.memory_space<vmem>>, vector<2x16x128xf32>,
    return
  }
  func.func @transform_0(%arg0: i32) -> (i32, i32, i32) {
    %c0_i32 = arith.constant 0 : i32
    %c0_i32_0 = arith.constant 0 : i32
    %c0_i32_1 = arith.constant 0 : i32
    return %arg0, %c0_i32, %c0_i32_0 : i32, i32, i32
  }
  func.func @transform_1(%arg0: i32) -> (i32, i32, i32) {
    %c0_i32 = arith.constant 0 : i32
    %c0_i32_0 = arith.constant 0 : i32
    %c0_i32_1 = arith.constant 0 : i32
    return %arg0, %c0_i32, %c0_i32_0 : i32, i32, i32
  }
  func.func @transform_2(%arg0: i32) -> (i32, i32) {
    %c0_i32 = arith.constant 0 : i32
    %c0_i32_0 = arith.constant 0 : i32
    %c0_i32_1 = arith.constant 0 : i32
    return %c0_i32, %c0_i32_0 : i32, i32
  }
  func.func @transform_3(%arg0: i32) -> (i32, i32) {
    %c0_i32 = arith.constant 0 : i32
    %c0_i32_0 = arith.constant 0 : i32
    %c0_i32_1 = arith.constant 0 : i32
    return %c0_i32, %c0_i32_0 : i32, i32
  }
  func.func @transform_4(%arg0: i32) -> (i32, i32) {
    %c0_i32 = arith.constant 0 : i32
    %c0_i32_0 = arith.constant 0 : i32
    %c0_i32_1 = arith.constant 0 : i32
    return %c0_i32, %c0_i32_0 : i32, i32
  }
  func.func @transform_5(%arg0: i32) -> (i32, i32) {
    %c0_i32 = arith.constant 0 : i32
    %c0_i32_0 = arith.constant 0 : i32
    %c0_i32_1 = arith.constant 0 : i32
    return %c0_i32, %c0_i32_0 : i32, i32
  }
  func.func @transform_6(%arg0: i32) -> (i32, i32) {
    %c0_i32 = arith.constant 0 : i32
    %c0_i32_0 = arith.constant 0 : i32
    %c0_i32_1 = arith.constant 0 : i32
    return %c0_i32, %c0_i32_0 : i32, i32
  }
  func.func @transform_7(%arg0: i32) -> (i32, i32) {
    %c0_i32 = arith.constant 0 : i32
    %c0_i32_0 = arith.constant 0 : i32
    %c0_i32_1 = arith.constant 0 : i32
    return %c0_i32, %c0_i32_0 : i32, i32
  }
  func.func @transform_8(%arg0: i32) -> (i32, i32) {
    %c0_i32 = arith.constant 0 : i32
    %c0_i32_0 = arith.constant 0 : i32
    %c0_i32_1 = arith.constant 0 : i32
    return %c0_i32, %c0_i32_0 : i32, i32
  }
  func.func @transform_9(%arg0: i32) -> (i32, i32) {
    %c0_i32 = arith.constant 0 : i32
    %c0_i32_0 = arith.constant 0 : i32
    %c0_i32_1 = arith.constant 0 : i32
    return %c0_i32, %c0_i32_0 : i32, i32
  }
  func.func @transform_10(%arg0: i32) -> (i32, i32) {
    %c0_i32 = arith.constant 0 : i32
    %c0_i32_0 = arith.constant 0 : i32
    %c0_i32_1 = arith.constant 0 : i32
    return %c0_i32, %c0_i32_0 : i32, i32
  }
  func.func @transform_11(%arg0: i32) -> (i32, i32) {
    %c0_i32 = arith.constant 0 : i32
    %c0_i32_0 = arith.constant 0 : i32
    %c0_i32_1 = arith.constant 0 : i32
    return %c0_i32, %c0_i32_0 : i32, i32
  }
  func.func @transform_12(%arg0: i32) -> (i32, i32, i32) {
    %c0_i32 = arith.constant 0 : i32
    %c0_i32_0 = arith.constant 0 : i32
    %c0_i32_1 = arith.constant 0 : i32
    return %arg0, %c0_i32, %c0_i32_0 : i32, i32, i32
  }
}

module attributes {stable_mosaic.version = 11 : i64} {
  func.func @_flow_head_kernel(%arg0: i32, %arg1: memref<32x1xf32, #tpu.memory_space<vmem>>, %arg2: memref<32x256xf32, #tpu.memory_space<vmem>>, %arg3: memref<32x128xf32, #tpu.memory_space<vmem>>, %arg4: memref<32x1xf32, #tpu.memory_space<vmem>>, %arg5: memref<1x256xf32, #tpu.memory_space<vmem>>, %arg6: memref<1x256xf32, #tpu.memory_space<vmem>>, %arg7: memref<256x256xbf16, #tpu.memory_space<vmem>>, %arg8: memref<1x256xf32, #tpu.memory_space<vmem>>, %arg9: memref<256x256xbf16, #tpu.memory_space<vmem>>, %arg10: memref<1x256xf32, #tpu.memory_space<vmem>>, %arg11: memref<128x256xbf16, #tpu.memory_space<vmem>>, %arg12: memref<1x256xf32, #tpu.memory_space<vmem>>, %arg13: memref<6x256x768xbf16, #tpu.memory_space<vmem>>, %arg14: memref<6x1x768xf32, #tpu.memory_space<vmem>>, %arg15: memref<6x256x256xbf16, #tpu.memory_space<vmem>>, %arg16: memref<6x1x256xf32, #tpu.memory_space<vmem>>, %arg17: memref<6x256x256xbf16, #tpu.memory_space<vmem>>, %arg18: memref<6x1x256xf32, #tpu.memory_space<vmem>>, %arg19: memref<256x512xbf16, #tpu.memory_space<vmem>>, %arg20: memref<1x512xf32, #tpu.memory_space<vmem>>, %arg21: memref<256x1xbf16, #tpu.memory_space<vmem>>, %arg22: memref<1x1xf32, #tpu.memory_space<vmem>>, %arg23: memref<2x1xf32, #tpu.memory_space<vmem>>, %arg24: memref<32x256xf32, #tpu.memory_space<vmem>>, %arg25: memref<32x256xf32, #tpu.memory_space<vmem>>) attributes {dimension_semantics = [#tpu.dimension_semantics<arbitrary>], iteration_bounds = array<i64: 6>, scalar_prefetch = 0 : i64, scratch_operands = 2 : i64, tpu.core_type = #tpu.core_type<tc>, window_params = [{pipeline_mode = #tpu.pipeline_mode<synchronous>, transform_indices = @transform_0, window_bounds = array<i64: 32, 1>}, {pipeline_mode = #tpu.pipeline_mode<synchronous>, transform_indices = @transform_1, window_bounds = array<i64: 32, 256>}, {pipeline_mode = #tpu.pipeline_mode<synchronous>, transform_indices = @transform_2, window_bounds = array<i64: 32, 128>}, {pipeline_mode = #tpu.pipeline_mode<synchronous>, transform_indices = @transform_3, window_bounds = array<i64: 32, 1>}, {pipeline_mode = #tpu.pipeline_mode<synchronous>, transform_indices = @transform_4, window_bounds = array<i64: 1, 256>}, {pipeline_mode = #tpu.pipeline_mode<synchronous>, transform_indices = @transform_5, window_bounds = array<i64: 1, 256>}, {pipeline_mode = #tpu.pipeline_mode<synchronous>, transform_indices = @transform_6, window_bounds = array<i64: 256, 256>}, {pipeline_mode = #tpu.pipeline_mode<synchronous>, transform_indices = @transform_7, window_bounds = array<i64: 1, 256>}, {pipeline_mode = #tpu.pipeline_mode<synchronous>, transform_indices = @transform_8, window_bounds = array<i64: 256, 256>}, {pipeline_mode = #tpu.pipeline_mode<synchronous>, transform_indices = @transform_9, window_bounds = array<i64: 1, 256>}, {pipeline_mode = #tpu.pipeline_mode<synchronous>, transform_indices = @transform_10, window_bounds = array<i64: 128, 256>}, {pipeline_mode = #tpu.pipeline_mode<synchronous>, transform_indices = @transform_11, window_bounds = array<i64: 1, 256>}, {pipeline_mode = #tpu.pipeline_mode<synchronous>, transform_indices = @transform_12, window_bounds = array<i64: 6, 256, 768>}, {pipeline_mode = #tpu.pipeline_mode<synchronous>, transform_indices = @transform_13, window_bounds = array<i64: 6, 1, 768>}, {pipeline_mode = #tpu.pipeline_mode<synchronous>, transform_indices = @transform_14, window_bounds = array<i64: 6, 256, 256>}, {pipeline_mode = #tpu.pipeline_mode<synchronous>, transform_indices = @transform_15, window_bounds = array<i64: 6, 1, 256>}, {pipeline_mode = #tpu.pipeline_mode<synchronous>, transform_indices = @transform_16, window_bounds = array<i64: 6, 256, 256>}, {pipeline_mode = #tpu.pipeline_mode<synchronous>, transform_indices = @transform_17, window_bounds = array<i64: 6, 1, 256>}, {pipeline_mode = #tpu.pipeline_mode<synchronous>, transform_indices = @transform_18, window_bounds = array<i64: 256, 512>}, {pipeline_mode = #tpu.pipeline_mode<synchronous>, transform_indices = @transform_19, window_bounds = array<i64: 1, 512>}, {pipeline_mode = #tpu.pipeline_mode<synchronous>, transform_indices = @transform_20, window_bounds = array<i64: 256, 1>}, {pipeline_mode = #tpu.pipeline_mode<synchronous>, transform_indices = @transform_21, window_bounds = array<i64: 1, 1>}, {pipeline_mode = #tpu.pipeline_mode<synchronous>, transform_indices = @transform_22, window_bounds = array<i64: 2, 1>}]} {
    %c0_i32 = arith.constant 0 : i32
    %0 = arith.cmpi eq, %arg0, %c0_i32 : i32
    %1 = arith.extui %0 : i1 to i32
    %c0_i32_0 = arith.constant 0 : i32
    %2 = arith.cmpi ne, %1, %c0_i32_0 : i32
    scf.if %2 {
      %c0_28 = arith.constant 0 : index
      %c0_29 = arith.constant 0 : index
      %72 = vector.load %arg1[%c0_28, %c0_29] : memref<32x1xf32, #tpu.memory_space<vmem>>, vector<32x1xf32>
      %c0_30 = arith.constant 0 : index
      %c0_31 = arith.constant 0 : index
      %73 = vector.load %arg5[%c0_30, %c0_31] : memref<1x256xf32, #tpu.memory_space<vmem>>, vector<1x256xf32>
      %74 = vector.broadcast %72 : vector<32x1xf32> to vector<32x256xf32>
      %75 = vector.broadcast %73 : vector<1x256xf32> to vector<32x256xf32>
      %76 = arith.mulf %74, %75 : vector<32x256xf32>
      %c0_32 = arith.constant 0 : index
      %c0_33 = arith.constant 0 : index
      %77 = vector.load %arg6[%c0_32, %c0_33] : memref<1x256xf32, #tpu.memory_space<vmem>>, vector<1x256xf32>
      %78 = vector.broadcast %77 : vector<1x256xf32> to vector<32x256xf32>
      %79 = arith.addf %76, %78 : vector<32x256xf32>
      %c0_34 = arith.constant 0 : index
      %c0_35 = arith.constant 0 : index
      %80 = vector.load %arg2[%c0_34, %c0_35] : memref<32x256xf32, #tpu.memory_space<vmem>>, vector<32x256xf32>
      %c0_36 = arith.constant 0 : index
      %c0_37 = arith.constant 0 : index
      %81 = vector.load %arg7[%c0_36, %c0_37] : memref<256x256xbf16, #tpu.memory_space<vmem>>, vector<256x256xbf16>
      %82 = arith.truncf %80 : vector<32x256xf32> to vector<32x256xbf16>
      %cst_38 = arith.constant dense<0.000000e+00> : vector<32x256xf32>
      %83 = tpu.matmul %82, %81, %cst_38 {dimension_numbers = #tpu.dot_dimension_numbers<[1], [0], [0], [1], [0, 0, 1, 1], [], []>} : vector<32x256xbf16>, vector<256x256xbf16>, vector<32x256xf32> -> vector<32x256xf32>
      %c0_39 = arith.constant 0 : index
      %c0_40 = arith.constant 0 : index
      %84 = vector.load %arg8[%c0_39, %c0_40] : memref<1x256xf32, #tpu.memory_space<vmem>>, vector<1x256xf32>
      %85 = vector.broadcast %84 : vector<1x256xf32> to vector<32x256xf32>
      %86 = arith.addf %83, %85 : vector<32x256xf32>
      %87 = arith.negf %86 : vector<32x256xf32>
      %88 = math.exp %87 : vector<32x256xf32>
      %cst_41 = arith.constant 1.000000e+00 : f32
      %89 = vector.broadcast %cst_41 : f32 to vector<32x256xf32>
      %90 = arith.addf %89, %88 : vector<32x256xf32>
      %91 = arith.divf %89, %90 : vector<32x256xf32>
      %92 = arith.mulf %86, %91 : vector<32x256xf32>
      %c0_42 = arith.constant 0 : index
      %c0_43 = arith.constant 0 : index
      %93 = vector.load %arg9[%c0_42, %c0_43] : memref<256x256xbf16, #tpu.memory_space<vmem>>, vector<256x256xbf16>
      %94 = arith.truncf %92 : vector<32x256xf32> to vector<32x256xbf16>
      %cst_44 = arith.constant dense<0.000000e+00> : vector<32x256xf32>
      %95 = tpu.matmul %94, %93, %cst_44 {dimension_numbers = #tpu.dot_dimension_numbers<[1], [0], [0], [1], [0, 0, 1, 1], [], []>} : vector<32x256xbf16>, vector<256x256xbf16>, vector<32x256xf32> -> vector<32x256xf32>
      %c0_45 = arith.constant 0 : index
      %c0_46 = arith.constant 0 : index
      %96 = vector.load %arg10[%c0_45, %c0_46] : memref<1x256xf32, #tpu.memory_space<vmem>>, vector<1x256xf32>
      %97 = vector.broadcast %96 : vector<1x256xf32> to vector<32x256xf32>
      %98 = arith.addf %95, %97 : vector<32x256xf32>
      %c0_47 = arith.constant 0 : index
      %c0_48 = arith.constant 0 : index
      %99 = vector.load %arg3[%c0_47, %c0_48] : memref<32x128xf32, #tpu.memory_space<vmem>>, vector<32x128xf32>
      %c0_49 = arith.constant 0 : index
      %c0_50 = arith.constant 0 : index
      %100 = vector.load %arg11[%c0_49, %c0_50] : memref<128x256xbf16, #tpu.memory_space<vmem>>, vector<128x256xbf16>
      %101 = arith.truncf %99 : vector<32x128xf32> to vector<32x128xbf16>
      %cst_51 = arith.constant dense<0.000000e+00> : vector<32x256xf32>
      %102 = tpu.matmul %101, %100, %cst_51 {dimension_numbers = #tpu.dot_dimension_numbers<[1], [0], [0], [1], [0, 0, 1, 1], [], []>} : vector<32x128xbf16>, vector<128x256xbf16>, vector<32x256xf32> -> vector<32x256xf32>
      %c0_52 = arith.constant 0 : index
      %c0_53 = arith.constant 0 : index
      %103 = vector.load %arg12[%c0_52, %c0_53] : memref<1x256xf32, #tpu.memory_space<vmem>>, vector<1x256xf32>
      %104 = vector.broadcast %103 : vector<1x256xf32> to vector<32x256xf32>
      %105 = arith.addf %102, %104 : vector<32x256xf32>
      %106 = arith.addf %98, %105 : vector<32x256xf32>
      %c0_54 = arith.constant 0 : index
      %c0_55 = arith.constant 0 : index
      %107 = vector.load %arg24[%c0_54, %c0_55] : memref<32x256xf32, #tpu.memory_space<vmem>>, vector<32x256xf32>
      tpu.vector_store %arg24[%c0_54, %c0_55], %79 {strides = array<i32>} : memref<32x256xf32, #tpu.memory_space<vmem>>, vector<32x256xf32>,
      %108 = arith.negf %106 : vector<32x256xf32>
      %109 = math.exp %108 : vector<32x256xf32>
      %cst_56 = arith.constant 1.000000e+00 : f32
      %110 = vector.broadcast %cst_56 : f32 to vector<32x256xf32>
      %111 = arith.addf %110, %109 : vector<32x256xf32>
      %112 = arith.divf %110, %111 : vector<32x256xf32>
      %113 = arith.mulf %106, %112 : vector<32x256xf32>
      %c0_57 = arith.constant 0 : index
      %c0_58 = arith.constant 0 : index
      %114 = vector.load %arg25[%c0_57, %c0_58] : memref<32x256xf32, #tpu.memory_space<vmem>>, vector<32x256xf32>
      tpu.vector_store %arg25[%c0_57, %c0_58], %113 {strides = array<i32>} : memref<32x256xf32, #tpu.memory_space<vmem>>, vector<32x256xf32>,
    } else {
    }
    %c0 = arith.constant 0 : index
    %c0_1 = arith.constant 0 : index
    %3 = vector.load %arg24[%c0, %c0_1] : memref<32x256xf32, #tpu.memory_space<vmem>>, vector<32x256xf32>
    %c0_2 = arith.constant 0 : index
    %c0_3 = arith.constant 0 : index
    %4 = vector.load %arg25[%c0_2, %c0_3] : memref<32x256xf32, #tpu.memory_space<vmem>>, vector<32x256xf32>
    %5 = arith.index_cast %arg0 : i32 to index
    %c0_4 = arith.constant 0 : index
    %c0_5 = arith.constant 0 : index
    %6 = vector.load %arg13[%5, %c0_4, %c0_5] : memref<6x256x768xbf16, #tpu.memory_space<vmem>>, vector<1x256x768xbf16>
    %7 = vector.shape_cast %6 : vector<1x256x768xbf16> to vector<256x768xbf16>
    %8 = arith.truncf %4 : vector<32x256xf32> to vector<32x256xbf16>
    %cst = arith.constant dense<0.000000e+00> : vector<32x768xf32>
    %9 = tpu.matmul %8, %7, %cst {dimension_numbers = #tpu.dot_dimension_numbers<[1], [0], [0], [1], [0, 0, 1, 1], [], []>} : vector<32x256xbf16>, vector<256x768xbf16>, vector<32x768xf32> -> vector<32x768xf32>
    %10 = arith.index_cast %arg0 : i32 to index
    %c0_6 = arith.constant 0 : index
    %c0_7 = arith.constant 0 : index
    %11 = vector.load %arg14[%10, %c0_6, %c0_7] : memref<6x1x768xf32, #tpu.memory_space<vmem>>, vector<1x1x768xf32>
    %12 = vector.shape_cast %11 : vector<1x1x768xf32> to vector<1x768xf32>
    %13 = vector.broadcast %12 : vector<1x768xf32> to vector<32x768xf32>
    %14 = arith.addf %9, %13 : vector<32x768xf32>
    %15 = vector.extract_strided_slice %14 {offsets = [0, 0], sizes = [32, 256], strides = [1, 1]} : vector<32x768xf32> to vector<32x256xf32>
    %16 = vector.extract_strided_slice %14 {offsets = [0, 256], sizes = [32, 256], strides = [1, 1]} : vector<32x768xf32> to vector<32x256xf32>
    %17 = vector.extract_strided_slice %14 {offsets = [0, 512], sizes = [32, 256], strides = [1, 1]} : vector<32x768xf32> to vector<32x256xf32>
    %cst_8 = arith.constant dense<0.000000e+00> : vector<32xf32>
    %18 = vector.multi_reduction <add>, %3, %cst_8 [1] : vector<32x256xf32> to vector<32xf32>
    %19 = vector.shape_cast %18 : vector<32xf32> to vector<32x1xf32>
    %cst_9 = arith.constant 2.560000e+02 : f32
    %20 = vector.broadcast %cst_9 : f32 to vector<32x1xf32>
    %21 = arith.divf %19, %20 : vector<32x1xf32>
    %22 = vector.broadcast %21 : vector<32x1xf32> to vector<32x256xf32>
    %23 = arith.subf %3, %22 : vector<32x256xf32>
    %24 = arith.mulf %23, %23 : vector<32x256xf32>
    %cst_10 = arith.constant dense<0.000000e+00> : vector<32xf32>
    %25 = vector.multi_reduction <add>, %24, %cst_10 [1] : vector<32x256xf32> to vector<32xf32>
    %26 = vector.shape_cast %25 : vector<32xf32> to vector<32x1xf32>
    %cst_11 = arith.constant 2.560000e+02 : f32
    %27 = vector.broadcast %cst_11 : f32 to vector<32x1xf32>
    %28 = arith.divf %26, %27 : vector<32x1xf32>
    %29 = vector.broadcast %21 : vector<32x1xf32> to vector<32x256xf32>
    %30 = arith.subf %3, %29 : vector<32x256xf32>
    %cst_12 = arith.constant 9.99999997E-7 : f32
    %31 = vector.broadcast %cst_12 : f32 to vector<32x1xf32>
    %32 = arith.addf %28, %31 : vector<32x1xf32>
    %33 = math.rsqrt %32 : vector<32x1xf32>
    %34 = vector.broadcast %33 : vector<32x1xf32> to vector<32x256xf32>
    %35 = arith.mulf %30, %34 : vector<32x256xf32>
    %cst_13 = arith.constant 1.000000e+00 : f32
    %36 = vector.broadcast %cst_13 : f32 to vector<32x256xf32>
    %37 = arith.addf %36, %16 : vector<32x256xf32>
    %38 = arith.mulf %35, %37 : vector<32x256xf32>
    %39 = arith.addf %38, %15 : vector<32x256xf32>
    %40 = arith.index_cast %arg0 : i32 to index
    %c0_14 = arith.constant 0 : index
    %c0_15 = arith.constant 0 : index
    %41 = vector.load %arg15[%40, %c0_14, %c0_15] : memref<6x256x256xbf16, #tpu.memory_space<vmem>>, vector<1x256x256xbf16>
    %42 = vector.shape_cast %41 : vector<1x256x256xbf16> to vector<256x256xbf16>
    %43 = arith.truncf %39 : vector<32x256xf32> to vector<32x256xbf16>
    %cst_16 = arith.constant dense<0.000000e+00> : vector<32x256xf32>
    %44 = tpu.matmul %43, %42, %cst_16 {dimension_numbers = #tpu.dot_dimension_numbers<[1], [0], [0], [1], [0, 0, 1, 1], [], []>} : vector<32x256xbf16>, vector<256x256xbf16>, vector<32x256xf32> -> vector<32x256xf32>
    %45 = arith.index_cast %arg0 : i32 to index
    %c0_17 = arith.constant 0 : index
    %c0_18 = arith.constant 0 : index
    %46 = vector.load %arg16[%45, %c0_17, %c0_18] : memref<6x1x256xf32, #tpu.memory_space<vmem>>, vector<1x1x256xf32>
    %47 = vector.shape_cast %46 : vector<1x1x256xf32> to vector<1x256xf32>
    %48 = vector.broadcast %47 : vector<1x256xf32> to vector<32x256xf32>
    %49 = arith.addf %44, %48 : vector<32x256xf32>
    %50 = arith.negf %49 : vector<32x256xf32>
    %51 = math.exp %50 : vector<32x256xf32>
    %cst_19 = arith.constant 1.000000e+00 : f32
    %52 = vector.broadcast %cst_19 : f32 to vector<32x256xf32>
    %53 = arith.addf %52, %51 : vector<32x256xf32>
    %54 = arith.divf %52, %53 : vector<32x256xf32>
    %55 = arith.mulf %49, %54 : vector<32x256xf32>
    %56 = arith.index_cast %arg0 : i32 to index
    %c0_20 = arith.constant 0 : index
    %c0_21 = arith.constant 0 : index
    %57 = vector.load %arg17[%56, %c0_20, %c0_21] : memref<6x256x256xbf16, #tpu.memory_space<vmem>>, vector<1x256x256xbf16>
    %58 = vector.shape_cast %57 : vector<1x256x256xbf16> to vector<256x256xbf16>
    %59 = arith.truncf %55 : vector<32x256xf32> to vector<32x256xbf16>
    %cst_22 = arith.constant dense<0.000000e+00> : vector<32x256xf32>
    %60 = tpu.matmul %59, %58, %cst_22 {dimension_numbers = #tpu.dot_dimension_numbers<[1], [0], [0], [1], [0, 0, 1, 1], [], []>} : vector<32x256xbf16>, vector<256x256xbf16>, vector<32x256xf32> -> vector<32x256xf32>
    %61 = arith.index_cast %arg0 : i32 to index
    %c0_23 = arith.constant 0 : index
    %c0_24 = arith.constant 0 : index
    %62 = vector.load %arg18[%61, %c0_23, %c0_24] : memref<6x1x256xf32, #tpu.memory_space<vmem>>, vector<1x1x256xf32>
    %63 = vector.shape_cast %62 : vector<1x1x256xf32> to vector<1x256xf32>
    %64 = vector.broadcast %63 : vector<1x256xf32> to vector<32x256xf32>
    %65 = arith.addf %60, %64 : vector<32x256xf32>
    %66 = arith.mulf %17, %65 : vector<32x256xf32>
    %67 = arith.addf %3, %66 : vector<32x256xf32>
    %c0_25 = arith.constant 0 : index
    %c0_26 = arith.constant 0 : index
    %68 = vector.load %arg24[%c0_25, %c0_26] : memref<32x256xf32, #tpu.memory_space<vmem>>, vector<32x256xf32>
    tpu.vector_store %arg24[%c0_25, %c0_26], %67 {strides = array<i32>} : memref<32x256xf32, #tpu.memory_space<vmem>>, vector<32x256xf32>,
    %c5_i32 = arith.constant 5 : i32
    %69 = arith.cmpi eq, %arg0, %c5_i32 : i32
    %70 = arith.extui %69 : i1 to i32
    %c0_i32_27 = arith.constant 0 : i32
    %71 = arith.cmpi ne, %70, %c0_i32_27 : i32
    scf.if %71 {
      %c0_28 = arith.constant 0 : index
      %c0_29 = arith.constant 0 : index
      %72 = vector.load %arg19[%c0_28, %c0_29] : memref<256x512xbf16, #tpu.memory_space<vmem>>, vector<256x512xbf16>
      %73 = arith.truncf %4 : vector<32x256xf32> to vector<32x256xbf16>
      %cst_30 = arith.constant dense<0.000000e+00> : vector<32x512xf32>
      %74 = tpu.matmul %73, %72, %cst_30 {dimension_numbers = #tpu.dot_dimension_numbers<[1], [0], [0], [1], [0, 0, 1, 1], [], []>} : vector<32x256xbf16>, vector<256x512xbf16>, vector<32x512xf32> -> vector<32x512xf32>
      %c0_31 = arith.constant 0 : index
      %c0_32 = arith.constant 0 : index
      %75 = vector.load %arg20[%c0_31, %c0_32] : memref<1x512xf32, #tpu.memory_space<vmem>>, vector<1x512xf32>
      %76 = vector.broadcast %75 : vector<1x512xf32> to vector<32x512xf32>
      %77 = arith.addf %74, %76 : vector<32x512xf32>
      %78 = vector.extract_strided_slice %77 {offsets = [0, 0], sizes = [32, 256], strides = [1, 1]} : vector<32x512xf32> to vector<32x256xf32>
      %79 = vector.extract_strided_slice %77 {offsets = [0, 256], sizes = [32, 256], strides = [1, 1]} : vector<32x512xf32> to vector<32x256xf32>
      %cst_33 = arith.constant dense<0.000000e+00> : vector<32xf32>
      %80 = vector.multi_reduction <add>, %67, %cst_33 [1] : vector<32x256xf32> to vector<32xf32>
      %81 = vector.shape_cast %80 : vector<32xf32> to vector<32x1xf32>
      %cst_34 = arith.constant 2.560000e+02 : f32
      %82 = vector.broadcast %cst_34 : f32 to vector<32x1xf32>
      %83 = arith.divf %81, %82 : vector<32x1xf32>
      %84 = vector.broadcast %83 : vector<32x1xf32> to vector<32x256xf32>
      %85 = arith.subf %67, %84 : vector<32x256xf32>
      %86 = arith.mulf %85, %85 : vector<32x256xf32>
      %cst_35 = arith.constant dense<0.000000e+00> : vector<32xf32>
      %87 = vector.multi_reduction <add>, %86, %cst_35 [1] : vector<32x256xf32> to vector<32xf32>
      %88 = vector.shape_cast %87 : vector<32xf32> to vector<32x1xf32>
      %cst_36 = arith.constant 2.560000e+02 : f32
      %89 = vector.broadcast %cst_36 : f32 to vector<32x1xf32>
      %90 = arith.divf %88, %89 : vector<32x1xf32>
      %91 = vector.broadcast %83 : vector<32x1xf32> to vector<32x256xf32>
      %92 = arith.subf %67, %91 : vector<32x256xf32>
      %cst_37 = arith.constant 9.99999997E-7 : f32
      %93 = vector.broadcast %cst_37 : f32 to vector<32x1xf32>
      %94 = arith.addf %90, %93 : vector<32x1xf32>
      %95 = math.rsqrt %94 : vector<32x1xf32>
      %96 = vector.broadcast %95 : vector<32x1xf32> to vector<32x256xf32>
      %97 = arith.mulf %92, %96 : vector<32x256xf32>
      %cst_38 = arith.constant 1.000000e+00 : f32
      %98 = vector.broadcast %cst_38 : f32 to vector<32x256xf32>
      %99 = arith.addf %98, %79 : vector<32x256xf32>
      %100 = arith.mulf %97, %99 : vector<32x256xf32>
      %101 = arith.addf %100, %78 : vector<32x256xf32>
      %c0_39 = arith.constant 0 : index
      %c0_40 = arith.constant 0 : index
      %102 = vector.load %arg21[%c0_39, %c0_40] : memref<256x1xbf16, #tpu.memory_space<vmem>>, vector<256x1xbf16>
      %103 = arith.truncf %101 : vector<32x256xf32> to vector<32x256xbf16>
      %cst_41 = arith.constant dense<0.000000e+00> : vector<32x1xf32>
      %104 = tpu.matmul %103, %102, %cst_41 {dimension_numbers = #tpu.dot_dimension_numbers<[1], [0], [0], [1], [0, 0, 1, 1], [], []>} : vector<32x256xbf16>, vector<256x1xbf16>, vector<32x1xf32> -> vector<32x1xf32>
      %c0_42 = arith.constant 0 : index
      %c0_43 = arith.constant 0 : index
      %105 = vector.load %arg22[%c0_42, %c0_43] : memref<1x1xf32, #tpu.memory_space<vmem>>, vector<1x1xf32>
      %106 = vector.broadcast %105 : vector<1x1xf32> to vector<32x1xf32>
      %107 = arith.addf %104, %106 : vector<32x1xf32>
      %c0_44 = arith.constant 0 : index
      %c0_45 = arith.constant 0 : index
      %108 = vector.load %arg4[%c0_44, %c0_45] : memref<32x1xf32, #tpu.memory_space<vmem>>, vector<32x1xf32>
      %109 = arith.subf %107, %108 : vector<32x1xf32>
      %110 = arith.mulf %109, %109 : vector<32x1xf32>
      %111 = tpu.iota {dimensions = array<i32: 0>} : vector<2x32xi32>
      %112 = tpu.iota {dimensions = array<i32: 1>} : vector<2x32xi32>
      %c16_i32 = arith.constant 16 : i32
      %113 = vector.broadcast %c16_i32 : i32 to vector<2x32xi32>
      %114 = arith.muli %111, %113 : vector<2x32xi32>
      %115 = arith.cmpi sge, %112, %114 : vector<2x32xi32>
      %c1_i32 = arith.constant 1 : i32
      %116 = vector.broadcast %c1_i32 : i32 to vector<2x32xi32>
      %117 = arith.addi %111, %116 : vector<2x32xi32>
      %c16_i32_46 = arith.constant 16 : i32
      %118 = vector.broadcast %c16_i32_46 : i32 to vector<2x32xi32>
      %119 = arith.muli %117, %118 : vector<2x32xi32>
      %120 = arith.cmpi slt, %112, %119 : vector<2x32xi32>
      %121 = arith.andi %115, %120 : vector<2x32xi1>
      %cst_47 = arith.constant 6.250000e-02 : f32
      %cst_48 = arith.constant 0.000000e+00 : f32
      %122 = vector.broadcast %cst_47 : f32 to vector<2x32xf32>
      %123 = vector.broadcast %cst_48 : f32 to vector<2x32xf32>
      %124 = arith.select %121, %122, %123 : vector<2x32xi1>, vector<2x32xf32>
      %cst_49 = arith.constant dense<0.000000e+00> : vector<2x1xf32>
      %125 = tpu.matmul %124, %110, %cst_49 {dimension_numbers = #tpu.dot_dimension_numbers<[1], [0], [0], [1], [0, 0, 1, 1], [], []>} : vector<2x32xf32>, vector<32x1xf32>, vector<2x1xf32> -> vector<2x1xf32>
      %c0_50 = arith.constant 0 : index
      %c0_51 = arith.constant 0 : index
      %126 = vector.load %arg23[%c0_50, %c0_51] : memref<2x1xf32, #tpu.memory_space<vmem>>, vector<2x1xf32>
      tpu.vector_store %arg23[%c0_50, %c0_51], %125 {strides = array<i32>} : memref<2x1xf32, #tpu.memory_space<vmem>>, vector<2x1xf32>,
    } else {
    }
    return
  }
  func.func @transform_0(%arg0: i32) -> (i32, i32) {
    %c0_i32 = arith.constant 0 : i32
    %c0_i32_0 = arith.constant 0 : i32
    %c0_i32_1 = arith.constant 0 : i32
    return %c0_i32, %c0_i32_0 : i32, i32
  }
  func.func @transform_1(%arg0: i32) -> (i32, i32) {
    %c0_i32 = arith.constant 0 : i32
    %c0_i32_0 = arith.constant 0 : i32
    %c0_i32_1 = arith.constant 0 : i32
    return %c0_i32, %c0_i32_0 : i32, i32
  }
  func.func @transform_2(%arg0: i32) -> (i32, i32) {
    %c0_i32 = arith.constant 0 : i32
    %c0_i32_0 = arith.constant 0 : i32
    %c0_i32_1 = arith.constant 0 : i32
    return %c0_i32, %c0_i32_0 : i32, i32
  }
  func.func @transform_3(%arg0: i32) -> (i32, i32) {
    %c0_i32 = arith.constant 0 : i32
    %c0_i32_0 = arith.constant 0 : i32
    %c0_i32_1 = arith.constant 0 : i32
    return %c0_i32, %c0_i32_0 : i32, i32
  }
  func.func @transform_4(%arg0: i32) -> (i32, i32) {
    %c0_i32 = arith.constant 0 : i32
    %c0_i32_0 = arith.constant 0 : i32
    %c0_i32_1 = arith.constant 0 : i32
    return %c0_i32, %c0_i32_0 : i32, i32
  }
  func.func @transform_5(%arg0: i32) -> (i32, i32) {
    %c0_i32 = arith.constant 0 : i32
    %c0_i32_0 = arith.constant 0 : i32
    %c0_i32_1 = arith.constant 0 : i32
    return %c0_i32, %c0_i32_0 : i32, i32
  }
  func.func @transform_6(%arg0: i32) -> (i32, i32) {
    %c0_i32 = arith.constant 0 : i32
    %c0_i32_0 = arith.constant 0 : i32
    %c0_i32_1 = arith.constant 0 : i32
    return %c0_i32, %c0_i32_0 : i32, i32
  }
  func.func @transform_7(%arg0: i32) -> (i32, i32) {
    %c0_i32 = arith.constant 0 : i32
    %c0_i32_0 = arith.constant 0 : i32
    %c0_i32_1 = arith.constant 0 : i32
    return %c0_i32, %c0_i32_0 : i32, i32
  }
  func.func @transform_8(%arg0: i32) -> (i32, i32) {
    %c0_i32 = arith.constant 0 : i32
    %c0_i32_0 = arith.constant 0 : i32
    %c0_i32_1 = arith.constant 0 : i32
    return %c0_i32, %c0_i32_0 : i32, i32
  }
  func.func @transform_9(%arg0: i32) -> (i32, i32) {
    %c0_i32 = arith.constant 0 : i32
    %c0_i32_0 = arith.constant 0 : i32
    %c0_i32_1 = arith.constant 0 : i32
    return %c0_i32, %c0_i32_0 : i32, i32
  }
  func.func @transform_10(%arg0: i32) -> (i32, i32) {
    %c0_i32 = arith.constant 0 : i32
    %c0_i32_0 = arith.constant 0 : i32
    %c0_i32_1 = arith.constant 0 : i32
    return %c0_i32, %c0_i32_0 : i32, i32
  }
  func.func @transform_11(%arg0: i32) -> (i32, i32) {
    %c0_i32 = arith.constant 0 : i32
    %c0_i32_0 = arith.constant 0 : i32
    %c0_i32_1 = arith.constant 0 : i32
    return %c0_i32, %c0_i32_0 : i32, i32
  }
  func.func @transform_12(%arg0: i32) -> (i32, i32, i32) {
    %c0_i32 = arith.constant 0 : i32
    %c0_i32_0 = arith.constant 0 : i32
    %c0_i32_1 = arith.constant 0 : i32
    %c0_i32_2 = arith.constant 0 : i32
    return %c0_i32, %c0_i32_0, %c0_i32_1 : i32, i32, i32
  }
  func.func @transform_13(%arg0: i32) -> (i32, i32, i32) {
    %c0_i32 = arith.constant 0 : i32
    %c0_i32_0 = arith.constant 0 : i32
    %c0_i32_1 = arith.constant 0 : i32
    %c0_i32_2 = arith.constant 0 : i32
    return %c0_i32, %c0_i32_0, %c0_i32_1 : i32, i32, i32
  }
  func.func @transform_14(%arg0: i32) -> (i32, i32, i32) {
    %c0_i32 = arith.constant 0 : i32
    %c0_i32_0 = arith.constant 0 : i32
    %c0_i32_1 = arith.constant 0 : i32
    %c0_i32_2 = arith.constant 0 : i32
    return %c0_i32, %c0_i32_0, %c0_i32_1 : i32, i32, i32
  }
  func.func @transform_15(%arg0: i32) -> (i32, i32, i32) {
    %c0_i32 = arith.constant 0 : i32
    %c0_i32_0 = arith.constant 0 : i32
    %c0_i32_1 = arith.constant 0 : i32
    %c0_i32_2 = arith.constant 0 : i32
    return %c0_i32, %c0_i32_0, %c0_i32_1 : i32, i32, i32
  }
  func.func @transform_16(%arg0: i32) -> (i32, i32, i32) {
    %c0_i32 = arith.constant 0 : i32
    %c0_i32_0 = arith.constant 0 : i32
    %c0_i32_1 = arith.constant 0 : i32
    %c0_i32_2 = arith.constant 0 : i32
    return %c0_i32, %c0_i32_0, %c0_i32_1 : i32, i32, i32
  }
  func.func @transform_17(%arg0: i32) -> (i32, i32, i32) {
    %c0_i32 = arith.constant 0 : i32
    %c0_i32_0 = arith.constant 0 : i32
    %c0_i32_1 = arith.constant 0 : i32
    %c0_i32_2 = arith.constant 0 : i32
    return %c0_i32, %c0_i32_0, %c0_i32_1 : i32, i32, i32
  }
  func.func @transform_18(%arg0: i32) -> (i32, i32) {
    %c0_i32 = arith.constant 0 : i32
    %c0_i32_0 = arith.constant 0 : i32
    %c0_i32_1 = arith.constant 0 : i32
    return %c0_i32, %c0_i32_0 : i32, i32
  }
  func.func @transform_19(%arg0: i32) -> (i32, i32) {
    %c0_i32 = arith.constant 0 : i32
    %c0_i32_0 = arith.constant 0 : i32
    %c0_i32_1 = arith.constant 0 : i32
    return %c0_i32, %c0_i32_0 : i32, i32
  }
  func.func @transform_20(%arg0: i32) -> (i32, i32) {
    %c0_i32 = arith.constant 0 : i32
    %c0_i32_0 = arith.constant 0 : i32
    %c0_i32_1 = arith.constant 0 : i32
    return %c0_i32, %c0_i32_0 : i32, i32
  }
  func.func @transform_21(%arg0: i32) -> (i32, i32) {
    %c0_i32 = arith.constant 0 : i32
    %c0_i32_0 = arith.constant 0 : i32
    %c0_i32_1 = arith.constant 0 : i32
    return %c0_i32, %c0_i32_0 : i32, i32
  }
  func.func @transform_22(%arg0: i32) -> (i32, i32) {
    %c0_i32 = arith.constant 0 : i32
    %c0_i32_0 = arith.constant 0 : i32
    %c0_i32_1 = arith.constant 0 : i32
    return %c0_i32, %c0_i32_0 : i32, i32
  }
}

</mosaic_0001>

<llo_original>
// kernel: arhead_forward.4
$region0: #{arhead_forward.4}
  #allocation0 [shape = 'u32[]', space=smem, size = 0x4, offset = 0x4, fixed_abs, tag = 'smem constant byte address 0x4 - core index']
  #allocation1 [shape = 'u32[72,128]{1,0:T(1,128)}', space=vmem, size = 0x9000, scoped, tag = 'internal scratch']
  %s0 = inlined_call_operand.vmem [shape: f32[2,16,128], index: 0, kind: input, shape index: {}]
  %s1 = inlined_call_operand.hbm [shape: f32[2,1,64], index: 1, kind: input, shape index: {}]
  %s2 = inlined_call_operand.hbm [shape: bf16[64,768], index: 2, kind: input, shape index: {}]
  %s3 = inlined_call_operand.hbm [shape: f32[1,768], index: 3, kind: input, shape index: {}]
  %s4 = inlined_call_operand.hbm [shape: bf16[128,384], index: 4, kind: input, shape index: {}]
  %s5 = inlined_call_operand.hbm [shape: f32[1,384], index: 5, kind: input, shape index: {}]
  %s6 = inlined_call_operand.hbm [shape: bf16[128,128], index: 6, kind: input, shape index: {}]
  %s7 = inlined_call_operand.hbm [shape: f32[1,128], index: 7, kind: input, shape index: {}]
  %s8 = inlined_call_operand.hbm [shape: bf16[128,512], index: 8, kind: input, shape index: {}]
  %s9 = inlined_call_operand.hbm [shape: f32[1,512], index: 9, kind: input, shape index: {}]
  %s10 = inlined_call_operand.hbm [shape: bf16[512,128], index: 10, kind: input, shape index: {}]
  %s11 = inlined_call_operand.hbm [shape: f32[1,128], index: 11, kind: input, shape index: {}]
  %s12 = inlined_call_operand.vmem [shape: f32[2,16,128], index: 12, kind: output, shape index: {}]
  %s13 = sld [smem:[#allocation0]]
  $region102: #{arhead_forward.4} parent=0
    _
  %s15 = ssub.s32 1, %s13
  %s16 = scalar_select 0, %s15, %s13
  $region1: #{arhead_forward.4} parent=0
    #allocation2 [shape = 'u8[1024]{0}', space=vmem, size = 0x400, scoped, tag = 'input window, operand 1, single buffered']
    #allocation3 [shape = 's32[1]{0}', space=sflag, size = 0x4, scoped, tag = 'scoped memory for arhead_forward.4']
    #allocation4 [shape = 'u8[98304]{0}', space=vmem, size = 0x18000, scoped, tag = 'input window, operand 2, single buffered']
    #allocation5 [shape = 's32[1]{0}', space=sflag, size = 0x4, scoped, tag = 'scoped memory for arhead_forward.4']
    #allocation6 [shape = 'u8[3072]{0}', space=vmem, size = 0xc00, scoped, tag = 'input window, operand 3, single buffered']
    #allocation7 [shape = 'u8[98304]{0}', space=vmem, size = 0x18000, scoped, tag = 'input window, operand 4, single buffered']
    #allocation8 [shape = 's32[1]{0}', space=sflag, size = 0x4, scoped, tag = 'scoped memory for arhead_forward.4']
    #allocation9 [shape = 'u8[1536]{0}', space=vmem, size = 0x800, scoped, tag = 'input window, operand 5, single buffered']
    #allocation10 [shape = 'u8[32768]{0}', space=vmem, size = 0x8000, scoped, tag = 'input window, operand 6, single buffered']
    #allocation11 [shape = 's32[1]{0}', space=sflag, size = 0x4, scoped, tag = 'scoped memory for arhead_forward.4']
    #allocation12 [shape = 'u8[512]{0}', space=vmem, size = 0x400, scoped, tag = 'input window, operand 7, single buffered']
    #allocation13 [shape = 'u8[131072]{0}', space=vmem, size = 0x20000, scoped, tag = 'input window, operand 8, single buffered']
    #allocation14 [shape = 's32[1]{0}', space=sflag, size = 0x4, scoped, tag = 'scoped memory for arhead_forward.4']
    #allocation15 [shape = 'u8[2048]{0}', space=vmem, size = 0x800, scoped, tag = 'input window, operand 9, single buffered']
    #allocation16 [shape = 'u8[131072]{0}', space=vmem, size = 0x20000, scoped, tag = 'input window, operand 10, single buffered']
    #allocation17 [shape = 's32[1]{0}', space=sflag, size = 0x4, scoped, tag = 'scoped memory for arhead_forward.4']
    #allocation18 [shape = 'u8[512]{0}', space=vmem, size = 0x400, scoped, tag = 'input window, operand 11, single buffered']
    %17 = vsyncpa [#allocation3], 0
    %18 = vsyncpa [#allocation5], 0
    %19 = vsyncpa [#allocation8], 0
    %20 = vsyncpa [#allocation11], 0
    %21 = vsyncpa [#allocation14], 0
    %22 = vsyncpa [#allocation17], 0
    // Predicated region
    $region2: #{arhead_forward.4} parent=1 // pred_check
      _
    $region3: #{arhead_forward.4} parent=1 // pred_check_branch
      %24 = sbr.rel (0) target = $region5
    $region4: #{arhead_forward.4} parent=1 // pred_region
      _
    $region5: #{arhead_forward.4} parent=1 // pred_fallthru
      _
    // Predicated region
    $region6: #{arhead_forward.4} parent=1 // pred_check
      _
    $region7: #{arhead_forward.4} parent=1 // pred_check_branch
      %26 = sbr.rel (0) target = $region9
    $region8: #{arhead_forward.4} parent=1 // pred_region
      %28 = vsyncadd [#allocation3], 0
      %s29 = sshll.u32 %s1, 4
      %s30 = int_to_ptr.hbm [resolvable:$true] %s29
      %s31 = sshll.u32 [#allocation2], 4
      %s32 = int_to_ptr.vmem [resolvable:$true] %s31
      %37 = dma.hbm_to_vmem [thread:$0]  %s30, 32, %s32, [#allocation3], 16, 16, 1
    $region9: #{arhead_forward.4} parent=1 // pred_fallthru
      _
    // Predicated region
    $region10: #{arhead_forward.4} parent=1 // pred_check
      _
    $region11: #{arhead_forward.4} parent=1 // pred_check_branch
      %39 = sbr.rel (0) target = $region13
    $region12: #{arhead_forward.4} parent=1 // pred_region
      %41 = vsyncadd [#allocation5], 0
      %s42 = sshll.u32 %s2, 4
      %s43 = int_to_ptr.hbm [resolvable:$true] %s42
      %s44 = sshll.u32 [#allocation4], 4
      %s45 = int_to_ptr.vmem [resolvable:$true] %s44
      %50 = dma.hbm_to_vmem [thread:$0]  %s43, 3072, %s45, [#allocation5], 384, 384, 24
    $region13: #{arhead_forward.4} parent=1 // pred_fallthru
      _
    // Predicated region
    $region14: #{arhead_forward.4} parent=1 // pred_check
      _
    $region15: #{arhead_forward.4} parent=1 // pred_check_branch
      %52 = sbr.rel (0) target = $region17
    $region16: #{arhead_forward.4} parent=1 // pred_region
      %54 = vsyncadd [#allocation5], 0
      %s56 = sshll.u32 %s3, 4
      %s57 = int_to_ptr.hbm [resolvable:$true] %s56
      %s58 = sshll.u32 [#allocation6], 4
      %s59 = int_to_ptr.vmem [resolvable:$true] %s58
      %61 = dma.hbm_to_vmem [thread:$0]  %s57, 96, %s59, [#allocation5]
    $region17: #{arhead_forward.4} parent=1 // pred_fallthru
      _
    // Predicated region
    $region18: #{arhead_forward.4} parent=1 // pred_check
      _
    $region19: #{arhead_forward.4} parent=1 // pred_check_branch
      %63 = sbr.rel (0) target = $region21
    $region20: #{arhead_forward.4} parent=1 // pred_region
      %65 = vsyncadd [#allocation8], 0
      %s66 = sshll.u32 %s4, 4
      %s67 = int_to_ptr.hbm [resolvable:$true] %s66
      %s68 = sshll.u32 [#allocation7], 4
      %s69 = int_to_ptr.vmem [resolvable:$true] %s68
      %74 = dma.hbm_to_vmem [thread:$0]  %s67, 3072, %s69, [#allocation8], 192, 192, 12
    $region21: #{arhead_forward.4} parent=1 // pred_fallthru
      _
    // Predicated region
    $region22: #{arhead_forward.4} parent=1 // pred_check
      _
    $region23: #{arhead_forward.4} parent=1 // pred_check_branch
      %76 = sbr.rel (0) target = $region25
    $region24: #{arhead_forward.4} parent=1 // pred_region
      %78 = vsyncadd [#allocation8], 0
      %s80 = sshll.u32 %s5, 4
      %s81 = int_to_ptr.hbm [resolvable:$true] %s80
      %s82 = sshll.u32 [#allocation9], 4
      %s83 = int_to_ptr.vmem [resolvable:$true] %s82
      %85 = dma.hbm_to_vmem [thread:$0]  %s81, 48, %s83, [#allocation8]
    $region25: #{arhead_forward.4} parent=1 // pred_fallthru
      _
    // Predicated region
    $region26: #{arhead_forward.4} parent=1 // pred_check
      _
    $region27: #{arhead_forward.4} parent=1 // pred_check_branch
      %87 = sbr.rel (0) target = $region29
    $region28: #{arhead_forward.4} parent=1 // pred_region
      %89 = vsyncadd [#allocation11], 0
      %s90 = sshll.u32 %s6, 4
      %s91 = int_to_ptr.hbm [resolvable:$true] %s90
      %s92 = sshll.u32 [#allocation10], 4
      %s93 = int_to_ptr.vmem [resolvable:$true] %s92
      %98 = dma.hbm_to_vmem [thread:$0]  %s91, 1024, %s93, [#allocation11], 64, 64, 4
    $region29: #{arhead_forward.4} parent=1 // pred_fallthru
      _
    // Predicated region
    $region30: #{arhead_forward.4} parent=1 // pred_check
      _
    $region31: #{arhead_forward.4} parent=1 // pred_check_branch
      %100 = sbr.rel (0) target = $region33
    $region32: #{arhead_forward.4} parent=1 // pred_region
      %102 = vsyncadd [#allocation11], 0
      %s104 = sshll.u32 %s7, 4
      %s105 = int_to_ptr.hbm [resolvable:$true] %s104
      %s106 = sshll.u32 [#allocation12], 4
      %s107 = int_to_ptr.vmem [resolvable:$true] %s106
      %109 = dma.hbm_to_vmem [thread:$0]  %s105, 16, %s107, [#allocation11]
    $region33: #{arhead_forward.4} parent=1 // pred_fallthru
      _
    // Predicated region
    $region34: #{arhead_forward.4} parent=1 // pred_check
      _
    $region35: #{arhead_forward.4} parent=1 // pred_check_branch
      %111 = sbr.rel (0) target = $region37
    $region36: #{arhead_forward.4} parent=1 // pred_region
      %113 = vsyncadd [#allocation14], 0
      %s114 = sshll.u32 %s8, 4
      %s115 = int_to_ptr.hbm [resolvable:$true] %s114
      %s116 = sshll.u32 [#allocation13], 4
      %s117 = int_to_ptr.vmem [resolvable:$true] %s116
      %122 = dma.hbm_to_vmem [thread:$0]  %s115, 4096, %s117, [#allocation14], 256, 256, 16
    $region37: #{arhead_forward.4} parent=1 // pred_fallthru
      _
    // Predicated region
    $region38: #{arhead_forward.4} parent=1 // pred_check
      _
    $region39: #{arhead_forward.4} parent=1 // pred_check_branch
      %124 = sbr.rel (0) target = $region41
    $region40: #{arhead_forward.4} parent=1 // pred_region
      %126 = vsyncadd [#allocation14], 0
      %s128 = sshll.u32 %s9, 4
      %s129 = int_to_ptr.hbm [resolvable:$true] %s128
      %s130 = sshll.u32 [#allocation15], 4
      %s131 = int_to_ptr.vmem [resolvable:$true] %s130
      %133 = dma.hbm_to_vmem [thread:$0]  %s129, 64, %s131, [#allocation14]
    $region41: #{arhead_forward.4} parent=1 // pred_fallthru
      _
    // Predicated region
    $region42: #{arhead_forward.4} parent=1 // pred_check
      _
    $region43: #{arhead_forward.4} parent=1 // pred_check_branch
      %135 = sbr.rel (0) target = $region45
    $region44: #{arhead_forward.4} parent=1 // pred_region
      %137 = vsyncadd [#allocation17], 0
      %s138 = sshll.u32 %s10, 4
      %s139 = int_to_ptr.hbm [resolvable:$true] %s138
      %s140 = sshll.u32 [#allocation16], 4
      %s141 = int_to_ptr.vmem [resolvable:$true] %s140
      %146 = dma.hbm_to_vmem [thread:$0]  %s139, 4096, %s141, [#allocation17], 64, 64, 4
    $region45: #{arhead_forward.4} parent=1 // pred_fallthru
      _
    // Predicated region
    $region46: #{arhead_forward.4} parent=1 // pred_check
      _
    $region47: #{arhead_forward.4} parent=1 // pred_check_branch
      %148 = sbr.rel (0) target = $region49
    $region48: #{arhead_forward.4} parent=1 // pred_region
      %150 = vsyncadd [#allocation17], 0
      %s152 = sshll.u32 %s11, 4
      %s153 = int_to_ptr.hbm [resolvable:$true] %s152
      %s154 = sshll.u32 [#allocation18], 4
      %s155 = int_to_ptr.vmem [resolvable:$true] %s154
      %157 = dma.hbm_to_vmem [thread:$0]  %s153, 16, %s155, [#allocation17]
    $region49: #{arhead_forward.4} parent=1 // pred_fallthru
      _
    // Predicated region
    $region50: #{arhead_forward.4} parent=1 // pred_check
      _
    $region51: #{arhead_forward.4} parent=1 // pred_check_branch
      %159 = sbr.rel (0) target = $region53
    $region52: #{arhead_forward.4} parent=1 // pred_region
      %161 = dma.done [#allocation3], 32
    $region53: #{arhead_forward.4} parent=1 // pred_fallthru
      _
    // Predicated region
    $region54: #{arhead_forward.4} parent=1 // pred_check
      _
    $region55: #{arhead_forward.4} parent=1 // pred_check_branch
      %163 = sbr.rel (0) target = $region57
    $region56: #{arhead_forward.4} parent=1 // pred_region
      %165 = dma.done [#allocation5], 3072
    $region57: #{arhead_forward.4} parent=1 // pred_fallthru
      _
    // Predicated region
    $region58: #{arhead_forward.4} parent=1 // pred_check
      _
    $region59: #{arhead_forward.4} parent=1 // pred_check_branch
      %167 = sbr.rel (0) target = $region61
    $region60: #{arhead_forward.4} parent=1 // pred_region
      %169 = dma.done [#allocation5], 96
    $region61: #{arhead_forward.4} parent=1 // pred_fallthru
      _
    // Predicated region
    $region62: #{arhead_forward.4} parent=1 // pred_check
      _
    $region63: #{arhead_forward.4} parent=1 // pred_check_branch
      %171 = sbr.rel (0) target = $region65
    $region64: #{arhead_forward.4} parent=1 // pred_region
      %173 = dma.done [#allocation8], 3072
    $region65: #{arhead_forward.4} parent=1 // pred_fallthru
      _
    // Predicated region
    $region66: #{arhead_forward.4} parent=1 // pred_check
      _
    $region67: #{arhead_forward.4} parent=1 // pred_check_branch
      %175 = sbr.rel (0) target = $region69
    $region68: #{arhead_forward.4} parent=1 // pred_region
      %177 = dma.done [#allocation8], 48
    $region69: #{arhead_forward.4} parent=1 // pred_fallthru
      _
    // Predicated region
    $region70: #{arhead_forward.4} parent=1 // pred_check
      _
    $region71: #{arhead_forward.4} parent=1 // pred_check_branch
      %179 = sbr.rel (0) target = $region73
    $region72: #{arhead_forward.4} parent=1 // pred_region
      %181 = dma.done [#allocation11], 1024
    $region73: #{arhead_forward.4} parent=1 // pred_fallthru
      _
    // Predicated region
    $region74: #{arhead_forward.4} parent=1 // pred_check
      _
    $region75: #{arhead_forward.4} parent=1 // pred_check_branch
      %183 = sbr.rel (0) target = $region77
    $region76: #{arhead_forward.4} parent=1 // pred_region
      %185 = dma.done [#allocation11], 16
    $region77: #{arhead_forward.4} parent=1 // pred_fallthru
      _
    // Predicated region
    $region78: #{arhead_forward.4} parent=1 // pred_check
      _
    $region79: #{arhead_forward.4} parent=1 // pred_check_branch
      %187 = sbr.rel (0) target = $region81
    $region80: #{arhead_forward.4} parent=1 // pred_region
      %189 = dma.done [#allocation14], 4096
    $region81: #{arhead_forward.4} parent=1 // pred_fallthru
      _
    // Predicated region
    $region82: #{arhead_forward.4} parent=1 // pred_check
      _
    $region83: #{arhead_forward.4} parent=1 // pred_check_branch
      %191 = sbr.rel (0) target = $region85
    $region84: #{arhead_forward.4} parent=1 // pred_region
      %193 = dma.done [#allocation14], 64
    $region85: #{arhead_forward.4} parent=1 // pred_fallthru
      _
    // Predicated region
    $region86: #{arhead_forward.4} parent=1 // pred_check
      _
    $region87: #{arhead_forward.4} parent=1 // pred_check_branch
      %195 = sbr.rel (0) target = $region89
    $region88: #{arhead_forward.4} parent=1 // pred_region
      %197 = dma.done [#allocation17], 4096
    $region89: #{arhead_forward.4} parent=1 // pred_fallthru
      _
    // Predicated region
    $region90: #{arhead_forward.4} parent=1 // pred_check
      _
    $region91: #{arhead_forward.4} parent=1 // pred_check_branch
      %199 = sbr.rel (0) target = $region93
    $region92: #{arhead_forward.4} parent=1 // pred_region
      %201 = dma.done [#allocation17], 16
    $region93: #{arhead_forward.4} parent=1 // pred_fallthru
      _
    %v203 = vld [vmem:[%s0] sm:$0xff]
    %v204 = vld [vmem:[%s0 + $0x8] sm:$0xff]
    %v205 = vld [vmem:[%s0 + $0x10] sm:$0xff]
    %v206 = vld [vmem:[%s0 + $0x18] sm:$0xff]
    %v207 = vld [vmem:[#allocation2] sm:$0x1]
    %v208 = vld [vmem:[#allocation2 + $0x1] sm:$0x1]
    %v209 = vxor.u32 %v207, 2147483648
    %v210 = vxor.u32 %v208, 2147483648
    %v211 = vmul.f32 %v209, 1.442695
    %v212 = vpow.pop %v211
    %v213 = vmul.f32 %v210, 1.442695
    %v214 = vpow.pop %v213
    %v215 = vadd.f32 %v212, 1.0
    %v216 = vadd.f32 %v214, 1.0
    %v217 = vrcp.pop %v215
    %v218 = vmul.f32 %v215, %v217
    %v219 = vsub.f32 1.0, %v218
    %v220 = vmul.f32 %v217, %v219
    %v221 = vadd.f32 %v217, %v220
    %vm222 = vweird.f32 %v215
    %vm223 = vweird.f32 %v217
    %vm224 = vmor %vm222, %vm223
    %v225 = vsel %vm224, %v217, %v221
    %v226 = vand.u32 2147483647, %v215
    %vm227 = vcmp.eq.f32.partialorder %v226, 8.507059e+37
    %v228 = vand.u32 %v215, 2147483648
    %v229 = vor.u32 1.1754944e-38, %v228
    %v230 = vsel %vm227, %v229, %v225
    %v231 = vmul.f32 1.0, %v230
    %v232 = vrcp.pop %v216
    %v233 = vmul.f32 %v216, %v232
    %v234 = vsub.f32 1.0, %v233
    %v235 = vmul.f32 %v232, %v234
    %v236 = vadd.f32 %v232, %v235
    %vm237 = vweird.f32 %v216
    %vm238 = vweird.f32 %v232
    %vm239 = vmor %vm237, %vm238
    %v240 = vsel %vm239, %v232, %v236
    %v241 = vand.u32 2147483647, %v216
    %vm242 = vcmp.eq.f32.partialorder %v241, 8.507059e+37
    %v243 = vand.u32 %v216, 2147483648
    %v244 = vor.u32 1.1754944e-38, %v243
    %v245 = vsel %vm242, %v244, %v240
    %v246 = vmul.f32 1.0, %v245
    %v247 = vmul.f32 %v207, %v231
    %v248 = vmul.f32 %v208, %v246
    %v249 = vld [vmem:[#allocation4] sm:$0xff]
    %v250 = vld [vmem:[#allocation4 + $0x8] sm:$0xff]
    %v251 = vld [vmem:[#allocation4 + $0x10] sm:$0xff]
    %v252 = vld [vmem:[#allocation4 + $0x18] sm:$0xff]
    %v253 = vld [vmem:[#allocation4 + $0x20] sm:$0xff]
    %v254 = vld [vmem:[#allocation4 + $0x28] sm:$0xff]
    %v255 = vld [vmem:[#allocation4 + $0x30] sm:$0xff]
    %v256 = vld [vmem:[#allocation4 + $0x38] sm:$0xff]
    %v257 = vld [vmem:[#allocation4 + $0x40] sm:$0xff]
    %v258 = vld [vmem:[#allocation4 + $0x48] sm:$0xff]
    %v259 = vld [vmem:[#allocation4 + $0x50] sm:$0xff]
    %v260 = vld [vmem:[#allocation4 + $0x58] sm:$0xff]
    %v261 = vld [vmem:[#allocation4 + $0x60] sm:$0xff]
    %v262 = vld [vmem:[#allocation4 + $0x68] sm:$0xff]
    %v263 = vld [vmem:[#allocation4 + $0x70] sm:$0xff]
    %v264 = vld [vmem:[#allocation4 + $0x78] sm:$0xff]
    %v265 = vld [vmem:[#allocation4 + $0x80] sm:$0xff]
    %v266 = vld [vmem:[#allocation4 + $0x88] sm:$0xff]
    %v267 = vld [vmem:[#allocation4 + $0x90] sm:$0xff]
    %v268 = vld [vmem:[#allocation4 + $0x98] sm:$0xff]
    %v269 = vld [vmem:[#allocation4 + $0xa0] sm:$0xff]
    %v270 = vld [vmem:[#allocation4 + $0xa8] sm:$0xff]
    %v271 = vld [vmem:[#allocation4 + $0xb0] sm:$0xff]
    %v272 = vld [vmem:[#allocation4 + $0xb8] sm:$0xff]
    %v273 = vpack.c.bf16 %v247, %v247
    %v274 = vpack.c.bf16 %v248, %v248
    %v275 = vld [vmem:[#allocation6] sm:$0x3f]
    %v277 = vperm.slane %v275, 0
    %v278 = vperm.slane %v275, 1
    %v279 = vperm.slane %v275, 2
    %v280 = vperm.slane %v275, 3
    %v281 = vperm.slane %v275, 4
    %v282 = vperm.slane %v275, 5
    %v291 = vunpack.c.l.b16 %v273
    %v292 = vunpack.c.l.b16 %v274
    %v293 = vrot.slane %v292, 7
    %vm294 = vcmask 1041409
    %v295 = vsel %vm294, %v293, %v291
    %v296 = vpack.c.b16 %v295, %v295
    %v321 = vunpack.c.l.b16 %v249
    %v322 = vunpack.c.h.b16 %v249
    %v323 = vunpack.c.l.b16 %v250
    %v324 = vunpack.c.h.b16 %v250
    %v325 = vunpack.c.l.b16 %v251
    %v326 = vunpack.c.h.b16 %v251
    %v327 = vunpack.c.l.b16 %v252
    %v328 = vunpack.c.h.b16 %v252
    %v329 = vunpack.c.l.b16 %v253
    %v330 = vunpack.c.h.b16 %v253
    %v331 = vunpack.c.l.b16 %v254
    %v332 = vunpack.c.h.b16 %v254
    %v333 = vunpack.c.l.b16 %v255
    %v334 = vunpack.c.h.b16 %v255
    %v335 = vunpack.c.l.b16 %v256
    %v336 = vunpack.c.h.b16 %v256
    %v337 = vunpack.c.l.b16 %v257
    %v338 = vunpack.c.h.b16 %v257
    %v339 = vunpack.c.l.b16 %v258
    %v340 = vunpack.c.h.b16 %v258
    %v341 = vunpack.c.l.b16 %v259
    %v342 = vunpack.c.h.b16 %v259
    %v343 = vunpack.c.l.b16 %v260
    %v344 = vunpack.c.h.b16 %v260
    %v345 = vunpack.c.l.b16 %v261
    %v346 = vunpack.c.h.b16 %v261
    %v347 = vunpack.c.l.b16 %v262
    %v348 = vunpack.c.h.b16 %v262
    %v349 = vunpack.c.l.b16 %v263
    %v350 = vunpack.c.h.b16 %v263
    %v351 = vunpack.c.l.b16 %v264
    %v352 = vunpack.c.h.b16 %v264
    %v353 = vunpack.c.l.b16 %v265
    %v354 = vunpack.c.h.b16 %v265
    %v355 = vunpack.c.l.b16 %v266
    %v356 = vunpack.c.h.b16 %v266
    %v357 = vunpack.c.l.b16 %v267
    %v358 = vunpack.c.h.b16 %v267
    %v359 = vunpack.c.l.b16 %v268
    %v360 = vunpack.c.h.b16 %v268
    %v361 = vunpack.c.l.b16 %v269
    %v362 = vunpack.c.h.b16 %v269
    %v363 = vunpack.c.l.b16 %v270
    %v364 = vunpack.c.h.b16 %v270
    %v365 = vunpack.c.l.b16 %v271
    %v366 = vunpack.c.h.b16 %v271
    %v367 = vunpack.c.l.b16 %v272
    %v368 = vunpack.c.h.b16 %v272
    %v369 = vpack.c.b16 %v327, %v321
    %v370 = vpack.c.b16 %v328, %v322
    %v371 = vpack.c.b16 %v329, %v323
    %v372 = vpack.c.b16 %v330, %v324
    %v373 = vpack.c.b16 %v331, %v325
    %v374 = vpack.c.b16 %v332, %v326
    %v375 = vpack.c.b16 %v339, %v333
    %v376 = vpack.c.b16 %v340, %v334
    %v377 = vpack.c.b16 %v341, %v335
    %v378 = vpack.c.b16 %v342, %v336
    %v379 = vpack.c.b16 %v343, %v337
    %v380 = vpack.c.b16 %v344, %v338
    %v381 = vpack.c.b16 %v351, %v345
    %v382 = vpack.c.b16 %v352, %v346
    %v383 = vpack.c.b16 %v353, %v347
    %v384 = vpack.c.b16 %v354, %v348
    %v385 = vpack.c.b16 %v355, %v349
    %v386 = vpack.c.b16 %v356, %v350
    %v387 = vpack.c.b16 %v363, %v357
    %v388 = vpack.c.b16 %v364, %v358
    %v389 = vpack.c.b16 %v365, %v359
    %v390 = vpack.c.b16 %v366, %v360
    %v391 = vpack.c.b16 %v367, %v361
    %v392 = vpack.c.b16 %v368, %v362
    %vm417 = vcmask 523264
    %v419 = vsel %vm417, %v296, 0
    %421 = vmatpush.bf16.msra.mxu0 0
    %422 = vmatpush.bf16.msra.mxu0 0
    %423 = vmatpush.bf16.msra.mxu0 0
    %424 = vmatpush.bf16.msra.mxu0 0
    %425 = vmatpush.bf16.msra.mxu0 %v387
    %426 = vmatpush.bf16.msra.mxu0 %v381
    %427 = vmatpush.bf16.msra.mxu0 %v375
    %428 = vmatpush.bf16.msra.mxu0 %v369
    %429 = vmatmul.bf16.gmra.mxu0 %v419
    %v430 = vpop.f32.mrf.mxu0
    %v431 = vadd.f32 %v277, %v430
    %v432 = vpop.f32.mrf.mxu0
    %433 = vdwg.mxu0
    %434 = vmatpush.bf16.msra.mxu0 0
    %435 = vmatpush.bf16.msra.mxu0 0
    %436 = vmatpush.bf16.msra.mxu0 0
    %437 = vmatpush.bf16.msra.mxu0 0
    %438 = vmatpush.bf16.msra.mxu0 %v388
    %439 = vmatpush.bf16.msra.mxu0 %v382
    %440 = vmatpush.bf16.msra.mxu0 %v376
    %441 = vmatpush.bf16.msra.mxu0 %v370
    %442 = vmatmul.bf16.gmra.mxu0 %v419
    %v443 = vpop.f32.mrf.mxu0
    %v444 = vadd.f32 %v278, %v443
    %v445 = vpop.f32.mrf.mxu0
    %446 = vdwg.mxu0
    %447 = vmatpush.bf16.msra.mxu0 0
    %448 = vmatpush.bf16.msra.mxu0 0
    %449 = vmatpush.bf16.msra.mxu0 0
    %450 = vmatpush.bf16.msra.mxu0 0
    %451 = vmatpush.bf16.msra.mxu0 %v389
    %452 = vmatpush.bf16.msra.mxu0 %v383
    %453 = vmatpush.bf16.msra.mxu0 %v377
    %454 = vmatpush.bf16.msra.mxu0 %v371
    %455 = vmatmul.bf16.gmra.mxu0 %v419
    %v456 = vpop.f32.mrf.mxu0
    %v457 = vadd.f32 %v279, %v456
    %v458 = vpop.f32.mrf.mxu0
    %459 = vdwg.mxu0
    %460 = vmatpush.bf16.msra.mxu0 0
    %461 = vmatpush.bf16.msra.mxu0 0
    %462 = vmatpush.bf16.msra.mxu0 0
    %463 = vmatpush.bf16.msra.mxu0 0
    %464 = vmatpush.bf16.msra.mxu0 %v390
    %465 = vmatpush.bf16.msra.mxu0 %v384
    %466 = vmatpush.bf16.msra.mxu0 %v378
    %467 = vmatpush.bf16.msra.mxu0 %v372
    %468 = vmatmul.bf16.gmra.mxu0 %v419
    %v469 = vpop.f32.mrf.mxu0
    %v470 = vadd.f32 %v280, %v469
    %v471 = vpop.f32.mrf.mxu0
    %472 = vdwg.mxu0
    %473 = vmatpush.bf16.msra.mxu0 0
    %474 = vmatpush.bf16.msra.mxu0 0
    %475 = vmatpush.bf16.msra.mxu0 0
    %476 = vmatpush.bf16.msra.mxu0 0
    %477 = vmatpush.bf16.msra.mxu0 %v391
    %478 = vmatpush.bf16.msra.mxu0 %v385
    %479 = vmatpush.bf16.msra.mxu0 %v379
    %480 = vmatpush.bf16.msra.mxu0 %v373
    %481 = vmatmul.bf16.gmra.mxu0 %v419
    %v482 = vpop.f32.mrf.mxu0
    %v483 = vadd.f32 %v281, %v482
    %v484 = vpop.f32.mrf.mxu0
    %485 = vdwg.mxu0
    %486 = vmatpush.bf16.msra.mxu0 0
    %487 = vmatpush.bf16.msra.mxu0 0
    %488 = vmatpush.bf16.msra.mxu0 0
    %489 = vmatpush.bf16.msra.mxu0 0
    %490 = vmatpush.bf16.msra.mxu0 %v392
    %491 = vmatpush.bf16.msra.mxu0 %v386
    %492 = vmatpush.bf16.msra.mxu0 %v380
    %493 = vmatpush.bf16.msra.mxu0 %v374
    %494 = vmatmul.bf16.gmra.mxu0 %v419
    %v495 = vpop.f32.mrf.mxu0
    %v496 = vadd.f32 %v282, %v495
    %v497 = vpop.f32.mrf.mxu0
    %498 = vdwg.mxu0
    %v500 = vrot.slane %v431, 1
    %v502 = vrot.slane %v444, 1
    %v504 = vrot.slane %v457, 1
    %v507 = vrot.slane %v470, 1
    %v510 = vrot.slane %v483, 1
    %v512 = vrot.slane %v496, 1
    %513 = vadd.xlane.f32.xlu0 %v203
    %v514 = vpop.xlane.xlu0 %513
    %515 = vadd.xlane.f32.xlu0 %v204
    %v516 = vpop.xlane.xlu0 %515
    %517 = vadd.xlane.f32.xlu0 %v205
    %v518 = vpop.xlane.xlu0 %517
    %519 = vadd.xlane.f32.xlu0 %v206
    %v520 = vpop.xlane.xlu0 %519
    %v521 = vrcp.pop 128.0
    %v522 = vmul.f32 128.0, %v521
    %v523 = vsub.f32 1.0, %v522
    %v524 = vmul.f32 %v521, %v523
    %v525 = vadd.f32 %v521, %v524
    %vm526 = vweird.f32 %v521
    %v527 = vsel %vm526, %v521, %v525
    %v528 = vmul.f32 %v514, %v527
    %v529 = vmul.f32 %v516, %v527
    %v530 = vmul.f32 %v518, %v527
    %v531 = vmul.f32 %v520, %v527
    %v532 = vsub.f32 %v203, %v528
    %v533 = vsub.f32 %v204, %v529
    %v534 = vsub.f32 %v205, %v530
    %v535 = vsub.f32 %v206, %v531
    %v536 = vmul.f32 %v532, %v532
    %v537 = vmul.f32 %v533, %v533
    %v538 = vmul.f32 %v534, %v534
    %v539 = vmul.f32 %v535, %v535
    %540 = vadd.xlane.f32.xlu0 %v536
    %v541 = vpop.xlane.xlu0 %540
    %542 = vadd.xlane.f32.xlu0 %v537
    %v543 = vpop.xlane.xlu0 %542
    %544 = vadd.xlane.f32.xlu0 %v538
    %v545 = vpop.xlane.xlu0 %544
    %546 = vadd.xlane.f32.xlu0 %v539
    %v547 = vpop.xlane.xlu0 %546
    %v548 = vmul.f32 %v541, %v527
    %v549 = vmul.f32 %v543, %v527
    %v550 = vmul.f32 %v545, %v527
    %v551 = vmul.f32 %v547, %v527
    %v552 = vadd.f32 %v548, 1e-06
    %v553 = vadd.f32 %v549, 1e-06
    %v554 = vadd.f32 %v550, 1e-06
    %v555 = vadd.f32 %v551, 1e-06
    %v556 = vrsqrt.pop %v552
    %v557 = vmul.f32 %v556, %v552
    %v558 = vmul.f32 %v557, %v556
    %v559 = vmul.f32 0.5, %v558
    %v560 = vsub.f32 1.5, %v559
    %v561 = vmul.f32 %v556, %v560
    %vm562 = vweird.f32 %v552
    %vm563 = vweird.f32 %v556
    %vm564 = vmor %vm562, %vm563
    %v565 = vsel %vm564, %v556, %v561
    %v566 = vrsqrt.pop %v553
    %v567 = vmul.f32 %v566, %v553
    %v568 = vmul.f32 %v567, %v566
    %v569 = vmul.f32 0.5, %v568
    %v570 = vsub.f32 1.5, %v569
    %v571 = vmul.f32 %v566, %v570
    %vm572 = vweird.f32 %v553
    %vm573 = vweird.f32 %v566
    %vm574 = vmor %vm572, %vm573
    %v575 = vsel %vm574, %v566, %v571
    %v576 = vrsqrt.pop %v554
    %v577 = vmul.f32 %v576, %v554
    %v578 = vmul.f32 %v577, %v576
    %v579 = vmul.f32 0.5, %v578
    %v580 = vsub.f32 1.5, %v579
    %v581 = vmul.f32 %v576, %v580
    %vm582 = vweird.f32 %v554
    %vm583 = vweird.f32 %v576
    %vm584 = vmor %vm582, %vm583
    %v585 = vsel %vm584, %v576, %v581
    %v586 = vrsqrt.pop %v555
    %v587 = vmul.f32 %v586, %v555
    %v588 = vmul.f32 %v587, %v586
    %v589 = vmul.f32 0.5, %v588
    %v590 = vsub.f32 1.5, %v589
    %v591 = vmul.f32 %v586, %v590
    %vm592 = vweird.f32 %v555
    %vm593 = vweird.f32 %v586
    %vm594 = vmor %vm592, %vm593
    %v595 = vsel %vm594, %v586, %v591
    %v596 = vmul.f32 %v532, %v565
    %v597 = vmul.f32 %v533, %v575
    %v598 = vmul.f32 %v534, %v585
    %v599 = vmul.f32 %v535, %v595
    %v600 = vadd.f32 %v457, 1.0
    %v601 = vadd.f32 %v504, 1.0
    %v604 = vperm.slane %v600, 0
    %v605 = vperm.slane %v601, 0
    %v608 = vmul.f32 %v596, %v604
    %v609 = vmul.f32 %v597, %v604
    %v610 = vmul.f32 %v598, %v605
    %v611 = vmul.f32 %v599, %v605
    %v612 = vperm.slane %v483, 0
    %v613 = vperm.slane %v510, 0
    %v616 = vadd.f32 %v608, %v612
    %v617 = vadd.f32 %v609, %v612
    %v618 = vadd.f32 %v610, %v613
    %v619 = vadd.f32 %v611, %v613
    %v620 = vld [vmem:[#allocation7] sm:$0xff]
    %v621 = vld [vmem:[#allocation7 + $0x8] sm:$0xf]
    %v622 = vld [vmem:[#allocation7 + $0xc] sm:$0xff]
    %v623 = vld [vmem:[#allocation7 + $0x14] sm:$0xf]
    %v624 = vld [vmem:[#allocation7 + $0x18] sm:$0xff]
    %v625 = vld [vmem:[#allocation7 + $0x20] sm:$0xf]
    %v626 = vld [vmem:[#allocation7 + $0x24] sm:$0xff]
    %v627 = vld [vmem:[#allocation7 + $0x2c] sm:$0xf]
    %v628 = vld [vmem:[#allocation7 + $0x30] sm:$0xff]
    %v629 = vld [vmem:[#allocation7 + $0x38] sm:$0xf]
    %v630 = vld [vmem:[#allocation7 + $0x3c] sm:$0xff]
    %v631 = vld [vmem:[#allocation7 + $0x44] sm:$0xf]
    %v632 = vld [vmem:[#allocation7 + $0x48] sm:$0xff]
    %v633 = vld [vmem:[#allocation7 + $0x50] sm:$0xf]
    %v634 = vld [vmem:[#allocation7 + $0x54] sm:$0xff]
    %v635 = vld [vmem:[#allocation7 + $0x5c] sm:$0xf]
    %v636 = vld [vmem:[#allocation7 + $0x60] sm:$0xff]
    %v637 = vld [vmem:[#allocation7 + $0x68] sm:$0xf]
    %v638 = vld [vmem:[#allocation7 + $0x6c] sm:$0xff]
    %v639 = vld [vmem:[#allocation7 + $0x74] sm:$0xf]
    %v640 = vld [vmem:[#allocation7 + $0x78] sm:$0xff]
    %v641 = vld [vmem:[#allocation7 + $0x80] sm:$0xf]
    %v642 = vld [vmem:[#allocation7 + $0x84] sm:$0xff]
    %v643 = vld [vmem:[#allocation7 + $0x8c] sm:$0xf]
    %v644 = vld [vmem:[#allocation7 + $0x90] sm:$0xff]
    %v645 = vld [vmem:[#allocation7 + $0x98] sm:$0xf]
    %v646 = vld [vmem:[#allocation7 + $0x9c] sm:$0xff]
    %v647 = vld [vmem:[#allocation7 + $0xa4] sm:$0xf]
    %v648 = vld [vmem:[#allocation7 + $0xa8] sm:$0xff]
    %v649 = vld [vmem:[#allocation7 + $0xb0] sm:$0xf]
    %v650 = vld [vmem:[#allocation7 + $0xb4] sm:$0xff]
    %v651 = vld [vmem:[#allocation7 + $0xbc] sm:$0xf]
    %v652 = vpack.c.bf16 %v617, %v616
    %v653 = vpack.c.bf16 %v619, %v618
    %v654 = vld [vmem:[#allocation9] sm:$0x7]
    %v656 = vperm.slane %v654, 0
    %v657 = vperm.slane %v654, 1
    %v658 = vperm.slane %v654, 2
    %v694 = vunpack.c.l.b16 %v620
    %v695 = vunpack.c.h.b16 %v620
    %v696 = vunpack.c.l.b16 %v621
    %v697 = vunpack.c.l.b16 %v622
    %v698 = vunpack.c.h.b16 %v622
    %v699 = vunpack.c.l.b16 %v623
    %v700 = vunpack.c.l.b16 %v624
    %v701 = vunpack.c.h.b16 %v624
    %v702 = vunpack.c.l.b16 %v625
    %v703 = vunpack.c.l.b16 %v626
    %v704 = vunpack.c.h.b16 %v626
    %v705 = vunpack.c.l.b16 %v627
    %v706 = vunpack.c.l.b16 %v628
    %v707 = vunpack.c.h.b16 %v628
    %v708 = vunpack.c.l.b16 %v629
    %v709 = vunpack.c.l.b16 %v630
    %v710 = vunpack.c.h.b16 %v630
    %v711 = vunpack.c.l.b16 %v631
    %v712 = vunpack.c.l.b16 %v632
    %v713 = vunpack.c.h.b16 %v632
    %v714 = vunpack.c.l.b16 %v633
    %v715 = vunpack.c.l.b16 %v634
    %v716 = vunpack.c.h.b16 %v634
    %v717 = vunpack.c.l.b16 %v635
    %v718 = vunpack.c.l.b16 %v636
    %v719 = vunpack.c.h.b16 %v636
    %v720 = vunpack.c.l.b16 %v637
    %v721 = vunpack.c.l.b16 %v638
    %v722 = vunpack.c.h.b16 %v638
    %v723 = vunpack.c.l.b16 %v639
    %v724 = vunpack.c.l.b16 %v640
    %v725 = vunpack.c.h.b16 %v640
    %v726 = vunpack.c.l.b16 %v641
    %v727 = vunpack.c.l.b16 %v642
    %v728 = vunpack.c.h.b16 %v642
    %v729 = vunpack.c.l.b16 %v643
    %v730 = vunpack.c.l.b16 %v644
    %v731 = vunpack.c.h.b16 %v644
    %v732 = vunpack.c.l.b16 %v645
    %v733 = vunpack.c.l.b16 %v646
    %v734 = vunpack.c.h.b16 %v646
    %v735 = vunpack.c.l.b16 %v647
    %v736 = vunpack.c.l.b16 %v648
    %v737 = vunpack.c.h.b16 %v648
    %v738 = vunpack.c.l.b16 %v649
    %v739 = vunpack.c.l.b16 %v650
    %v740 = vunpack.c.h.b16 %v650
    %v741 = vunpack.c.l.b16 %v651
    %v742 = vpack.c.b16 %v697, %v694
    %v743 = vpack.c.b16 %v698, %v695
    %v744 = vpack.c.b16 %v699, %v696
    %v745 = vpack.c.b16 %v703, %v700
    %v746 = vpack.c.b16 %v704, %v701
    %v747 = vpack.c.b16 %v705, %v702
    %v748 = vpack.c.b16 %v709, %v706
    %v749 = vpack.c.b16 %v710, %v707
    %v750 = vpack.c.b16 %v711, %v708
    %v751 = vpack.c.b16 %v715, %v712
    %v752 = vpack.c.b16 %v716, %v713
    %v753 = vpack.c.b16 %v717, %v714
    %v754 = vpack.c.b16 %v721, %v718
    %v755 = vpack.c.b16 %v722, %v719
    %v756 = vpack.c.b16 %v723, %v720
    %v757 = vpack.c.b16 %v727, %v724
    %v758 = vpack.c.b16 %v728, %v725
    %v759 = vpack.c.b16 %v729, %v726
    %v760 = vpack.c.b16 %v733, %v730
    %v761 = vpack.c.b16 %v734, %v731
    %v762 = vpack.c.b16 %v735, %v732
    %v763 = vpack.c.b16 %v739, %v736
    %v764 = vpack.c.b16 %v740, %v737
    %v765 = vpack.c.b16 %v741, %v738
    %790 = vmatpush.bf16.msra.mxu0 %v763
    %791 = vmatpush.bf16.msra.mxu0 %v760
    %792 = vmatpush.bf16.msra.mxu0 %v757
    %793 = vmatpush.bf16.msra.mxu0 %v754
    %794 = vmatpush.bf16.msra.mxu0 %v751
    %795 = vmatpush.bf16.msra.mxu0 %v748
    %796 = vmatpush.bf16.msra.mxu0 %v745
    %797 = vmatpush.bf16.msra.mxu0 %v742
    %798 = vmatmul.bf16.gmra.mxu0 %v652
    %v799 = vpop.f32.mrf.mxu0
    %v800 = vadd.f32 %v656, %v799
    %v801 = vpop.f32.mrf.mxu0
    %v802 = vadd.f32 %v656, %v801
    %803 = vmatmul.bf16.gmra.mxu0 %v653
    %v804 = vpop.f32.mrf.mxu0
    %v805 = vadd.f32 %v656, %v804
    %v806 = vpop.f32.mrf.mxu0
    %v807 = vadd.f32 %v656, %v806
    %808 = vdwg.mxu0
    %809 = vmatpush.bf16.msra.mxu0 %v764
    %810 = vmatpush.bf16.msra.mxu0 %v761
    %811 = vmatpush.bf16.msra.mxu0 %v758
    %812 = vmatpush.bf16.msra.mxu0 %v755
    %813 = vmatpush.bf16.msra.mxu0 %v752
    %814 = vmatpush.bf16.msra.mxu0 %v749
    %815 = vmatpush.bf16.msra.mxu0 %v746
    %816 = vmatpush.bf16.msra.mxu0 %v743
    %817 = vmatmul.bf16.gmra.mxu0 %v652
    %v818 = vpop.f32.mrf.mxu0
    %v819 = vadd.f32 %v657, %v818
    %v820 = vpop.f32.mrf.mxu0
    %v821 = vadd.f32 %v657, %v820
    %822 = vmatmul.bf16.gmra.mxu0 %v653
    %v823 = vpop.f32.mrf.mxu0
    %v824 = vadd.f32 %v657, %v823
    %v825 = vpop.f32.mrf.mxu0
    %v826 = vadd.f32 %v657, %v825
    %827 = vdwg.mxu0
    %828 = vmatpush.bf16.msra.mxu0 %v765
    %829 = vmatpush.bf16.msra.mxu0 %v762
    %830 = vmatpush.bf16.msra.mxu0 %v759
    %831 = vmatpush.bf16.msra.mxu0 %v756
    %832 = vmatpush.bf16.msra.mxu0 %v753
    %833 = vmatpush.bf16.msra.mxu0 %v750
    %834 = vmatpush.bf16.msra.mxu0 %v747
    %835 = vmatpush.bf16.msra.mxu0 %v744
    %836 = vmatmul.bf16.gmra.mxu0 %v652
    %v837 = vpop.f32.mrf.mxu0
    %v838 = vadd.f32 %v658, %v837
    %v839 = vpop.f32.mrf.mxu0
    %v840 = vadd.f32 %v658, %v839
    %841 = vmatmul.bf16.gmra.mxu0 %v653
    %v842 = vpop.f32.mrf.mxu0
    %v843 = vadd.f32 %v658, %v842
    %v844 = vpop.f32.mrf.mxu0
    %v845 = vadd.f32 %v658, %v844
    %846 = vdwg.mxu0
    %v847 = vlaneseq
    %v848 = vshrl.u32 %v847, 7
    %v849 = vadd.s32 %v848, 8
    %v850 = vlaneseq
    %v851 = vand.u32 %v850, 127
    %v852 = vmul.u32 %v848, 8
    %v853 = vmul.u32 %v849, 8
    %vm854 = vcmp.ge.s32.totalorder %v851, %v852
    %vm855 = vcmp.ge.s32.totalorder %v851, %v853
    %v856 = vadd.s32 %v848, 1
    %v857 = vadd.s32 %v849, 1
    %v858 = vmul.u32 %v856, 8
    %v859 = vmul.u32 %v857, 8
    %vm860 = vcmp.lt.s32.totalorder %v851, %v858
    %vm861 = vcmp.lt.s32.totalorder %v851, %v859
    %vm862 = vmand %vm854, %vm860
    %vm863 = vmand %vm855, %vm861
    %v864 = vsel %vm862, 1, 0
    %v865 = vsel %vm863, 1, 0
    %v866 = vrot.slane %v864, 1
    %v867 = vrot.slane %v864, 2
    %v868 = vrot.slane %v864, 3
    %v869 = vrot.slane %v864, 4
    %v870 = vrot.slane %v864, 5
    %v871 = vrot.slane %v864, 6
    %v872 = vrot.slane %v864, 7
    %v873 = vrot.slane %v865, 1
    %v874 = vrot.slane %v865, 2
    %v875 = vrot.slane %v865, 3
    %v876 = vrot.slane %v865, 4
    %v877 = vrot.slane %v865, 5
    %v878 = vrot.slane %v865, 6
    %v879 = vrot.slane %v865, 7
    %vm880 = vcmp.ne.s32.totalorder %v866, 0
    %vm881 = vcmp.ne.s32.totalorder %v867, 0
    %vm882 = vcmp.ne.s32.totalorder %v868, 0
    %vm883 = vcmp.ne.s32.totalorder %v869, 0
    %vm884 = vcmp.ne.s32.totalorder %v870, 0
    %vm885 = vcmp.ne.s32.totalorder %v871, 0
    %vm886 = vcmp.ne.s32.totalorder %v872, 0
    %vm887 = vcmp.ne.s32.totalorder %v873, 0
    %vm888 = vcmp.ne.s32.totalorder %v874, 0
    %vm889 = vcmp.ne.s32.totalorder %v875, 0
    %vm890 = vcmp.ne.s32.totalorder %v876, 0
    %vm891 = vcmp.ne.s32.totalorder %v877, 0
    %vm892 = vcmp.ne.s32.totalorder %v878, 0
    %vm893 = vcmp.ne.s32.totalorder %v879, 0
    %v894 = vsel %vm880, 1, 0
    %v895 = vsel %vm881, 1, 0
    %v896 = vsel %vm882, 1, 0
    %v897 = vsel %vm883, 1, 0
    %v898 = vsel %vm884, 1, 0
    %v899 = vsel %vm885, 1, 0
    %v900 = vsel %vm886, 1, 0
    %v901 = vsel %vm887, 1, 0
    %v902 = vsel %vm888, 1, 0
    %v903 = vsel %vm889, 1, 0
    %v904 = vsel %vm890, 1, 0
    %v905 = vsel %vm891, 1, 0
    %v906 = vsel %vm892, 1, 0
    %v907 = vsel %vm893, 1, 0
    %v908 = vperm.slane %v864, 0
    %v909 = vperm.slane %v894, 0
    %v910 = vperm.slane %v895, 0
    %v911 = vperm.slane %v896, 0
    %v912 = vperm.slane %v897, 0
    %v913 = vperm.slane %v898, 0
    %v914 = vperm.slane %v899, 0
    %v915 = vperm.slane %v900, 0
    %v916 = vperm.slane %v865, 0
    %v917 = vperm.slane %v901, 0
    %v918 = vperm.slane %v902, 0
    %v919 = vperm.slane %v903, 0
    %v920 = vperm.slane %v904, 0
    %v921 = vperm.slane %v905, 0
    %v922 = vperm.slane %v906, 0
    %v923 = vperm.slane %v907, 0
    %vm924 = vcmp.eq.s32.totalorder %v908, 1
    %vm925 = vcmp.eq.s32.totalorder %v909, 1
    %vm926 = vcmp.eq.s32.totalorder %v910, 1
    %vm927 = vcmp.eq.s32.totalorder %v911, 1
    %vm928 = vcmp.eq.s32.totalorder %v912, 1
    %vm929 = vcmp.eq.s32.totalorder %v913, 1
    %vm930 = vcmp.eq.s32.totalorder %v914, 1
    %vm931 = vcmp.eq.s32.totalorder %v915, 1
    %vm932 = vcmp.eq.s32.totalorder %v916, 1
    %vm933 = vcmp.eq.s32.totalorder %v917, 1
    %vm934 = vcmp.eq.s32.totalorder %v918, 1
    %vm935 = vcmp.eq.s32.totalorder %v919, 1
    %vm936 = vcmp.eq.s32.totalorder %v920, 1
    %vm937 = vcmp.eq.s32.totalorder %v921, 1
    %vm938 = vcmp.eq.s32.totalorder %v922, 1
    %vm939 = vcmp.eq.s32.totalorder %v923, 1
    %v940 = vmul.f32 %v800, 0.35355338
    %v941 = vmul.f32 %v802, 0.35355338
    %v942 = vmul.f32 %v805, 0.35355338
    %v943 = vmul.f32 %v807, 0.35355338
    %v944 = vsel %vm924, 1, 0
    %v945 = vsel %vm925, 1, 0
    %v946 = vsel %vm926, 1, 0
    %v947 = vsel %vm927, 1, 0
    %v948 = vsel %vm928, 1, 0
    %v949 = vsel %vm929, 1, 0
    %v950 = vsel %vm930, 1, 0
    %v951 = vsel %vm931, 1, 0
    %v952 = vsel %vm932, 1, 0
    %v953 = vsel %vm933, 1, 0
    %v954 = vsel %vm934, 1, 0
    %v955 = vsel %vm935, 1, 0
    %v956 = vsel %vm936, 1, 0
    %v957 = vsel %vm937, 1, 0
    %v958 = vsel %vm938, 1, 0
    %v959 = vsel %vm939, 1, 0
    %vm960 = vcmp.eq.s32.totalorder %v944, 1
    %vm961 = vcmp.eq.s32.totalorder %v945, 1
    %vm962 = vcmp.eq.s32.totalorder %v946, 1
    %vm963 = vcmp.eq.s32.totalorder %v947, 1
    %vm964 = vcmp.eq.s32.totalorder %v948, 1
    %vm965 = vcmp.eq.s32.totalorder %v949, 1
    %vm966 = vcmp.eq.s32.totalorder %v950, 1
    %vm967 = vcmp.eq.s32.totalorder %v951, 1
    %vm968 = vcmp.eq.s32.totalorder %v952, 1
    %vm969 = vcmp.eq.s32.totalorder %v953, 1
    %vm970 = vcmp.eq.s32.totalorder %v954, 1
    %vm971 = vcmp.eq.s32.totalorder %v955, 1
    %vm972 = vcmp.eq.s32.totalorder %v956, 1
    %vm973 = vcmp.eq.s32.totalorder %v957, 1
    %vm974 = vcmp.eq.s32.totalorder %v958, 1
    %vm975 = vcmp.eq.s32.totalorder %v959, 1
    %v976 = vsel %vm960, %v940, 0.0
    %v977 = vsel %vm960, %v941, 0.0
    %v978 = vsel %vm961, %v940, 0.0
    %v979 = vsel %vm961, %v941, 0.0
    %v980 = vsel %vm962, %v940, 0.0
    %v981 = vsel %vm962, %v941, 0.0
    %v982 = vsel %vm963, %v940, 0.0
    %v983 = vsel %vm963, %v941, 0.0
    %v984 = vsel %vm964, %v940, 0.0
    %v985 = vsel %vm964, %v941, 0.0
    %v986 = vsel %vm965, %v940, 0.0
    %v987 = vsel %vm965, %v941, 0.0
    %v988 = vsel %vm966, %v940, 0.0
    %v989 = vsel %vm966, %v941, 0.0
    %v990 = vsel %vm967, %v940, 0.0
    %v991 = vsel %vm967, %v941, 0.0
    %v992 = vsel %vm968, %v940, 0.0
    %v993 = vsel %vm968, %v941, 0.0
    %v994 = vsel %vm969, %v940, 0.0
    %v995 = vsel %vm969, %v941, 0.0
    %v996 = vsel %vm970, %v940, 0.0
    %v997 = vsel %vm970, %v941, 0.0
    %v998 = vsel %vm971, %v940, 0.0
    %v999 = vsel %vm971, %v941, 0.0
    %v1000 = vsel %vm972, %v940, 0.0
    %v1001 = vsel %vm972, %v941, 0.0
    %v1002 = vsel %vm973, %v940, 0.0
    %v1003 = vsel %vm973, %v941, 0.0
    %v1004 = vsel %vm974, %v940, 0.0
    %v1005 = vsel %vm974, %v941, 0.0
    %v1006 = vsel %vm975, %v940, 0.0
    %v1007 = vsel %vm975, %v941, 0.0
    %v1008 = vsel %vm960, %v942, 0.0
    %v1009 = vsel %vm960, %v943, 0.0
    %v1010 = vsel %vm961, %v942, 0.0
    %v1011 = vsel %vm961, %v943, 0.0
    %v1012 = vsel %vm962, %v942, 0.0
    %v1013 = vsel %vm962, %v943, 0.0
    %v1014 = vsel %vm963, %v942, 0.0
    %v1015 = vsel %vm963, %v943, 0.0
    %v1016 = vsel %vm964, %v942, 0.0
    %v1017 = vsel %vm964, %v943, 0.0
    %v1018 = vsel %vm965, %v942, 0.0
    %v1019 = vsel %vm965, %v943, 0.0
    %v1020 = vsel %vm966, %v942, 0.0
    %v1021 = vsel %vm966, %v943, 0.0
    %v1022 = vsel %vm967, %v942, 0.0
    %v1023 = vsel %vm967, %v943, 0.0
    %v1024 = vsel %vm968, %v942, 0.0
    %v1025 = vsel %vm968, %v943, 0.0
    %v1026 = vsel %vm969, %v942, 0.0
    %v1027 = vsel %vm969, %v943, 0.0
    %v1028 = vsel %vm970, %v942, 0.0
    %v1029 = vsel %vm970, %v943, 0.0
    %v1030 = vsel %vm971, %v942, 0.0
    %v1031 = vsel %vm971, %v943, 0.0
    %v1032 = vsel %vm972, %v942, 0.0
    %v1033 = vsel %vm972, %v943, 0.0
    %v1034 = vsel %vm973, %v942, 0.0
    %v1035 = vsel %vm973, %v943, 0.0
    %v1036 = vsel %vm974, %v942, 0.0
    %v1037 = vsel %vm974, %v943, 0.0
    %v1038 = vsel %vm975, %v942, 0.0
    %v1039 = vsel %vm975, %v943, 0.0
    %v1040 = vpack.c.bf16 %v976, %v976
    %v1041 = vpack.c.bf16 %v977, %v977
    %v1042 = vpack.c.bf16 %v978, %v978
    %v1043 = vpack.c.bf16 %v979, %v979
    %v1044 = vpack.c.bf16 %v980, %v980
    %v1045 = vpack.c.bf16 %v981, %v981
    %v1046 = vpack.c.bf16 %v982, %v982
    %v1047 = vpack.c.bf16 %v983, %v983
    %v1048 = vpack.c.bf16 %v984, %v984
    %v1049 = vpack.c.bf16 %v985, %v985
    %v1050 = vpack.c.bf16 %v986, %v986
    %v1051 = vpack.c.bf16 %v987, %v987
    %v1052 = vpack.c.bf16 %v988, %v988
    %v1053 = vpack.c.bf16 %v989, %v989
    %v1054 = vpack.c.bf16 %v990, %v990
    %v1055 = vpack.c.bf16 %v991, %v991
    %v1056 = vpack.c.bf16 %v992, %v992
    %v1057 = vpack.c.bf16 %v993, %v993
    %v1058 = vpack.c.bf16 %v994, %v994
    %v1059 = vpack.c.bf16 %v995, %v995
    %v1060 = vpack.c.bf16 %v996, %v996
    %v1061 = vpack.c.bf16 %v997, %v997
    %v1062 = vpack.c.bf16 %v998, %v998
    %v1063 = vpack.c.bf16 %v999, %v999
    %v1064 = vpack.c.bf16 %v1000, %v1000
    %v1065 = vpack.c.bf16 %v1001, %v1001
    %v1066 = vpack.c.bf16 %v1002, %v1002
    %v1067 = vpack.c.bf16 %v1003, %v1003
    %v1068 = vpack.c.bf16 %v1004, %v1004
    %v1069 = vpack.c.bf16 %v1005, %v1005
    %v1070 = vpack.c.bf16 %v1006, %v1006
    %v1071 = vpack.c.bf16 %v1007, %v1007
    %v1072 = vpack.c.bf16 %v1008, %v1008
    %v1073 = vpack.c.bf16 %v1009, %v1009
    %v1074 = vpack.c.bf16 %v1010, %v1010
    %v1075 = vpack.c.bf16 %v1011, %v1011
    %v1076 = vpack.c.bf16 %v1012, %v1012
    %v1077 = vpack.c.bf16 %v1013, %v1013
    %v1078 = vpack.c.bf16 %v1014, %v1014
    %v1079 = vpack.c.bf16 %v1015, %v1015
    %v1080 = vpack.c.bf16 %v1016, %v1016
    %v1081 = vpack.c.bf16 %v1017, %v1017
    %v1082 = vpack.c.bf16 %v1018, %v1018
    %v1083 = vpack.c.bf16 %v1019, %v1019
    %v1084 = vpack.c.bf16 %v1020, %v1020
    %v1085 = vpack.c.bf16 %v1021, %v1021
    %v1086 = vpack.c.bf16 %v1022, %v1022
    %v1087 = vpack.c.bf16 %v1023, %v1023
    %v1088 = vpack.c.bf16 %v1024, %v1024
    %v1089 = vpack.c.bf16 %v1025, %v1025
    %v1090 = vpack.c.bf16 %v1026, %v1026
    %v1091 = vpack.c.bf16 %v1027, %v1027
    %v1092 = vpack.c.bf16 %v1028, %v1028
    %v1093 = vpack.c.bf16 %v1029, %v1029
    %v1094 = vpack.c.bf16 %v1030, %v1030
    %v1095 = vpack.c.bf16 %v1031, %v1031
    %v1096 = vpack.c.bf16 %v1032, %v1032
    %v1097 = vpack.c.bf16 %v1033, %v1033
    %v1098 = vpack.c.bf16 %v1034, %v1034
    %v1099 = vpack.c.bf16 %v1035, %v1035
    %v1100 = vpack.c.bf16 %v1036, %v1036
    %v1101 = vpack.c.bf16 %v1037, %v1037
    %v1102 = vpack.c.bf16 %v1038, %v1038
    %v1103 = vpack.c.bf16 %v1039, %v1039
    %v1104 = vpack.c.bf16 %v819, %v819
    %v1105 = vpack.c.bf16 %v821, %v821
    %v1106 = vpack.c.bf16 %v824, %v824
    %v1107 = vpack.c.bf16 %v826, %v826
    %v1140 = vunpack.c.l.b16 %v1040
    %v1141 = vunpack.c.l.b16 %v1041
    %v1142 = vunpack.c.l.b16 %v1042
    %v1143 = vunpack.c.l.b16 %v1043
    %v1144 = vunpack.c.l.b16 %v1044
    %v1145 = vunpack.c.l.b16 %v1045
    %v1146 = vunpack.c.l.b16 %v1046
    %v1147 = vunpack.c.l.b16 %v1047
    %v1148 = vunpack.c.l.b16 %v1048
    %v1149 = vunpack.c.l.b16 %v1049
    %v1150 = vunpack.c.l.b16 %v1050
    %v1151 = vunpack.c.l.b16 %v1051
    %v1152 = vunpack.c.l.b16 %v1052
    %v1153 = vunpack.c.l.b16 %v1053
    %v1154 = vunpack.c.l.b16 %v1054
    %v1155 = vunpack.c.l.b16 %v1055
    %v1156 = vunpack.c.l.b16 %v1056
    %v1157 = vunpack.c.l.b16 %v1057
    %v1158 = vunpack.c.l.b16 %v1058
    %v1159 = vunpack.c.l.b16 %v1059
    %v1160 = vunpack.c.l.b16 %v1060
    %v1161 = vunpack.c.l.b16 %v1061
    %v1162 = vunpack.c.l.b16 %v1062
    %v1163 = vunpack.c.l.b16 %v1063
    %v1164 = vunpack.c.l.b16 %v1064
    %v1165 = vunpack.c.l.b16 %v1065
    %v1166 = vunpack.c.l.b16 %v1066
    %v1167 = vunpack.c.l.b16 %v1067
    %v1168 = vunpack.c.l.b16 %v1068
    %v1169 = vunpack.c.l.b16 %v1069
    %v1170 = vunpack.c.l.b16 %v1070
    %v1171 = vunpack.c.l.b16 %v1071
    %v1172 = vpack.c.b16 %v1141, %v1140
    %v1173 = vpack.c.b16 %v1143, %v1142
    %v1174 = vpack.c.b16 %v1145, %v1144
    %v1175 = vpack.c.b16 %v1147, %v1146
    %v1176 = vpack.c.b16 %v1149, %v1148
    %v1177 = vpack.c.b16 %v1151, %v1150
    %v1178 = vpack.c.b16 %v1153, %v1152
    %v1179 = vpack.c.b16 %v1155, %v1154
    %v1180 = vpack.c.b16 %v1157, %v1156
    %v1181 = vpack.c.b16 %v1159, %v1158
    %v1182 = vpack.c.b16 %v1161, %v1160
    %v1183 = vpack.c.b16 %v1163, %v1162
    %v1184 = vpack.c.b16 %v1165, %v1164
    %v1185 = vpack.c.b16 %v1167, %v1166
    %v1186 = vpack.c.b16 %v1169, %v1168
    %v1187 = vpack.c.b16 %v1171, %v1170
    %v1206 = vunpack.c.l.b16 %v1104
    %v1207 = vunpack.c.l.b16 %v1105
    %v1208 = vpack.c.b16 %v1207, %v1206
    %1210 = vmatpush.bf16.xpose.msra.mxu0 0
    %1211 = vmatpush.bf16.xpose.msra.mxu0 0
    %1212 = vmatpush.bf16.xpose.msra.mxu0 0
    %1213 = vmatpush.bf16.xpose.msra.mxu0 0
    %1214 = vmatpush.bf16.xpose.msra.mxu0 0
    %1215 = vmatpush.bf16.xpose.msra.mxu0 0
    %1216 = vmatpush.bf16.xpose.msra.mxu0 0
    %1217 = vmatpush.bf16.xpose.msra.mxu0 %v1208
    %1218 = vmatmul.bf16.gmra.mxu0 %v1172
    %v1219 = vpop.f32.mrf.mxu0
    %v1220 = vadd.f32 0.0, %v1219
    %v1221 = vpop.f32.mrf.mxu0
    %v1222 = vadd.f32 0.0, %v1221
    %1223 = vmatmul.bf16.gmra.mxu0 %v1173
    %v1224 = vpop.f32.mrf.mxu0
    %v1225 = vadd.f32 0.0, %v1224
    %v1226 = vpop.f32.mrf.mxu0
    %v1227 = vadd.f32 0.0, %v1226
    %1228 = vmatmul.bf16.gmra.mxu0 %v1174
    %v1229 = vpop.f32.mrf.mxu0
    %v1230 = vadd.f32 0.0, %v1229
    %v1231 = vpop.f32.mrf.mxu0
    %v1232 = vadd.f32 0.0, %v1231
    %1233 = vmatmul.bf16.gmra.mxu0 %v1175
    %v1234 = vpop.f32.mrf.mxu0
    %v1235 = vadd.f32 0.0, %v1234
    %v1236 = vpop.f32.mrf.mxu0
    %v1237 = vadd.f32 0.0, %v1236
    %1238 = vmatmul.bf16.gmra.mxu0 %v1176
    %v1239 = vpop.f32.mrf.mxu0
    %v1240 = vadd.f32 0.0, %v1239
    %v1241 = vpop.f32.mrf.mxu0
    %v1242 = vadd.f32 0.0, %v1241
    %1243 = vmatmul.bf16.gmra.mxu0 %v1177
    %v1244 = vpop.f32.mrf.mxu0
    %v1245 = vadd.f32 0.0, %v1244
    %v1246 = vpop.f32.mrf.mxu0
    %v1247 = vadd.f32 0.0, %v1246
    %1248 = vmatmul.bf16.gmra.mxu0 %v1178
    %v1249 = vpop.f32.mrf.mxu0
    %v1250 = vadd.f32 0.0, %v1249
    %v1251 = vpop.f32.mrf.mxu0
    %v1252 = vadd.f32 0.0, %v1251
    %1253 = vmatmul.bf16.gmra.mxu0 %v1179
    %v1254 = vpop.f32.mrf.mxu0
    %v1255 = vadd.f32 0.0, %v1254
    %v1256 = vpop.f32.mrf.mxu0
    %v1257 = vadd.f32 0.0, %v1256
    %1258 = vmatmul.bf16.gmra.mxu0 %v1180
    %v1259 = vpop.f32.mrf.mxu0
    %v1260 = vadd.f32 0.0, %v1259
    %v1261 = vpop.f32.mrf.mxu0
    %v1262 = vadd.f32 0.0, %v1261
    %1263 = vmatmul.bf16.gmra.mxu0 %v1181
    %v1264 = vpop.f32.mrf.mxu0
    %v1265 = vadd.f32 0.0, %v1264
    %v1266 = vpop.f32.mrf.mxu0
    %v1267 = vadd.f32 0.0, %v1266
    %1268 = vmatmul.bf16.gmra.mxu0 %v1182
    %v1269 = vpop.f32.mrf.mxu0
    %v1270 = vadd.f32 0.0, %v1269
    %v1271 = vpop.f32.mrf.mxu0
    %v1272 = vadd.f32 0.0, %v1271
    %1273 = vmatmul.bf16.gmra.mxu0 %v1183
    %v1274 = vpop.f32.mrf.mxu0
    %v1275 = vadd.f32 0.0, %v1274
    %v1276 = vpop.f32.mrf.mxu0
    %v1277 = vadd.f32 0.0, %v1276
    %1278 = vmatmul.bf16.gmra.mxu0 %v1184
    %v1279 = vpop.f32.mrf.mxu0
    %v1280 = vadd.f32 0.0, %v1279
    %v1281 = vpop.f32.mrf.mxu0
    %v1282 = vadd.f32 0.0, %v1281
    %1283 = vmatmul.bf16.gmra.mxu0 %v1185
    %v1284 = vpop.f32.mrf.mxu0
    %v1285 = vadd.f32 0.0, %v1284
    %v1286 = vpop.f32.mrf.mxu0
    %v1287 = vadd.f32 0.0, %v1286
    %1288 = vmatmul.bf16.gmra.mxu0 %v1186
    %v1289 = vpop.f32.mrf.mxu0
    %v1290 = vadd.f32 0.0, %v1289
    %v1291 = vpop.f32.mrf.mxu0
    %v1292 = vadd.f32 0.0, %v1291
    %1293 = vmatmul.bf16.gmra.mxu0 %v1187
    %v1294 = vpop.f32.mrf.mxu0
    %v1295 = vadd.f32 0.0, %v1294
    %v1296 = vpop.f32.mrf.mxu0
    %v1297 = vadd.f32 0.0, %v1296
    %1298 = vdwg.mxu0
    %v1331 = vunpack.c.l.b16 %v1072
    %v1332 = vunpack.c.l.b16 %v1073
    %v1333 = vunpack.c.l.b16 %v1074
    %v1334 = vunpack.c.l.b16 %v1075
    %v1335 = vunpack.c.l.b16 %v1076
    %v1336 = vunpack.c.l.b16 %v1077
    %v1337 = vunpack.c.l.b16 %v1078
    %v1338 = vunpack.c.l.b16 %v1079
    %v1339 = vunpack.c.l.b16 %v1080
    %v1340 = vunpack.c.l.b16 %v1081
    %v1341 = vunpack.c.l.b16 %v1082
    %v1342 = vunpack.c.l.b16 %v1083
    %v1343 = vunpack.c.l.b16 %v1084
    %v1344 = vunpack.c.l.b16 %v1085
    %v1345 = vunpack.c.l.b16 %v1086
    %v1346 = vunpack.c.l.b16 %v1087
    %v1347 = vunpack.c.l.b16 %v1088
    %v1348 = vunpack.c.l.b16 %v1089
    %v1349 = vunpack.c.l.b16 %v1090
    %v1350 = vunpack.c.l.b16 %v1091
    %v1351 = vunpack.c.l.b16 %v1092
    %v1352 = vunpack.c.l.b16 %v1093
    %v1353 = vunpack.c.l.b16 %v1094
    %v1354 = vunpack.c.l.b16 %v1095
    %v1355 = vunpack.c.l.b16 %v1096
    %v1356 = vunpack.c.l.b16 %v1097
    %v1357 = vunpack.c.l.b16 %v1098
    %v1358 = vunpack.c.l.b16 %v1099
    %v1359 = vunpack.c.l.b16 %v1100
    %v1360 = vunpack.c.l.b16 %v1101
    %v1361 = vunpack.c.l.b16 %v1102
    %v1362 = vunpack.c.l.b16 %v1103
    %v1363 = vpack.c.b16 %v1332, %v1331
    %v1364 = vpack.c.b16 %v1334, %v1333
    %v1365 = vpack.c.b16 %v1336, %v1335
    %v1366 = vpack.c.b16 %v1338, %v1337
    %v1367 = vpack.c.b16 %v1340, %v1339
    %v1368 = vpack.c.b16 %v1342, %v1341
    %v1369 = vpack.c.b16 %v1344, %v1343
    %v1370 = vpack.c.b16 %v1346, %v1345
    %v1371 = vpack.c.b16 %v1348, %v1347
    %v1372 = vpack.c.b16 %v1350, %v1349
    %v1373 = vpack.c.b16 %v1352, %v1351
    %v1374 = vpack.c.b16 %v1354, %v1353
    %v1375 = vpack.c.b16 %v1356, %v1355
    %v1376 = vpack.c.b16 %v1358, %v1357
    %v1377 = vpack.c.b16 %v1360, %v1359
    %v1378 = vpack.c.b16 %v1362, %v1361
    %v1397 = vunpack.c.l.b16 %v1106
    %v1398 = vunpack.c.l.b16 %v1107
    %v1399 = vpack.c.b16 %v1398, %v1397
    %1401 = vmatpush.bf16.xpose.msra.mxu0 0
    %1402 = vmatpush.bf16.xpose.msra.mxu0 0
    %1403 = vmatpush.bf16.xpose.msra.mxu0 0
    %1404 = vmatpush.bf16.xpose.msra.mxu0 0
    %1405 = vmatpush.bf16.xpose.msra.mxu0 0
    %1406 = vmatpush.bf16.xpose.msra.mxu0 0
    %1407 = vmatpush.bf16.xpose.msra.mxu0 0
    %1408 = vmatpush.bf16.xpose.msra.mxu0 %v1399
    %1409 = vmatmul.bf16.gmra.mxu0 %v1363
    %v1410 = vpop.f32.mrf.mxu0
    %v1411 = vadd.f32 0.0, %v1410
    %v1412 = vpop.f32.mrf.mxu0
    %v1413 = vadd.f32 0.0, %v1412
    %1414 = vmatmul.bf16.gmra.mxu0 %v1364
    %v1415 = vpop.f32.mrf.mxu0
    %v1416 = vadd.f32 0.0, %v1415
    %v1417 = vpop.f32.mrf.mxu0
    %v1418 = vadd.f32 0.0, %v1417
    %1419 = vmatmul.bf16.gmra.mxu0 %v1365
    %v1420 = vpop.f32.mrf.mxu0
    %v1421 = vadd.f32 0.0, %v1420
    %v1422 = vpop.f32.mrf.mxu0
    %v1423 = vadd.f32 0.0, %v1422
    %1424 = vmatmul.bf16.gmra.mxu0 %v1366
    %v1425 = vpop.f32.mrf.mxu0
    %v1426 = vadd.f32 0.0, %v1425
    %v1427 = vpop.f32.mrf.mxu0
    %v1428 = vadd.f32 0.0, %v1427
    %1429 = vmatmul.bf16.gmra.mxu0 %v1367
    %v1430 = vpop.f32.mrf.mxu0
    %v1431 = vadd.f32 0.0, %v1430
    %v1432 = vpop.f32.mrf.mxu0
    %v1433 = vadd.f32 0.0, %v1432
    %1434 = vmatmul.bf16.gmra.mxu0 %v1368
    %v1435 = vpop.f32.mrf.mxu0
    %v1436 = vadd.f32 0.0, %v1435
    %v1437 = vpop.f32.mrf.mxu0
    %v1438 = vadd.f32 0.0, %v1437
    %1439 = vmatmul.bf16.gmra.mxu0 %v1369
    %v1440 = vpop.f32.mrf.mxu0
    %v1441 = vadd.f32 0.0, %v1440
    %v1442 = vpop.f32.mrf.mxu0
    %v1443 = vadd.f32 0.0, %v1442
    %1444 = vmatmul.bf16.gmra.mxu0 %v1370
    %v1445 = vpop.f32.mrf.mxu0
    %v1446 = vadd.f32 0.0, %v1445
    %v1447 = vpop.f32.mrf.mxu0
    %v1448 = vadd.f32 0.0, %v1447
    %1449 = vmatmul.bf16.gmra.mxu0 %v1371
    %v1450 = vpop.f32.mrf.mxu0
    %v1451 = vadd.f32 0.0, %v1450
    %v1452 = vpop.f32.mrf.mxu0
    %v1453 = vadd.f32 0.0, %v1452
    %1454 = vmatmul.bf16.gmra.mxu0 %v1372
    %v1455 = vpop.f32.mrf.mxu0
    %v1456 = vadd.f32 0.0, %v1455
    %v1457 = vpop.f32.mrf.mxu0
    %v1458 = vadd.f32 0.0, %v1457
    %1459 = vmatmul.bf16.gmra.mxu0 %v1373
    %v1460 = vpop.f32.mrf.mxu0
    %v1461 = vadd.f32 0.0, %v1460
    %v1462 = vpop.f32.mrf.mxu0
    %v1463 = vadd.f32 0.0, %v1462
    %1464 = vmatmul.bf16.gmra.mxu0 %v1374
    %v1465 = vpop.f32.mrf.mxu0
    %v1466 = vadd.f32 0.0, %v1465
    %v1467 = vpop.f32.mrf.mxu0
    %v1468 = vadd.f32 0.0, %v1467
    %1469 = vmatmul.bf16.gmra.mxu0 %v1375
    %v1470 = vpop.f32.mrf.mxu0
    %v1471 = vadd.f32 0.0, %v1470
    %v1472 = vpop.f32.mrf.mxu0
    %v1473 = vadd.f32 0.0, %v1472
    %1474 = vmatmul.bf16.gmra.mxu0 %v1376
    %v1475 = vpop.f32.mrf.mxu0
    %v1476 = vadd.f32 0.0, %v1475
    %v1477 = vpop.f32.mrf.mxu0
    %v1478 = vadd.f32 0.0, %v1477
    %1479 = vmatmul.bf16.gmra.mxu0 %v1377
    %v1480 = vpop.f32.mrf.mxu0
    %v1481 = vadd.f32 0.0, %v1480
    %v1482 = vpop.f32.mrf.mxu0
    %v1483 = vadd.f32 0.0, %v1482
    %1484 = vmatmul.bf16.gmra.mxu0 %v1378
    %v1485 = vpop.f32.mrf.mxu0
    %v1486 = vadd.f32 0.0, %v1485
    %v1487 = vpop.f32.mrf.mxu0
    %v1488 = vadd.f32 0.0, %v1487
    %1489 = vdwg.mxu0
    %vm1490 = vcmp.le.s32.totalorder %v851, %v848
    %vm1491 = vcmp.le.s32.totalorder %v851, %v849
    %v1492 = vsel %vm1490, 1, 0
    %v1493 = vsel %vm1491, 1, 0
    %vm1494 = vcmp.eq.s32.totalorder %v1492, 1
    %vm1495 = vcmp.eq.s32.totalorder %v1493, 1
    %v1496 = vsel %vm1494, 1, 0
    %v1497 = vsel %vm1495, 1, 0
    %vm1498 = vcmp.eq.s32.totalorder %v1496, 1
    %vm1499 = vcmp.eq.s32.totalorder %v1497, 1
    %v1500 = vsel %vm1498, %v1220, -1e+30
    %v1501 = vsel %vm1499, %v1222, -1e+30
    %v1502 = vsel %vm1498, %v1225, -1e+30
    %v1503 = vsel %vm1499, %v1227, -1e+30
    %v1504 = vsel %vm1498, %v1230, -1e+30
    %v1505 = vsel %vm1499, %v1232, -1e+30
    %v1506 = vsel %vm1498, %v1235, -1e+30
    %v1507 = vsel %vm1499, %v1237, -1e+30
    %v1508 = vsel %vm1498, %v1240, -1e+30
    %v1509 = vsel %vm1499, %v1242, -1e+30
    %v1510 = vsel %vm1498, %v1245, -1e+30
    %v1511 = vsel %vm1499, %v1247, -1e+30
    %v1512 = vsel %vm1498, %v1250, -1e+30
    %v1513 = vsel %vm1499, %v1252, -1e+30
    %v1514 = vsel %vm1498, %v1255, -1e+30
    %v1515 = vsel %vm1499, %v1257, -1e+30
    %v1516 = vsel %vm1498, %v1260, -1e+30
    %v1517 = vsel %vm1499, %v1262, -1e+30
    %v1518 = vsel %vm1498, %v1265, -1e+30
    %v1519 = vsel %vm1499, %v1267, -1e+30
    %v1520 = vsel %vm1498, %v1270, -1e+30
    %v1521 = vsel %vm1499, %v1272, -1e+30
    %v1522 = vsel %vm1498, %v1275, -1e+30
    %v1523 = vsel %vm1499, %v1277, -1e+30
    %v1524 = vsel %vm1498, %v1280, -1e+30
    %v1525 = vsel %vm1499, %v1282, -1e+30
    %v1526 = vsel %vm1498, %v1285, -1e+30
    %v1527 = vsel %vm1499, %v1287, -1e+30
    %v1528 = vsel %vm1498, %v1290, -1e+30
    %v1529 = vsel %vm1499, %v1292, -1e+30
    %v1530 = vsel %vm1498, %v1295, -1e+30
    %v1531 = vsel %vm1499, %v1297, -1e+30
    %v1532 = vsel %vm1498, %v1411, -1e+30
    %v1533 = vsel %vm1499, %v1413, -1e+30
    %v1534 = vsel %vm1498, %v1416, -1e+30
    %v1535 = vsel %vm1499, %v1418, -1e+30
    %v1536 = vsel %vm1498, %v1421, -1e+30
    %v1537 = vsel %vm1499, %v1423, -1e+30
    %v1538 = vsel %vm1498, %v1426, -1e+30
    %v1539 = vsel %vm1499, %v1428, -1e+30
    %v1540 = vsel %vm1498, %v1431, -1e+30
    %v1541 = vsel %vm1499, %v1433, -1e+30
    %v1542 = vsel %vm1498, %v1436, -1e+30
    %v1543 = vsel %vm1499, %v1438, -1e+30
    %v1544 = vsel %vm1498, %v1441, -1e+30
    %v1545 = vsel %vm1499, %v1443, -1e+30
    %v1546 = vsel %vm1498, %v1446, -1e+30
    %v1547 = vsel %vm1499, %v1448, -1e+30
    %v1548 = vsel %vm1498, %v1451, -1e+30
    %v1549 = vsel %vm1499, %v1453, -1e+30
    %v1550 = vsel %vm1498, %v1456, -1e+30
    %v1551 = vsel %vm1499, %v1458, -1e+30
    %v1552 = vsel %vm1498, %v1461, -1e+30
    %v1553 = vsel %vm1499, %v1463, -1e+30
    %v1554 = vsel %vm1498, %v1466, -1e+30
    %v1555 = vsel %vm1499, %v1468, -1e+30
    %v1556 = vsel %vm1498, %v1471, -1e+30
    %v1557 = vsel %vm1499, %v1473, -1e+30
    %v1558 = vsel %vm1498, %v1476, -1e+30
    %v1559 = vsel %vm1499, %v1478, -1e+30
    %v1560 = vsel %vm1498, %v1481, -1e+30
    %v1561 = vsel %vm1499, %v1483, -1e+30
    %v1562 = vsel %vm1498, %v1486, -1e+30
    %v1563 = vsel %vm1499, %v1488, -1e+30
    %vm1564 = vcmask 130048
    %v1565 = vsel %vm1564, %v1500, -inf
    %1566 = vmax.xlane.f32.xlu0 %v1565
    %v1567 = vpop.xlane.xlu0 %1566
    %v1568 = vsel %vm1564, %v1501, -inf
    %1569 = vmax.xlane.f32.xlu0 %v1568
    %v1570 = vpop.xlane.xlu0 %1569
    %v1571 = vsel %vm1564, %v1502, -inf
    %1572 = vmax.xlane.f32.xlu0 %v1571
    %v1573 = vpop.xlane.xlu0 %1572
    %v1574 = vsel %vm1564, %v1503, -inf
    %1575 = vmax.xlane.f32.xlu0 %v1574
    %v1576 = vpop.xlane.xlu0 %1575
    %v1577 = vsel %vm1564, %v1504, -inf
    %1578 = vmax.xlane.f32.xlu0 %v1577
    %v1579 = vpop.xlane.xlu0 %1578
    %v1580 = vsel %vm1564, %v1505, -inf
    %1581 = vmax.xlane.f32.xlu0 %v1580
    %v1582 = vpop.xlane.xlu0 %1581
    %v1583 = vsel %vm1564, %v1506, -inf
    %1584 = vmax.xlane.f32.xlu0 %v1583
    %v1585 = vpop.xlane.xlu0 %1584
    %v1586 = vsel %vm1564, %v1507, -inf
    %1587 = vmax.xlane.f32.xlu0 %v1586
    %v1588 = vpop.xlane.xlu0 %1587
    %v1589 = vsel %vm1564, %v1508, -inf
    %1590 = vmax.xlane.f32.xlu0 %v1589
    %v1591 = vpop.xlane.xlu0 %1590
    %v1592 = vsel %vm1564, %v1509, -inf
    %1593 = vmax.xlane.f32.xlu0 %v1592
    %v1594 = vpop.xlane.xlu0 %1593
    %v1595 = vsel %vm1564, %v1510, -inf
    %1596 = vmax.xlane.f32.xlu0 %v1595
    %v1597 = vpop.xlane.xlu0 %1596
    %v1598 = vsel %vm1564, %v1511, -inf
    %1599 = vmax.xlane.f32.xlu0 %v1598
    %v1600 = vpop.xlane.xlu0 %1599
    %v1601 = vsel %vm1564, %v1512, -inf
    %1602 = vmax.xlane.f32.xlu0 %v1601
    %v1603 = vpop.xlane.xlu0 %1602
    %v1604 = vsel %vm1564, %v1513, -inf
    %1605 = vmax.xlane.f32.xlu0 %v1604
    %v1606 = vpop.xlane.xlu0 %1605
    %v1607 = vsel %vm1564, %v1514, -inf
    %1608 = vmax.xlane.f32.xlu0 %v1607
    %v1609 = vpop.xlane.xlu0 %1608
    %v1610 = vsel %vm1564, %v1515, -inf
    %1611 = vmax.xlane.f32.xlu0 %v1610
    %v1612 = vpop.xlane.xlu0 %1611
    %v1613 = vsel %vm1564, %v1516, -inf
    %1614 = vmax.xlane.f32.xlu0 %v1613
    %v1615 = vpop.xlane.xlu0 %1614
    %v1616 = vsel %vm1564, %v1517, -inf
    %1617 = vmax.xlane.f32.xlu0 %v1616
    %v1618 = vpop.xlane.xlu0 %1617
    %v1619 = vsel %vm1564, %v1518, -inf
    %1620 = vmax.xlane.f32.xlu0 %v1619
    %v1621 = vpop.xlane.xlu0 %1620
    %v1622 = vsel %vm1564, %v1519, -inf
    %1623 = vmax.xlane.f32.xlu0 %v1622
    %v1624 = vpop.xlane.xlu0 %1623
    %v1625 = vsel %vm1564, %v1520, -inf
    %1626 = vmax.xlane.f32.xlu0 %v1625
    %v1627 = vpop.xlane.xlu0 %1626
    %v1628 = vsel %vm1564, %v1521, -inf
    %1629 = vmax.xlane.f32.xlu0 %v1628
    %v1630 = vpop.xlane.xlu0 %1629
    %v1631 = vsel %vm1564, %v1522, -inf
    %1632 = vmax.xlane.f32.xlu0 %v1631
    %v1633 = vpop.xlane.xlu0 %1632
    %v1634 = vsel %vm1564, %v1523, -inf
    %1635 = vmax.xlane.f32.xlu0 %v1634
    %v1636 = vpop.xlane.xlu0 %1635
    %v1637 = vsel %vm1564, %v1524, -inf
    %1638 = vmax.xlane.f32.xlu0 %v1637
    %v1639 = vpop.xlane.xlu0 %1638
    %v1640 = vsel %vm1564, %v1525, -inf
    %1641 = vmax.xlane.f32.xlu0 %v1640
    %v1642 = vpop.xlane.xlu0 %1641
    %v1643 = vsel %vm1564, %v1526, -inf
    %1644 = vmax.xlane.f32.xlu0 %v1643
    %v1645 = vpop.xlane.xlu0 %1644
    %v1646 = vsel %vm1564, %v1527, -inf
    %1647 = vmax.xlane.f32.xlu0 %v1646
    %v1648 = vpop.xlane.xlu0 %1647
    %v1649 = vsel %vm1564, %v1528, -inf
    %1650 = vmax.xlane.f32.xlu0 %v1649
    %v1651 = vpop.xlane.xlu0 %1650
    %v1652 = vsel %vm1564, %v1529, -inf
    %1653 = vmax.xlane.f32.xlu0 %v1652
    %v1654 = vpop.xlane.xlu0 %1653
    %v1655 = vsel %vm1564, %v1530, -inf
    %1656 = vmax.xlane.f32.xlu0 %v1655
    %v1657 = vpop.xlane.xlu0 %1656
    %v1658 = vsel %vm1564, %v1531, -inf
    %1659 = vmax.xlane.f32.xlu0 %v1658
    %v1660 = vpop.xlane.xlu0 %1659
    %v1661 = vsel %vm1564, %v1532, -inf
    %1662 = vmax.xlane.f32.xlu0 %v1661
    %v1663 = vpop.xlane.xlu0 %1662
    %v1664 = vsel %vm1564, %v1533, -inf
    %1665 = vmax.xlane.f32.xlu0 %v1664
    %v1666 = vpop.xlane.xlu0 %1665
    %v1667 = vsel %vm1564, %v1534, -inf
    %1668 = vmax.xlane.f32.xlu0 %v1667
    %v1669 = vpop.xlane.xlu0 %1668
    %v1670 = vsel %vm1564, %v1535, -inf
    %1671 = vmax.xlane.f32.xlu0 %v1670
    %v1672 = vpop.xlane.xlu0 %1671
    %v1673 = vsel %vm1564, %v1536, -inf
    %1674 = vmax.xlane.f32.xlu0 %v1673
    %v1675 = vpop.xlane.xlu0 %1674
    %v1676 = vsel %vm1564, %v1537, -inf
    %1677 = vmax.xlane.f32.xlu0 %v1676
    %v1678 = vpop.xlane.xlu0 %1677
    %v1679 = vsel %vm1564, %v1538, -inf
    %1680 = vmax.xlane.f32.xlu0 %v1679
    %v1681 = vpop.xlane.xlu0 %1680
    %v1682 = vsel %vm1564, %v1539, -inf
    %1683 = vmax.xlane.f32.xlu0 %v1682
    %v1684 = vpop.xlane.xlu0 %1683
    %v1685 = vsel %vm1564, %v1540, -inf
    %1686 = vmax.xlane.f32.xlu0 %v1685
    %v1687 = vpop.xlane.xlu0 %1686
    %v1688 = vsel %vm1564, %v1541, -inf
    %1689 = vmax.xlane.f32.xlu0 %v1688
    %v1690 = vpop.xlane.xlu0 %1689
    %v1691 = vsel %vm1564, %v1542, -inf
    %1692 = vmax.xlane.f32.xlu0 %v1691
    %v1693 = vpop.xlane.xlu0 %1692
    %v1694 = vsel %vm1564, %v1543, -inf
    %1695 = vmax.xlane.f32.xlu0 %v1694
    %v1696 = vpop.xlane.xlu0 %1695
    %v1697 = vsel %vm1564, %v1544, -inf
    %1698 = vmax.xlane.f32.xlu0 %v1697
    %v1699 = vpop.xlane.xlu0 %1698
    %v1700 = vsel %vm1564, %v1545, -inf
    %1701 = vmax.xlane.f32.xlu0 %v1700
    %v1702 = vpop.xlane.xlu0 %1701
    %v1703 = vsel %vm1564, %v1546, -inf
    %1704 = vmax.xlane.f32.xlu0 %v1703
    %v1705 = vpop.xlane.xlu0 %1704
    %v1706 = vsel %vm1564, %v1547, -inf
    %1707 = vmax.xlane.f32.xlu0 %v1706
    %v1708 = vpop.xlane.xlu0 %1707
    %v1709 = vsel %vm1564, %v1548, -inf
    %1710 = vmax.xlane.f32.xlu0 %v1709
    %v1711 = vpop.xlane.xlu0 %1710
    %v1712 = vsel %vm1564, %v1549, -inf
    %1713 = vmax.xlane.f32.xlu0 %v1712
    %v1714 = vpop.xlane.xlu0 %1713
    %v1715 = vsel %vm1564, %v1550, -inf
    %1716 = vmax.xlane.f32.xlu0 %v1715
    %v1717 = vpop.xlane.xlu0 %1716
    %v1718 = vsel %vm1564, %v1551, -inf
    %1719 = vmax.xlane.f32.xlu0 %v1718
    %v1720 = vpop.xlane.xlu0 %1719
    %v1721 = vsel %vm1564, %v1552, -inf
    %1722 = vmax.xlane.f32.xlu0 %v1721
    %v1723 = vpop.xlane.xlu0 %1722
    %v1724 = vsel %vm1564, %v1553, -inf
    %1725 = vmax.xlane.f32.xlu0 %v1724
    %v1726 = vpop.xlane.xlu0 %1725
    %v1727 = vsel %vm1564, %v1554, -inf
    %1728 = vmax.xlane.f32.xlu0 %v1727
    %v1729 = vpop.xlane.xlu0 %1728
    %v1730 = vsel %vm1564, %v1555, -inf
    %1731 = vmax.xlane.f32.xlu0 %v1730
    %v1732 = vpop.xlane.xlu0 %1731
    %v1733 = vsel %vm1564, %v1556, -inf
    %1734 = vmax.xlane.f32.xlu0 %v1733
    %v1735 = vpop.xlane.xlu0 %1734
    %v1736 = vsel %vm1564, %v1557, -inf
    %1737 = vmax.xlane.f32.xlu0 %v1736
    %v1738 = vpop.xlane.xlu0 %1737
    %v1739 = vsel %vm1564, %v1558, -inf
    %1740 = vmax.xlane.f32.xlu0 %v1739
    %v1741 = vpop.xlane.xlu0 %1740
    %v1742 = vsel %vm1564, %v1559, -inf
    %1743 = vmax.xlane.f32.xlu0 %v1742
    %v1744 = vpop.xlane.xlu0 %1743
    %v1745 = vsel %vm1564, %v1560, -inf
    %1746 = vmax.xlane.f32.xlu0 %v1745
    %v1747 = vpop.xlane.xlu0 %1746
    %v1748 = vsel %vm1564, %v1561, -inf
    %1749 = vmax.xlane.f32.xlu0 %v1748
    %v1750 = vpop.xlane.xlu0 %1749
    %v1751 = vsel %vm1564, %v1562, -inf
    %1752 = vmax.xlane.f32.xlu0 %v1751
    %v1753 = vpop.xlane.xlu0 %1752
    %v1754 = vsel %vm1564, %v1563, -inf
    %1755 = vmax.xlane.f32.xlu0 %v1754
    %v1756 = vpop.xlane.xlu0 %1755
    %v1757 = vsub.f32 %v1500, %v1567
    %v1758 = vsub.f32 %v1501, %v1570
    %v1759 = vsub.f32 %v1502, %v1573
    %v1760 = vsub.f32 %v1503, %v1576
    %v1761 = vsub.f32 %v1504, %v1579
    %v1762 = vsub.f32 %v1505, %v1582
    %v1763 = vsub.f32 %v1506, %v1585
    %v1764 = vsub.f32 %v1507, %v1588
    %v1765 = vsub.f32 %v1508, %v1591
    %v1766 = vsub.f32 %v1509, %v1594
    %v1767 = vsub.f32 %v1510, %v1597
    %v1768 = vsub.f32 %v1511, %v1600
    %v1769 = vsub.f32 %v1512, %v1603
    %v1770 = vsub.f32 %v1513, %v1606
    %v1771 = vsub.f32 %v1514, %v1609
    %v1772 = vsub.f32 %v1515, %v1612
    %v1773 = vsub.f32 %v1516, %v1615
    %v1774 = vsub.f32 %v1517, %v1618
    %v1775 = vsub.f32 %v1518, %v1621
    %v1776 = vsub.f32 %v1519, %v1624
    %v1777 = vsub.f32 %v1520, %v1627
    %v1778 = vsub.f32 %v1521, %v1630
    %v1779 = vsub.f32 %v1522, %v1633
    %v1780 = vsub.f32 %v1523, %v1636
    %v1781 = vsub.f32 %v1524, %v1639
    %v1782 = vsub.f32 %v1525, %v1642
    %v1783 = vsub.f32 %v1526, %v1645
    %v1784 = vsub.f32 %v1527, %v1648
    %v1785 = vsub.f32 %v1528, %v1651
    %v1786 = vsub.f32 %v1529, %v1654
    %v1787 = vsub.f32 %v1530, %v1657
    %v1788 = vsub.f32 %v1531, %v1660
    %v1789 = vsub.f32 %v1532, %v1663
    %v1790 = vsub.f32 %v1533, %v1666
    %v1791 = vsub.f32 %v1534, %v1669
    %v1792 = vsub.f32 %v1535, %v1672
    %v1793 = vsub.f32 %v1536, %v1675
    %v1794 = vsub.f32 %v1537, %v1678
    %v1795 = vsub.f32 %v1538, %v1681
    %v1796 = vsub.f32 %v1539, %v1684
    %v1797 = vsub.f32 %v1540, %v1687
    %v1798 = vsub.f32 %v1541, %v1690
    %v1799 = vsub.f32 %v1542, %v1693
    %v1800 = vsub.f32 %v1543, %v1696
    %v1801 = vsub.f32 %v1544, %v1699
    %v1802 = vsub.f32 %v1545, %v1702
    %v1803 = vsub.f32 %v1546, %v1705
    %v1804 = vsub.f32 %v1547, %v1708
    %v1805 = vsub.f32 %v1548, %v1711
    %v1806 = vsub.f32 %v1549, %v1714
    %v1807 = vsub.f32 %v1550, %v1717
    %v1808 = vsub.f32 %v1551, %v1720
    %v1809 = vsub.f32 %v1552, %v1723
    %v1810 = vsub.f32 %v1553, %v1726
    %v1811 = vsub.f32 %v1554, %v1729
    %v1812 = vsub.f32 %v1555, %v1732
    %v1813 = vsub.f32 %v1556, %v1735
    %v1814 = vsub.f32 %v1557, %v1738
    %v1815 = vsub.f32 %v1558, %v1741
    %v1816 = vsub.f32 %v1559, %v1744
    %v1817 = vsub.f32 %v1560, %v1747
    %v1818 = vsub.f32 %v1561, %v1750
    %v1819 = vsub.f32 %v1562, %v1753
    %v1820 = vsub.f32 %v1563, %v1756
    %v1821 = vmul.f32 %v1757, 1.442695
    %v1822 = vpow.pop %v1821
    %v1823 = vmul.f32 %v1758, 1.442695
    %v1824 = vpow.pop %v1823
    %v1825 = vmul.f32 %v1759, 1.442695
    %v1826 = vpow.pop %v1825
    %v1827 = vmul.f32 %v1760, 1.442695
    %v1828 = vpow.pop %v1827
    %v1829 = vmul.f32 %v1761, 1.442695
    %v1830 = vpow.pop %v1829
    %v1831 = vmul.f32 %v1762, 1.442695
    %v1832 = vpow.pop %v1831
    %v1833 = vmul.f32 %v1763, 1.442695
    %v1834 = vpow.pop %v1833
    %v1835 = vmul.f32 %v1764, 1.442695
    %v1836 = vpow.pop %v1835
    %v1837 = vmul.f32 %v1765, 1.442695
    %v1838 = vpow.pop %v1837
    %v1839 = vmul.f32 %v1766, 1.442695
    %v1840 = vpow.pop %v1839
    %v1841 = vmul.f32 %v1767, 1.442695
    %v1842 = vpow.pop %v1841
    %v1843 = vmul.f32 %v1768, 1.442695
    %v1844 = vpow.pop %v1843
    %v1845 = vmul.f32 %v1769, 1.442695
    %v1846 = vpow.pop %v1845
    %v1847 = vmul.f32 %v1770, 1.442695
    %v1848 = vpow.pop %v1847
    %v1849 = vmul.f32 %v1771, 1.442695
    %v1850 = vpow.pop %v1849
    %v1851 = vmul.f32 %v1772, 1.442695
    %v1852 = vpow.pop %v1851
    %v1853 = vmul.f32 %v1773, 1.442695
    %v1854 = vpow.pop %v1853
    %v1855 = vmul.f32 %v1774, 1.442695
    %v1856 = vpow.pop %v1855
    %v1857 = vmul.f32 %v1775, 1.442695
    %v1858 = vpow.pop %v1857
    %v1859 = vmul.f32 %v1776, 1.442695
    %v1860 = vpow.pop %v1859
    %v1861 = vmul.f32 %v1777, 1.442695
    %v1862 = vpow.pop %v1861
    %v1863 = vmul.f32 %v1778, 1.442695
    %v1864 = vpow.pop %v1863
    %v1865 = vmul.f32 %v1779, 1.442695
    %v1866 = vpow.pop %v1865
    %v1867 = vmul.f32 %v1780, 1.442695
    %v1868 = vpow.pop %v1867
    %v1869 = vmul.f32 %v1781, 1.442695
    %v1870 = vpow.pop %v1869
    %v1871 = vmul.f32 %v1782, 1.442695
    %v1872 = vpow.pop %v1871
    %v1873 = vmul.f32 %v1783, 1.442695
    %v1874 = vpow.pop %v1873
    %v1875 = vmul.f32 %v1784, 1.442695
    %v1876 = vpow.pop %v1875
    %v1877 = vmul.f32 %v1785, 1.442695
    %v1878 = vpow.pop %v1877
    %v1879 = vmul.f32 %v1786, 1.442695
    %v1880 = vpow.pop %v1879
    %v1881 = vmul.f32 %v1787, 1.442695
    %v1882 = vpow.pop %v1881
    %v1883 = vmul.f32 %v1788, 1.442695
    %v1884 = vpow.pop %v1883
    %v1885 = vmul.f32 %v1789, 1.442695
    %v1886 = vpow.pop %v1885
    %v1887 = vmul.f32 %v1790, 1.442695
    %v1888 = vpow.pop %v1887
    %v1889 = vmul.f32 %v1791, 1.442695
    %v1890 = vpow.pop %v1889
    %v1891 = vmul.f32 %v1792, 1.442695
    %v1892 = vpow.pop %v1891
    %v1893 = vmul.f32 %v1793, 1.442695
    %v1894 = vpow.pop %v1893
    %v1895 = vmul.f32 %v1794, 1.442695
    %v1896 = vpow.pop %v1895
    %v1897 = vmul.f32 %v1795, 1.442695
    %v1898 = vpow.pop %v1897
    %v1899 = vmul.f32 %v1796, 1.442695
    %v1900 = vpow.pop %v1899
    %v1901 = vmul.f32 %v1797, 1.442695
    %v1902 = vpow.pop %v1901
    %v1903 = vmul.f32 %v1798, 1.442695
    %v1904 = vpow.pop %v1903
    %v1905 = vmul.f32 %v1799, 1.442695
    %v1906 = vpow.pop %v1905
    %v1907 = vmul.f32 %v1800, 1.442695
    %v1908 = vpow.pop %v1907
    %v1909 = vmul.f32 %v1801, 1.442695
    %v1910 = vpow.pop %v1909
    %v1911 = vmul.f32 %v1802, 1.442695
    %v1912 = vpow.pop %v1911
    %v1913 = vmul.f32 %v1803, 1.442695
    %v1914 = vpow.pop %v1913
    %v1915 = vmul.f32 %v1804, 1.442695
    %v1916 = vpow.pop %v1915
    %v1917 = vmul.f32 %v1805, 1.442695
    %v1918 = vpow.pop %v1917
    %v1919 = vmul.f32 %v1806, 1.442695
    %v1920 = vpow.pop %v1919
    %v1921 = vmul.f32 %v1807, 1.442695
    %v1922 = vpow.pop %v1921
    %v1923 = vmul.f32 %v1808, 1.442695
    %v1924 = vpow.pop %v1923
    %v1925 = vmul.f32 %v1809, 1.442695
    %v1926 = vpow.pop %v1925
    %v1927 = vmul.f32 %v1810, 1.442695
    %v1928 = vpow.pop %v1927
    %v1929 = vmul.f32 %v1811, 1.442695
    %v1930 = vpow.pop %v1929
    %v1931 = vmul.f32 %v1812, 1.442695
    %v1932 = vpow.pop %v1931
    %v1933 = vmul.f32 %v1813, 1.442695
    %v1934 = vpow.pop %v1933
    %v1935 = vmul.f32 %v1814, 1.442695
    %v1936 = vpow.pop %v1935
    %v1937 = vmul.f32 %v1815, 1.442695
    %v1938 = vpow.pop %v1937
    %v1939 = vmul.f32 %v1816, 1.442695
    %v1940 = vpow.pop %v1939
    %v1941 = vmul.f32 %v1817, 1.442695
    %v1942 = vpow.pop %v1941
    %v1943 = vmul.f32 %v1818, 1.442695
    %v1944 = vpow.pop %v1943
    %v1945 = vmul.f32 %v1819, 1.442695
    %v1946 = vpow.pop %v1945
    %v1947 = vmul.f32 %v1820, 1.442695
    %v1948 = vpow.pop %v1947
    %v1949 = vsel %vm1564, %v1822, 0.0
    %1950 = vadd.xlane.f32.xlu0 %v1949
    %v1951 = vpop.xlane.xlu0 %1950
    %v1952 = vsel %vm1564, %v1824, 0.0
    %1953 = vadd.xlane.f32.xlu0 %v1952
    %v1954 = vpop.xlane.xlu0 %1953
    %v1955 = vsel %vm1564, %v1826, 0.0
    %1956 = vadd.xlane.f32.xlu0 %v1955
    %v1957 = vpop.xlane.xlu0 %1956
    %v1958 = vsel %vm1564, %v1828, 0.0
    %1959 = vadd.xlane.f32.xlu0 %v1958
    %v1960 = vpop.xlane.xlu0 %1959
    %v1961 = vsel %vm1564, %v1830, 0.0
    %1962 = vadd.xlane.f32.xlu0 %v1961
    %v1963 = vpop.xlane.xlu0 %1962
    %v1964 = vsel %vm1564, %v1832, 0.0
    %1965 = vadd.xlane.f32.xlu0 %v1964
    %v1966 = vpop.xlane.xlu0 %1965
    %v1967 = vsel %vm1564, %v1834, 0.0
    %1968 = vadd.xlane.f32.xlu0 %v1967
    %v1969 = vpop.xlane.xlu0 %1968
    %v1970 = vsel %vm1564, %v1836, 0.0
    %1971 = vadd.xlane.f32.xlu0 %v1970
    %v1972 = vpop.xlane.xlu0 %1971
    %v1973 = vsel %vm1564, %v1838, 0.0
    %1974 = vadd.xlane.f32.xlu0 %v1973
    %v1975 = vpop.xlane.xlu0 %1974
    %v1976 = vsel %vm1564, %v1840, 0.0
    %1977 = vadd.xlane.f32.xlu0 %v1976
    %v1978 = vpop.xlane.xlu0 %1977
    %v1979 = vsel %vm1564, %v1842, 0.0
    %1980 = vadd.xlane.f32.xlu0 %v1979
    %v1981 = vpop.xlane.xlu0 %1980
    %v1982 = vsel %vm1564, %v1844, 0.0
    %1983 = vadd.xlane.f32.xlu0 %v1982
    %v1984 = vpop.xlane.xlu0 %1983
    %v1985 = vsel %vm1564, %v1846, 0.0
    %1986 = vadd.xlane.f32.xlu0 %v1985
    %v1987 = vpop.xlane.xlu0 %1986
    %v1988 = vsel %vm1564, %v1848, 0.0
    %1989 = vadd.xlane.f32.xlu0 %v1988
    %v1990 = vpop.xlane.xlu0 %1989
    %v1991 = vsel %vm1564, %v1850, 0.0
    %1992 = vadd.xlane.f32.xlu0 %v1991
    %v1993 = vpop.xlane.xlu0 %1992
    %v1994 = vsel %vm1564, %v1852, 0.0
    %1995 = vadd.xlane.f32.xlu0 %v1994
    %v1996 = vpop.xlane.xlu0 %1995
    %v1997 = vsel %vm1564, %v1854, 0.0
    %1998 = vadd.xlane.f32.xlu0 %v1997
    %v1999 = vpop.xlane.xlu0 %1998
    %v2000 = vsel %vm1564, %v1856, 0.0
    %2001 = vadd.xlane.f32.xlu0 %v2000
    %v2002 = vpop.xlane.xlu0 %2001
    %v2003 = vsel %vm1564, %v1858, 0.0
    %2004 = vadd.xlane.f32.xlu0 %v2003
    %v2005 = vpop.xlane.xlu0 %2004
    %v2006 = vsel %vm1564, %v1860, 0.0
    %2007 = vadd.xlane.f32.xlu0 %v2006
    %v2008 = vpop.xlane.xlu0 %2007
    %v2009 = vsel %vm1564, %v1862, 0.0
    %2010 = vadd.xlane.f32.xlu0 %v2009
    %v2011 = vpop.xlane.xlu0 %2010
    %v2012 = vsel %vm1564, %v1864, 0.0
    %2013 = vadd.xlane.f32.xlu0 %v2012
    %v2014 = vpop.xlane.xlu0 %2013
    %v2015 = vsel %vm1564, %v1866, 0.0
    %2016 = vadd.xlane.f32.xlu0 %v2015
    %v2017 = vpop.xlane.xlu0 %2016
    %v2018 = vsel %vm1564, %v1868, 0.0
    %2019 = vadd.xlane.f32.xlu0 %v2018
    %v2020 = vpop.xlane.xlu0 %2019
    %v2021 = vsel %vm1564, %v1870, 0.0
    %2022 = vadd.xlane.f32.xlu0 %v2021
    %v2023 = vpop.xlane.xlu0 %2022
    %v2024 = vsel %vm1564, %v1872, 0.0
    %2025 = vadd.xlane.f32.xlu0 %v2024
    %v2026 = vpop.xlane.xlu0 %2025
    %v2027 = vsel %vm1564, %v1874, 0.0
    %2028 = vadd.xlane.f32.xlu0 %v2027
    %v2029 = vpop.xlane.xlu0 %2028
    %v2030 = vsel %vm1564, %v1876, 0.0
    %2031 = vadd.xlane.f32.xlu0 %v2030
    %v2032 = vpop.xlane.xlu0 %2031
    %v2033 = vsel %vm1564, %v1878, 0.0
    %2034 = vadd.xlane.f32.xlu0 %v2033
    %v2035 = vpop.xlane.xlu0 %2034
    %v2036 = vsel %vm1564, %v1880, 0.0
    %2037 = vadd.xlane.f32.xlu0 %v2036
    %v2038 = vpop.xlane.xlu0 %2037
    %v2039 = vsel %vm1564, %v1882, 0.0
    %2040 = vadd.xlane.f32.xlu0 %v2039
    %v2041 = vpop.xlane.xlu0 %2040
    %v2042 = vsel %vm1564, %v1884, 0.0
    %2043 = vadd.xlane.f32.xlu0 %v2042
    %v2044 = vpop.xlane.xlu0 %2043
    %v2045 = vsel %vm1564, %v1886, 0.0
    %2046 = vadd.xlane.f32.xlu0 %v2045
    %v2047 = vpop.xlane.xlu0 %2046
    %v2048 = vsel %vm1564, %v1888, 0.0
    %2049 = vadd.xlane.f32.xlu0 %v2048
    %v2050 = vpop.xlane.xlu0 %2049
    %v2051 = vsel %vm1564, %v1890, 0.0
    %2052 = vadd.xlane.f32.xlu0 %v2051
    %v2053 = vpop.xlane.xlu0 %2052
    %v2054 = vsel %vm1564, %v1892, 0.0
    %2055 = vadd.xlane.f32.xlu0 %v2054
    %v2056 = vpop.xlane.xlu0 %2055
    %v2057 = vsel %vm1564, %v1894, 0.0
    %2058 = vadd.xlane.f32.xlu0 %v2057
    %v2059 = vpop.xlane.xlu0 %2058
    %v2060 = vsel %vm1564, %v1896, 0.0
    %2061 = vadd.xlane.f32.xlu0 %v2060
    %v2062 = vpop.xlane.xlu0 %2061
    %v2063 = vsel %vm1564, %v1898, 0.0
    %2064 = vadd.xlane.f32.xlu0 %v2063
    %v2065 = vpop.xlane.xlu0 %2064
    %v2066 = vsel %vm1564, %v1900, 0.0
    %2067 = vadd.xlane.f32.xlu0 %v2066
    %v2068 = vpop.xlane.xlu0 %2067
    %v2069 = vsel %vm1564, %v1902, 0.0
    %2070 = vadd.xlane.f32.xlu0 %v2069
    %v2071 = vpop.xlane.xlu0 %2070
    %v2072 = vsel %vm1564, %v1904, 0.0
    %2073 = vadd.xlane.f32.xlu0 %v2072
    %v2074 = vpop.xlane.xlu0 %2073
    %v2075 = vsel %vm1564, %v1906, 0.0
    %2076 = vadd.xlane.f32.xlu0 %v2075
    %v2077 = vpop.xlane.xlu0 %2076
    %v2078 = vsel %vm1564, %v1908, 0.0
    %2079 = vadd.xlane.f32.xlu0 %v2078
    %v2080 = vpop.xlane.xlu0 %2079
    %v2081 = vsel %vm1564, %v1910, 0.0
    %2082 = vadd.xlane.f32.xlu0 %v2081
    %v2083 = vpop.xlane.xlu0 %2082
    %v2084 = vsel %vm1564, %v1912, 0.0
    %2085 = vadd.xlane.f32.xlu0 %v2084
    %v2086 = vpop.xlane.xlu0 %2085
    %v2087 = vsel %vm1564, %v1914, 0.0
    %2088 = vadd.xlane.f32.xlu0 %v2087
    %v2089 = vpop.xlane.xlu0 %2088
    %v2090 = vsel %vm1564, %v1916, 0.0
    %2091 = vadd.xlane.f32.xlu0 %v2090
    %v2092 = vpop.xlane.xlu0 %2091
    %v2093 = vsel %vm1564, %v1918, 0.0
    %2094 = vadd.xlane.f32.xlu0 %v2093
    %v2095 = vpop.xlane.xlu0 %2094
    %v2096 = vsel %vm1564, %v1920, 0.0
    %2097 = vadd.xlane.f32.xlu0 %v2096
    %v2098 = vpop.xlane.xlu0 %2097
    %v2099 = vsel %vm1564, %v1922, 0.0
    %2100 = vadd.xlane.f32.xlu0 %v2099
    %v2101 = vpop.xlane.xlu0 %2100
    %v2102 = vsel %vm1564, %v1924, 0.0
    %2103 = vadd.xlane.f32.xlu0 %v2102
    %v2104 = vpop.xlane.xlu0 %2103
    %v2105 = vsel %vm1564, %v1926, 0.0
    %2106 = vadd.xlane.f32.xlu0 %v2105
    %v2107 = vpop.xlane.xlu0 %2106
    %v2108 = vsel %vm1564, %v1928, 0.0
    %2109 = vadd.xlane.f32.xlu0 %v2108
    %v2110 = vpop.xlane.xlu0 %2109
    %v2111 = vsel %vm1564, %v1930, 0.0
    %2112 = vadd.xlane.f32.xlu0 %v2111
    %v2113 = vpop.xlane.xlu0 %2112
    %v2114 = vsel %vm1564, %v1932, 0.0
    %2115 = vadd.xlane.f32.xlu0 %v2114
    %v2116 = vpop.xlane.xlu0 %2115
    %v2117 = vsel %vm1564, %v1934, 0.0
    %2118 = vadd.xlane.f32.xlu0 %v2117
    %v2119 = vpop.xlane.xlu0 %2118
    %v2120 = vsel %vm1564, %v1936, 0.0
    %2121 = vadd.xlane.f32.xlu0 %v2120
    %v2122 = vpop.xlane.xlu0 %2121
    %v2123 = vsel %vm1564, %v1938, 0.0
    %2124 = vadd.xlane.f32.xlu0 %v2123
    %v2125 = vpop.xlane.xlu0 %2124
    %v2126 = vsel %vm1564, %v1940, 0.0
    %2127 = vadd.xlane.f32.xlu0 %v2126
    %v2128 = vpop.xlane.xlu0 %2127
    %v2129 = vsel %vm1564, %v1942, 0.0
    %2130 = vadd.xlane.f32.xlu0 %v2129
    %v2131 = vpop.xlane.xlu0 %2130
    %v2132 = vsel %vm1564, %v1944, 0.0
    %2133 = vadd.xlane.f32.xlu0 %v2132
    %v2134 = vpop.xlane.xlu0 %2133
    %v2135 = vsel %vm1564, %v1946, 0.0
    %2136 = vadd.xlane.f32.xlu0 %v2135
    %v2137 = vpop.xlane.xlu0 %2136
    %v2138 = vsel %vm1564, %v1948, 0.0
    %2139 = vadd.xlane.f32.xlu0 %v2138
    %v2140 = vpop.xlane.xlu0 %2139
    %v2141 = vrcp.pop %v1951
    %v2142 = vrcp.pop %v1954
    %v2143 = vrcp.pop %v1957
    %v2144 = vrcp.pop %v1960
    %v2145 = vrcp.pop %v1963
    %v2146 = vrcp.pop %v1966
    %v2147 = vrcp.pop %v1969
    %v2148 = vrcp.pop %v1972
    %v2149 = vrcp.pop %v1975
    %v2150 = vrcp.pop %v1978
    %v2151 = vrcp.pop %v1981
    %v2152 = vrcp.pop %v1984
    %v2153 = vrcp.pop %v1987
    %v2154 = vrcp.pop %v1990
    %v2155 = vrcp.pop %v1993
    %v2156 = vrcp.pop %v1996
    %v2157 = vrcp.pop %v1999
    %v2158 = vrcp.pop %v2002
    %v2159 = vrcp.pop %v2005
    %v2160 = vrcp.pop %v2008
    %v2161 = vrcp.pop %v2011
    %v2162 = vrcp.pop %v2014
    %v2163 = vrcp.pop %v2017
    %v2164 = vrcp.pop %v2020
    %v2165 = vrcp.pop %v2023
    %v2166 = vrcp.pop %v2026
    %v2167 = vrcp.pop %v2029
    %v2168 = vrcp.pop %v2032
    %v2169 = vrcp.pop %v2035
    %v2170 = vrcp.pop %v2038
    %v2171 = vrcp.pop %v2041
    %v2172 = vrcp.pop %v2044
    %v2173 = vrcp.pop %v2047
    %v2174 = vrcp.pop %v2050
    %v2175 = vrcp.pop %v2053
    %v2176 = vrcp.pop %v2056
    %v2177 = vrcp.pop %v2059
    %v2178 = vrcp.pop %v2062
    %v2179 = vrcp.pop %v2065
    %v2180 = vrcp.pop %v2068
    %v2181 = vrcp.pop %v2071
    %v2182 = vrcp.pop %v2074
    %v2183 = vrcp.pop %v2077
    %v2184 = vrcp.pop %v2080
    %v2185 = vrcp.pop %v2083
    %v2186 = vrcp.pop %v2086
    %v2187 = vrcp.pop %v2089
    %v2188 = vrcp.pop %v2092
    %v2189 = vrcp.pop %v2095
    %v2190 = vrcp.pop %v2098
    %v2191 = vrcp.pop %v2101
    %v2192 = vrcp.pop %v2104
    %v2193 = vrcp.pop %v2107
    %v2194 = vrcp.pop %v2110
    %v2195 = vrcp.pop %v2113
    %v2196 = vrcp.pop %v2116
    %v2197 = vrcp.pop %v2119
    %v2198 = vrcp.pop %v2122
    %v2199 = vrcp.pop %v2125
    %v2200 = vrcp.pop %v2128
    %v2201 = vrcp.pop %v2131
    %v2202 = vrcp.pop %v2134
    %v2203 = vrcp.pop %v2137
    %v2204 = vrcp.pop %v2140
    %v2205 = vmul.f32 %v1822, %v2141
    %v2206 = vmul.f32 %v1824, %v2142
    %v2207 = vmul.f32 %v1826, %v2143
    %v2208 = vmul.f32 %v1828, %v2144
    %v2209 = vmul.f32 %v1830, %v2145
    %v2210 = vmul.f32 %v1832, %v2146
    %v2211 = vmul.f32 %v1834, %v2147
    %v2212 = vmul.f32 %v1836, %v2148
    %v2213 = vmul.f32 %v1838, %v2149
    %v2214 = vmul.f32 %v1840, %v2150
    %v2215 = vmul.f32 %v1842, %v2151
    %v2216 = vmul.f32 %v1844, %v2152
    %v2217 = vmul.f32 %v1846, %v2153
    %v2218 = vmul.f32 %v1848, %v2154
    %v2219 = vmul.f32 %v1850, %v2155
    %v2220 = vmul.f32 %v1852, %v2156
    %v2221 = vmul.f32 %v1854, %v2157
    %v2222 = vmul.f32 %v1856, %v2158
    %v2223 = vmul.f32 %v1858, %v2159
    %v2224 = vmul.f32 %v1860, %v2160
    %v2225 = vmul.f32 %v1862, %v2161
    %v2226 = vmul.f32 %v1864, %v2162
    %v2227 = vmul.f32 %v1866, %v2163
    %v2228 = vmul.f32 %v1868, %v2164
    %v2229 = vmul.f32 %v1870, %v2165
    %v2230 = vmul.f32 %v1872, %v2166
    %v2231 = vmul.f32 %v1874, %v2167
    %v2232 = vmul.f32 %v1876, %v2168
    %v2233 = vmul.f32 %v1878, %v2169
    %v2234 = vmul.f32 %v1880, %v2170
    %v2235 = vmul.f32 %v1882, %v2171
    %v2236 = vmul.f32 %v1884, %v2172
    %v2237 = vmul.f32 %v1886, %v2173
    %v2238 = vmul.f32 %v1888, %v2174
    %v2239 = vmul.f32 %v1890, %v2175
    %v2240 = vmul.f32 %v1892, %v2176
    %v2241 = vmul.f32 %v1894, %v2177
    %v2242 = vmul.f32 %v1896, %v2178
    %v2243 = vmul.f32 %v1898, %v2179
    %v2244 = vmul.f32 %v1900, %v2180
    %v2245 = vmul.f32 %v1902, %v2181
    %v2246 = vmul.f32 %v1904, %v2182
    %v2247 = vmul.f32 %v1906, %v2183
    %v2248 = vmul.f32 %v1908, %v2184
    %v2249 = vmul.f32 %v1910, %v2185
    %v2250 = vmul.f32 %v1912, %v2186
    %v2251 = vmul.f32 %v1914, %v2187
    %v2252 = vmul.f32 %v1916, %v2188
    %v2253 = vmul.f32 %v1918, %v2189
    %v2254 = vmul.f32 %v1920, %v2190
    %v2255 = vmul.f32 %v1922, %v2191
    %v2256 = vmul.f32 %v1924, %v2192
    %v2257 = vmul.f32 %v1926, %v2193
    %v2258 = vmul.f32 %v1928, %v2194
    %v2259 = vmul.f32 %v1930, %v2195
    %v2260 = vmul.f32 %v1932, %v2196
    %v2261 = vmul.f32 %v1934, %v2197
    %v2262 = vmul.f32 %v1936, %v2198
    %v2263 = vmul.f32 %v1938, %v2199
    %v2264 = vmul.f32 %v1940, %v2200
    %v2265 = vmul.f32 %v1942, %v2201
    %v2266 = vmul.f32 %v1944, %v2202
    %v2267 = vmul.f32 %v1946, %v2203
    %v2268 = vmul.f32 %v1948, %v2204
    %v2269 = vpack.c.bf16 %v2205, %v2205
    %v2270 = vpack.c.bf16 %v2206, %v2206
    %v2271 = vpack.c.bf16 %v2207, %v2207
    %v2272 = vpack.c.bf16 %v2208, %v2208
    %v2273 = vpack.c.bf16 %v2209, %v2209
    %v2274 = vpack.c.bf16 %v2210, %v2210
    %v2275 = vpack.c.bf16 %v2211, %v2211
    %v2276 = vpack.c.bf16 %v2212, %v2212
    %v2277 = vpack.c.bf16 %v2213, %v2213
    %v2278 = vpack.c.bf16 %v2214, %v2214
    %v2279 = vpack.c.bf16 %v2215, %v2215
    %v2280 = vpack.c.bf16 %v2216, %v2216
    %v2281 = vpack.c.bf16 %v2217, %v2217
    %v2282 = vpack.c.bf16 %v2218, %v2218
    %v2283 = vpack.c.bf16 %v2219, %v2219
    %v2284 = vpack.c.bf16 %v2220, %v2220
    %v2285 = vpack.c.bf16 %v2221, %v2221
    %v2286 = vpack.c.bf16 %v2222, %v2222
    %v2287 = vpack.c.bf16 %v2223, %v2223
    %v2288 = vpack.c.bf16 %v2224, %v2224
    %v2289 = vpack.c.bf16 %v2225, %v2225
    %v2290 = vpack.c.bf16 %v2226, %v2226
    %v2291 = vpack.c.bf16 %v2227, %v2227
    %v2292 = vpack.c.bf16 %v2228, %v2228
    %v2293 = vpack.c.bf16 %v2229, %v2229
    %v2294 = vpack.c.bf16 %v2230, %v2230
    %v2295 = vpack.c.bf16 %v2231, %v2231
    %v2296 = vpack.c.bf16 %v2232, %v2232
    %v2297 = vpack.c.bf16 %v2233, %v2233
    %v2298 = vpack.c.bf16 %v2234, %v2234
    %v2299 = vpack.c.bf16 %v2235, %v2235
    %v2300 = vpack.c.bf16 %v2236, %v2236
    %v2301 = vpack.c.bf16 %v2237, %v2237
    %v2302 = vpack.c.bf16 %v2238, %v2238
    %v2303 = vpack.c.bf16 %v2239, %v2239
    %v2304 = vpack.c.bf16 %v2240, %v2240
    %v2305 = vpack.c.bf16 %v2241, %v2241
    %v2306 = vpack.c.bf16 %v2242, %v2242
    %v2307 = vpack.c.bf16 %v2243, %v2243
    %v2308 = vpack.c.bf16 %v2244, %v2244
    %v2309 = vpack.c.bf16 %v2245, %v2245
    %v2310 = vpack.c.bf16 %v2246, %v2246
    %v2311 = vpack.c.bf16 %v2247, %v2247
    %v2312 = vpack.c.bf16 %v2248, %v2248
    %v2313 = vpack.c.bf16 %v2249, %v2249
    %v2314 = vpack.c.bf16 %v2250, %v2250
    %v2315 = vpack.c.bf16 %v2251, %v2251
    %v2316 = vpack.c.bf16 %v2252, %v2252
    %v2317 = vpack.c.bf16 %v2253, %v2253
    %v2318 = vpack.c.bf16 %v2254, %v2254
    %v2319 = vpack.c.bf16 %v2255, %v2255
    %v2320 = vpack.c.bf16 %v2256, %v2256
    %v2321 = vpack.c.bf16 %v2257, %v2257
    %v2322 = vpack.c.bf16 %v2258, %v2258
    %v2323 = vpack.c.bf16 %v2259, %v2259
    %v2324 = vpack.c.bf16 %v2260, %v2260
    %v2325 = vpack.c.bf16 %v2261, %v2261
    %v2326 = vpack.c.bf16 %v2262, %v2262
    %v2327 = vpack.c.bf16 %v2263, %v2263
    %v2328 = vpack.c.bf16 %v2264, %v2264
    %v2329 = vpack.c.bf16 %v2265, %v2265
    %v2330 = vpack.c.bf16 %v2266, %v2266
    %v2331 = vpack.c.bf16 %v2267, %v2267
    %v2332 = vpack.c.bf16 %v2268, %v2268
    %v2333 = vpack.c.bf16 %v838, %v838
    %v2334 = vpack.c.bf16 %v840, %v840
    %v2335 = vpack.c.bf16 %v843, %v843
    %v2336 = vpack.c.bf16 %v845, %v845
    %v2369 = vunpack.c.l.b16 %v2269
    %v2370 = vunpack.c.l.b16 %v2270
    %v2371 = vunpack.c.l.b16 %v2271
    %v2372 = vunpack.c.l.b16 %v2272
    %v2373 = vunpack.c.l.b16 %v2273
    %v2374 = vunpack.c.l.b16 %v2274
    %v2375 = vunpack.c.l.b16 %v2275
    %v2376 = vunpack.c.l.b16 %v2276
    %v2377 = vunpack.c.l.b16 %v2277
    %v2378 = vunpack.c.l.b16 %v2278
    %v2379 = vunpack.c.l.b16 %v2279
    %v2380 = vunpack.c.l.b16 %v2280
    %v2381 = vunpack.c.l.b16 %v2281
    %v2382 = vunpack.c.l.b16 %v2282
    %v2383 = vunpack.c.l.b16 %v2283
    %v2384 = vunpack.c.l.b16 %v2284
    %v2385 = vunpack.c.l.b16 %v2285
    %v2386 = vunpack.c.l.b16 %v2286
    %v2387 = vunpack.c.l.b16 %v2287
    %v2388 = vunpack.c.l.b16 %v2288
    %v2389 = vunpack.c.l.b16 %v2289
    %v2390 = vunpack.c.l.b16 %v2290
    %v2391 = vunpack.c.l.b16 %v2291
    %v2392 = vunpack.c.l.b16 %v2292
    %v2393 = vunpack.c.l.b16 %v2293
    %v2394 = vunpack.c.l.b16 %v2294
    %v2395 = vunpack.c.l.b16 %v2295
    %v2396 = vunpack.c.l.b16 %v2296
    %v2397 = vunpack.c.l.b16 %v2297
    %v2398 = vunpack.c.l.b16 %v2298
    %v2399 = vunpack.c.l.b16 %v2299
    %v2400 = vunpack.c.l.b16 %v2300
    %v2401 = vpack.c.b16 %v2370, %v2369
    %v2402 = vpack.c.b16 %v2372, %v2371
    %v2403 = vpack.c.b16 %v2374, %v2373
    %v2404 = vpack.c.b16 %v2376, %v2375
    %v2405 = vpack.c.b16 %v2378, %v2377
    %v2406 = vpack.c.b16 %v2380, %v2379
    %v2407 = vpack.c.b16 %v2382, %v2381
    %v2408 = vpack.c.b16 %v2384, %v2383
    %v2409 = vpack.c.b16 %v2386, %v2385
    %v2410 = vpack.c.b16 %v2388, %v2387
    %v2411 = vpack.c.b16 %v2390, %v2389
    %v2412 = vpack.c.b16 %v2392, %v2391
    %v2413 = vpack.c.b16 %v2394, %v2393
    %v2414 = vpack.c.b16 %v2396, %v2395
    %v2415 = vpack.c.b16 %v2398, %v2397
    %v2416 = vpack.c.b16 %v2400, %v2399
    %v2419 = vunpack.c.l.b16 %v2333
    %v2420 = vunpack.c.l.b16 %v2334
    %v2421 = vpack.c.b16 %v2420, %v2419
    %v2424 = vsel %vm1564, %v2401, 0
    %v2427 = vsel %vm1564, %v2402, 0
    %v2430 = vsel %vm1564, %v2403, 0
    %v2433 = vsel %vm1564, %v2404, 0
    %v2436 = vsel %vm1564, %v2405, 0
    %v2439 = vsel %vm1564, %v2406, 0
    %v2442 = vsel %vm1564, %v2407, 0
    %v2445 = vsel %vm1564, %v2408, 0
    %v2448 = vsel %vm1564, %v2409, 0
    %v2451 = vsel %vm1564, %v2410, 0
    %v2454 = vsel %vm1564, %v2411, 0
    %v2457 = vsel %vm1564, %v2412, 0
    %v2460 = vsel %vm1564, %v2413, 0
    %v2463 = vsel %vm1564, %v2414, 0
    %v2466 = vsel %vm1564, %v2415, 0
    %v2469 = vsel %vm1564, %v2416, 0
    %2471 = vmatpush.bf16.msra.mxu0 0
    %2472 = vmatpush.bf16.msra.mxu0 0
    %2473 = vmatpush.bf16.msra.mxu0 0
    %2474 = vmatpush.bf16.msra.mxu0 0
    %2475 = vmatpush.bf16.msra.mxu0 0
    %2476 = vmatpush.bf16.msra.mxu0 0
    %2477 = vmatpush.bf16.msra.mxu0 0
    %2478 = vmatpush.bf16.msra.mxu0 %v2421
    %2479 = vmatmul.bf16.gmra.mxu0 %v2424
    %v2480 = vpop.f32.mrf.mxu0
    %v2481 = vadd.f32 0.0, %v2480
    %v2482 = vpop.f32.mrf.mxu0
    %v2483 = vadd.f32 0.0, %v2482
    %2484 = vmatmul.bf16.gmra.mxu0 %v2427
    %v2485 = vpop.f32.mrf.mxu0
    %v2486 = vadd.f32 0.0, %v2485
    %v2487 = vpop.f32.mrf.mxu0
    %v2488 = vadd.f32 0.0, %v2487
    %2489 = vmatmul.bf16.gmra.mxu0 %v2430
    %v2490 = vpop.f32.mrf.mxu0
    %v2491 = vadd.f32 0.0, %v2490
    %v2492 = vpop.f32.mrf.mxu0
    %v2493 = vadd.f32 0.0, %v2492
    %2494 = vmatmul.bf16.gmra.mxu0 %v2433
    %v2495 = vpop.f32.mrf.mxu0
    %v2496 = vadd.f32 0.0, %v2495
    %v2497 = vpop.f32.mrf.mxu0
    %v2498 = vadd.f32 0.0, %v2497
    %2499 = vmatmul.bf16.gmra.mxu0 %v2436
    %v2500 = vpop.f32.mrf.mxu0
    %v2501 = vadd.f32 0.0, %v2500
    %v2502 = vpop.f32.mrf.mxu0
    %v2503 = vadd.f32 0.0, %v2502
    %2504 = vmatmul.bf16.gmra.mxu0 %v2439
    %v2505 = vpop.f32.mrf.mxu0
    %v2506 = vadd.f32 0.0, %v2505
    %v2507 = vpop.f32.mrf.mxu0
    %v2508 = vadd.f32 0.0, %v2507
    %2509 = vmatmul.bf16.gmra.mxu0 %v2442
    %v2510 = vpop.f32.mrf.mxu0
    %v2511 = vadd.f32 0.0, %v2510
    %v2512 = vpop.f32.mrf.mxu0
    %v2513 = vadd.f32 0.0, %v2512
    %2514 = vmatmul.bf16.gmra.mxu0 %v2445
    %v2515 = vpop.f32.mrf.mxu0
    %v2516 = vadd.f32 0.0, %v2515
    %v2517 = vpop.f32.mrf.mxu0
    %v2518 = vadd.f32 0.0, %v2517
    %2519 = vmatmul.bf16.gmra.mxu0 %v2448
    %v2520 = vpop.f32.mrf.mxu0
    %v2521 = vadd.f32 0.0, %v2520
    %v2522 = vpop.f32.mrf.mxu0
    %v2523 = vadd.f32 0.0, %v2522
    %2524 = vmatmul.bf16.gmra.mxu0 %v2451
    %v2525 = vpop.f32.mrf.mxu0
    %v2526 = vadd.f32 0.0, %v2525
    %v2527 = vpop.f32.mrf.mxu0
    %v2528 = vadd.f32 0.0, %v2527
    %2529 = vmatmul.bf16.gmra.mxu0 %v2454
    %v2530 = vpop.f32.mrf.mxu0
    %v2531 = vadd.f32 0.0, %v2530
    %v2532 = vpop.f32.mrf.mxu0
    %v2533 = vadd.f32 0.0, %v2532
    %2534 = vmatmul.bf16.gmra.mxu0 %v2457
    %v2535 = vpop.f32.mrf.mxu0
    %v2536 = vadd.f32 0.0, %v2535
    %v2537 = vpop.f32.mrf.mxu0
    %v2538 = vadd.f32 0.0, %v2537
    %2539 = vmatmul.bf16.gmra.mxu0 %v2460
    %v2540 = vpop.f32.mrf.mxu0
    %v2541 = vadd.f32 0.0, %v2540
    %v2542 = vpop.f32.mrf.mxu0
    %v2543 = vadd.f32 0.0, %v2542
    %2544 = vmatmul.bf16.gmra.mxu0 %v2463
    %v2545 = vpop.f32.mrf.mxu0
    %v2546 = vadd.f32 0.0, %v2545
    %v2547 = vpop.f32.mrf.mxu0
    %v2548 = vadd.f32 0.0, %v2547
    %2549 = vmatmul.bf16.gmra.mxu0 %v2466
    %v2550 = vpop.f32.mrf.mxu0
    %v2551 = vadd.f32 0.0, %v2550
    %v2552 = vpop.f32.mrf.mxu0
    %v2553 = vadd.f32 0.0, %v2552
    %2554 = vmatmul.bf16.gmra.mxu0 %v2469
    %v2555 = vpop.f32.mrf.mxu0
    %v2556 = vadd.f32 0.0, %v2555
    %v2557 = vpop.f32.mrf.mxu0
    %v2558 = vadd.f32 0.0, %v2557
    %2559 = vdwg.mxu0
    %v2592 = vunpack.c.l.b16 %v2301
    %v2593 = vunpack.c.l.b16 %v2302
    %v2594 = vunpack.c.l.b16 %v2303
    %v2595 = vunpack.c.l.b16 %v2304
    %v2596 = vunpack.c.l.b16 %v2305
    %v2597 = vunpack.c.l.b16 %v2306
    %v2598 = vunpack.c.l.b16 %v2307
    %v2599 = vunpack.c.l.b16 %v2308
    %v2600 = vunpack.c.l.b16 %v2309
    %v2601 = vunpack.c.l.b16 %v2310
    %v2602 = vunpack.c.l.b16 %v2311
    %v2603 = vunpack.c.l.b16 %v2312
    %v2604 = vunpack.c.l.b16 %v2313
    %v2605 = vunpack.c.l.b16 %v2314
    %v2606 = vunpack.c.l.b16 %v2315
    %v2607 = vunpack.c.l.b16 %v2316
    %v2608 = vunpack.c.l.b16 %v2317
    %v2609 = vunpack.c.l.b16 %v2318
    %v2610 = vunpack.c.l.b16 %v2319
    %v2611 = vunpack.c.l.b16 %v2320
    %v2612 = vunpack.c.l.b16 %v2321
    %v2613 = vunpack.c.l.b16 %v2322
    %v2614 = vunpack.c.l.b16 %v2323
    %v2615 = vunpack.c.l.b16 %v2324
    %v2616 = vunpack.c.l.b16 %v2325
    %v2617 = vunpack.c.l.b16 %v2326
    %v2618 = vunpack.c.l.b16 %v2327
    %v2619 = vunpack.c.l.b16 %v2328
    %v2620 = vunpack.c.l.b16 %v2329
    %v2621 = vunpack.c.l.b16 %v2330
    %v2622 = vunpack.c.l.b16 %v2331
    %v2623 = vunpack.c.l.b16 %v2332
    %v2624 = vpack.c.b16 %v2593, %v2592
    %v2625 = vpack.c.b16 %v2595, %v2594
    %v2626 = vpack.c.b16 %v2597, %v2596
    %v2627 = vpack.c.b16 %v2599, %v2598
    %v2628 = vpack.c.b16 %v2601, %v2600
    %v2629 = vpack.c.b16 %v2603, %v2602
    %v2630 = vpack.c.b16 %v2605, %v2604
    %v2631 = vpack.c.b16 %v2607, %v2606
    %v2632 = vpack.c.b16 %v2609, %v2608
    %v2633 = vpack.c.b16 %v2611, %v2610
    %v2634 = vpack.c.b16 %v2613, %v2612
    %v2635 = vpack.c.b16 %v2615, %v2614
    %v2636 = vpack.c.b16 %v2617, %v2616
    %v2637 = vpack.c.b16 %v2619, %v2618
    %v2638 = vpack.c.b16 %v2621, %v2620
    %v2639 = vpack.c.b16 %v2623, %v2622
    %v2642 = vunpack.c.l.b16 %v2335
    %v2643 = vunpack.c.l.b16 %v2336
    %v2644 = vpack.c.b16 %v2643, %v2642
    %v2647 = vsel %vm1564, %v2624, 0
    %v2650 = vsel %vm1564, %v2625, 0
    %v2653 = vsel %vm1564, %v2626, 0
    %v2656 = vsel %vm1564, %v2627, 0
    %v2659 = vsel %vm1564, %v2628, 0
    %v2662 = vsel %vm1564, %v2629, 0
    %v2665 = vsel %vm1564, %v2630, 0
    %v2668 = vsel %vm1564, %v2631, 0
    %v2671 = vsel %vm1564, %v2632, 0
    %v2674 = vsel %vm1564, %v2633, 0
    %v2677 = vsel %vm1564, %v2634, 0
    %v2680 = vsel %vm1564, %v2635, 0
    %v2683 = vsel %vm1564, %v2636, 0
    %v2686 = vsel %vm1564, %v2637, 0
    %v2689 = vsel %vm1564, %v2638, 0
    %v2692 = vsel %vm1564, %v2639, 0
    %2694 = vmatpush.bf16.msra.mxu0 0
    %2695 = vmatpush.bf16.msra.mxu0 0
    %2696 = vmatpush.bf16.msra.mxu0 0
    %2697 = vmatpush.bf16.msra.mxu0 0
    %2698 = vmatpush.bf16.msra.mxu0 0
    %2699 = vmatpush.bf16.msra.mxu0 0
    %2700 = vmatpush.bf16.msra.mxu0 0
    %2701 = vmatpush.bf16.msra.mxu0 %v2644
    %2702 = vmatmul.bf16.gmra.mxu0 %v2647
    %v2703 = vpop.f32.mrf.mxu0
    %v2704 = vadd.f32 0.0, %v2703
    %v2705 = vpop.f32.mrf.mxu0
    %v2706 = vadd.f32 0.0, %v2705
    %2707 = vmatmul.bf16.gmra.mxu0 %v2650
    %v2708 = vpop.f32.mrf.mxu0
    %v2709 = vadd.f32 0.0, %v2708
    %v2710 = vpop.f32.mrf.mxu0
    %v2711 = vadd.f32 0.0, %v2710
    %2712 = vmatmul.bf16.gmra.mxu0 %v2653
    %v2713 = vpop.f32.mrf.mxu0
    %v2714 = vadd.f32 0.0, %v2713
    %v2715 = vpop.f32.mrf.mxu0
    %v2716 = vadd.f32 0.0, %v2715
    %2717 = vmatmul.bf16.gmra.mxu0 %v2656
    %v2718 = vpop.f32.mrf.mxu0
    %v2719 = vadd.f32 0.0, %v2718
    %v2720 = vpop.f32.mrf.mxu0
    %v2721 = vadd.f32 0.0, %v2720
    %2722 = vmatmul.bf16.gmra.mxu0 %v2659
    %v2723 = vpop.f32.mrf.mxu0
    %v2724 = vadd.f32 0.0, %v2723
    %v2725 = vpop.f32.mrf.mxu0
    %v2726 = vadd.f32 0.0, %v2725
    %2727 = vmatmul.bf16.gmra.mxu0 %v2662
    %v2728 = vpop.f32.mrf.mxu0
    %v2729 = vadd.f32 0.0, %v2728
    %v2730 = vpop.f32.mrf.mxu0
    %v2731 = vadd.f32 0.0, %v2730
    %2732 = vmatmul.bf16.gmra.mxu0 %v2665
    %v2733 = vpop.f32.mrf.mxu0
    %v2734 = vadd.f32 0.0, %v2733
    %v2735 = vpop.f32.mrf.mxu0
    %v2736 = vadd.f32 0.0, %v2735
    %2737 = vmatmul.bf16.gmra.mxu0 %v2668
    %v2738 = vpop.f32.mrf.mxu0
    %v2739 = vadd.f32 0.0, %v2738
    %v2740 = vpop.f32.mrf.mxu0
    %v2741 = vadd.f32 0.0, %v2740
    %2742 = vmatmul.bf16.gmra.mxu0 %v2671
    %v2743 = vpop.f32.mrf.mxu0
    %v2744 = vadd.f32 0.0, %v2743
    %v2745 = vpop.f32.mrf.mxu0
    %v2746 = vadd.f32 0.0, %v2745
    %2747 = vmatmul.bf16.gmra.mxu0 %v2674
    %v2748 = vpop.f32.mrf.mxu0
    %v2749 = vadd.f32 0.0, %v2748
    %v2750 = vpop.f32.mrf.mxu0
    %v2751 = vadd.f32 0.0, %v2750
    %2752 = vmatmul.bf16.gmra.mxu0 %v2677
    %v2753 = vpop.f32.mrf.mxu0
    %v2754 = vadd.f32 0.0, %v2753
    %v2755 = vpop.f32.mrf.mxu0
    %v2756 = vadd.f32 0.0, %v2755
    %2757 = vmatmul.bf16.gmra.mxu0 %v2680
    %v2758 = vpop.f32.mrf.mxu0
    %v2759 = vadd.f32 0.0, %v2758
    %v2760 = vpop.f32.mrf.mxu0
    %v2761 = vadd.f32 0.0, %v2760
    %2762 = vmatmul.bf16.gmra.mxu0 %v2683
    %v2763 = vpop.f32.mrf.mxu0
    %v2764 = vadd.f32 0.0, %v2763
    %v2765 = vpop.f32.mrf.mxu0
    %v2766 = vadd.f32 0.0, %v2765
    %2767 = vmatmul.bf16.gmra.mxu0 %v2686
    %v2768 = vpop.f32.mrf.mxu0
    %v2769 = vadd.f32 0.0, %v2768
    %v2770 = vpop.f32.mrf.mxu0
    %v2771 = vadd.f32 0.0, %v2770
    %2772 = vmatmul.bf16.gmra.mxu0 %v2689
    %v2773 = vpop.f32.mrf.mxu0
    %v2774 = vadd.f32 0.0, %v2773
    %v2775 = vpop.f32.mrf.mxu0
    %v2776 = vadd.f32 0.0, %v2775
    %2777 = vmatmul.bf16.gmra.mxu0 %v2692
    %v2778 = vpop.f32.mrf.mxu0
    %v2779 = vadd.f32 0.0, %v2778
    %v2780 = vpop.f32.mrf.mxu0
    %v2781 = vadd.f32 0.0, %v2780
    %2782 = vdwg.mxu0
    %v2783 = vsel %vm960, %v2481, 0.0
    %v2784 = vsel %vm960, %v2483, 0.0
    %v2785 = vsel %vm961, %v2486, 0.0
    %v2786 = vsel %vm961, %v2488, 0.0
    %v2787 = vsel %vm962, %v2491, 0.0
    %v2788 = vsel %vm962, %v2493, 0.0
    %v2789 = vsel %vm963, %v2496, 0.0
    %v2790 = vsel %vm963, %v2498, 0.0
    %v2791 = vsel %vm964, %v2501, 0.0
    %v2792 = vsel %vm964, %v2503, 0.0
    %v2793 = vsel %vm965, %v2506, 0.0
    %v2794 = vsel %vm965, %v2508, 0.0
    %v2795 = vsel %vm966, %v2511, 0.0
    %v2796 = vsel %vm966, %v2513, 0.0
    %v2797 = vsel %vm967, %v2516, 0.0
    %v2798 = vsel %vm967, %v2518, 0.0
    %v2799 = vsel %vm968, %v2521, 0.0
    %v2800 = vsel %vm968, %v2523, 0.0
    %v2801 = vsel %vm969, %v2526, 0.0
    %v2802 = vsel %vm969, %v2528, 0.0
    %v2803 = vsel %vm970, %v2531, 0.0
    %v2804 = vsel %vm970, %v2533, 0.0
    %v2805 = vsel %vm971, %v2536, 0.0
    %v2806 = vsel %vm971, %v2538, 0.0
    %v2807 = vsel %vm972, %v2541, 0.0
    %v2808 = vsel %vm972, %v2543, 0.0
    %v2809 = vsel %vm973, %v2546, 0.0
    %v2810 = vsel %vm973, %v2548, 0.0
    %v2811 = vsel %vm974, %v2551, 0.0
    %v2812 = vsel %vm974, %v2553, 0.0
    %v2813 = vsel %vm975, %v2556, 0.0
    %v2814 = vsel %vm975, %v2558, 0.0
    %v2815 = vsel %vm960, %v2704, 0.0
    %v2816 = vsel %vm960, %v2706, 0.0
    %v2817 = vsel %vm961, %v2709, 0.0
    %v2818 = vsel %vm961, %v2711, 0.0
    %v2819 = vsel %vm962, %v2714, 0.0
    %v2820 = vsel %vm962, %v2716, 0.0
    %v2821 = vsel %vm963, %v2719, 0.0
    %v2822 = vsel %vm963, %v2721, 0.0
    %v2823 = vsel %vm964, %v2724, 0.0
    %v2824 = vsel %vm964, %v2726, 0.0
    %v2825 = vsel %vm965, %v2729, 0.0
    %v2826 = vsel %vm965, %v2731, 0.0
    %v2827 = vsel %vm966, %v2734, 0.0
    %v2828 = vsel %vm966, %v2736, 0.0
    %v2829 = vsel %vm967, %v2739, 0.0
    %v2830 = vsel %vm967, %v2741, 0.0
    %v2831 = vsel %vm968, %v2744, 0.0
    %v2832 = vsel %vm968, %v2746, 0.0
    %v2833 = vsel %vm969, %v2749, 0.0
    %v2834 = vsel %vm969, %v2751, 0.0
    %v2835 = vsel %vm970, %v2754, 0.0
    %v2836 = vsel %vm970, %v2756, 0.0
    %v2837 = vsel %vm971, %v2759, 0.0
    %v2838 = vsel %vm971, %v2761, 0.0
    %v2839 = vsel %vm972, %v2764, 0.0
    %v2840 = vsel %vm972, %v2766, 0.0
    %v2841 = vsel %vm973, %v2769, 0.0
    %v2842 = vsel %vm973, %v2771, 0.0
    %v2843 = vsel %vm974, %v2774, 0.0
    %v2844 = vsel %vm974, %v2776, 0.0
    %v2845 = vsel %vm975, %v2779, 0.0
    %v2846 = vsel %vm975, %v2781, 0.0
    %v2847 = vadd.f32 %v2783, %v2785
    %v2848 = vadd.f32 %v2784, %v2786
    %v2849 = vadd.f32 %v2815, %v2817
    %v2850 = vadd.f32 %v2816, %v2818
    %v2851 = vadd.f32 %v2847, %v2787
    %v2852 = vadd.f32 %v2848, %v2788
    %v2853 = vadd.f32 %v2849, %v2819
    %v2854 = vadd.f32 %v2850, %v2820
    %v2855 = vadd.f32 %v2851, %v2789
    %v2856 = vadd.f32 %v2852, %v2790
    %v2857 = vadd.f32 %v2853, %v2821
    %v2858 = vadd.f32 %v2854, %v2822
    %v2859 = vadd.f32 %v2855, %v2791
    %v2860 = vadd.f32 %v2856, %v2792
    %v2861 = vadd.f32 %v2857, %v2823
    %v2862 = vadd.f32 %v2858, %v2824
    %v2863 = vadd.f32 %v2859, %v2793
    %v2864 = vadd.f32 %v2860, %v2794
    %v2865 = vadd.f32 %v2861, %v2825
    %v2866 = vadd.f32 %v2862, %v2826
    %v2867 = vadd.f32 %v2863, %v2795
    %v2868 = vadd.f32 %v2864, %v2796
    %v2869 = vadd.f32 %v2865, %v2827
    %v2870 = vadd.f32 %v2866, %v2828
    %v2871 = vadd.f32 %v2867, %v2797
    %v2872 = vadd.f32 %v2868, %v2798
    %v2873 = vadd.f32 %v2869, %v2829
    %v2874 = vadd.f32 %v2870, %v2830
    %v2875 = vadd.f32 %v2871, %v2799
    %v2876 = vadd.f32 %v2872, %v2800
    %v2877 = vadd.f32 %v2873, %v2831
    %v2878 = vadd.f32 %v2874, %v2832
    %v2879 = vadd.f32 %v2875, %v2801
    %v2880 = vadd.f32 %v2876, %v2802
    %v2881 = vadd.f32 %v2877, %v2833
    %v2882 = vadd.f32 %v2878, %v2834
    %v2883 = vadd.f32 %v2879, %v2803
    %v2884 = vadd.f32 %v2880, %v2804
    %v2885 = vadd.f32 %v2881, %v2835
    %v2886 = vadd.f32 %v2882, %v2836
    %v2887 = vadd.f32 %v2883, %v2805
    %v2888 = vadd.f32 %v2884, %v2806
    %v2889 = vadd.f32 %v2885, %v2837
    %v2890 = vadd.f32 %v2886, %v2838
    %v2891 = vadd.f32 %v2887, %v2807
    %v2892 = vadd.f32 %v2888, %v2808
    %v2893 = vadd.f32 %v2889, %v2839
    %v2894 = vadd.f32 %v2890, %v2840
    %v2895 = vadd.f32 %v2891, %v2809
    %v2896 = vadd.f32 %v2892, %v2810
    %v2897 = vadd.f32 %v2893, %v2841
    %v2898 = vadd.f32 %v2894, %v2842
    %v2899 = vadd.f32 %v2895, %v2811
    %v2900 = vadd.f32 %v2896, %v2812
    %v2901 = vadd.f32 %v2897, %v2843
    %v2902 = vadd.f32 %v2898, %v2844
    %v2903 = vadd.f32 %v2899, %v2813
    %v2904 = vadd.f32 %v2900, %v2814
    %v2905 = vadd.f32 %v2901, %v2845
    %v2906 = vadd.f32 %v2902, %v2846
    %v2907 = vld [vmem:[#allocation10] sm:$0xf]
    %v2908 = vld [vmem:[#allocation10 + $0x4] sm:$0xf]
    %v2909 = vld [vmem:[#allocation10 + $0x8] sm:$0xf]
    %v2910 = vld [vmem:[#allocation10 + $0xc] sm:$0xf]
    %v2911 = vld [vmem:[#allocation10 + $0x10] sm:$0xf]
    %v2912 = vld [vmem:[#allocation10 + $0x14] sm:$0xf]
    %v2913 = vld [vmem:[#allocation10 + $0x18] sm:$0xf]
    %v2914 = vld [vmem:[#allocation10 + $0x1c] sm:$0xf]
    %v2915 = vld [vmem:[#allocation10 + $0x20] sm:$0xf]
    %v2916 = vld [vmem:[#allocation10 + $0x24] sm:$0xf]
    %v2917 = vld [vmem:[#allocation10 + $0x28] sm:$0xf]
    %v2918 = vld [vmem:[#allocation10 + $0x2c] sm:$0xf]
    %v2919 = vld [vmem:[#allocation10 + $0x30] sm:$0xf]
    %v2920 = vld [vmem:[#allocation10 + $0x34] sm:$0xf]
    %v2921 = vld [vmem:[#allocation10 + $0x38] sm:$0xf]
    %v2922 = vld [vmem:[#allocation10 + $0x3c] sm:$0xf]
    %v2923 = vpack.c.bf16 %v2904, %v2903
    %v2924 = vpack.c.bf16 %v2906, %v2905
    %v2925 = vld [vmem:[#allocation12] sm:$0x1]
    %v2927 = vperm.slane %v2925, 0
    %v2945 = vunpack.c.l.b16 %v2907
    %v2946 = vunpack.c.l.b16 %v2908
    %v2947 = vunpack.c.l.b16 %v2909
    %v2948 = vunpack.c.l.b16 %v2910
    %v2949 = vunpack.c.l.b16 %v2911
    %v2950 = vunpack.c.l.b16 %v2912
    %v2951 = vunpack.c.l.b16 %v2913
    %v2952 = vunpack.c.l.b16 %v2914
    %v2953 = vunpack.c.l.b16 %v2915
    %v2954 = vunpack.c.l.b16 %v2916
    %v2955 = vunpack.c.l.b16 %v2917
    %v2956 = vunpack.c.l.b16 %v2918
    %v2957 = vunpack.c.l.b16 %v2919
    %v2958 = vunpack.c.l.b16 %v2920
    %v2959 = vunpack.c.l.b16 %v2921
    %v2960 = vunpack.c.l.b16 %v2922
    %v2961 = vpack.c.b16 %v2946, %v2945
    %v2962 = vpack.c.b16 %v2948, %v2947
    %v2963 = vpack.c.b16 %v2950, %v2949
    %v2964 = vpack.c.b16 %v2952, %v2951
    %v2965 = vpack.c.b16 %v2954, %v2953
    %v2966 = vpack.c.b16 %v2956, %v2955
    %v2967 = vpack.c.b16 %v2958, %v2957
    %v2968 = vpack.c.b16 %v2960, %v2959
    %2977 = vmatpush.bf16.msra.mxu0 %v2968
    %2978 = vmatpush.bf16.msra.mxu0 %v2967
    %2979 = vmatpush.bf16.msra.mxu0 %v2966
    %2980 = vmatpush.bf16.msra.mxu0 %v2965
    %2981 = vmatpush.bf16.msra.mxu0 %v2964
    %2982 = vmatpush.bf16.msra.mxu0 %v2963
    %2983 = vmatpush.bf16.msra.mxu0 %v2962
    %2984 = vmatpush.bf16.msra.mxu0 %v2961
    %2985 = vmatmul.bf16.gmra.mxu0 %v2923
    %v2986 = vpop.f32.mrf.mxu0
    %v2987 = vadd.f32 %v2927, %v2986
    %v2988 = vpop.f32.mrf.mxu0
    %v2989 = vadd.f32 %v2927, %v2988
    %2990 = vmatmul.bf16.gmra.mxu0 %v2924
    %v2991 = vpop.f32.mrf.mxu0
    %v2992 = vadd.f32 %v2927, %v2991
    %v2993 = vpop.f32.mrf.mxu0
    %v2994 = vadd.f32 %v2927, %v2993
    %2995 = vdwg.mxu0
    %v2996 = vperm.slane %v431, 0
    %v2997 = vperm.slane %v500, 0
    %v3000 = vmul.f32 %v2996, %v2987
    %v3001 = vmul.f32 %v2996, %v2989
    %v3002 = vmul.f32 %v2997, %v2992
    %v3003 = vmul.f32 %v2997, %v2994
    %v3004 = vadd.f32 %v203, %v3000
    %v3005 = vadd.f32 %v204, %v3001
    %v3006 = vadd.f32 %v205, %v3002
    %v3007 = vadd.f32 %v206, %v3003
    %3008 = vadd.xlane.f32.xlu0 %v3004
    %v3009 = vpop.xlane.xlu0 %3008
    %3010 = vadd.xlane.f32.xlu0 %v3005
    %v3011 = vpop.xlane.xlu0 %3010
    %3012 = vadd.xlane.f32.xlu0 %v3006
    %v3013 = vpop.xlane.xlu0 %3012
    %3014 = vadd.xlane.f32.xlu0 %v3007
    %v3015 = vpop.xlane.xlu0 %3014
    %v3016 = vmul.f32 %v3009, %v527
    %v3017 = vmul.f32 %v3011, %v527
    %v3018 = vmul.f32 %v3013, %v527
    %v3019 = vmul.f32 %v3015, %v527
    %v3020 = vsub.f32 %v3004, %v3016
    %v3021 = vsub.f32 %v3005, %v3017
    %v3022 = vsub.f32 %v3006, %v3018
    %v3023 = vsub.f32 %v3007, %v3019
    %v3024 = vmul.f32 %v3020, %v3020
    %v3025 = vmul.f32 %v3021, %v3021
    %v3026 = vmul.f32 %v3022, %v3022
    %v3027 = vmul.f32 %v3023, %v3023
    %3028 = vadd.xlane.f32.xlu0 %v3024
    %v3029 = vpop.xlane.xlu0 %3028
    %3030 = vadd.xlane.f32.xlu0 %v3025
    %v3031 = vpop.xlane.xlu0 %3030
    %3032 = vadd.xlane.f32.xlu0 %v3026
    %v3033 = vpop.xlane.xlu0 %3032
    %3034 = vadd.xlane.f32.xlu0 %v3027
    %v3035 = vpop.xlane.xlu0 %3034
    %v3036 = vmul.f32 %v3029, %v527
    %v3037 = vmul.f32 %v3031, %v527
    %v3038 = vmul.f32 %v3033, %v527
    %v3039 = vmul.f32 %v3035, %v527
    %v3040 = vadd.f32 %v3036, 1e-06
    %v3041 = vadd.f32 %v3037, 1e-06
    %v3042 = vadd.f32 %v3038, 1e-06
    %v3043 = vadd.f32 %v3039, 1e-06
    %v3044 = vrsqrt.pop %v3040
    %v3045 = vmul.f32 %v3044, %v3040
    %v3046 = vmul.f32 %v3045, %v3044
    %v3047 = vmul.f32 0.5, %v3046
    %v3048 = vsub.f32 1.5, %v3047
    %v3049 = vmul.f32 %v3044, %v3048
    %vm3050 = vweird.f32 %v3040
    %vm3051 = vweird.f32 %v3044
    %vm3052 = vmor %vm3050, %vm3051
    %v3053 = vsel %vm3052, %v3044, %v3049
    %v3054 = vrsqrt.pop %v3041
    %v3055 = vmul.f32 %v3054, %v3041
    %v3056 = vmul.f32 %v3055, %v3054
    %v3057 = vmul.f32 0.5, %v3056
    %v3058 = vsub.f32 1.5, %v3057
    %v3059 = vmul.f32 %v3054, %v3058
    %vm3060 = vweird.f32 %v3041
    %vm3061 = vweird.f32 %v3054
    %vm3062 = vmor %vm3060, %vm3061
    %v3063 = vsel %vm3062, %v3054, %v3059
    %v3064 = vrsqrt.pop %v3042
    %v3065 = vmul.f32 %v3064, %v3042
    %v3066 = vmul.f32 %v3065, %v3064
    %v3067 = vmul.f32 0.5, %v3066
    %v3068 = vsub.f32 1.5, %v3067
    %v3069 = vmul.f32 %v3064, %v3068
    %vm3070 = vweird.f32 %v3042
    %vm3071 = vweird.f32 %v3064
    %vm3072 = vmor %vm3070, %vm3071
    %v3073 = vsel %vm3072, %v3064, %v3069
    %v3074 = vrsqrt.pop %v3043
    %v3075 = vmul.f32 %v3074, %v3043
    %v3076 = vmul.f32 %v3075, %v3074
    %v3077 = vmul.f32 0.5, %v3076
    %v3078 = vsub.f32 1.5, %v3077
    %v3079 = vmul.f32 %v3074, %v3078
    %vm3080 = vweird.f32 %v3043
    %vm3081 = vweird.f32 %v3074
    %vm3082 = vmor %vm3080, %vm3081
    %v3083 = vsel %vm3082, %v3074, %v3079
    %v3084 = vmul.f32 %v3020, %v3053
    %v3085 = vmul.f32 %v3021, %v3063
    %v3086 = vmul.f32 %v3022, %v3073
    %v3087 = vmul.f32 %v3023, %v3083
    %v3088 = vadd.f32 %v470, 1.0
    %v3089 = vadd.f32 %v507, 1.0
    %v3092 = vperm.slane %v3088, 0
    %v3093 = vperm.slane %v3089, 0
    %v3096 = vmul.f32 %v3084, %v3092
    %v3097 = vmul.f32 %v3085, %v3092
    %v3098 = vmul.f32 %v3086, %v3093
    %v3099 = vmul.f32 %v3087, %v3093
    %v3100 = vperm.slane %v496, 0
    %v3101 = vperm.slane %v512, 0
    %v3104 = vadd.f32 %v3096, %v3100
    %v3105 = vadd.f32 %v3097, %v3100
    %v3106 = vadd.f32 %v3098, %v3101
    %v3107 = vadd.f32 %v3099, %v3101
    %v3108 = vld [vmem:[#allocation13] sm:$0xff]
    %v3109 = vld [vmem:[#allocation13 + $0x8] sm:$0xff]
    %v3110 = vld [vmem:[#allocation13 + $0x10] sm:$0xff]
    %v3111 = vld [vmem:[#allocation13 + $0x18] sm:$0xff]
    %v3112 = vld [vmem:[#allocation13 + $0x20] sm:$0xff]
    %v3113 = vld [vmem:[#allocation13 + $0x28] sm:$0xff]
    %v3114 = vld [vmem:[#allocation13 + $0x30] sm:$0xff]
    %v3115 = vld [vmem:[#allocation13 + $0x38] sm:$0xff]
    %v3116 = vld [vmem:[#allocation13 + $0x40] sm:$0xff]
    %v3117 = vld [vmem:[#allocation13 + $0x48] sm:$0xff]
    %v3118 = vld [vmem:[#allocation13 + $0x50] sm:$0xff]
    %v3119 = vld [vmem:[#allocation13 + $0x58] sm:$0xff]
    %v3120 = vld [vmem:[#allocation13 + $0x60] sm:$0xff]
    %v3121 = vld [vmem:[#allocation13 + $0x68] sm:$0xff]
    %v3122 = vld [vmem:[#allocation13 + $0x70] sm:$0xff]
    %v3123 = vld [vmem:[#allocation13 + $0x78] sm:$0xff]
    %v3124 = vld [vmem:[#allocation13 + $0x80] sm:$0xff]
    %v3125 = vld [vmem:[#allocation13 + $0x88] sm:$0xff]
    %v3126 = vld [vmem:[#allocation13 + $0x90] sm:$0xff]
    %v3127 = vld [vmem:[#allocation13 + $0x98] sm:$0xff]
    %v3128 = vld [vmem:[#allocation13 + $0xa0] sm:$0xff]
    %v3129 = vld [vmem:[#allocation13 + $0xa8] sm:$0xff]
    %v3130 = vld [vmem:[#allocation13 + $0xb0] sm:$0xff]
    %v3131 = vld [vmem:[#allocation13 + $0xb8] sm:$0xff]
    %v3132 = vld [vmem:[#allocation13 + $0xc0] sm:$0xff]
    %v3133 = vld [vmem:[#allocation13 + $0xc8] sm:$0xff]
    %v3134 = vld [vmem:[#allocation13 + $0xd0] sm:$0xff]
    %v3135 = vld [vmem:[#allocation13 + $0xd8] sm:$0xff]
    %v3136 = vld [vmem:[#allocation13 + $0xe0] sm:$0xff]
    %v3137 = vld [vmem:[#allocation13 + $0xe8] sm:$0xff]
    %v3138 = vld [vmem:[#allocation13 + $0xf0] sm:$0xff]
    %v3139 = vld [vmem:[#allocation13 + $0xf8] sm:$0xff]
    %v3140 = vpack.c.bf16 %v3105, %v3104
    %v3141 = vpack.c.bf16 %v3107, %v3106
    %v3142 = vld [vmem:[#allocation15] sm:$0xf]
    %v3144 = vperm.slane %v3142, 0
    %v3145 = vperm.slane %v3142, 1
    %v3146 = vperm.slane %v3142, 2
    %v3147 = vperm.slane %v3142, 3
    %v3184 = vunpack.c.l.b16 %v3108
    %v3185 = vunpack.c.h.b16 %v3108
    %v3186 = vunpack.c.l.b16 %v3109
    %v3187 = vunpack.c.h.b16 %v3109
    %v3188 = vunpack.c.l.b16 %v3110
    %v3189 = vunpack.c.h.b16 %v3110
    %v3190 = vunpack.c.l.b16 %v3111
    %v3191 = vunpack.c.h.b16 %v3111
    %v3192 = vunpack.c.l.b16 %v3112
    %v3193 = vunpack.c.h.b16 %v3112
    %v3194 = vunpack.c.l.b16 %v3113
    %v3195 = vunpack.c.h.b16 %v3113
    %v3196 = vunpack.c.l.b16 %v3114
    %v3197 = vunpack.c.h.b16 %v3114
    %v3198 = vunpack.c.l.b16 %v3115
    %v3199 = vunpack.c.h.b16 %v3115
    %v3200 = vunpack.c.l.b16 %v3116
    %v3201 = vunpack.c.h.b16 %v3116
    %v3202 = vunpack.c.l.b16 %v3117
    %v3203 = vunpack.c.h.b16 %v3117
    %v3204 = vunpack.c.l.b16 %v3118
    %v3205 = vunpack.c.h.b16 %v3118
    %v3206 = vunpack.c.l.b16 %v3119
    %v3207 = vunpack.c.h.b16 %v3119
    %v3208 = vunpack.c.l.b16 %v3120
    %v3209 = vunpack.c.h.b16 %v3120
    %v3210 = vunpack.c.l.b16 %v3121
    %v3211 = vunpack.c.h.b16 %v3121
    %v3212 = vunpack.c.l.b16 %v3122
    %v3213 = vunpack.c.h.b16 %v3122
    %v3214 = vunpack.c.l.b16 %v3123
    %v3215 = vunpack.c.h.b16 %v3123
    %v3216 = vunpack.c.l.b16 %v3124
    %v3217 = vunpack.c.h.b16 %v3124
    %v3218 = vunpack.c.l.b16 %v3125
    %v3219 = vunpack.c.h.b16 %v3125
    %v3220 = vunpack.c.l.b16 %v3126
    %v3221 = vunpack.c.h.b16 %v3126
    %v3222 = vunpack.c.l.b16 %v3127
    %v3223 = vunpack.c.h.b16 %v3127
    %v3224 = vunpack.c.l.b16 %v3128
    %v3225 = vunpack.c.h.b16 %v3128
    %v3226 = vunpack.c.l.b16 %v3129
    %v3227 = vunpack.c.h.b16 %v3129
    %v3228 = vunpack.c.l.b16 %v3130
    %v3229 = vunpack.c.h.b16 %v3130
    %v3230 = vunpack.c.l.b16 %v3131
    %v3231 = vunpack.c.h.b16 %v3131
    %v3232 = vunpack.c.l.b16 %v3132
    %v3233 = vunpack.c.h.b16 %v3132
    %v3234 = vunpack.c.l.b16 %v3133
    %v3235 = vunpack.c.h.b16 %v3133
    %v3236 = vunpack.c.l.b16 %v3134
    %v3237 = vunpack.c.h.b16 %v3134
    %v3238 = vunpack.c.l.b16 %v3135
    %v3239 = vunpack.c.h.b16 %v3135
    %v3240 = vunpack.c.l.b16 %v3136
    %v3241 = vunpack.c.h.b16 %v3136
    %v3242 = vunpack.c.l.b16 %v3137
    %v3243 = vunpack.c.h.b16 %v3137
    %v3244 = vunpack.c.l.b16 %v3138
    %v3245 = vunpack.c.h.b16 %v3138
    %v3246 = vunpack.c.l.b16 %v3139
    %v3247 = vunpack.c.h.b16 %v3139
    %v3248 = vpack.c.b16 %v3188, %v3184
    %v3249 = vpack.c.b16 %v3189, %v3185
    %v3250 = vpack.c.b16 %v3190, %v3186
    %v3251 = vpack.c.b16 %v3191, %v3187
    %v3252 = vpack.c.b16 %v3196, %v3192
    %v3253 = vpack.c.b16 %v3197, %v3193
    %v3254 = vpack.c.b16 %v3198, %v3194
    %v3255 = vpack.c.b16 %v3199, %v3195
    %v3256 = vpack.c.b16 %v3204, %v3200
    %v3257 = vpack.c.b16 %v3205, %v3201
    %v3258 = vpack.c.b16 %v3206, %v3202
    %v3259 = vpack.c.b16 %v3207, %v3203
    %v3260 = vpack.c.b16 %v3212, %v3208
    %v3261 = vpack.c.b16 %v3213, %v3209
    %v3262 = vpack.c.b16 %v3214, %v3210
    %v3263 = vpack.c.b16 %v3215, %v3211
    %v3264 = vpack.c.b16 %v3220, %v3216
    %v3265 = vpack.c.b16 %v3221, %v3217
    %v3266 = vpack.c.b16 %v3222, %v3218
    %v3267 = vpack.c.b16 %v3223, %v3219
    %v3268 = vpack.c.b16 %v3228, %v3224
    %v3269 = vpack.c.b16 %v3229, %v3225
    %v3270 = vpack.c.b16 %v3230, %v3226
    %v3271 = vpack.c.b16 %v3231, %v3227
    %v3272 = vpack.c.b16 %v3236, %v3232
    %v3273 = vpack.c.b16 %v3237, %v3233
    %v3274 = vpack.c.b16 %v3238, %v3234
    %v3275 = vpack.c.b16 %v3239, %v3235
    %v3276 = vpack.c.b16 %v3244, %v3240
    %v3277 = vpack.c.b16 %v3245, %v3241
    %v3278 = vpack.c.b16 %v3246, %v3242
    %v3279 = vpack.c.b16 %v3247, %v3243
    %3312 = vmatpush.bf16.msra.mxu0 %v3276
    %3313 = vmatpush.bf16.msra.mxu0 %v3272
    %3314 = vmatpush.bf16.msra.mxu0 %v3268
    %3315 = vmatpush.bf16.msra.mxu0 %v3264
    %3316 = vmatpush.bf16.msra.mxu0 %v3260
    %3317 = vmatpush.bf16.msra.mxu0 %v3256
    %3318 = vmatpush.bf16.msra.mxu0 %v3252
    %3319 = vmatpush.bf16.msra.mxu0 %v3248
    %3320 = vmatmul.bf16.gmra.mxu0 %v3140
    %v3321 = vpop.f32.mrf.mxu0
    %v3322 = vadd.f32 %v3144, %v3321
    %v3323 = vpop.f32.mrf.mxu0
    %v3324 = vadd.f32 %v3144, %v3323
    %3325 = vmatmul.bf16.gmra.mxu0 %v3141
    %v3326 = vpop.f32.mrf.mxu0
    %v3327 = vadd.f32 %v3144, %v3326
    %v3328 = vpop.f32.mrf.mxu0
    %v3329 = vadd.f32 %v3144, %v3328
    %3330 = vdwg.mxu0
    %3331 = vmatpush.bf16.msra.mxu0 %v3277
    %3332 = vmatpush.bf16.msra.mxu0 %v3273
    %3333 = vmatpush.bf16.msra.mxu0 %v3269
    %3334 = vmatpush.bf16.msra.mxu0 %v3265
    %3335 = vmatpush.bf16.msra.mxu0 %v3261
    %3336 = vmatpush.bf16.msra.mxu0 %v3257
    %3337 = vmatpush.bf16.msra.mxu0 %v3253
    %3338 = vmatpush.bf16.msra.mxu0 %v3249
    %3339 = vmatmul.bf16.gmra.mxu0 %v3140
    %v3340 = vpop.f32.mrf.mxu0
    %v3341 = vadd.f32 %v3145, %v3340
    %v3342 = vpop.f32.mrf.mxu0
    %v3343 = vadd.f32 %v3145, %v3342
    %3344 = vmatmul.bf16.gmra.mxu0 %v3141
    %v3345 = vpop.f32.mrf.mxu0
    %v3346 = vadd.f32 %v3145, %v3345
    %v3347 = vpop.f32.mrf.mxu0
    %v3348 = vadd.f32 %v3145, %v3347
    %3349 = vdwg.mxu0
    %3350 = vmatpush.bf16.msra.mxu0 %v3278
    %3351 = vmatpush.bf16.msra.mxu0 %v3274
    %3352 = vmatpush.bf16.msra.mxu0 %v3270
    %3353 = vmatpush.bf16.msra.mxu0 %v3266
    %3354 = vmatpush.bf16.msra.mxu0 %v3262
    %3355 = vmatpush.bf16.msra.mxu0 %v3258
    %3356 = vmatpush.bf16.msra.mxu0 %v3254
    %3357 = vmatpush.bf16.msra.mxu0 %v3250
    %3358 = vmatmul.bf16.gmra.mxu0 %v3140
    %v3359 = vpop.f32.mrf.mxu0
    %v3360 = vadd.f32 %v3146, %v3359
    %v3361 = vpop.f32.mrf.mxu0
    %v3362 = vadd.f32 %v3146, %v3361
    %3363 = vmatmul.bf16.gmra.mxu0 %v3141
    %v3364 = vpop.f32.mrf.mxu0
    %v3365 = vadd.f32 %v3146, %v3364
    %v3366 = vpop.f32.mrf.mxu0
    %v3367 = vadd.f32 %v3146, %v3366
    %3368 = vdwg.mxu0
    %3369 = vmatpush.bf16.msra.mxu0 %v3279
    %3370 = vmatpush.bf16.msra.mxu0 %v3275
    %3371 = vmatpush.bf16.msra.mxu0 %v3271
    %3372 = vmatpush.bf16.msra.mxu0 %v3267
    %3373 = vmatpush.bf16.msra.mxu0 %v3263
    %3374 = vmatpush.bf16.msra.mxu0 %v3259
    %3375 = vmatpush.bf16.msra.mxu0 %v3255
    %3376 = vmatpush.bf16.msra.mxu0 %v3251
    %3377 = vmatmul.bf16.gmra.mxu0 %v3140
    %v3378 = vpop.f32.mrf.mxu0
    %v3379 = vadd.f32 %v3147, %v3378
    %v3380 = vpop.f32.mrf.mxu0
    %v3381 = vadd.f32 %v3147, %v3380
    %3382 = vmatmul.bf16.gmra.mxu0 %v3141
    %v3383 = vpop.f32.mrf.mxu0
    %v3384 = vadd.f32 %v3147, %v3383
    %v3385 = vpop.f32.mrf.mxu0
    %v3386 = vadd.f32 %v3147, %v3385
    %3387 = vdwg.mxu0
    %v3388 = vmul.f32 %v3322, %v3322
    %v3389 = vmul.f32 %v3341, %v3341
    %v3390 = vmul.f32 %v3360, %v3360
    %v3391 = vmul.f32 %v3379, %v3379
    %v3392 = vmul.f32 %v3324, %v3324
    %v3393 = vmul.f32 %v3343, %v3343
    %v3394 = vmul.f32 %v3362, %v3362
    %v3395 = vmul.f32 %v3381, %v3381
    %v3396 = vmul.f32 %v3327, %v3327
    %v3397 = vmul.f32 %v3346, %v3346
    %v3398 = vmul.f32 %v3365, %v3365
    %v3399 = vmul.f32 %v3384, %v3384
    %v3400 = vmul.f32 %v3329, %v3329
    %v3401 = vmul.f32 %v3348, %v3348
    %v3402 = vmul.f32 %v3367, %v3367
    %v3403 = vmul.f32 %v3386, %v3386
    %v3404 = vmul.f32 %v3322, %v3388
    %v3405 = vmul.f32 %v3341, %v3389
    %v3406 = vmul.f32 %v3360, %v3390
    %v3407 = vmul.f32 %v3379, %v3391
    %v3408 = vmul.f32 %v3324, %v3392
    %v3409 = vmul.f32 %v3343, %v3393
    %v3410 = vmul.f32 %v3362, %v3394
    %v3411 = vmul.f32 %v3381, %v3395
    %v3412 = vmul.f32 %v3327, %v3396
    %v3413 = vmul.f32 %v3346, %v3397
    %v3414 = vmul.f32 %v3365, %v3398
    %v3415 = vmul.f32 %v3384, %v3399
    %v3416 = vmul.f32 %v3329, %v3400
    %v3417 = vmul.f32 %v3348, %v3401
    %v3418 = vmul.f32 %v3367, %v3402
    %v3419 = vmul.f32 %v3386, %v3403
    %v3420 = vmul.f32 %v3404, 0.044715
    %v3421 = vmul.f32 %v3405, 0.044715
    %v3422 = vmul.f32 %v3406, 0.044715
    %v3423 = vmul.f32 %v3407, 0.044715
    %v3424 = vmul.f32 %v3408, 0.044715
    %v3425 = vmul.f32 %v3409, 0.044715
    %v3426 = vmul.f32 %v3410, 0.044715
    %v3427 = vmul.f32 %v3411, 0.044715
    %v3428 = vmul.f32 %v3412, 0.044715
    %v3429 = vmul.f32 %v3413, 0.044715
    %v3430 = vmul.f32 %v3414, 0.044715
    %v3431 = vmul.f32 %v3415, 0.044715
    %v3432 = vmul.f32 %v3416, 0.044715
    %v3433 = vmul.f32 %v3417, 0.044715
    %v3434 = vmul.f32 %v3418, 0.044715
    %v3435 = vmul.f32 %v3419, 0.044715
    %v3436 = vadd.f32 %v3322, %v3420
    %v3437 = vadd.f32 %v3341, %v3421
    %v3438 = vadd.f32 %v3360, %v3422
    %v3439 = vadd.f32 %v3379, %v3423
    %v3440 = vadd.f32 %v3324, %v3424
    %v3441 = vadd.f32 %v3343, %v3425
    %v3442 = vadd.f32 %v3362, %v3426
    %v3443 = vadd.f32 %v3381, %v3427
    %v3444 = vadd.f32 %v3327, %v3428
    %v3445 = vadd.f32 %v3346, %v3429
    %v3446 = vadd.f32 %v3365, %v3430
    %v3447 = vadd.f32 %v3384, %v3431
    %v3448 = vadd.f32 %v3329, %v3432
    %v3449 = vadd.f32 %v3348, %v3433
    %v3450 = vadd.f32 %v3367, %v3434
    %v3451 = vadd.f32 %v3386, %v3435
    %v3452 = vmul.f32 %v3436, 0.7978846
    %v3453 = vmul.f32 %v3437, 0.7978846
    %v3454 = vmul.f32 %v3438, 0.7978846
    %v3455 = vmul.f32 %v3439, 0.7978846
    %v3456 = vmul.f32 %v3440, 0.7978846
    %v3457 = vmul.f32 %v3441, 0.7978846
    %v3458 = vmul.f32 %v3442, 0.7978846
    %v3459 = vmul.f32 %v3443, 0.7978846
    %v3460 = vmul.f32 %v3444, 0.7978846
    %v3461 = vmul.f32 %v3445, 0.7978846
    %v3462 = vmul.f32 %v3446, 0.7978846
    %v3463 = vmul.f32 %v3447, 0.7978846
    %v3464 = vmul.f32 %v3448, 0.7978846
    %v3465 = vmul.f32 %v3449, 0.7978846
    %v3466 = vmul.f32 %v3450, 0.7978846
    %v3467 = vmul.f32 %v3451, 0.7978846
    %v3468 = vtanh.pop %v3452
    %v3469 = vtanh.pop %v3453
    %v3470 = vtanh.pop %v3454
    %v3471 = vtanh.pop %v3455
    %v3472 = vtanh.pop %v3456
    %v3473 = vtanh.pop %v3457
    %v3474 = vtanh.pop %v3458
    %v3475 = vtanh.pop %v3459
    %v3476 = vtanh.pop %v3460
    %v3477 = vtanh.pop %v3461
    %v3478 = vtanh.pop %v3462
    %v3479 = vtanh.pop %v3463
    %v3480 = vtanh.pop %v3464
    %v3481 = vtanh.pop %v3465
    %v3482 = vtanh.pop %v3466
    %v3483 = vtanh.pop %v3467
    %v3484 = vadd.f32 %v3468, 1.0
    %v3485 = vadd.f32 %v3469, 1.0
    %v3486 = vadd.f32 %v3470, 1.0
    %v3487 = vadd.f32 %v3471, 1.0
    %v3488 = vadd.f32 %v3472, 1.0
    %v3489 = vadd.f32 %v3473, 1.0
    %v3490 = vadd.f32 %v3474, 1.0
    %v3491 = vadd.f32 %v3475, 1.0
    %v3492 = vadd.f32 %v3476, 1.0
    %v3493 = vadd.f32 %v3477, 1.0
    %v3494 = vadd.f32 %v3478, 1.0
    %v3495 = vadd.f32 %v3479, 1.0
    %v3496 = vadd.f32 %v3480, 1.0
    %v3497 = vadd.f32 %v3481, 1.0
    %v3498 = vadd.f32 %v3482, 1.0
    %v3499 = vadd.f32 %v3483, 1.0
    %v3500 = vmul.f32 %v3484, 0.5
    %v3501 = vmul.f32 %v3485, 0.5
    %v3502 = vmul.f32 %v3486, 0.5
    %v3503 = vmul.f32 %v3487, 0.5
    %v3504 = vmul.f32 %v3488, 0.5
    %v3505 = vmul.f32 %v3489, 0.5
    %v3506 = vmul.f32 %v3490, 0.5
    %v3507 = vmul.f32 %v3491, 0.5
    %v3508 = vmul.f32 %v3492, 0.5
    %v3509 = vmul.f32 %v3493, 0.5
    %v3510 = vmul.f32 %v3494, 0.5
    %v3511 = vmul.f32 %v3495, 0.5
    %v3512 = vmul.f32 %v3496, 0.5
    %v3513 = vmul.f32 %v3497, 0.5
    %v3514 = vmul.f32 %v3498, 0.5
    %v3515 = vmul.f32 %v3499, 0.5
    %v3516 = vmul.f32 %v3322, %v3500
    %v3517 = vmul.f32 %v3341, %v3501
    %v3518 = vmul.f32 %v3360, %v3502
    %v3519 = vmul.f32 %v3379, %v3503
    %v3520 = vmul.f32 %v3324, %v3504
    %v3521 = vmul.f32 %v3343, %v3505
    %v3522 = vmul.f32 %v3362, %v3506
    %v3523 = vmul.f32 %v3381, %v3507
    %v3524 = vmul.f32 %v3327, %v3508
    %v3525 = vmul.f32 %v3346, %v3509
    %v3526 = vmul.f32 %v3365, %v3510
    %v3527 = vmul.f32 %v3384, %v3511
    %v3528 = vmul.f32 %v3329, %v3512
    %v3529 = vmul.f32 %v3348, %v3513
    %v3530 = vmul.f32 %v3367, %v3514
    %v3531 = vmul.f32 %v3386, %v3515
    %v3532 = vld [vmem:[#allocation16] sm:$0xf]
    %v3533 = vld [vmem:[#allocation16 + $0x4] sm:$0xf]
    %v3534 = vld [vmem:[#allocation16 + $0x8] sm:$0xf]
    %v3535 = vld [vmem:[#allocation16 + $0xc] sm:$0xf]
    %v3536 = vld [vmem:[#allocation16 + $0x10] sm:$0xf]
    %v3537 = vld [vmem:[#allocation16 + $0x14] sm:$0xf]
    %v3538 = vld [vmem:[#allocation16 + $0x18] sm:$0xf]
    %v3539 = vld [vmem:[#allocation16 + $0x1c] sm:$0xf]
    %v3540 = vld [vmem:[#allocation16 + $0x20] sm:$0xf]
    %v3541 = vld [vmem:[#allocation16 + $0x24] sm:$0xf]
    %v3542 = vld [vmem:[#allocation16 + $0x28] sm:$0xf]
    %v3543 = vld [vmem:[#allocation16 + $0x2c] sm:$0xf]
    %v3544 = vld [vmem:[#allocation16 + $0x30] sm:$0xf]
    %v3545 = vld [vmem:[#allocation16 + $0x34] sm:$0xf]
    %v3546 = vld [vmem:[#allocation16 + $0x38] sm:$0xf]
    %v3547 = vld [vmem:[#allocation16 + $0x3c] sm:$0xf]
    %v3548 = vld [vmem:[#allocation16 + $0x40] sm:$0xf]
    %v3549 = vld [vmem:[#allocation16 + $0x44] sm:$0xf]
    %v3550 = vld [vmem:[#allocation16 + $0x48] sm:$0xf]
    %v3551 = vld [vmem:[#allocation16 + $0x4c] sm:$0xf]
    %v3552 = vld [vmem:[#allocation16 + $0x50] sm:$0xf]
    %v3553 = vld [vmem:[#allocation16 + $0x54] sm:$0xf]
    %v3554 = vld [vmem:[#allocation16 + $0x58] sm:$0xf]
    %v3555 = vld [vmem:[#allocation16 + $0x5c] sm:$0xf]
    %v3556 = vld [vmem:[#allocation16 + $0x60] sm:$0xf]
    %v3557 = vld [vmem:[#allocation16 + $0x64] sm:$0xf]
    %v3558 = vld [vmem:[#allocation16 + $0x68] sm:$0xf]
    %v3559 = vld [vmem:[#allocation16 + $0x6c] sm:$0xf]
    %v3560 = vld [vmem:[#allocation16 + $0x70] sm:$0xf]
    %v3561 = vld [vmem:[#allocation16 + $0x74] sm:$0xf]
    %v3562 = vld [vmem:[#allocation16 + $0x78] sm:$0xf]
    %v3563 = vld [vmem:[#allocation16 + $0x7c] sm:$0xf]
    %v3564 = vld [vmem:[#allocation16 + $0x80] sm:$0xf]
    %v3565 = vld [vmem:[#allocation16 + $0x84] sm:$0xf]
    %v3566 = vld [vmem:[#allocation16 + $0x88] sm:$0xf]
    %v3567 = vld [vmem:[#allocation16 + $0x8c] sm:$0xf]
    %v3568 = vld [vmem:[#allocation16 + $0x90] sm:$0xf]
    %v3569 = vld [vmem:[#allocation16 + $0x94] sm:$0xf]
    %v3570 = vld [vmem:[#allocation16 + $0x98] sm:$0xf]
    %v3571 = vld [vmem:[#allocation16 + $0x9c] sm:$0xf]
    %v3572 = vld [vmem:[#allocation16 + $0xa0] sm:$0xf]
    %v3573 = vld [vmem:[#allocation16 + $0xa4] sm:$0xf]
    %v3574 = vld [vmem:[#allocation16 + $0xa8] sm:$0xf]
    %v3575 = vld [vmem:[#allocation16 + $0xac] sm:$0xf]
    %v3576 = vld [vmem:[#allocation16 + $0xb0] sm:$0xf]
    %v3577 = vld [vmem:[#allocation16 + $0xb4] sm:$0xf]
    %v3578 = vld [vmem:[#allocation16 + $0xb8] sm:$0xf]
    %v3579 = vld [vmem:[#allocation16 + $0xbc] sm:$0xf]
    %v3580 = vld [vmem:[#allocation16 + $0xc0] sm:$0xf]
    %v3581 = vld [vmem:[#allocation16 + $0xc4] sm:$0xf]
    %v3582 = vld [vmem:[#allocation16 + $0xc8] sm:$0xf]
    %v3583 = vld [vmem:[#allocation16 + $0xcc] sm:$0xf]
    %v3584 = vld [vmem:[#allocation16 + $0xd0] sm:$0xf]
    %v3585 = vld [vmem:[#allocation16 + $0xd4] sm:$0xf]
    %v3586 = vld [vmem:[#allocation16 + $0xd8] sm:$0xf]
    %v3587 = vld [vmem:[#allocation16 + $0xdc] sm:$0xf]
    %v3588 = vld [vmem:[#allocation16 + $0xe0] sm:$0xf]
    %v3589 = vld [vmem:[#allocation16 + $0xe4] sm:$0xf]
    %v3590 = vld [vmem:[#allocation16 + $0xe8] sm:$0xf]
    %v3591 = vld [vmem:[#allocation16 + $0xec] sm:$0xf]
    %v3592 = vld [vmem:[#allocation16 + $0xf0] sm:$0xf]
    %v3593 = vld [vmem:[#allocation16 + $0xf4] sm:$0xf]
    %v3594 = vld [vmem:[#allocation16 + $0xf8] sm:$0xf]
    %v3595 = vld [vmem:[#allocation16 + $0xfc] sm:$0xf]
    %v3596 = vpack.c.bf16 %v3520, %v3516
    %v3597 = vpack.c.bf16 %v3521, %v3517
    %v3598 = vpack.c.bf16 %v3522, %v3518
    %v3599 = vpack.c.bf16 %v3523, %v3519
    %v3600 = vpack.c.bf16 %v3528, %v3524
    %v3601 = vpack.c.bf16 %v3529, %v3525
    %v3602 = vpack.c.bf16 %v3530, %v3526
    %v3603 = vpack.c.bf16 %v3531, %v3527
    %v3604 = vld [vmem:[#allocation18] sm:$0x1]
    %v3606 = vperm.slane %v3604, 0
    %v3672 = vunpack.c.l.b16 %v3532
    %v3673 = vunpack.c.l.b16 %v3533
    %v3674 = vunpack.c.l.b16 %v3534
    %v3675 = vunpack.c.l.b16 %v3535
    %v3676 = vunpack.c.l.b16 %v3536
    %v3677 = vunpack.c.l.b16 %v3537
    %v3678 = vunpack.c.l.b16 %v3538
    %v3679 = vunpack.c.l.b16 %v3539
    %v3680 = vunpack.c.l.b16 %v3540
    %v3681 = vunpack.c.l.b16 %v3541
    %v3682 = vunpack.c.l.b16 %v3542
    %v3683 = vunpack.c.l.b16 %v3543
    %v3684 = vunpack.c.l.b16 %v3544
    %v3685 = vunpack.c.l.b16 %v3545
    %v3686 = vunpack.c.l.b16 %v3546
    %v3687 = vunpack.c.l.b16 %v3547
    %v3688 = vunpack.c.l.b16 %v3548
    %v3689 = vunpack.c.l.b16 %v3549
    %v3690 = vunpack.c.l.b16 %v3550
    %v3691 = vunpack.c.l.b16 %v3551
    %v3692 = vunpack.c.l.b16 %v3552
    %v3693 = vunpack.c.l.b16 %v3553
    %v3694 = vunpack.c.l.b16 %v3554
    %v3695 = vunpack.c.l.b16 %v3555
    %v3696 = vunpack.c.l.b16 %v3556
    %v3697 = vunpack.c.l.b16 %v3557
    %v3698 = vunpack.c.l.b16 %v3558
    %v3699 = vunpack.c.l.b16 %v3559
    %v3700 = vunpack.c.l.b16 %v3560
    %v3701 = vunpack.c.l.b16 %v3561
    %v3702 = vunpack.c.l.b16 %v3562
    %v3703 = vunpack.c.l.b16 %v3563
    %v3704 = vunpack.c.l.b16 %v3564
    %v3705 = vunpack.c.l.b16 %v3565
    %v3706 = vunpack.c.l.b16 %v3566
    %v3707 = vunpack.c.l.b16 %v3567
    %v3708 = vunpack.c.l.b16 %v3568
    %v3709 = vunpack.c.l.b16 %v3569
    %v3710 = vunpack.c.l.b16 %v3570
    %v3711 = vunpack.c.l.b16 %v3571
    %v3712 = vunpack.c.l.b16 %v3572
    %v3713 = vunpack.c.l.b16 %v3573
    %v3714 = vunpack.c.l.b16 %v3574
    %v3715 = vunpack.c.l.b16 %v3575
    %v3716 = vunpack.c.l.b16 %v3576
    %v3717 = vunpack.c.l.b16 %v3577
    %v3718 = vunpack.c.l.b16 %v3578
    %v3719 = vunpack.c.l.b16 %v3579
    %v3720 = vunpack.c.l.b16 %v3580
    %v3721 = vunpack.c.l.b16 %v3581
    %v3722 = vunpack.c.l.b16 %v3582
    %v3723 = vunpack.c.l.b16 %v3583
    %v3724 = vunpack.c.l.b16 %v3584
    %v3725 = vunpack.c.l.b16 %v3585
    %v3726 = vunpack.c.l.b16 %v3586
    %v3727 = vunpack.c.l.b16 %v3587
    %v3728 = vunpack.c.l.b16 %v3588
    %v3729 = vunpack.c.l.b16 %v3589
    %v3730 = vunpack.c.l.b16 %v3590
    %v3731 = vunpack.c.l.b16 %v3591
    %v3732 = vunpack.c.l.b16 %v3592
    %v3733 = vunpack.c.l.b16 %v3593
    %v3734 = vunpack.c.l.b16 %v3594
    %v3735 = vunpack.c.l.b16 %v3595
    %v3736 = vpack.c.b16 %v3673, %v3672
    %v3737 = vpack.c.b16 %v3675, %v3674
    %v3738 = vpack.c.b16 %v3677, %v3676
    %v3739 = vpack.c.b16 %v3679, %v3678
    %v3740 = vpack.c.b16 %v3681, %v3680
    %v3741 = vpack.c.b16 %v3683, %v3682
    %v3742 = vpack.c.b16 %v3685, %v3684
    %v3743 = vpack.c.b16 %v3687, %v3686
    %v3744 = vpack.c.b16 %v3689, %v3688
    %v3745 = vpack.c.b16 %v3691, %v3690
    %v3746 = vpack.c.b16 %v3693, %v3692
    %v3747 = vpack.c.b16 %v3695, %v3694
    %v3748 = vpack.c.b16 %v3697, %v3696
    %v3749 = vpack.c.b16 %v3699, %v3698
    %v3750 = vpack.c.b16 %v3701, %v3700
    %v3751 = vpack.c.b16 %v3703, %v3702
    %v3752 = vpack.c.b16 %v3705, %v3704
    %v3753 = vpack.c.b16 %v3707, %v3706
    %v3754 = vpack.c.b16 %v3709, %v3708
    %v3755 = vpack.c.b16 %v3711, %v3710
    %v3756 = vpack.c.b16 %v3713, %v3712
    %v3757 = vpack.c.b16 %v3715, %v3714
    %v3758 = vpack.c.b16 %v3717, %v3716
    %v3759 = vpack.c.b16 %v3719, %v3718
    %v3760 = vpack.c.b16 %v3721, %v3720
    %v3761 = vpack.c.b16 %v3723, %v3722
    %v3762 = vpack.c.b16 %v3725, %v3724
    %v3763 = vpack.c.b16 %v3727, %v3726
    %v3764 = vpack.c.b16 %v3729, %v3728
    %v3765 = vpack.c.b16 %v3731, %v3730
    %v3766 = vpack.c.b16 %v3733, %v3732
    %v3767 = vpack.c.b16 %v3735, %v3734
    %3800 = vmatpush.bf16.msra.mxu0 %v3743
    %3801 = vmatpush.bf16.msra.mxu0 %v3742
    %3802 = vmatpush.bf16.msra.mxu0 %v3741
    %3803 = vmatpush.bf16.msra.mxu0 %v3740
    %3804 = vmatpush.bf16.msra.mxu0 %v3739
    %3805 = vmatpush.bf16.msra.mxu0 %v3738
    %3806 = vmatpush.bf16.msra.mxu0 %v3737
    %3807 = vmatpush.bf16.msra.mxu0 %v3736
    %3808 = vmatmul.bf16.gmra.mxu0 %v3596
    %v3809 = vpop.f32.mrf.mxu0
    %v3810 = vadd.f32 %v3606, %v3809
    %v3811 = vpop.f32.mrf.mxu0
    %v3812 = vadd.f32 %v3606, %v3811
    %3813 = vmatmul.bf16.gmra.mxu0 %v3600
    %v3814 = vpop.f32.mrf.mxu0
    %v3815 = vadd.f32 %v3606, %v3814
    %v3816 = vpop.f32.mrf.mxu0
    %v3817 = vadd.f32 %v3606, %v3816
    %3818 = vdwg.mxu0
    %3819 = vmatpush.bf16.msra.mxu0 %v3751
    %3820 = vmatpush.bf16.msra.mxu0 %v3750
    %3821 = vmatpush.bf16.msra.mxu0 %v3749
    %3822 = vmatpush.bf16.msra.mxu0 %v3748
    %3823 = vmatpush.bf16.msra.mxu0 %v3747
    %3824 = vmatpush.bf16.msra.mxu0 %v3746
    %3825 = vmatpush.bf16.msra.mxu0 %v3745
    %3826 = vmatpush.bf16.msra.mxu0 %v3744
    %3827 = vmatmul.bf16.gmra.mxu0 %v3597
    %v3828 = vpop.f32.mrf.mxu0
    %v3829 = vadd.f32 %v3810, %v3828
    %v3830 = vpop.f32.mrf.mxu0
    %v3831 = vadd.f32 %v3812, %v3830
    %3832 = vmatmul.bf16.gmra.mxu0 %v3601
    %v3833 = vpop.f32.mrf.mxu0
    %v3834 = vadd.f32 %v3815, %v3833
    %v3835 = vpop.f32.mrf.mxu0
    %v3836 = vadd.f32 %v3817, %v3835
    %3837 = vdwg.mxu0
    %3838 = vmatpush.bf16.msra.mxu0 %v3759
    %3839 = vmatpush.bf16.msra.mxu0 %v3758
    %3840 = vmatpush.bf16.msra.mxu0 %v3757
    %3841 = vmatpush.bf16.msra.mxu0 %v3756
    %3842 = vmatpush.bf16.msra.mxu0 %v3755
    %3843 = vmatpush.bf16.msra.mxu0 %v3754
    %3844 = vmatpush.bf16.msra.mxu0 %v3753
    %3845 = vmatpush.bf16.msra.mxu0 %v3752
    %3846 = vmatmul.bf16.gmra.mxu0 %v3598
    %v3847 = vpop.f32.mrf.mxu0
    %v3848 = vadd.f32 %v3829, %v3847
    %v3849 = vpop.f32.mrf.mxu0
    %v3850 = vadd.f32 %v3831, %v3849
    %3851 = vmatmul.bf16.gmra.mxu0 %v3602
    %v3852 = vpop.f32.mrf.mxu0
    %v3853 = vadd.f32 %v3834, %v3852
    %v3854 = vpop.f32.mrf.mxu0
    %v3855 = vadd.f32 %v3836, %v3854
    %3856 = vdwg.mxu0
    %3857 = vmatpush.bf16.msra.mxu0 %v3767
    %3858 = vmatpush.bf16.msra.mxu0 %v3766
    %3859 = vmatpush.bf16.msra.mxu0 %v3765
    %3860 = vmatpush.bf16.msra.mxu0 %v3764
    %3861 = vmatpush.bf16.msra.mxu0 %v3763
    %3862 = vmatpush.bf16.msra.mxu0 %v3762
    %3863 = vmatpush.bf16.msra.mxu0 %v3761
    %3864 = vmatpush.bf16.msra.mxu0 %v3760
    %3865 = vmatmul.bf16.gmra.mxu0 %v3599
    %v3866 = vpop.f32.mrf.mxu0
    %v3867 = vadd.f32 %v3848, %v3866
    %v3868 = vpop.f32.mrf.mxu0
    %v3869 = vadd.f32 %v3850, %v3868
    %3870 = vmatmul.bf16.gmra.mxu0 %v3603
    %v3871 = vpop.f32.mrf.mxu0
    %v3872 = vadd.f32 %v3853, %v3871
    %v3873 = vpop.f32.mrf.mxu0
    %v3874 = vadd.f32 %v3855, %v3873
    %3875 = vdwg.mxu0
    %v3876 = vperm.slane %v444, 0
    %v3877 = vperm.slane %v502, 0
    %v3880 = vmul.f32 %v3876, %v3867
    %v3881 = vmul.f32 %v3876, %v3869
    %v3882 = vmul.f32 %v3877, %v3872
    %v3883 = vmul.f32 %v3877, %v3874
    %v3884 = vadd.f32 %v3004, %v3880
    %v3885 = vadd.f32 %v3005, %v3881
    %v3886 = vadd.f32 %v3006, %v3882
    %v3887 = vadd.f32 %v3007, %v3883
    %3888 = vst [vmem:[%s12] sm:$0xff] %v3884
    %3889 = vst [vmem:[%s12 + $0x8] sm:$0xff] %v3885
    %3890 = vst [vmem:[%s12 + $0x10] sm:$0xff] %v3886
    %3891 = vst [vmem:[%s12 + $0x18] sm:$0xff] %v3887
    // Predicated region
    $region94: #{arhead_forward.4} parent=1 // pred_check
      _
    $region95: #{arhead_forward.4} parent=1 // pred_check_branch
      %3893 = sbr.rel (0) target = $region97
    $region96: #{arhead_forward.4} parent=1 // pred_region
      _
    $region97: #{arhead_forward.4} parent=1 // pred_fallthru
      _
    // Predicated region
    $region98: #{arhead_forward.4} parent=1 // pred_check
      _
    $region99: #{arhead_forward.4} parent=1 // pred_check_branch
      %3895 = sbr.rel (0) target = $region101
    $region100: #{arhead_forward.4} parent=1 // pred_region
      _
    $region101: #{arhead_forward.4} parent=1 // pred_fallthru
      _
    %3896 = vsyncpa [#allocation3], 1
    %3897 = vsyncpa [#allocation5], 1
    %3898 = vsyncpa [#allocation8], 1
    %3899 = vsyncpa [#allocation11], 1
    %3900 = vsyncpa [#allocation14], 1
    %3901 = vsyncpa [#allocation17], 1

// kernel: arhead_forward.5
$region0: #{arhead_forward.5}
  #allocation0 [shape = 'u32[]', space=smem, size = 0x4, offset = 0x4, fixed_abs, tag = 'smem constant byte address 0x4 - core index']
  #allocation1 [shape = 'u32[72,128]{1,0:T(1,128)}', space=vmem, size = 0x9000, scoped, tag = 'internal scratch']
  #allocation2 [shape = 'f32[32,256]{1,0:T(8,128)}', space=vmem, size = 0x8000, scoped, tag = 'scratch operand']
  #allocation3 [shape = 'f32[32,256]{1,0:T(8,128)}', space=vmem, size = 0x8000, scoped, tag = 'scratch operand']
  #allocation4 [shape = 'f32[1,1]{1,0:T(1,128)S(1)}', space=vmem, size = 0x200, scoped, tag = 'scoped memory for arhead_forward.5']
  %s0 = inlined_call_operand.vmem [shape: f32[32,1], index: 0, kind: input, shape index: {}]
  %s1 = inlined_call_operand.vmem [shape: f32[32,256], index: 1, kind: input, shape index: {}]
  %s2 = inlined_call_operand.vmem [shape: f32[32,128], index: 2, kind: input, shape index: {}]
  %s3 = inlined_call_operand.vmem [shape: f32[32,1], index: 3, kind: input, shape index: {}]
  %s4 = inlined_call_operand.hbm [shape: f32[1,256], index: 4, kind: input, shape index: {}]
  %s5 = inlined_call_operand.hbm [shape: f32[1,256], index: 5, kind: input, shape index: {}]
  %s6 = inlined_call_operand.hbm [shape: bf16[256,256], index: 6, kind: input, shape index: {}]
  %s7 = inlined_call_operand.hbm [shape: f32[1,256], index: 7, kind: input, shape index: {}]
  %s8 = inlined_call_operand.hbm [shape: bf16[256,256], index: 8, kind: input, shape index: {}]
  %s9 = inlined_call_operand.hbm [shape: f32[1,256], index: 9, kind: input, shape index: {}]
  %s10 = inlined_call_operand.hbm [shape: bf16[128,256], index: 10, kind: input, shape index: {}]
  %s11 = inlined_call_operand.hbm [shape: f32[1,256], index: 11, kind: input, shape index: {}]
  %s12 = inlined_call_operand.hbm [shape: bf16[6,256,768], index: 12, kind: input, shape index: {}]
  %s13 = inlined_call_operand.hbm [shape: f32[6,1,768], index: 13, kind: input, shape index: {}]
  %s14 = inlined_call_operand.hbm [shape: bf16[6,256,256], index: 14, kind: input, shape index: {}]
  %s15 = inlined_call_operand.hbm [shape: f32[6,1,256], index: 15, kind: input, shape index: {}]
  %s16 = inlined_call_operand.hbm [shape: bf16[6,256,256], index: 16, kind: input, shape index: {}]
  %s17 = inlined_call_operand.hbm [shape: f32[6,1,256], index: 17, kind: input, shape index: {}]
  %s18 = inlined_call_operand.hbm [shape: bf16[256,512], index: 18, kind: input, shape index: {}]
  %s19 = inlined_call_operand.hbm [shape: f32[1,512], index: 19, kind: input, shape index: {}]
  %s20 = inlined_call_operand.vmem [shape: bf16[256,1], index: 20, kind: input, shape index: {}]
  %s21 = inlined_call_operand.<no memory space> [shape: f32[1,1], index: 21, kind: input, shape index: {}]
  %s22 = inlined_call_operand.vmem [shape: f32[2,1], index: 22, kind: output, shape index: {}]
  %s23 = sld [smem:[#allocation0]]
  $region193: #{arhead_forward.5} parent=0
    _
  %s25 = ssub.s32 1, %s23
  %s26 = scalar_select 0, %s25, %s23
  %v27 = vstv %s21
  %28 = vst [vmem:[#allocation4] sm:$0x1] %v27
  $region1: #{arhead_forward.5} parent=0
    #allocation5 [shape = 'u8[1024]{0}', space=vmem, size = 0x400, scoped, tag = 'input window, operand 4, single buffered']
    #allocation6 [shape = 's32[2]{0}', space=sflag, size = 0x8, scoped, tag = 'scoped memory for arhead_forward.5']
    #allocation7 [shape = 'u8[1024]{0}', space=vmem, size = 0x400, scoped, tag = 'input window, operand 5, single buffered']
    #allocation8 [shape = 's32[1]{0}', space=sflag, size = 0x4, scoped, tag = 'scoped memory for arhead_forward.5']
    #allocation9 [shape = 'u8[131072]{0}', space=vmem, size = 0x20000, scoped, tag = 'input window, operand 6, single buffered']
    #allocation10 [shape = 'u8[1024]{0}', space=vmem, size = 0x400, scoped, tag = 'input window, operand 7, single buffered']
    #allocation11 [shape = 's32[1]{0}', space=sflag, size = 0x4, scoped, tag = 'scoped memory for arhead_forward.5']
    #allocation12 [shape = 'u8[131072]{0}', space=vmem, size = 0x20000, scoped, tag = 'input window, operand 8, single buffered']
    #allocation13 [shape = 'u8[1024]{0}', space=vmem, size = 0x400, scoped, tag = 'input window, operand 9, single buffered']
    #allocation14 [shape = 's32[1]{0}', space=sflag, size = 0x4, scoped, tag = 'scoped memory for arhead_forward.5']
    #allocation15 [shape = 'u8[65536]{0}', space=vmem, size = 0x10000, scoped, tag = 'input window, operand 10, single buffered']
    #allocation16 [shape = 'u8[1024]{0}', space=vmem, size = 0x400, scoped, tag = 'input window, operand 11, single buffered']
    #allocation17 [shape = 's32[1]{0}', space=sflag, size = 0x4, scoped, tag = 'scoped memory for arhead_forward.5']
    #allocation18 [shape = 'u8[2359296]{0}', space=vmem, size = 0x240000, scoped, tag = 'input window, operand 12, single buffered']
    #allocation19 [shape = 'u8[18432]{0}', space=vmem, size = 0x4800, scoped, tag = 'input window, operand 13, single buffered']
    #allocation20 [shape = 's32[1]{0}', space=sflag, size = 0x4, scoped, tag = 'scoped memory for arhead_forward.5']
    #allocation21 [shape = 'u8[786432]{0}', space=vmem, size = 0xc0000, scoped, tag = 'input window, operand 14, single buffered']
    #allocation22 [shape = 'u8[6144]{0}', space=vmem, size = 0x1800, scoped, tag = 'input window, operand 15, single buffered']
    #allocation23 [shape = 's32[1]{0}', space=sflag, size = 0x4, scoped, tag = 'scoped memory for arhead_forward.5']
    #allocation24 [shape = 'u8[786432]{0}', space=vmem, size = 0xc0000, scoped, tag = 'input window, operand 16, single buffered']
    #allocation25 [shape = 'u8[6144]{0}', space=vmem, size = 0x1800, scoped, tag = 'input window, operand 17, single buffered']
    #allocation26 [shape = 's32[1]{0}', space=sflag, size = 0x4, scoped, tag = 'scoped memory for arhead_forward.5']
    #allocation27 [shape = 'u8[262144]{0}', space=vmem, size = 0x40000, scoped, tag = 'input window, operand 18, single buffered']
    #allocation28 [shape = 'u8[2048]{0}', space=vmem, size = 0x800, scoped, tag = 'input window, operand 19, single buffered']
    #allocation29 [shape = 's32[1]{0}', space=sflag, size = 0x4, scoped, tag = 'scoped memory for arhead_forward.5']
    %29 = vsyncpa [#allocation6], 0
    %30 = vsyncpa [#allocation8], 0
    %31 = vsyncpa [#allocation11], 0
    %32 = vsyncpa [#allocation14], 0
    %33 = vsyncpa [#allocation17], 0
    %34 = vsyncpa [#allocation20], 0
    %35 = vsyncpa [#allocation23], 0
    %36 = vsyncpa [#allocation26], 0
    %37 = vsyncpa [#allocation29], 0
    loop: start=0, step=1, limit=8
    $region2: #{arhead_forward.5} parent=1 // loop_pre_header
      _
    $region3: #{arhead_forward.5} parent=1 // loop_header
      %s39 = sphi 0, %s43
      %p40 = scmp.ge.s32.totalorder %s39, 8
      %s47 = sphi 0, %s47
      %s49 = sphi 0, %s47
      %s50 = sphi 0, %s49
      %s64 = sphi 0, %s50
      %s68 = sphi 0, %s68
      %s70 = sphi 0, %s68
      %s71 = sphi 0, %s70
      %s85 = sphi 0, %s71
      %s89 = sphi 0, %s89
      %s91 = sphi 0, %s89
      %s92 = sphi 0, %s91
      %s106 = sphi 0, %s92
      %s110 = sphi 0, %s110
      %s112 = sphi 0, %s110
      %s113 = sphi 0, %s112
      %s127 = sphi 0, %s113
      %s131 = sphi 0, %s131
      %s133 = sphi 0, %s131
      %s134 = sphi 0, %s133
      %s148 = sphi 0, %s134
      %s152 = sphi 0, %s152
      %s154 = sphi 0, %s152
      %s155 = sphi 0, %s154
      %s169 = sphi 0, %s155
      %s173 = sphi 0, %s173
      %s175 = sphi 0, %s173
      %s176 = sphi 0, %s175
      %s190 = sphi 0, %s176
      %s194 = sphi 0, %s194
      %s196 = sphi 0, %s194
      %s197 = sphi 0, %s196
      %s211 = sphi 0, %s197
      %s215 = sphi 0, %s215
      %s217 = sphi 0, %s215
      %s218 = sphi 0, %s217
      %s232 = sphi 0, %s218
      %s236 = sphi 0, %s236
      %s238 = sphi 0, %s236
      %s239 = sphi 0, %s238
      %s253 = sphi 0, %s239
      %s257 = sphi 0, %s257
      %s259 = sphi 0, %s257
      %s260 = sphi 0, %s259
      %s274 = sphi 0, %s260
      %s278 = sphi 0, %s278
      %s280 = sphi 0, %s278
      %s281 = sphi 0, %s280
      %s295 = sphi 0, %s281
      %s299 = sphi 0, %s299
      %s301 = sphi 0, %s299
      %s302 = sphi 0, %s301
      %s316 = sphi 0, %s302
      %s320 = sphi 0, %s320
      %s322 = sphi 0, %s320
      %s323 = sphi 0, %s322
      %s337 = sphi 0, %s323
      %s341 = sphi 0, %s341
      %s343 = sphi 0, %s341
      %s344 = sphi 0, %s343
      %s358 = sphi 0, %s344
      %s362 = sphi 0, %s362
      %s364 = sphi 0, %s362
      %s365 = sphi 0, %s364
      %s379 = sphi 0, %s365
      %s383 = sphi 0, %s383
      %s385 = sphi 0, %s383
      %s386 = sphi 0, %s385
      %s400 = sphi 0, %s386
      %s404 = sphi 0, %s404
      %s406 = sphi 0, %s404
      %s407 = sphi 0, %s406
      %s421 = sphi 0, %s407
      %s425 = sphi 0, %s425
      %s427 = sphi 0, %s425
      %s428 = sphi 0, %s427
      %s442 = sphi 0, %s428
      %s446 = sphi 0, %s446
      %s448 = sphi 0, %s446
      %s449 = sphi 0, %s448
      %s463 = sphi 0, %s449
      %s467 = sphi 0, %s467
      %s469 = sphi 0, %s467
      %s470 = sphi 0, %s469
      %s484 = sphi 0, %s470
      %s488 = sphi 0, %s488
      %s490 = sphi 0, %s488
      %s491 = sphi 0, %s490
      %s505 = sphi 0, %s491
      %s509 = sphi 0, %s509
      %s511 = sphi 0, %s509
      %s512 = sphi 0, %s511
      %s526 = sphi 0, %s512
    $region4: #{arhead_forward.5} parent=1 // loop_header_branch
      %42 = sbr.rel (%p40) target = $region8
    $region5: #{arhead_forward.5} parent=1 // loop_body
      %s44 = ssub.s32 %s39, 1
      %s45 = ssub.s32 %s39, 2
      %s46 = sadd.s32 %s39, 1
      %s48 = sadd.s32 %s47, 1
      %p51 = scmp.eq.s32.totalorder %s39, 5
      %p52 = scmp.ne.s32.totalorder %s47, %s49
      %p53 = scmp.eq.s32.totalorder %s39, 0
      %p54 = por %p52, %p53
      %p55 = scmp.ne.s32.totalorder %s47, %s49
      %p56 = scmp.eq.s32.totalorder %s44, 5
      %p57 = por %p55, %p56
      %p58 = scmp.ne.s32.totalorder %s49, %s50
      %p59 = scmp.eq.s32.totalorder %s44, 0
      %p60 = por %p58, %p59
      %p61 = scmp.ne.s32.totalorder %s49, %s50
      %p62 = scmp.eq.s32.totalorder %s45, 5
      %p63 = por %p61, %p62
      %p65 = scmp.ne.s32.totalorder %s50, %s64
      %p66 = scmp.eq.s32.totalorder %s45, 0
      %p67 = por %p65, %p66
      %s69 = sadd.s32 %s68, 1
      %p72 = scmp.eq.s32.totalorder %s39, 5
      %p73 = scmp.ne.s32.totalorder %s68, %s70
      %p74 = scmp.eq.s32.totalorder %s39, 0
      %p75 = por %p73, %p74
      %p76 = scmp.ne.s32.totalorder %s68, %s70
      %p77 = scmp.eq.s32.totalorder %s44, 5
      %p78 = por %p76, %p77
      %p79 = scmp.ne.s32.totalorder %s70, %s71
      %p80 = scmp.eq.s32.totalorder %s44, 0
      %p81 = por %p79, %p80
      %p82 = scmp.ne.s32.totalorder %s70, %s71
      %p83 = scmp.eq.s32.totalorder %s45, 5
      %p84 = por %p82, %p83
      %p86 = scmp.ne.s32.totalorder %s71, %s85
      %p87 = scmp.eq.s32.totalorder %s45, 0
      %p88 = por %p86, %p87
      %s90 = sadd.s32 %s89, 1
      %p93 = scmp.eq.s32.totalorder %s39, 5
      %p94 = scmp.ne.s32.totalorder %s89, %s91
      %p95 = scmp.eq.s32.totalorder %s39, 0
      %p96 = por %p94, %p95
      %p97 = scmp.ne.s32.totalorder %s89, %s91
      %p98 = scmp.eq.s32.totalorder %s44, 5
      %p99 = por %p97, %p98
      %p100 = scmp.ne.s32.totalorder %s91, %s92
      %p101 = scmp.eq.s32.totalorder %s44, 0
      %p102 = por %p100, %p101
      %p103 = scmp.ne.s32.totalorder %s91, %s92
      %p104 = scmp.eq.s32.totalorder %s45, 5
      %p105 = por %p103, %p104
      %p107 = scmp.ne.s32.totalorder %s92, %s106
      %p108 = scmp.eq.s32.totalorder %s45, 0
      %p109 = por %p107, %p108
      %s111 = sadd.s32 %s110, 1
      %p114 = scmp.eq.s32.totalorder %s39, 5
      %p115 = scmp.ne.s32.totalorder %s110, %s112
      %p116 = scmp.eq.s32.totalorder %s39, 0
      %p117 = por %p115, %p116
      %p118 = scmp.ne.s32.totalorder %s110, %s112
      %p119 = scmp.eq.s32.totalorder %s44, 5
      %p120 = por %p118, %p119
      %p121 = scmp.ne.s32.totalorder %s112, %s113
      %p122 = scmp.eq.s32.totalorder %s44, 0
      %p123 = por %p121, %p122
      %p124 = scmp.ne.s32.totalorder %s112, %s113
      %p125 = scmp.eq.s32.totalorder %s45, 5
      %p126 = por %p124, %p125
      %p128 = scmp.ne.s32.totalorder %s113, %s127
      %p129 = scmp.eq.s32.totalorder %s45, 0
      %p130 = por %p128, %p129
      %s132 = sadd.s32 %s131, 1
      %p135 = scmp.eq.s32.totalorder %s39, 5
      %p136 = scmp.ne.s32.totalorder %s131, %s133
      %p137 = scmp.eq.s32.totalorder %s39, 0
      %p138 = por %p136, %p137
      %p139 = scmp.ne.s32.totalorder %s131, %s133
      %p140 = scmp.eq.s32.totalorder %s44, 5
      %p141 = por %p139, %p140
      %p142 = scmp.ne.s32.totalorder %s133, %s134
      %p143 = scmp.eq.s32.totalorder %s44, 0
      %p144 = por %p142, %p143
      %p145 = scmp.ne.s32.totalorder %s133, %s134
      %p146 = scmp.eq.s32.totalorder %s45, 5
      %p147 = por %p145, %p146
      %p149 = scmp.ne.s32.totalorder %s134, %s148
      %p150 = scmp.eq.s32.totalorder %s45, 0
      %p151 = por %p149, %p150
      %s153 = sadd.s32 %s152, 1
      %p156 = scmp.eq.s32.totalorder %s39, 5
      %p157 = scmp.ne.s32.totalorder %s152, %s154
      %p158 = scmp.eq.s32.totalorder %s39, 0
      %p159 = por %p157, %p158
      %p160 = scmp.ne.s32.totalorder %s152, %s154
      %p161 = scmp.eq.s32.totalorder %s44, 5
      %p162 = por %p160, %p161
      %p163 = scmp.ne.s32.totalorder %s154, %s155
      %p164 = scmp.eq.s32.totalorder %s44, 0
      %p165 = por %p163, %p164
      %p166 = scmp.ne.s32.totalorder %s154, %s155
      %p167 = scmp.eq.s32.totalorder %s45, 5
      %p168 = por %p166, %p167
      %p170 = scmp.ne.s32.totalorder %s155, %s169
      %p171 = scmp.eq.s32.totalorder %s45, 0
      %p172 = por %p170, %p171
      %s174 = sadd.s32 %s173, 1
      %p177 = scmp.eq.s32.totalorder %s39, 5
      %p178 = scmp.ne.s32.totalorder %s173, %s175
      %p179 = scmp.eq.s32.totalorder %s39, 0
      %p180 = por %p178, %p179
      %p181 = scmp.ne.s32.totalorder %s173, %s175
      %p182 = scmp.eq.s32.totalorder %s44, 5
      %p183 = por %p181, %p182
      %p184 = scmp.ne.s32.totalorder %s175, %s176
      %p185 = scmp.eq.s32.totalorder %s44, 0
      %p186 = por %p184, %p185
      %p187 = scmp.ne.s32.totalorder %s175, %s176
      %p188 = scmp.eq.s32.totalorder %s45, 5
      %p189 = por %p187, %p188
      %p191 = scmp.ne.s32.totalorder %s176, %s190
      %p192 = scmp.eq.s32.totalorder %s45, 0
      %p193 = por %p191, %p192
      %s195 = sadd.s32 %s194, 1
      %p198 = scmp.eq.s32.totalorder %s39, 5
      %p199 = scmp.ne.s32.totalorder %s194, %s196
      %p200 = scmp.eq.s32.totalorder %s39, 0
      %p201 = por %p199, %p200
      %p202 = scmp.ne.s32.totalorder %s194, %s196
      %p203 = scmp.eq.s32.totalorder %s44, 5
      %p204 = por %p202, %p203
      %p205 = scmp.ne.s32.totalorder %s196, %s197
      %p206 = scmp.eq.s32.totalorder %s44, 0
      %p207 = por %p205, %p206
      %p208 = scmp.ne.s32.totalorder %s196, %s197
      %p209 = scmp.eq.s32.totalorder %s45, 5
      %p210 = por %p208, %p209
      %p212 = scmp.ne.s32.totalorder %s197, %s211
      %p213 = scmp.eq.s32.totalorder %s45, 0
      %p214 = por %p212, %p213
      %s216 = sadd.s32 %s215, 1
      %p219 = scmp.eq.s32.totalorder %s39, 5
      %p220 = scmp.ne.s32.totalorder %s215, %s217
      %p221 = scmp.eq.s32.totalorder %s39, 0
      %p222 = por %p220, %p221
      %p223 = scmp.ne.s32.totalorder %s215, %s217
      %p224 = scmp.eq.s32.totalorder %s44, 5
      %p225 = por %p223, %p224
      %p226 = scmp.ne.s32.totalorder %s217, %s218
      %p227 = scmp.eq.s32.totalorder %s44, 0
      %p228 = por %p226, %p227
      %p229 = scmp.ne.s32.totalorder %s217, %s218
      %p230 = scmp.eq.s32.totalorder %s45, 5
      %p231 = por %p229, %p230
      %p233 = scmp.ne.s32.totalorder %s218, %s232
      %p234 = scmp.eq.s32.totalorder %s45, 0
      %p235 = por %p233, %p234
      %s237 = sadd.s32 %s236, 1
      %p240 = scmp.eq.s32.totalorder %s39, 5
      %p241 = scmp.ne.s32.totalorder %s236, %s238
      %p242 = scmp.eq.s32.totalorder %s39, 0
      %p243 = por %p241, %p242
      %p244 = scmp.ne.s32.totalorder %s236, %s238
      %p245 = scmp.eq.s32.totalorder %s44, 5
      %p246 = por %p244, %p245
      %p247 = scmp.ne.s32.totalorder %s238, %s239
      %p248 = scmp.eq.s32.totalorder %s44, 0
      %p249 = por %p247, %p248
      %p250 = scmp.ne.s32.totalorder %s238, %s239
      %p251 = scmp.eq.s32.totalorder %s45, 5
      %p252 = por %p250, %p251
      %p254 = scmp.ne.s32.totalorder %s239, %s253
      %p255 = scmp.eq.s32.totalorder %s45, 0
      %p256 = por %p254, %p255
      %s258 = sadd.s32 %s257, 1
      %p261 = scmp.eq.s32.totalorder %s39, 5
      %p262 = scmp.ne.s32.totalorder %s257, %s259
      %p263 = scmp.eq.s32.totalorder %s39, 0
      %p264 = por %p262, %p263
      %p265 = scmp.ne.s32.totalorder %s257, %s259
      %p266 = scmp.eq.s32.totalorder %s44, 5
      %p267 = por %p265, %p266
      %p268 = scmp.ne.s32.totalorder %s259, %s260
      %p269 = scmp.eq.s32.totalorder %s44, 0
      %p270 = por %p268, %p269
      %p271 = scmp.ne.s32.totalorder %s259, %s260
      %p272 = scmp.eq.s32.totalorder %s45, 5
      %p273 = por %p271, %p272
      %p275 = scmp.ne.s32.totalorder %s260, %s274
      %p276 = scmp.eq.s32.totalorder %s45, 0
      %p277 = por %p275, %p276
      %s279 = sadd.s32 %s278, 1
      %p282 = scmp.eq.s32.totalorder %s39, 5
      %p283 = scmp.ne.s32.totalorder %s278, %s280
      %p284 = scmp.eq.s32.totalorder %s39, 0
      %p285 = por %p283, %p284
      %p286 = scmp.ne.s32.totalorder %s278, %s280
      %p287 = scmp.eq.s32.totalorder %s44, 5
      %p288 = por %p286, %p287
      %p289 = scmp.ne.s32.totalorder %s280, %s281
      %p290 = scmp.eq.s32.totalorder %s44, 0
      %p291 = por %p289, %p290
      %p292 = scmp.ne.s32.totalorder %s280, %s281
      %p293 = scmp.eq.s32.totalorder %s45, 5
      %p294 = por %p292, %p293
      %p296 = scmp.ne.s32.totalorder %s281, %s295
      %p297 = scmp.eq.s32.totalorder %s45, 0
      %p298 = por %p296, %p297
      %s300 = sadd.s32 %s299, 1
      %p303 = scmp.eq.s32.totalorder %s39, 5
      %p304 = scmp.ne.s32.totalorder %s299, %s301
      %p305 = scmp.eq.s32.totalorder %s39, 0
      %p306 = por %p304, %p305
      %p307 = scmp.ne.s32.totalorder %s299, %s301
      %p308 = scmp.eq.s32.totalorder %s44, 5
      %p309 = por %p307, %p308
      %p310 = scmp.ne.s32.totalorder %s301, %s302
      %p311 = scmp.eq.s32.totalorder %s44, 0
      %p312 = por %p310, %p311
      %p313 = scmp.ne.s32.totalorder %s301, %s302
      %p314 = scmp.eq.s32.totalorder %s45, 5
      %p315 = por %p313, %p314
      %p317 = scmp.ne.s32.totalorder %s302, %s316
      %p318 = scmp.eq.s32.totalorder %s45, 0
      %p319 = por %p317, %p318
      %s321 = sadd.s32 %s320, 1
      %p324 = scmp.eq.s32.totalorder %s39, 5
      %p325 = scmp.ne.s32.totalorder %s320, %s322
      %p326 = scmp.eq.s32.totalorder %s39, 0
      %p327 = por %p325, %p326
      %p328 = scmp.ne.s32.totalorder %s320, %s322
      %p329 = scmp.eq.s32.totalorder %s44, 5
      %p330 = por %p328, %p329
      %p331 = scmp.ne.s32.totalorder %s322, %s323
      %p332 = scmp.eq.s32.totalorder %s44, 0
      %p333 = por %p331, %p332
      %p334 = scmp.ne.s32.totalorder %s322, %s323
      %p335 = scmp.eq.s32.totalorder %s45, 5
      %p336 = por %p334, %p335
      %p338 = scmp.ne.s32.totalorder %s323, %s337
      %p339 = scmp.eq.s32.totalorder %s45, 0
      %p340 = por %p338, %p339
      %s342 = sadd.s32 %s341, 1
      %p345 = scmp.eq.s32.totalorder %s39, 5
      %p346 = scmp.ne.s32.totalorder %s341, %s343
      %p347 = scmp.eq.s32.totalorder %s39, 0
      %p348 = por %p346, %p347
      %p349 = scmp.ne.s32.totalorder %s341, %s343
      %p350 = scmp.eq.s32.totalorder %s44, 5
      %p351 = por %p349, %p350
      %p352 = scmp.ne.s32.totalorder %s343, %s344
      %p353 = scmp.eq.s32.totalorder %s44, 0
      %p354 = por %p352, %p353
      %p355 = scmp.ne.s32.totalorder %s343, %s344
      %p356 = scmp.eq.s32.totalorder %s45, 5
      %p357 = por %p355, %p356
      %p359 = scmp.ne.s32.totalorder %s344, %s358
      %p360 = scmp.eq.s32.totalorder %s45, 0
      %p361 = por %p359, %p360
      %s363 = sadd.s32 %s362, 1
      %p366 = scmp.eq.s32.totalorder %s39, 5
      %p367 = scmp.ne.s32.totalorder %s362, %s364
      %p368 = scmp.eq.s32.totalorder %s39, 0
      %p369 = por %p367, %p368
      %p370 = scmp.ne.s32.totalorder %s362, %s364
      %p371 = scmp.eq.s32.totalorder %s44, 5
      %p372 = por %p370, %p371
      %p373 = scmp.ne.s32.totalorder %s364, %s365
      %p374 = scmp.eq.s32.totalorder %s44, 0
      %p375 = por %p373, %p374
      %p376 = scmp.ne.s32.totalorder %s364, %s365
      %p377 = scmp.eq.s32.totalorder %s45, 5
      %p378 = por %p376, %p377
      %p380 = scmp.ne.s32.totalorder %s365, %s379
      %p381 = scmp.eq.s32.totalorder %s45, 0
      %p382 = por %p380, %p381
      %s384 = sadd.s32 %s383, 1
      %p387 = scmp.eq.s32.totalorder %s39, 5
      %p388 = scmp.ne.s32.totalorder %s383, %s385
      %p389 = scmp.eq.s32.totalorder %s39, 0
      %p390 = por %p388, %p389
      %p391 = scmp.ne.s32.totalorder %s383, %s385
      %p392 = scmp.eq.s32.totalorder %s44, 5
      %p393 = por %p391, %p392
      %p394 = scmp.ne.s32.totalorder %s385, %s386
      %p395 = scmp.eq.s32.totalorder %s44, 0
      %p396 = por %p394, %p395
      %p397 = scmp.ne.s32.totalorder %s385, %s386
      %p398 = scmp.eq.s32.totalorder %s45, 5
      %p399 = por %p397, %p398
      %p401 = scmp.ne.s32.totalorder %s386, %s400
      %p402 = scmp.eq.s32.totalorder %s45, 0
      %p403 = por %p401, %p402
      %s405 = sadd.s32 %s404, 1
      %p408 = scmp.eq.s32.totalorder %s39, 5
      %p409 = scmp.ne.s32.totalorder %s404, %s406
      %p410 = scmp.eq.s32.totalorder %s39, 0
      %p411 = por %p409, %p410
      %p412 = scmp.ne.s32.totalorder %s404, %s406
      %p413 = scmp.eq.s32.totalorder %s44, 5
      %p414 = por %p412, %p413
      %p415 = scmp.ne.s32.totalorder %s406, %s407
      %p416 = scmp.eq.s32.totalorder %s44, 0
      %p417 = por %p415, %p416
      %p418 = scmp.ne.s32.totalorder %s406, %s407
      %p419 = scmp.eq.s32.totalorder %s45, 5
      %p420 = por %p418, %p419
      %p422 = scmp.ne.s32.totalorder %s407, %s421
      %p423 = scmp.eq.s32.totalorder %s45, 0
      %p424 = por %p422, %p423
      %s426 = sadd.s32 %s425, 1
      %p429 = scmp.eq.s32.totalorder %s39, 5
      %p430 = scmp.ne.s32.totalorder %s425, %s427
      %p431 = scmp.eq.s32.totalorder %s39, 0
      %p432 = por %p430, %p431
      %p433 = scmp.ne.s32.totalorder %s425, %s427
      %p434 = scmp.eq.s32.totalorder %s44, 5
      %p435 = por %p433, %p434
      %p436 = scmp.ne.s32.totalorder %s427, %s428
      %p437 = scmp.eq.s32.totalorder %s44, 0
      %p438 = por %p436, %p437
      %p439 = scmp.ne.s32.totalorder %s427, %s428
      %p440 = scmp.eq.s32.totalorder %s45, 5
      %p441 = por %p439, %p440
      %p443 = scmp.ne.s32.totalorder %s428, %s442
      %p444 = scmp.eq.s32.totalorder %s45, 0
      %p445 = por %p443, %p444
      %s447 = sadd.s32 %s446, 1
      %p450 = scmp.eq.s32.totalorder %s39, 5
      %p451 = scmp.ne.s32.totalorder %s446, %s448
      %p452 = scmp.eq.s32.totalorder %s39, 0
      %p453 = por %p451, %p452
      %p454 = scmp.ne.s32.totalorder %s446, %s448
      %p455 = scmp.eq.s32.totalorder %s44, 5
      %p456 = por %p454, %p455
      %p457 = scmp.ne.s32.totalorder %s448, %s449
      %p458 = scmp.eq.s32.totalorder %s44, 0
      %p459 = por %p457, %p458
      %p460 = scmp.ne.s32.totalorder %s448, %s449
      %p461 = scmp.eq.s32.totalorder %s45, 5
      %p462 = por %p460, %p461
      %p464 = scmp.ne.s32.totalorder %s449, %s463
      %p465 = scmp.eq.s32.totalorder %s45, 0
      %p466 = por %p464, %p465
      %s468 = sadd.s32 %s467, 1
      %p471 = scmp.eq.s32.totalorder %s39, 5
      %p472 = scmp.ne.s32.totalorder %s467, %s469
      %p473 = scmp.eq.s32.totalorder %s39, 0
      %p474 = por %p472, %p473
      %p475 = scmp.ne.s32.totalorder %s467, %s469
      %p476 = scmp.eq.s32.totalorder %s44, 5
      %p477 = por %p475, %p476
      %p478 = scmp.ne.s32.totalorder %s469, %s470
      %p479 = scmp.eq.s32.totalorder %s44, 0
      %p480 = por %p478, %p479
      %p481 = scmp.ne.s32.totalorder %s469, %s470
      %p482 = scmp.eq.s32.totalorder %s45, 5
      %p483 = por %p481, %p482
      %p485 = scmp.ne.s32.totalorder %s470, %s484
      %p486 = scmp.eq.s32.totalorder %s45, 0
      %p487 = por %p485, %p486
      %s489 = sadd.s32 %s488, 1
      %p492 = scmp.eq.s32.totalorder %s39, 5
      %p493 = scmp.ne.s32.totalorder %s488, %s490
      %p494 = scmp.eq.s32.totalorder %s39, 0
      %p495 = por %p493, %p494
      %p496 = scmp.ne.s32.totalorder %s488, %s490
      %p497 = scmp.eq.s32.totalorder %s44, 5
      %p498 = por %p496, %p497
      %p499 = scmp.ne.s32.totalorder %s490, %s491
      %p500 = scmp.eq.s32.totalorder %s44, 0
      %p501 = por %p499, %p500
      %p502 = scmp.ne.s32.totalorder %s490, %s491
      %p503 = scmp.eq.s32.totalorder %s45, 5
      %p504 = por %p502, %p503
      %p506 = scmp.ne.s32.totalorder %s491, %s505
      %p507 = scmp.eq.s32.totalorder %s45, 0
      %p508 = por %p506, %p507
      %s510 = sadd.s32 %s509, 1
      %p513 = scmp.eq.s32.totalorder %s39, 5
      %p514 = scmp.ne.s32.totalorder %s509, %s511
      %p515 = scmp.eq.s32.totalorder %s39, 0
      %p516 = por %p514, %p515
      %p517 = scmp.ne.s32.totalorder %s509, %s511
      %p518 = scmp.eq.s32.totalorder %s44, 5
      %p519 = por %p517, %p518
      %p520 = scmp.ne.s32.totalorder %s511, %s512
      %p521 = scmp.eq.s32.totalorder %s44, 0
      %p522 = por %p520, %p521
      %p523 = scmp.ne.s32.totalorder %s511, %s512
      %p524 = scmp.eq.s32.totalorder %s45, 5
      %p525 = por %p523, %p524
      %p527 = scmp.ne.s32.totalorder %s512, %s526
      %p528 = scmp.eq.s32.totalorder %s45, 0
      %p529 = por %p527, %p528
      %p530 = scmp.le.s32.totalorder 1, %s39
      %p531 = scmp.lt.s32.totalorder %s39, 7
      %p532 = pnand %p530, %p531
      %p533 = pneg %p532
      // Predicated region
      $region9: #{arhead_forward.5} parent=5 // pred_check
        _
      $region10: #{arhead_forward.5} parent=5 // pred_check_branch
        %535 = sbr.rel (%p532) target = $region12
      $region11: #{arhead_forward.5} parent=5 // pred_region
        %s536 = ssub.s32 %s39, 1
        // Predicated region
        $region13: #{arhead_forward.5} parent=11 // pred_check
          %p537 = pneg %p60
        $region14: #{arhead_forward.5} parent=11 // pred_check_branch
          %539 = sbr.rel (%p537) target = $region16
        $region15: #{arhead_forward.5} parent=11 // pred_region
          _
        $region16: #{arhead_forward.5} parent=11 // pred_fallthru
          _
        // Predicated region
        $region17: #{arhead_forward.5} parent=11 // pred_check
          %p540 = pneg %p81
        $region18: #{arhead_forward.5} parent=11 // pred_check_branch
          %542 = sbr.rel (%p540) target = $region20
        $region19: #{arhead_forward.5} parent=11 // pred_region
          _
        $region20: #{arhead_forward.5} parent=11 // pred_fallthru
          _
        // Predicated region
        $region21: #{arhead_forward.5} parent=11 // pred_check
          %p543 = pneg %p102
        $region22: #{arhead_forward.5} parent=11 // pred_check_branch
          %545 = sbr.rel (%p543) target = $region24
        $region23: #{arhead_forward.5} parent=11 // pred_region
          _
        $region24: #{arhead_forward.5} parent=11 // pred_fallthru
          _
        // Predicated region
        $region25: #{arhead_forward.5} parent=11 // pred_check
          %p546 = pneg %p123
        $region26: #{arhead_forward.5} parent=11 // pred_check_branch
          %548 = sbr.rel (%p546) target = $region28
        $region27: #{arhead_forward.5} parent=11 // pred_region
          _
        $region28: #{arhead_forward.5} parent=11 // pred_fallthru
          _
        // Predicated region
        $region29: #{arhead_forward.5} parent=11 // pred_check
          %p549 = pneg %p144
        $region30: #{arhead_forward.5} parent=11 // pred_check_branch
          %551 = sbr.rel (%p549) target = $region32
        $region31: #{arhead_forward.5} parent=11 // pred_region
          %553 = vsyncadd [#allocation6], 0
          %s555 = sshll.u32 %s4, 4
          %s556 = int_to_ptr.hbm [resolvable:$true] %s555
          %s557 = sshll.u32 [#allocation5], 4
          %s558 = int_to_ptr.vmem [resolvable:$true] %s557
          %560 = dma.hbm_to_vmem [thread:$0]  %s556, 32, %s558, [#allocation6]
        $region32: #{arhead_forward.5} parent=11 // pred_fallthru
          _
        // Predicated region
        $region33: #{arhead_forward.5} parent=11 // pred_check
          %p561 = pneg %p165
        $region34: #{arhead_forward.5} parent=11 // pred_check_branch
          %563 = sbr.rel (%p561) target = $region36
        $region35: #{arhead_forward.5} parent=11 // pred_region
          %565 = vsyncadd [#allocation8], 0
          %s567 = sshll.u32 %s5, 4
          %s568 = int_to_ptr.hbm [resolvable:$true] %s567
          %s569 = sshll.u32 [#allocation7], 4
          %s570 = int_to_ptr.vmem [resolvable:$true] %s569
          %572 = dma.hbm_to_vmem [thread:$0]  %s568, 32, %s570, [#allocation8]
        $region36: #{arhead_forward.5} parent=11 // pred_fallthru
          _
        // Predicated region
        $region37: #{arhead_forward.5} parent=11 // pred_check
          %p573 = pneg %p186
        $region38: #{arhead_forward.5} parent=11 // pred_check_branch
          %575 = sbr.rel (%p573) target = $region40
        $region39: #{arhead_forward.5} parent=11 // pred_region
          %577 = vsyncadd [#allocation8], 0
          %s578 = sshll.u32 %s6, 4
          %s579 = int_to_ptr.hbm [resolvable:$true] %s578
          %s580 = sshll.u32 [#allocation9], 4
          %s581 = int_to_ptr.vmem [resolvable:$true] %s580
          %586 = dma.hbm_to_vmem [thread:$0]  %s579, 4096, %s581, [#allocation8], 128, 128, 8
        $region40: #{arhead_forward.5} parent=11 // pred_fallthru
          _
        // Predicated region
        $region41: #{arhead_forward.5} parent=11 // pred_check
          %p587 = pneg %p207
        $region42: #{arhead_forward.5} parent=11 // pred_check_branch
          %589 = sbr.rel (%p587) target = $region44
        $region43: #{arhead_forward.5} parent=11 // pred_region
          %591 = vsyncadd [#allocation11], 0
          %s593 = sshll.u32 %s7, 4
          %s594 = int_to_ptr.hbm [resolvable:$true] %s593
          %s595 = sshll.u32 [#allocation10], 4
          %s596 = int_to_ptr.vmem [resolvable:$true] %s595
          %598 = dma.hbm_to_vmem [thread:$0]  %s594, 32, %s596, [#allocation11]
        $region44: #{arhead_forward.5} parent=11 // pred_fallthru
          _
        // Predicated region
        $region45: #{arhead_forward.5} parent=11 // pred_check
          %p599 = pneg %p228
        $region46: #{arhead_forward.5} parent=11 // pred_check_branch
          %601 = sbr.rel (%p599) target = $region48
        $region47: #{arhead_forward.5} parent=11 // pred_region
          %603 = vsyncadd [#allocation11], 0
          %s604 = sshll.u32 %s8, 4
          %s605 = int_to_ptr.hbm [resolvable:$true] %s604
          %s606 = sshll.u32 [#allocation12], 4
          %s607 = int_to_ptr.vmem [resolvable:$true] %s606
          %612 = dma.hbm_to_vmem [thread:$0]  %s605, 4096, %s607, [#allocation11], 128, 128, 8
        $region48: #{arhead_forward.5} parent=11 // pred_fallthru
          _
        // Predicated region
        $region49: #{arhead_forward.5} parent=11 // pred_check
          %p613 = pneg %p249
        $region50: #{arhead_forward.5} parent=11 // pred_check_branch
          %615 = sbr.rel (%p613) target = $region52
        $region51: #{arhead_forward.5} parent=11 // pred_region
          %617 = vsyncadd [#allocation14], 0
          %s619 = sshll.u32 %s9, 4
          %s620 = int_to_ptr.hbm [resolvable:$true] %s619
          %s621 = sshll.u32 [#allocation13], 4
          %s622 = int_to_ptr.vmem [resolvable:$true] %s621
          %624 = dma.hbm_to_vmem [thread:$0]  %s620, 32, %s622, [#allocation14]
        $region52: #{arhead_forward.5} parent=11 // pred_fallthru
          _
        // Predicated region
        $region53: #{arhead_forward.5} parent=11 // pred_check
          %p625 = pneg %p270
        $region54: #{arhead_forward.5} parent=11 // pred_check_branch
          %627 = sbr.rel (%p625) target = $region56
        $region55: #{arhead_forward.5} parent=11 // pred_region
          %629 = vsyncadd [#allocation14], 0
          %s630 = sshll.u32 %s10, 4
          %s631 = int_to_ptr.hbm [resolvable:$true] %s630
          %s632 = sshll.u32 [#allocation15], 4
          %s633 = int_to_ptr.vmem [resolvable:$true] %s632
          %638 = dma.hbm_to_vmem [thread:$0]  %s631, 2048, %s633, [#allocation14], 128, 128, 8
        $region56: #{arhead_forward.5} parent=11 // pred_fallthru
          _
        // Predicated region
        $region57: #{arhead_forward.5} parent=11 // pred_check
          %p639 = pneg %p291
        $region58: #{arhead_forward.5} parent=11 // pred_check_branch
          %641 = sbr.rel (%p639) target = $region60
        $region59: #{arhead_forward.5} parent=11 // pred_region
          %643 = vsyncadd [#allocation17], 0
          %s645 = sshll.u32 %s11, 4
          %s646 = int_to_ptr.hbm [resolvable:$true] %s645
          %s647 = sshll.u32 [#allocation16], 4
          %s648 = int_to_ptr.vmem [resolvable:$true] %s647
          %650 = dma.hbm_to_vmem [thread:$0]  %s646, 32, %s648, [#allocation17]
        $region60: #{arhead_forward.5} parent=11 // pred_fallthru
          _
        // Predicated region
        $region61: #{arhead_forward.5} parent=11 // pred_check
          %p651 = pneg %p312
        $region62: #{arhead_forward.5} parent=11 // pred_check_branch
          %653 = sbr.rel (%p651) target = $region64
        $region63: #{arhead_forward.5} parent=11 // pred_region
          %655 = vsyncadd [#allocation17], 0
          %s656 = sshll.u32 %s12, 4
          %s657 = int_to_ptr.hbm [resolvable:$true] %s656
          %s658 = sshll.u32 [#allocation18], 4
          %s659 = int_to_ptr.vmem [resolvable:$true] %s658
          %664 = dma.hbm_to_vmem [thread:$0]  %s657, 73728, %s659, [#allocation17], 384, 384, 24
        $region64: #{arhead_forward.5} parent=11 // pred_fallthru
          _
        // Predicated region
        $region65: #{arhead_forward.5} parent=11 // pred_check
          %p665 = pneg %p333
        $region66: #{arhead_forward.5} parent=11 // pred_check_branch
          %667 = sbr.rel (%p665) target = $region68
        $region67: #{arhead_forward.5} parent=11 // pred_region
          %669 = vsyncadd [#allocation20], 0
          %s670 = sshll.u32 %s13, 4
          %s671 = int_to_ptr.hbm [resolvable:$true] %s670
          %s672 = sshll.u32 [#allocation19], 4
          %s673 = int_to_ptr.vmem [resolvable:$true] %s672
          %678 = dma.hbm_to_vmem [thread:$0]  %s671, 576, %s673, [#allocation20], 96, 96, 6
        $region68: #{arhead_forward.5} parent=11 // pred_fallthru
          _
        // Predicated region
        $region69: #{arhead_forward.5} parent=11 // pred_check
          %p679 = pneg %p354
        $region70: #{arhead_forward.5} parent=11 // pred_check_branch
          %681 = sbr.rel (%p679) target = $region72
        $region71: #{arhead_forward.5} parent=11 // pred_region
          %683 = vsyncadd [#allocation20], 0
          %s684 = sshll.u32 %s14, 4
          %s685 = int_to_ptr.hbm [resolvable:$true] %s684
          %s686 = sshll.u32 [#allocation21], 4
          %s687 = int_to_ptr.vmem [resolvable:$true] %s686
          %692 = dma.hbm_to_vmem [thread:$0]  %s685, 24576, %s687, [#allocation20], 128, 128, 8
        $region72: #{arhead_forward.5} parent=11 // pred_fallthru
          _
        // Predicated region
        $region73: #{arhead_forward.5} parent=11 // pred_check
          %p693 = pneg %p375
        $region74: #{arhead_forward.5} parent=11 // pred_check_branch
          %695 = sbr.rel (%p693) target = $region76
        $region75: #{arhead_forward.5} parent=11 // pred_region
          %697 = vsyncadd [#allocation23], 0
          %s698 = sshll.u32 %s15, 4
          %s699 = int_to_ptr.hbm [resolvable:$true] %s698
          %s700 = sshll.u32 [#allocation22], 4
          %s701 = int_to_ptr.vmem [resolvable:$true] %s700
          %706 = dma.hbm_to_vmem [thread:$0]  %s699, 192, %s701, [#allocation23], 32, 32, 2
        $region76: #{arhead_forward.5} parent=11 // pred_fallthru
          _
        // Predicated region
        $region77: #{arhead_forward.5} parent=11 // pred_check
          %p707 = pneg %p396
        $region78: #{arhead_forward.5} parent=11 // pred_check_branch
          %709 = sbr.rel (%p707) target = $region80
        $region79: #{arhead_forward.5} parent=11 // pred_region
          %711 = vsyncadd [#allocation23], 0
          %s712 = sshll.u32 %s16, 4
          %s713 = int_to_ptr.hbm [resolvable:$true] %s712
          %s714 = sshll.u32 [#allocation24], 4
          %s715 = int_to_ptr.vmem [resolvable:$true] %s714
          %720 = dma.hbm_to_vmem [thread:$0]  %s713, 24576, %s715, [#allocation23], 128, 128, 8
        $region80: #{arhead_forward.5} parent=11 // pred_fallthru
          _
        // Predicated region
        $region81: #{arhead_forward.5} parent=11 // pred_check
          %p721 = pneg %p417
        $region82: #{arhead_forward.5} parent=11 // pred_check_branch
          %723 = sbr.rel (%p721) target = $region84
        $region83: #{arhead_forward.5} parent=11 // pred_region
          %725 = vsyncadd [#allocation26], 0
          %s726 = sshll.u32 %s17, 4
          %s727 = int_to_ptr.hbm [resolvable:$true] %s726
          %s728 = sshll.u32 [#allocation25], 4
          %s729 = int_to_ptr.vmem [resolvable:$true] %s728
          %734 = dma.hbm_to_vmem [thread:$0]  %s727, 192, %s729, [#allocation26], 32, 32, 2
        $region84: #{arhead_forward.5} parent=11 // pred_fallthru
          _
        // Predicated region
        $region85: #{arhead_forward.5} parent=11 // pred_check
          %p735 = pneg %p438
        $region86: #{arhead_forward.5} parent=11 // pred_check_branch
          %737 = sbr.rel (%p735) target = $region88
        $region87: #{arhead_forward.5} parent=11 // pred_region
          %739 = vsyncadd [#allocation26], 0
          %s740 = sshll.u32 %s18, 4
          %s741 = int_to_ptr.hbm [resolvable:$true] %s740
          %s742 = sshll.u32 [#allocation27], 4
          %s743 = int_to_ptr.vmem [resolvable:$true] %s742
          %748 = dma.hbm_to_vmem [thread:$0]  %s741, 8192, %s743, [#allocation26], 256, 256, 16
        $region88: #{arhead_forward.5} parent=11 // pred_fallthru
          _
        // Predicated region
        $region89: #{arhead_forward.5} parent=11 // pred_check
          %p749 = pneg %p459
        $region90: #{arhead_forward.5} parent=11 // pred_check_branch
          %751 = sbr.rel (%p749) target = $region92
        $region91: #{arhead_forward.5} parent=11 // pred_region
          %753 = vsyncadd [#allocation29], 0
          %s755 = sshll.u32 %s19, 4
          %s756 = int_to_ptr.hbm [resolvable:$true] %s755
          %s757 = sshll.u32 [#allocation28], 4
          %s758 = int_to_ptr.vmem [resolvable:$true] %s757
          %760 = dma.hbm_to_vmem [thread:$0]  %s756, 64, %s758, [#allocation29]
        $region92: #{arhead_forward.5} parent=11 // pred_fallthru
          _
        // Predicated region
        $region93: #{arhead_forward.5} parent=11 // pred_check
          %p761 = pneg %p480
        $region94: #{arhead_forward.5} parent=11 // pred_check_branch
          %763 = sbr.rel (%p761) target = $region96
        $region95: #{arhead_forward.5} parent=11 // pred_region
          _
        $region96: #{arhead_forward.5} parent=11 // pred_fallthru
          _
        // Predicated region
        $region97: #{arhead_forward.5} parent=11 // pred_check
          %p764 = pneg %p501
        $region98: #{arhead_forward.5} parent=11 // pred_check_branch
          %766 = sbr.rel (%p764) target = $region100
        $region99: #{arhead_forward.5} parent=11 // pred_region
          _
        $region100: #{arhead_forward.5} parent=11 // pred_fallthru
          _
      $region12: #{arhead_forward.5} parent=5 // pred_fallthru
        _
      %p767 = scmp.lt.s32.totalorder %s39, 6
      // Predicated region
      $region101: #{arhead_forward.5} parent=5 // pred_check
        %p768 = pneg %p767
      $region102: #{arhead_forward.5} parent=5 // pred_check_branch
        %770 = sbr.rel (%p768) target = $region104
      $region103: #{arhead_forward.5} parent=5 // pred_region
        _
      $region104: #{arhead_forward.5} parent=5 // pred_fallthru
        _
      %p771 = scmp.le.s32.totalorder 1, %s39
      %p772 = scmp.lt.s32.totalorder %s39, 7
      %p773 = pnand %p771, %p772
      %p774 = pneg %p773
      // Predicated region
      $region105: #{arhead_forward.5} parent=5 // pred_check
        _
      $region106: #{arhead_forward.5} parent=5 // pred_check_branch
        %776 = sbr.rel (%p773) target = $region108
      $region107: #{arhead_forward.5} parent=5 // pred_region
        %s777 = ssub.s32 %s39, 1
        // Predicated region
        $region109: #{arhead_forward.5} parent=107 // pred_check
          %p778 = pneg %p144
        $region110: #{arhead_forward.5} parent=107 // pred_check_branch
          %780 = sbr.rel (%p778) target = $region112
        $region111: #{arhead_forward.5} parent=107 // pred_region
          %782 = dma.done [#allocation6], 32
        $region112: #{arhead_forward.5} parent=107 // pred_fallthru
          _
        // Predicated region
        $region113: #{arhead_forward.5} parent=107 // pred_check
          %p783 = pneg %p165
        $region114: #{arhead_forward.5} parent=107 // pred_check_branch
          %785 = sbr.rel (%p783) target = $region116
        $region115: #{arhead_forward.5} parent=107 // pred_region
          %787 = dma.done [#allocation8], 32
        $region116: #{arhead_forward.5} parent=107 // pred_fallthru
          _
        // Predicated region
        $region117: #{arhead_forward.5} parent=107 // pred_check
          %p788 = pneg %p186
        $region118: #{arhead_forward.5} parent=107 // pred_check_branch
          %790 = sbr.rel (%p788) target = $region120
        $region119: #{arhead_forward.5} parent=107 // pred_region
          %792 = dma.done [#allocation8], 4096
        $region120: #{arhead_forward.5} parent=107 // pred_fallthru
          _
        // Predicated region
        $region121: #{arhead_forward.5} parent=107 // pred_check
          %p793 = pneg %p207
        $region122: #{arhead_forward.5} parent=107 // pred_check_branch
          %795 = sbr.rel (%p793) target = $region124
        $region123: #{arhead_forward.5} parent=107 // pred_region
          %797 = dma.done [#allocation11], 32
        $region124: #{arhead_forward.5} parent=107 // pred_fallthru
          _
        // Predicated region
        $region125: #{arhead_forward.5} parent=107 // pred_check
          %p798 = pneg %p228
        $region126: #{arhead_forward.5} parent=107 // pred_check_branch
          %800 = sbr.rel (%p798) target = $region128
        $region127: #{arhead_forward.5} parent=107 // pred_region
          %802 = dma.done [#allocation11], 4096
        $region128: #{arhead_forward.5} parent=107 // pred_fallthru
          _
        // Predicated region
        $region129: #{arhead_forward.5} parent=107 // pred_check
          %p803 = pneg %p249
        $region130: #{arhead_forward.5} parent=107 // pred_check_branch
          %805 = sbr.rel (%p803) target = $region132
        $region131: #{arhead_forward.5} parent=107 // pred_region
          %807 = dma.done [#allocation14], 32
        $region132: #{arhead_forward.5} parent=107 // pred_fallthru
          _
        // Predicated region
        $region133: #{arhead_forward.5} parent=107 // pred_check
          %p808 = pneg %p270
        $region134: #{arhead_forward.5} parent=107 // pred_check_branch
          %810 = sbr.rel (%p808) target = $region136
        $region135: #{arhead_forward.5} parent=107 // pred_region
          %812 = dma.done [#allocation14], 2048
        $region136: #{arhead_forward.5} parent=107 // pred_fallthru
          _
        // Predicated region
        $region137: #{arhead_forward.5} parent=107 // pred_check
          %p813 = pneg %p291
        $region138: #{arhead_forward.5} parent=107 // pred_check_branch
          %815 = sbr.rel (%p813) target = $region140
        $region139: #{arhead_forward.5} parent=107 // pred_region
          %817 = dma.done [#allocation17], 32
        $region140: #{arhead_forward.5} parent=107 // pred_fallthru
          _
        // Predicated region
        $region141: #{arhead_forward.5} parent=107 // pred_check
          %p818 = pneg %p312
        $region142: #{arhead_forward.5} parent=107 // pred_check_branch
          %820 = sbr.rel (%p818) target = $region144
        $region143: #{arhead_forward.5} parent=107 // pred_region
          %822 = dma.done [#allocation17], 73728
        $region144: #{arhead_forward.5} parent=107 // pred_fallthru
          _
        // Predicated region
        $region145: #{arhead_forward.5} parent=107 // pred_check
          %p823 = pneg %p333
        $region146: #{arhead_forward.5} parent=107 // pred_check_branch
          %825 = sbr.rel (%p823) target = $region148
        $region147: #{arhead_forward.5} parent=107 // pred_region
          %827 = dma.done [#allocation20], 576
        $region148: #{arhead_forward.5} parent=107 // pred_fallthru
          _
        // Predicated region
        $region149: #{arhead_forward.5} parent=107 // pred_check
          %p828 = pneg %p354
        $region150: #{arhead_forward.5} parent=107 // pred_check_branch
          %830 = sbr.rel (%p828) target = $region152
        $region151: #{arhead_forward.5} parent=107 // pred_region
          %832 = dma.done [#allocation20], 24576
        $region152: #{arhead_forward.5} parent=107 // pred_fallthru
          _
        // Predicated region
        $region153: #{arhead_forward.5} parent=107 // pred_check
          %p833 = pneg %p375
        $region154: #{arhead_forward.5} parent=107 // pred_check_branch
          %835 = sbr.rel (%p833) target = $region156
        $region155: #{arhead_forward.5} parent=107 // pred_region
          %837 = dma.done [#allocation23], 192
        $region156: #{arhead_forward.5} parent=107 // pred_fallthru
          _
        // Predicated region
        $region157: #{arhead_forward.5} parent=107 // pred_check
          %p838 = pneg %p396
        $region158: #{arhead_forward.5} parent=107 // pred_check_branch
          %840 = sbr.rel (%p838) target = $region160
        $region159: #{arhead_forward.5} parent=107 // pred_region
          %842 = dma.done [#allocation23], 24576
        $region160: #{arhead_forward.5} parent=107 // pred_fallthru
          _
        // Predicated region
        $region161: #{arhead_forward.5} parent=107 // pred_check
          %p843 = pneg %p417
        $region162: #{arhead_forward.5} parent=107 // pred_check_branch
          %845 = sbr.rel (%p843) target = $region164
        $region163: #{arhead_forward.5} parent=107 // pred_region
          %847 = dma.done [#allocation26], 192
        $region164: #{arhead_forward.5} parent=107 // pred_fallthru
          _
        // Predicated region
        $region165: #{arhead_forward.5} parent=107 // pred_check
          %p848 = pneg %p438
        $region166: #{arhead_forward.5} parent=107 // pred_check_branch
          %850 = sbr.rel (%p848) target = $region168
        $region167: #{arhead_forward.5} parent=107 // pred_region
          %852 = dma.done [#allocation26], 8192
        $region168: #{arhead_forward.5} parent=107 // pred_fallthru
          _
        // Predicated region
        $region169: #{arhead_forward.5} parent=107 // pred_check
          %p853 = pneg %p459
        $region170: #{arhead_forward.5} parent=107 // pred_check_branch
          %855 = sbr.rel (%p853) target = $region172
        $region171: #{arhead_forward.5} parent=107 // pred_region
          %857 = dma.done [#allocation29], 64
        $region172: #{arhead_forward.5} parent=107 // pred_fallthru
          _
        %p858 = pneg %p60
        %p859 = pneg %p57
        %p860 = pneg %p81
        %p861 = pneg %p78
        %p862 = pneg %p102
        %p863 = pneg %p99
        %p864 = pneg %p123
        %p865 = pneg %p120
        %p866 = pneg %p144
        %p867 = pneg %p141
        %p868 = pneg %p165
        %p869 = pneg %p162
        %p870 = pneg %p186
        %p871 = pneg %p183
        %p872 = pneg %p207
        %p873 = pneg %p204
        %p874 = pneg %p228
        %p875 = pneg %p225
        %p876 = pneg %p249
        %p877 = pneg %p246
        %p878 = pneg %p270
        %p879 = pneg %p267
        %p880 = pneg %p291
        %p881 = pneg %p288
        %p882 = pneg %p312
        %p883 = pneg %p309
        %p884 = pneg %p333
        %p885 = pneg %p330
        %p886 = pneg %p354
        %p887 = pneg %p351
        %p888 = pneg %p375
        %p889 = pneg %p372
        %p890 = pneg %p396
        %p891 = pneg %p393
        %p892 = pneg %p417
        %p893 = pneg %p414
        %p894 = pneg %p438
        %p895 = pneg %p435
        %p896 = pneg %p459
        %p897 = pneg %p456
        %p898 = pneg %p480
        %p899 = pneg %p477
        %p900 = pneg %p501
        %p901 = pneg %p498
        %p902 = pneg %p522
        %p903 = pneg %p519
        %p904 = scmp.eq.s32.totalorder %s44, 0
        // Predicated region
        $region173: #{arhead_forward.5} parent=107 // pred_check
          %p905 = pneg %p904
        $region174: #{arhead_forward.5} parent=107 // pred_check_branch
          %907 = sbr.rel (%p905) target = $region176
        $region175: #{arhead_forward.5} parent=107 // pred_region
          %v908 = vld [vmem:[%s0] sm:$0xff]
          %v909 = vld [vmem:[%s0 + $0x8] sm:$0xff]
          %v910 = vld [vmem:[%s0 + $0x10] sm:$0xff]
          %v911 = vld [vmem:[%s0 + $0x18] sm:$0xff]
          %v912 = vld [vmem:[#allocation5] sm:$0x3]
          %914 = vset.pattern.permute.xlu0 0
          %915 = vperm.xlu0 %914, %v908
          %v916 = vpop.permute.xlu0 %915
          %919 = vset.pattern.permute.xlu0 0
          %920 = vperm.xlu0 %919, %v909
          %v921 = vpop.permute.xlu0 %920
          %924 = vset.pattern.permute.xlu0 0
          %925 = vperm.xlu0 %924, %v910
          %v926 = vpop.permute.xlu0 %925
          %929 = vset.pattern.permute.xlu0 0
          %930 = vperm.xlu0 %929, %v911
          %v931 = vpop.permute.xlu0 %930
          %v934 = vperm.slane %v912, 0
          %v935 = vperm.slane %v912, 1
          %v938 = vmul.f32 %v916, %v934
          %v939 = vmul.f32 %v916, %v935
          %v940 = vmul.f32 %v921, %v934
          %v941 = vmul.f32 %v921, %v935
          %v942 = vmul.f32 %v926, %v934
          %v943 = vmul.f32 %v926, %v935
          %v944 = vmul.f32 %v931, %v934
          %v945 = vmul.f32 %v931, %v935
          %v946 = vld [vmem:[#allocation7] sm:$0x3]
          %v948 = vperm.slane %v946, 0
          %v949 = vperm.slane %v946, 1
          %v952 = vadd.f32 %v938, %v948
          %v953 = vadd.f32 %v939, %v949
          %v954 = vadd.f32 %v940, %v948
          %v955 = vadd.f32 %v941, %v949
          %v956 = vadd.f32 %v942, %v948
          %v957 = vadd.f32 %v943, %v949
          %v958 = vadd.f32 %v944, %v948
          %v959 = vadd.f32 %v945, %v949
          %v960 = vld [vmem:[%s1] sm:$0xff]
          %v961 = vld [vmem:[%s1 + $0x8] sm:$0xff]
          %v962 = vld [vmem:[%s1 + $0x10] sm:$0xff]
          %v963 = vld [vmem:[%s1 + $0x18] sm:$0xff]
          %v964 = vld [vmem:[%s1 + $0x20] sm:$0xff]
          %v965 = vld [vmem:[%s1 + $0x28] sm:$0xff]
          %v966 = vld [vmem:[%s1 + $0x30] sm:$0xff]
          %v967 = vld [vmem:[%s1 + $0x38] sm:$0xff]
          %v968 = vld [vmem:[#allocation9] sm:$0xff]
          %v969 = vld [vmem:[#allocation9 + $0x8] sm:$0xff]
          %v970 = vld [vmem:[#allocation9 + $0x10] sm:$0xff]
          %v971 = vld [vmem:[#allocation9 + $0x18] sm:$0xff]
          %v972 = vld [vmem:[#allocation9 + $0x20] sm:$0xff]
          %v973 = vld [vmem:[#allocation9 + $0x28] sm:$0xff]
          %v974 = vld [vmem:[#allocation9 + $0x30] sm:$0xff]
          %v975 = vld [vmem:[#allocation9 + $0x38] sm:$0xff]
          %v976 = vld [vmem:[#allocation9 + $0x40] sm:$0xff]
          %v977 = vld [vmem:[#allocation9 + $0x48] sm:$0xff]
          %v978 = vld [vmem:[#allocation9 + $0x50] sm:$0xff]
          %v979 = vld [vmem:[#allocation9 + $0x58] sm:$0xff]
          %v980 = vld [vmem:[#allocation9 + $0x60] sm:$0xff]
          %v981 = vld [vmem:[#allocation9 + $0x68] sm:$0xff]
          %v982 = vld [vmem:[#allocation9 + $0x70] sm:$0xff]
          %v983 = vld [vmem:[#allocation9 + $0x78] sm:$0xff]
          %v984 = vld [vmem:[#allocation9 + $0x80] sm:$0xff]
          %v985 = vld [vmem:[#allocation9 + $0x88] sm:$0xff]
          %v986 = vld [vmem:[#allocation9 + $0x90] sm:$0xff]
          %v987 = vld [vmem:[#allocation9 + $0x98] sm:$0xff]
          %v988 = vld [vmem:[#allocation9 + $0xa0] sm:$0xff]
          %v989 = vld [vmem:[#allocation9 + $0xa8] sm:$0xff]
          %v990 = vld [vmem:[#allocation9 + $0xb0] sm:$0xff]
          %v991 = vld [vmem:[#allocation9 + $0xb8] sm:$0xff]
          %v992 = vld [vmem:[#allocation9 + $0xc0] sm:$0xff]
          %v993 = vld [vmem:[#allocation9 + $0xc8] sm:$0xff]
          %v994 = vld [vmem:[#allocation9 + $0xd0] sm:$0xff]
          %v995 = vld [vmem:[#allocation9 + $0xd8] sm:$0xff]
          %v996 = vld [vmem:[#allocation9 + $0xe0] sm:$0xff]
          %v997 = vld [vmem:[#allocation9 + $0xe8] sm:$0xff]
          %v998 = vld [vmem:[#allocation9 + $0xf0] sm:$0xff]
          %v999 = vld [vmem:[#allocation9 + $0xf8] sm:$0xff]
          %v1000 = vpack.c.bf16 %v962, %v960
          %v1001 = vpack.c.bf16 %v963, %v961
          %v1002 = vpack.c.bf16 %v966, %v964
          %v1003 = vpack.c.bf16 %v967, %v965
          %v1004 = vld [vmem:[#allocation10] sm:$0x3]
          %v1006 = vperm.slane %v1004, 0
          %v1007 = vperm.slane %v1004, 1
          %v1042 = vunpack.c.l.b16 %v968
          %v1043 = vunpack.c.h.b16 %v968
          %v1044 = vunpack.c.l.b16 %v969
          %v1045 = vunpack.c.h.b16 %v969
          %v1046 = vunpack.c.l.b16 %v970
          %v1047 = vunpack.c.h.b16 %v970
          %v1048 = vunpack.c.l.b16 %v971
          %v1049 = vunpack.c.h.b16 %v971
          %v1050 = vunpack.c.l.b16 %v972
          %v1051 = vunpack.c.h.b16 %v972
          %v1052 = vunpack.c.l.b16 %v973
          %v1053 = vunpack.c.h.b16 %v973
          %v1054 = vunpack.c.l.b16 %v974
          %v1055 = vunpack.c.h.b16 %v974
          %v1056 = vunpack.c.l.b16 %v975
          %v1057 = vunpack.c.h.b16 %v975
          %v1058 = vunpack.c.l.b16 %v976
          %v1059 = vunpack.c.h.b16 %v976
          %v1060 = vunpack.c.l.b16 %v977
          %v1061 = vunpack.c.h.b16 %v977
          %v1062 = vunpack.c.l.b16 %v978
          %v1063 = vunpack.c.h.b16 %v978
          %v1064 = vunpack.c.l.b16 %v979
          %v1065 = vunpack.c.h.b16 %v979
          %v1066 = vunpack.c.l.b16 %v980
          %v1067 = vunpack.c.h.b16 %v980
          %v1068 = vunpack.c.l.b16 %v981
          %v1069 = vunpack.c.h.b16 %v981
          %v1070 = vunpack.c.l.b16 %v982
          %v1071 = vunpack.c.h.b16 %v982
          %v1072 = vunpack.c.l.b16 %v983
          %v1073 = vunpack.c.h.b16 %v983
          %v1074 = vunpack.c.l.b16 %v984
          %v1075 = vunpack.c.h.b16 %v984
          %v1076 = vunpack.c.l.b16 %v985
          %v1077 = vunpack.c.h.b16 %v985
          %v1078 = vunpack.c.l.b16 %v986
          %v1079 = vunpack.c.h.b16 %v986
          %v1080 = vunpack.c.l.b16 %v987
          %v1081 = vunpack.c.h.b16 %v987
          %v1082 = vunpack.c.l.b16 %v988
          %v1083 = vunpack.c.h.b16 %v988
          %v1084 = vunpack.c.l.b16 %v989
          %v1085 = vunpack.c.h.b16 %v989
          %v1086 = vunpack.c.l.b16 %v990
          %v1087 = vunpack.c.h.b16 %v990
          %v1088 = vunpack.c.l.b16 %v991
          %v1089 = vunpack.c.h.b16 %v991
          %v1090 = vunpack.c.l.b16 %v992
          %v1091 = vunpack.c.h.b16 %v992
          %v1092 = vunpack.c.l.b16 %v993
          %v1093 = vunpack.c.h.b16 %v993
          %v1094 = vunpack.c.l.b16 %v994
          %v1095 = vunpack.c.h.b16 %v994
          %v1096 = vunpack.c.l.b16 %v995
          %v1097 = vunpack.c.h.b16 %v995
          %v1098 = vunpack.c.l.b16 %v996
          %v1099 = vunpack.c.h.b16 %v996
          %v1100 = vunpack.c.l.b16 %v997
          %v1101 = vunpack.c.h.b16 %v997
          %v1102 = vunpack.c.l.b16 %v998
          %v1103 = vunpack.c.h.b16 %v998
          %v1104 = vunpack.c.l.b16 %v999
          %v1105 = vunpack.c.h.b16 %v999
          %v1106 = vpack.c.b16 %v1044, %v1042
          %v1107 = vpack.c.b16 %v1045, %v1043
          %v1108 = vpack.c.b16 %v1048, %v1046
          %v1109 = vpack.c.b16 %v1049, %v1047
          %v1110 = vpack.c.b16 %v1052, %v1050
          %v1111 = vpack.c.b16 %v1053, %v1051
          %v1112 = vpack.c.b16 %v1056, %v1054
          %v1113 = vpack.c.b16 %v1057, %v1055
          %v1114 = vpack.c.b16 %v1060, %v1058
          %v1115 = vpack.c.b16 %v1061, %v1059
          %v1116 = vpack.c.b16 %v1064, %v1062
          %v1117 = vpack.c.b16 %v1065, %v1063
          %v1118 = vpack.c.b16 %v1068, %v1066
          %v1119 = vpack.c.b16 %v1069, %v1067
          %v1120 = vpack.c.b16 %v1072, %v1070
          %v1121 = vpack.c.b16 %v1073, %v1071
          %v1122 = vpack.c.b16 %v1076, %v1074
          %v1123 = vpack.c.b16 %v1077, %v1075
          %v1124 = vpack.c.b16 %v1080, %v1078
          %v1125 = vpack.c.b16 %v1081, %v1079
          %v1126 = vpack.c.b16 %v1084, %v1082
          %v1127 = vpack.c.b16 %v1085, %v1083
          %v1128 = vpack.c.b16 %v1088, %v1086
          %v1129 = vpack.c.b16 %v1089, %v1087
          %v1130 = vpack.c.b16 %v1092, %v1090
          %v1131 = vpack.c.b16 %v1093, %v1091
          %v1132 = vpack.c.b16 %v1096, %v1094
          %v1133 = vpack.c.b16 %v1097, %v1095
          %v1134 = vpack.c.b16 %v1100, %v1098
          %v1135 = vpack.c.b16 %v1101, %v1099
          %v1136 = vpack.c.b16 %v1104, %v1102
          %v1137 = vpack.c.b16 %v1105, %v1103
          %1170 = vmatpush.bf16.msra.mxu0 %v1120
          %1171 = vmatpush.bf16.msra.mxu0 %v1118
          %1172 = vmatpush.bf16.msra.mxu0 %v1116
          %1173 = vmatpush.bf16.msra.mxu0 %v1114
          %1174 = vmatpush.bf16.msra.mxu0 %v1112
          %1175 = vmatpush.bf16.msra.mxu0 %v1110
          %1176 = vmatpush.bf16.msra.mxu0 %v1108
          %1177 = vmatpush.bf16.msra.mxu0 %v1106
          %1178 = vmatmul.bf16.gmra.mxu0 %v1000
          %v1179 = vpop.f32.mrf.mxu0
          %v1180 = vadd.f32 %v1006, %v1179
          %v1181 = vpop.f32.mrf.mxu0
          %v1182 = vadd.f32 %v1006, %v1181
          %1183 = vmatmul.bf16.gmra.mxu0 %v1002
          %v1184 = vpop.f32.mrf.mxu0
          %v1185 = vadd.f32 %v1006, %v1184
          %v1186 = vpop.f32.mrf.mxu0
          %v1187 = vadd.f32 %v1006, %v1186
          %1188 = vdwg.mxu0
          %1189 = vmatpush.bf16.msra.mxu0 %v1136
          %1190 = vmatpush.bf16.msra.mxu0 %v1134
          %1191 = vmatpush.bf16.msra.mxu0 %v1132
          %1192 = vmatpush.bf16.msra.mxu0 %v1130
          %1193 = vmatpush.bf16.msra.mxu0 %v1128
          %1194 = vmatpush.bf16.msra.mxu0 %v1126
          %1195 = vmatpush.bf16.msra.mxu0 %v1124
          %1196 = vmatpush.bf16.msra.mxu0 %v1122
          %1197 = vmatmul.bf16.gmra.mxu0 %v1001
          %v1198 = vpop.f32.mrf.mxu0
          %v1199 = vadd.f32 %v1180, %v1198
          %v1200 = vpop.f32.mrf.mxu0
          %v1201 = vadd.f32 %v1182, %v1200
          %1202 = vmatmul.bf16.gmra.mxu0 %v1003
          %v1203 = vpop.f32.mrf.mxu0
          %v1204 = vadd.f32 %v1185, %v1203
          %v1205 = vpop.f32.mrf.mxu0
          %v1206 = vadd.f32 %v1187, %v1205
          %1207 = vdwg.mxu0
          %1208 = vmatpush.bf16.msra.mxu0 %v1121
          %1209 = vmatpush.bf16.msra.mxu0 %v1119
          %1210 = vmatpush.bf16.msra.mxu0 %v1117
          %1211 = vmatpush.bf16.msra.mxu0 %v1115
          %1212 = vmatpush.bf16.msra.mxu0 %v1113
          %1213 = vmatpush.bf16.msra.mxu0 %v1111
          %1214 = vmatpush.bf16.msra.mxu0 %v1109
          %1215 = vmatpush.bf16.msra.mxu0 %v1107
          %1216 = vmatmul.bf16.gmra.mxu0 %v1000
          %v1217 = vpop.f32.mrf.mxu0
          %v1218 = vadd.f32 %v1007, %v1217
          %v1219 = vpop.f32.mrf.mxu0
          %v1220 = vadd.f32 %v1007, %v1219
          %1221 = vmatmul.bf16.gmra.mxu0 %v1002
          %v1222 = vpop.f32.mrf.mxu0
          %v1223 = vadd.f32 %v1007, %v1222
          %v1224 = vpop.f32.mrf.mxu0
          %v1225 = vadd.f32 %v1007, %v1224
          %1226 = vdwg.mxu0
          %1227 = vmatpush.bf16.msra.mxu0 %v1137
          %1228 = vmatpush.bf16.msra.mxu0 %v1135
          %1229 = vmatpush.bf16.msra.mxu0 %v1133
          %1230 = vmatpush.bf16.msra.mxu0 %v1131
          %1231 = vmatpush.bf16.msra.mxu0 %v1129
          %1232 = vmatpush.bf16.msra.mxu0 %v1127
          %1233 = vmatpush.bf16.msra.mxu0 %v1125
          %1234 = vmatpush.bf16.msra.mxu0 %v1123
          %1235 = vmatmul.bf16.gmra.mxu0 %v1001
          %v1236 = vpop.f32.mrf.mxu0
          %v1237 = vadd.f32 %v1218, %v1236
          %v1238 = vpop.f32.mrf.mxu0
          %v1239 = vadd.f32 %v1220, %v1238
          %1240 = vmatmul.bf16.gmra.mxu0 %v1003
          %v1241 = vpop.f32.mrf.mxu0
          %v1242 = vadd.f32 %v1223, %v1241
          %v1243 = vpop.f32.mrf.mxu0
          %v1244 = vadd.f32 %v1225, %v1243
          %1245 = vdwg.mxu0
          %v1246 = vxor.u32 %v1199, 2147483648
          %v1247 = vxor.u32 %v1237, 2147483648
          %v1248 = vxor.u32 %v1201, 2147483648
          %v1249 = vxor.u32 %v1239, 2147483648
          %v1250 = vxor.u32 %v1204, 2147483648
          %v1251 = vxor.u32 %v1242, 2147483648
          %v1252 = vxor.u32 %v1206, 2147483648
          %v1253 = vxor.u32 %v1244, 2147483648
          %v1254 = vmul.f32 %v1246, 1.442695
          %v1255 = vpow.pop %v1254
          %v1256 = vmul.f32 %v1247, 1.442695
          %v1257 = vpow.pop %v1256
          %v1258 = vmul.f32 %v1248, 1.442695
          %v1259 = vpow.pop %v1258
          %v1260 = vmul.f32 %v1249, 1.442695
          %v1261 = vpow.pop %v1260
          %v1262 = vmul.f32 %v1250, 1.442695
          %v1263 = vpow.pop %v1262
          %v1264 = vmul.f32 %v1251, 1.442695
          %v1265 = vpow.pop %v1264
          %v1266 = vmul.f32 %v1252, 1.442695
          %v1267 = vpow.pop %v1266
          %v1268 = vmul.f32 %v1253, 1.442695
          %v1269 = vpow.pop %v1268
          %v1270 = vadd.f32 %v1255, 1.0
          %v1271 = vadd.f32 %v1257, 1.0
          %v1272 = vadd.f32 %v1259, 1.0
          %v1273 = vadd.f32 %v1261, 1.0
          %v1274 = vadd.f32 %v1263, 1.0
          %v1275 = vadd.f32 %v1265, 1.0
          %v1276 = vadd.f32 %v1267, 1.0
          %v1277 = vadd.f32 %v1269, 1.0
          %v1278 = vrcp.pop %v1270
          %v1279 = vmul.f32 %v1270, %v1278
          %v1280 = vsub.f32 1.0, %v1279
          %v1281 = vmul.f32 %v1278, %v1280
          %v1282 = vadd.f32 %v1278, %v1281
          %vm1283 = vweird.f32 %v1270
          %vm1284 = vweird.f32 %v1278
          %vm1285 = vmor %vm1283, %vm1284
          %v1286 = vsel %vm1285, %v1278, %v1282
          %v1287 = vand.u32 2147483647, %v1270
          %vm1288 = vcmp.eq.f32.partialorder %v1287, 8.507059e+37
          %v1289 = vand.u32 %v1270, 2147483648
          %v1290 = vor.u32 1.1754944e-38, %v1289
          %v1291 = vsel %vm1288, %v1290, %v1286
          %v1292 = vmul.f32 1.0, %v1291
          %v1293 = vrcp.pop %v1271
          %v1294 = vmul.f32 %v1271, %v1293
          %v1295 = vsub.f32 1.0, %v1294
          %v1296 = vmul.f32 %v1293, %v1295
          %v1297 = vadd.f32 %v1293, %v1296
          %vm1298 = vweird.f32 %v1271
          %vm1299 = vweird.f32 %v1293
          %vm1300 = vmor %vm1298, %vm1299
          %v1301 = vsel %vm1300, %v1293, %v1297
          %v1302 = vand.u32 2147483647, %v1271
          %vm1303 = vcmp.eq.f32.partialorder %v1302, 8.507059e+37
          %v1304 = vand.u32 %v1271, 2147483648
          %v1305 = vor.u32 1.1754944e-38, %v1304
          %v1306 = vsel %vm1303, %v1305, %v1301
          %v1307 = vmul.f32 1.0, %v1306
          %v1308 = vrcp.pop %v1272
          %v1309 = vmul.f32 %v1272, %v1308
          %v1310 = vsub.f32 1.0, %v1309
          %v1311 = vmul.f32 %v1308, %v1310
          %v1312 = vadd.f32 %v1308, %v1311
          %vm1313 = vweird.f32 %v1272
          %vm1314 = vweird.f32 %v1308
          %vm1315 = vmor %vm1313, %vm1314
          %v1316 = vsel %vm1315, %v1308, %v1312
          %v1317 = vand.u32 2147483647, %v1272
          %vm1318 = vcmp.eq.f32.partialorder %v1317, 8.507059e+37
          %v1319 = vand.u32 %v1272, 2147483648
          %v1320 = vor.u32 1.1754944e-38, %v1319
          %v1321 = vsel %vm1318, %v1320, %v1316
          %v1322 = vmul.f32 1.0, %v1321
          %v1323 = vrcp.pop %v1273
          %v1324 = vmul.f32 %v1273, %v1323
          %v1325 = vsub.f32 1.0, %v1324
          %v1326 = vmul.f32 %v1323, %v1325
          %v1327 = vadd.f32 %v1323, %v1326
          %vm1328 = vweird.f32 %v1273
          %vm1329 = vweird.f32 %v1323
          %vm1330 = vmor %vm1328, %vm1329
          %v1331 = vsel %vm1330, %v1323, %v1327
          %v1332 = vand.u32 2147483647, %v1273
          %vm1333 = vcmp.eq.f32.partialorder %v1332, 8.507059e+37
          %v1334 = vand.u32 %v1273, 2147483648
          %v1335 = vor.u32 1.1754944e-38, %v1334
          %v1336 = vsel %vm1333, %v1335, %v1331
          %v1337 = vmul.f32 1.0, %v1336
          %v1338 = vrcp.pop %v1274
          %v1339 = vmul.f32 %v1274, %v1338
          %v1340 = vsub.f32 1.0, %v1339
          %v1341 = vmul.f32 %v1338, %v1340
          %v1342 = vadd.f32 %v1338, %v1341
          %vm1343 = vweird.f32 %v1274
          %vm1344 = vweird.f32 %v1338
          %vm1345 = vmor %vm1343, %vm1344
          %v1346 = vsel %vm1345, %v1338, %v1342
          %v1347 = vand.u32 2147483647, %v1274
          %vm1348 = vcmp.eq.f32.partialorder %v1347, 8.507059e+37
          %v1349 = vand.u32 %v1274, 2147483648
          %v1350 = vor.u32 1.1754944e-38, %v1349
          %v1351 = vsel %vm1348, %v1350, %v1346
          %v1352 = vmul.f32 1.0, %v1351
          %v1353 = vrcp.pop %v1275
          %v1354 = vmul.f32 %v1275, %v1353
          %v1355 = vsub.f32 1.0, %v1354
          %v1356 = vmul.f32 %v1353, %v1355
          %v1357 = vadd.f32 %v1353, %v1356
          %vm1358 = vweird.f32 %v1275
          %vm1359 = vweird.f32 %v1353
          %vm1360 = vmor %vm1358, %vm1359
          %v1361 = vsel %vm1360, %v1353, %v1357
          %v1362 = vand.u32 2147483647, %v1275
          %vm1363 = vcmp.eq.f32.partialorder %v1362, 8.507059e+37
          %v1364 = vand.u32 %v1275, 2147483648
          %v1365 = vor.u32 1.1754944e-38, %v1364
          %v1366 = vsel %vm1363, %v1365, %v1361
          %v1367 = vmul.f32 1.0, %v1366
          %v1368 = vrcp.pop %v1276
          %v1369 = vmul.f32 %v1276, %v1368
          %v1370 = vsub.f32 1.0, %v1369
          %v1371 = vmul.f32 %v1368, %v1370
          %v1372 = vadd.f32 %v1368, %v1371
          %vm1373 = vweird.f32 %v1276
          %vm1374 = vweird.f32 %v1368
          %vm1375 = vmor %vm1373, %vm1374
          %v1376 = vsel %vm1375, %v1368, %v1372
          %v1377 = vand.u32 2147483647, %v1276
          %vm1378 = vcmp.eq.f32.partialorder %v1377, 8.507059e+37
          %v1379 = vand.u32 %v1276, 2147483648
          %v1380 = vor.u32 1.1754944e-38, %v1379
          %v1381 = vsel %vm1378, %v1380, %v1376
          %v1382 = vmul.f32 1.0, %v1381
          %v1383 = vrcp.pop %v1277
          %v1384 = vmul.f32 %v1277, %v1383
          %v1385 = vsub.f32 1.0, %v1384
          %v1386 = vmul.f32 %v1383, %v1385
          %v1387 = vadd.f32 %v1383, %v1386
          %vm1388 = vweird.f32 %v1277
          %vm1389 = vweird.f32 %v1383
          %vm1390 = vmor %vm1388, %vm1389
          %v1391 = vsel %vm1390, %v1383, %v1387
          %v1392 = vand.u32 2147483647, %v1277
          %vm1393 = vcmp.eq.f32.partialorder %v1392, 8.507059e+37
          %v1394 = vand.u32 %v1277, 2147483648
          %v1395 = vor.u32 1.1754944e-38, %v1394
          %v1396 = vsel %vm1393, %v1395, %v1391
          %v1397 = vmul.f32 1.0, %v1396
          %v1398 = vmul.f32 %v1199, %v1292
          %v1399 = vmul.f32 %v1237, %v1307
          %v1400 = vmul.f32 %v1201, %v1322
          %v1401 = vmul.f32 %v1239, %v1337
          %v1402 = vmul.f32 %v1204, %v1352
          %v1403 = vmul.f32 %v1242, %v1367
          %v1404 = vmul.f32 %v1206, %v1382
          %v1405 = vmul.f32 %v1244, %v1397
          %v1406 = vld [vmem:[#allocation12] sm:$0xff]
          %v1407 = vld [vmem:[#allocation12 + $0x8] sm:$0xff]
          %v1408 = vld [vmem:[#allocation12 + $0x10] sm:$0xff]
          %v1409 = vld [vmem:[#allocation12 + $0x18] sm:$0xff]
          %v1410 = vld [vmem:[#allocation12 + $0x20] sm:$0xff]
          %v1411 = vld [vmem:[#allocation12 + $0x28] sm:$0xff]
          %v1412 = vld [vmem:[#allocation12 + $0x30] sm:$0xff]
          %v1413 = vld [vmem:[#allocation12 + $0x38] sm:$0xff]
          %v1414 = vld [vmem:[#allocation12 + $0x40] sm:$0xff]
          %v1415 = vld [vmem:[#allocation12 + $0x48] sm:$0xff]
          %v1416 = vld [vmem:[#allocation12 + $0x50] sm:$0xff]
          %v1417 = vld [vmem:[#allocation12 + $0x58] sm:$0xff]
          %v1418 = vld [vmem:[#allocation12 + $0x60] sm:$0xff]
          %v1419 = vld [vmem:[#allocation12 + $0x68] sm:$0xff]
          %v1420 = vld [vmem:[#allocation12 + $0x70] sm:$0xff]
          %v1421 = vld [vmem:[#allocation12 + $0x78] sm:$0xff]
          %v1422 = vld [vmem:[#allocation12 + $0x80] sm:$0xff]
          %v1423 = vld [vmem:[#allocation12 + $0x88] sm:$0xff]
          %v1424 = vld [vmem:[#allocation12 + $0x90] sm:$0xff]
          %v1425 = vld [vmem:[#allocation12 + $0x98] sm:$0xff]
          %v1426 = vld [vmem:[#allocation12 + $0xa0] sm:$0xff]
          %v1427 = vld [vmem:[#allocation12 + $0xa8] sm:$0xff]
          %v1428 = vld [vmem:[#allocation12 + $0xb0] sm:$0xff]
          %v1429 = vld [vmem:[#allocation12 + $0xb8] sm:$0xff]
          %v1430 = vld [vmem:[#allocation12 + $0xc0] sm:$0xff]
          %v1431 = vld [vmem:[#allocation12 + $0xc8] sm:$0xff]
          %v1432 = vld [vmem:[#allocation12 + $0xd0] sm:$0xff]
          %v1433 = vld [vmem:[#allocation12 + $0xd8] sm:$0xff]
          %v1434 = vld [vmem:[#allocation12 + $0xe0] sm:$0xff]
          %v1435 = vld [vmem:[#allocation12 + $0xe8] sm:$0xff]
          %v1436 = vld [vmem:[#allocation12 + $0xf0] sm:$0xff]
          %v1437 = vld [vmem:[#allocation12 + $0xf8] sm:$0xff]
          %v1438 = vpack.c.bf16 %v1400, %v1398
          %v1439 = vpack.c.bf16 %v1401, %v1399
          %v1440 = vpack.c.bf16 %v1404, %v1402
          %v1441 = vpack.c.bf16 %v1405, %v1403
          %v1442 = vld [vmem:[#allocation13] sm:$0x3]
          %v1444 = vperm.slane %v1442, 0
          %v1445 = vperm.slane %v1442, 1
          %v1480 = vunpack.c.l.b16 %v1406
          %v1481 = vunpack.c.h.b16 %v1406
          %v1482 = vunpack.c.l.b16 %v1407
          %v1483 = vunpack.c.h.b16 %v1407
          %v1484 = vunpack.c.l.b16 %v1408
          %v1485 = vunpack.c.h.b16 %v1408
          %v1486 = vunpack.c.l.b16 %v1409
          %v1487 = vunpack.c.h.b16 %v1409
          %v1488 = vunpack.c.l.b16 %v1410
          %v1489 = vunpack.c.h.b16 %v1410
          %v1490 = vunpack.c.l.b16 %v1411
          %v1491 = vunpack.c.h.b16 %v1411
          %v1492 = vunpack.c.l.b16 %v1412
          %v1493 = vunpack.c.h.b16 %v1412
          %v1494 = vunpack.c.l.b16 %v1413
          %v1495 = vunpack.c.h.b16 %v1413
          %v1496 = vunpack.c.l.b16 %v1414
          %v1497 = vunpack.c.h.b16 %v1414
          %v1498 = vunpack.c.l.b16 %v1415
          %v1499 = vunpack.c.h.b16 %v1415
          %v1500 = vunpack.c.l.b16 %v1416
          %v1501 = vunpack.c.h.b16 %v1416
          %v1502 = vunpack.c.l.b16 %v1417
          %v1503 = vunpack.c.h.b16 %v1417
          %v1504 = vunpack.c.l.b16 %v1418
          %v1505 = vunpack.c.h.b16 %v1418
          %v1506 = vunpack.c.l.b16 %v1419
          %v1507 = vunpack.c.h.b16 %v1419
          %v1508 = vunpack.c.l.b16 %v1420
          %v1509 = vunpack.c.h.b16 %v1420
          %v1510 = vunpack.c.l.b16 %v1421
          %v1511 = vunpack.c.h.b16 %v1421
          %v1512 = vunpack.c.l.b16 %v1422
          %v1513 = vunpack.c.h.b16 %v1422
          %v1514 = vunpack.c.l.b16 %v1423
          %v1515 = vunpack.c.h.b16 %v1423
          %v1516 = vunpack.c.l.b16 %v1424
          %v1517 = vunpack.c.h.b16 %v1424
          %v1518 = vunpack.c.l.b16 %v1425
          %v1519 = vunpack.c.h.b16 %v1425
          %v1520 = vunpack.c.l.b16 %v1426
          %v1521 = vunpack.c.h.b16 %v1426
          %v1522 = vunpack.c.l.b16 %v1427
          %v1523 = vunpack.c.h.b16 %v1427
          %v1524 = vunpack.c.l.b16 %v1428
          %v1525 = vunpack.c.h.b16 %v1428
          %v1526 = vunpack.c.l.b16 %v1429
          %v1527 = vunpack.c.h.b16 %v1429
          %v1528 = vunpack.c.l.b16 %v1430
          %v1529 = vunpack.c.h.b16 %v1430
          %v1530 = vunpack.c.l.b16 %v1431
          %v1531 = vunpack.c.h.b16 %v1431
          %v1532 = vunpack.c.l.b16 %v1432
          %v1533 = vunpack.c.h.b16 %v1432
          %v1534 = vunpack.c.l.b16 %v1433
          %v1535 = vunpack.c.h.b16 %v1433
          %v1536 = vunpack.c.l.b16 %v1434
          %v1537 = vunpack.c.h.b16 %v1434
          %v1538 = vunpack.c.l.b16 %v1435
          %v1539 = vunpack.c.h.b16 %v1435
          %v1540 = vunpack.c.l.b16 %v1436
          %v1541 = vunpack.c.h.b16 %v1436
          %v1542 = vunpack.c.l.b16 %v1437
          %v1543 = vunpack.c.h.b16 %v1437
          %v1544 = vpack.c.b16 %v1482, %v1480
          %v1545 = vpack.c.b16 %v1483, %v1481
          %v1546 = vpack.c.b16 %v1486, %v1484
          %v1547 = vpack.c.b16 %v1487, %v1485
          %v1548 = vpack.c.b16 %v1490, %v1488
          %v1549 = vpack.c.b16 %v1491, %v1489
          %v1550 = vpack.c.b16 %v1494, %v1492
          %v1551 = vpack.c.b16 %v1495, %v1493
          %v1552 = vpack.c.b16 %v1498, %v1496
          %v1553 = vpack.c.b16 %v1499, %v1497
          %v1554 = vpack.c.b16 %v1502, %v1500
          %v1555 = vpack.c.b16 %v1503, %v1501
          %v1556 = vpack.c.b16 %v1506, %v1504
          %v1557 = vpack.c.b16 %v1507, %v1505
          %v1558 = vpack.c.b16 %v1510, %v1508
          %v1559 = vpack.c.b16 %v1511, %v1509
          %v1560 = vpack.c.b16 %v1514, %v1512
          %v1561 = vpack.c.b16 %v1515, %v1513
          %v1562 = vpack.c.b16 %v1518, %v1516
          %v1563 = vpack.c.b16 %v1519, %v1517
          %v1564 = vpack.c.b16 %v1522, %v1520
          %v1565 = vpack.c.b16 %v1523, %v1521
          %v1566 = vpack.c.b16 %v1526, %v1524
          %v1567 = vpack.c.b16 %v1527, %v1525
          %v1568 = vpack.c.b16 %v1530, %v1528
          %v1569 = vpack.c.b16 %v1531, %v1529
          %v1570 = vpack.c.b16 %v1534, %v1532
          %v1571 = vpack.c.b16 %v1535, %v1533
          %v1572 = vpack.c.b16 %v1538, %v1536
          %v1573 = vpack.c.b16 %v1539, %v1537
          %v1574 = vpack.c.b16 %v1542, %v1540
          %v1575 = vpack.c.b16 %v1543, %v1541
          %1608 = vmatpush.bf16.msra.mxu0 %v1558
          %1609 = vmatpush.bf16.msra.mxu0 %v1556
          %1610 = vmatpush.bf16.msra.mxu0 %v1554
          %1611 = vmatpush.bf16.msra.mxu0 %v1552
          %1612 = vmatpush.bf16.msra.mxu0 %v1550
          %1613 = vmatpush.bf16.msra.mxu0 %v1548
          %1614 = vmatpush.bf16.msra.mxu0 %v1546
          %1615 = vmatpush.bf16.msra.mxu0 %v1544
          %1616 = vmatmul.bf16.gmra.mxu0 %v1438
          %v1617 = vpop.f32.mrf.mxu0
          %v1618 = vadd.f32 %v1444, %v1617
          %v1619 = vpop.f32.mrf.mxu0
          %v1620 = vadd.f32 %v1444, %v1619
          %1621 = vmatmul.bf16.gmra.mxu0 %v1440
          %v1622 = vpop.f32.mrf.mxu0
          %v1623 = vadd.f32 %v1444, %v1622
          %v1624 = vpop.f32.mrf.mxu0
          %v1625 = vadd.f32 %v1444, %v1624
          %1626 = vdwg.mxu0
          %1627 = vmatpush.bf16.msra.mxu0 %v1574
          %1628 = vmatpush.bf16.msra.mxu0 %v1572
          %1629 = vmatpush.bf16.msra.mxu0 %v1570
          %1630 = vmatpush.bf16.msra.mxu0 %v1568
          %1631 = vmatpush.bf16.msra.mxu0 %v1566
          %1632 = vmatpush.bf16.msra.mxu0 %v1564
          %1633 = vmatpush.bf16.msra.mxu0 %v1562
          %1634 = vmatpush.bf16.msra.mxu0 %v1560
          %1635 = vmatmul.bf16.gmra.mxu0 %v1439
          %v1636 = vpop.f32.mrf.mxu0
          %v1637 = vadd.f32 %v1618, %v1636
          %v1638 = vpop.f32.mrf.mxu0
          %v1639 = vadd.f32 %v1620, %v1638
          %1640 = vmatmul.bf16.gmra.mxu0 %v1441
          %v1641 = vpop.f32.mrf.mxu0
          %v1642 = vadd.f32 %v1623, %v1641
          %v1643 = vpop.f32.mrf.mxu0
          %v1644 = vadd.f32 %v1625, %v1643
          %1645 = vdwg.mxu0
          %1646 = vmatpush.bf16.msra.mxu0 %v1559
          %1647 = vmatpush.bf16.msra.mxu0 %v1557
          %1648 = vmatpush.bf16.msra.mxu0 %v1555
          %1649 = vmatpush.bf16.msra.mxu0 %v1553
          %1650 = vmatpush.bf16.msra.mxu0 %v1551
          %1651 = vmatpush.bf16.msra.mxu0 %v1549
          %1652 = vmatpush.bf16.msra.mxu0 %v1547
          %1653 = vmatpush.bf16.msra.mxu0 %v1545
          %1654 = vmatmul.bf16.gmra.mxu0 %v1438
          %v1655 = vpop.f32.mrf.mxu0
          %v1656 = vadd.f32 %v1445, %v1655
          %v1657 = vpop.f32.mrf.mxu0
          %v1658 = vadd.f32 %v1445, %v1657
          %1659 = vmatmul.bf16.gmra.mxu0 %v1440
          %v1660 = vpop.f32.mrf.mxu0
          %v1661 = vadd.f32 %v1445, %v1660
          %v1662 = vpop.f32.mrf.mxu0
          %v1663 = vadd.f32 %v1445, %v1662
          %1664 = vdwg.mxu0
          %1665 = vmatpush.bf16.msra.mxu0 %v1575
          %1666 = vmatpush.bf16.msra.mxu0 %v1573
          %1667 = vmatpush.bf16.msra.mxu0 %v1571
          %1668 = vmatpush.bf16.msra.mxu0 %v1569
          %1669 = vmatpush.bf16.msra.mxu0 %v1567
          %1670 = vmatpush.bf16.msra.mxu0 %v1565
          %1671 = vmatpush.bf16.msra.mxu0 %v1563
          %1672 = vmatpush.bf16.msra.mxu0 %v1561
          %1673 = vmatmul.bf16.gmra.mxu0 %v1439
          %v1674 = vpop.f32.mrf.mxu0
          %v1675 = vadd.f32 %v1656, %v1674
          %v1676 = vpop.f32.mrf.mxu0
          %v1677 = vadd.f32 %v1658, %v1676
          %1678 = vmatmul.bf16.gmra.mxu0 %v1441
          %v1679 = vpop.f32.mrf.mxu0
          %v1680 = vadd.f32 %v1661, %v1679
          %v1681 = vpop.f32.mrf.mxu0
          %v1682 = vadd.f32 %v1663, %v1681
          %1683 = vdwg.mxu0
          %v1684 = vld [vmem:[%s2] sm:$0xff]
          %v1685 = vld [vmem:[%s2 + $0x8] sm:$0xff]
          %v1686 = vld [vmem:[%s2 + $0x10] sm:$0xff]
          %v1687 = vld [vmem:[%s2 + $0x18] sm:$0xff]
          %v1688 = vld [vmem:[#allocation15] sm:$0xff]
          %v1689 = vld [vmem:[#allocation15 + $0x8] sm:$0xff]
          %v1690 = vld [vmem:[#allocation15 + $0x10] sm:$0xff]
          %v1691 = vld [vmem:[#allocation15 + $0x18] sm:$0xff]
          %v1692 = vld [vmem:[#allocation15 + $0x20] sm:$0xff]
          %v1693 = vld [vmem:[#allocation15 + $0x28] sm:$0xff]
          %v1694 = vld [vmem:[#allocation15 + $0x30] sm:$0xff]
          %v1695 = vld [vmem:[#allocation15 + $0x38] sm:$0xff]
          %v1696 = vld [vmem:[#allocation15 + $0x40] sm:$0xff]
          %v1697 = vld [vmem:[#allocation15 + $0x48] sm:$0xff]
          %v1698 = vld [vmem:[#allocation15 + $0x50] sm:$0xff]
          %v1699 = vld [vmem:[#allocation15 + $0x58] sm:$0xff]
          %v1700 = vld [vmem:[#allocation15 + $0x60] sm:$0xff]
          %v1701 = vld [vmem:[#allocation15 + $0x68] sm:$0xff]
          %v1702 = vld [vmem:[#allocation15 + $0x70] sm:$0xff]
          %v1703 = vld [vmem:[#allocation15 + $0x78] sm:$0xff]
          %v1704 = vpack.c.bf16 %v1685, %v1684
          %v1705 = vpack.c.bf16 %v1687, %v1686
          %v1706 = vld [vmem:[#allocation16] sm:$0x3]
          %v1708 = vperm.slane %v1706, 0
          %v1709 = vperm.slane %v1706, 1
          %v1728 = vunpack.c.l.b16 %v1688
          %v1729 = vunpack.c.h.b16 %v1688
          %v1730 = vunpack.c.l.b16 %v1689
          %v1731 = vunpack.c.h.b16 %v1689
          %v1732 = vunpack.c.l.b16 %v1690
          %v1733 = vunpack.c.h.b16 %v1690
          %v1734 = vunpack.c.l.b16 %v1691
          %v1735 = vunpack.c.h.b16 %v1691
          %v1736 = vunpack.c.l.b16 %v1692
          %v1737 = vunpack.c.h.b16 %v1692
          %v1738 = vunpack.c.l.b16 %v1693
          %v1739 = vunpack.c.h.b16 %v1693
          %v1740 = vunpack.c.l.b16 %v1694
          %v1741 = vunpack.c.h.b16 %v1694
          %v1742 = vunpack.c.l.b16 %v1695
          %v1743 = vunpack.c.h.b16 %v1695
          %v1744 = vunpack.c.l.b16 %v1696
          %v1745 = vunpack.c.h.b16 %v1696
          %v1746 = vunpack.c.l.b16 %v1697
          %v1747 = vunpack.c.h.b16 %v1697
          %v1748 = vunpack.c.l.b16 %v1698
          %v1749 = vunpack.c.h.b16 %v1698
          %v1750 = vunpack.c.l.b16 %v1699
          %v1751 = vunpack.c.h.b16 %v1699
          %v1752 = vunpack.c.l.b16 %v1700
          %v1753 = vunpack.c.h.b16 %v1700
          %v1754 = vunpack.c.l.b16 %v1701
          %v1755 = vunpack.c.h.b16 %v1701
          %v1756 = vunpack.c.l.b16 %v1702
          %v1757 = vunpack.c.h.b16 %v1702
          %v1758 = vunpack.c.l.b16 %v1703
          %v1759 = vunpack.c.h.b16 %v1703
          %v1760 = vpack.c.b16 %v1730, %v1728
          %v1761 = vpack.c.b16 %v1731, %v1729
          %v1762 = vpack.c.b16 %v1734, %v1732
          %v1763 = vpack.c.b16 %v1735, %v1733
          %v1764 = vpack.c.b16 %v1738, %v1736
          %v1765 = vpack.c.b16 %v1739, %v1737
          %v1766 = vpack.c.b16 %v1742, %v1740
          %v1767 = vpack.c.b16 %v1743, %v1741
          %v1768 = vpack.c.b16 %v1746, %v1744
          %v1769 = vpack.c.b16 %v1747, %v1745
          %v1770 = vpack.c.b16 %v1750, %v1748
          %v1771 = vpack.c.b16 %v1751, %v1749
          %v1772 = vpack.c.b16 %v1754, %v1752
          %v1773 = vpack.c.b16 %v1755, %v1753
          %v1774 = vpack.c.b16 %v1758, %v1756
          %v1775 = vpack.c.b16 %v1759, %v1757
          %1792 = vmatpush.bf16.msra.mxu0 %v1774
          %1793 = vmatpush.bf16.msra.mxu0 %v1772
          %1794 = vmatpush.bf16.msra.mxu0 %v1770
          %1795 = vmatpush.bf16.msra.mxu0 %v1768
          %1796 = vmatpush.bf16.msra.mxu0 %v1766
          %1797 = vmatpush.bf16.msra.mxu0 %v1764
          %1798 = vmatpush.bf16.msra.mxu0 %v1762
          %1799 = vmatpush.bf16.msra.mxu0 %v1760
          %1800 = vmatmul.bf16.gmra.mxu0 %v1704
          %v1801 = vpop.f32.mrf.mxu0
          %v1802 = vadd.f32 %v1708, %v1801
          %v1803 = vpop.f32.mrf.mxu0
          %v1804 = vadd.f32 %v1708, %v1803
          %1805 = vmatmul.bf16.gmra.mxu0 %v1705
          %v1806 = vpop.f32.mrf.mxu0
          %v1807 = vadd.f32 %v1708, %v1806
          %v1808 = vpop.f32.mrf.mxu0
          %v1809 = vadd.f32 %v1708, %v1808
          %1810 = vdwg.mxu0
          %1811 = vmatpush.bf16.msra.mxu0 %v1775
          %1812 = vmatpush.bf16.msra.mxu0 %v1773
          %1813 = vmatpush.bf16.msra.mxu0 %v1771
          %1814 = vmatpush.bf16.msra.mxu0 %v1769
          %1815 = vmatpush.bf16.msra.mxu0 %v1767
          %1816 = vmatpush.bf16.msra.mxu0 %v1765
          %1817 = vmatpush.bf16.msra.mxu0 %v1763
          %1818 = vmatpush.bf16.msra.mxu0 %v1761
          %1819 = vmatmul.bf16.gmra.mxu0 %v1704
          %v1820 = vpop.f32.mrf.mxu0
          %v1821 = vadd.f32 %v1709, %v1820
          %v1822 = vpop.f32.mrf.mxu0
          %v1823 = vadd.f32 %v1709, %v1822
          %1824 = vmatmul.bf16.gmra.mxu0 %v1705
          %v1825 = vpop.f32.mrf.mxu0
          %v1826 = vadd.f32 %v1709, %v1825
          %v1827 = vpop.f32.mrf.mxu0
          %v1828 = vadd.f32 %v1709, %v1827
          %1829 = vdwg.mxu0
          %v1830 = vadd.f32 %v1637, %v1802
          %v1831 = vadd.f32 %v1675, %v1821
          %v1832 = vadd.f32 %v1639, %v1804
          %v1833 = vadd.f32 %v1677, %v1823
          %v1834 = vadd.f32 %v1642, %v1807
          %v1835 = vadd.f32 %v1680, %v1826
          %v1836 = vadd.f32 %v1644, %v1809
          %v1837 = vadd.f32 %v1682, %v1828
          %1838 = vst [vmem:[#allocation2] sm:$0xff] %v952
          %1839 = vst [vmem:[#allocation2 + $0x8] sm:$0xff] %v953
          %1840 = vst [vmem:[#allocation2 + $0x10] sm:$0xff] %v954
          %1841 = vst [vmem:[#allocation2 + $0x18] sm:$0xff] %v955
          %1842 = vst [vmem:[#allocation2 + $0x20] sm:$0xff] %v956
          %1843 = vst [vmem:[#allocation2 + $0x28] sm:$0xff] %v957
          %1844 = vst [vmem:[#allocation2 + $0x30] sm:$0xff] %v958
          %1845 = vst [vmem:[#allocation2 + $0x38] sm:$0xff] %v959
          %v1846 = vxor.u32 %v1830, 2147483648
          %v1847 = vxor.u32 %v1831, 2147483648
          %v1848 = vxor.u32 %v1832, 2147483648
          %v1849 = vxor.u32 %v1833, 2147483648
          %v1850 = vxor.u32 %v1834, 2147483648
          %v1851 = vxor.u32 %v1835, 2147483648
          %v1852 = vxor.u32 %v1836, 2147483648
          %v1853 = vxor.u32 %v1837, 2147483648
          %v1854 = vmul.f32 %v1846, 1.442695
          %v1855 = vpow.pop %v1854
          %v1856 = vmul.f32 %v1847, 1.442695
          %v1857 = vpow.pop %v1856
          %v1858 = vmul.f32 %v1848, 1.442695
          %v1859 = vpow.pop %v1858
          %v1860 = vmul.f32 %v1849, 1.442695
          %v1861 = vpow.pop %v1860
          %v1862 = vmul.f32 %v1850, 1.442695
          %v1863 = vpow.pop %v1862
          %v1864 = vmul.f32 %v1851, 1.442695
          %v1865 = vpow.pop %v1864
          %v1866 = vmul.f32 %v1852, 1.442695
          %v1867 = vpow.pop %v1866
          %v1868 = vmul.f32 %v1853, 1.442695
          %v1869 = vpow.pop %v1868
          %v1870 = vadd.f32 %v1855, 1.0
          %v1871 = vadd.f32 %v1857, 1.0
          %v1872 = vadd.f32 %v1859, 1.0
          %v1873 = vadd.f32 %v1861, 1.0
          %v1874 = vadd.f32 %v1863, 1.0
          %v1875 = vadd.f32 %v1865, 1.0
          %v1876 = vadd.f32 %v1867, 1.0
          %v1877 = vadd.f32 %v1869, 1.0
          %v1878 = vrcp.pop %v1870
          %v1879 = vmul.f32 %v1870, %v1878
          %v1880 = vsub.f32 1.0, %v1879
          %v1881 = vmul.f32 %v1878, %v1880
          %v1882 = vadd.f32 %v1878, %v1881
          %vm1883 = vweird.f32 %v1870
          %vm1884 = vweird.f32 %v1878
          %vm1885 = vmor %vm1883, %vm1884
          %v1886 = vsel %vm1885, %v1878, %v1882
          %v1887 = vand.u32 2147483647, %v1870
          %vm1888 = vcmp.eq.f32.partialorder %v1887, 8.507059e+37
          %v1889 = vand.u32 %v1870, 2147483648
          %v1890 = vor.u32 1.1754944e-38, %v1889
          %v1891 = vsel %vm1888, %v1890, %v1886
          %v1892 = vmul.f32 1.0, %v1891
          %v1893 = vrcp.pop %v1871
          %v1894 = vmul.f32 %v1871, %v1893
          %v1895 = vsub.f32 1.0, %v1894
          %v1896 = vmul.f32 %v1893, %v1895
          %v1897 = vadd.f32 %v1893, %v1896
          %vm1898 = vweird.f32 %v1871
          %vm1899 = vweird.f32 %v1893
          %vm1900 = vmor %vm1898, %vm1899
          %v1901 = vsel %vm1900, %v1893, %v1897
          %v1902 = vand.u32 2147483647, %v1871
          %vm1903 = vcmp.eq.f32.partialorder %v1902, 8.507059e+37
          %v1904 = vand.u32 %v1871, 2147483648
          %v1905 = vor.u32 1.1754944e-38, %v1904
          %v1906 = vsel %vm1903, %v1905, %v1901
          %v1907 = vmul.f32 1.0, %v1906
          %v1908 = vrcp.pop %v1872
          %v1909 = vmul.f32 %v1872, %v1908
          %v1910 = vsub.f32 1.0, %v1909
          %v1911 = vmul.f32 %v1908, %v1910
          %v1912 = vadd.f32 %v1908, %v1911
          %vm1913 = vweird.f32 %v1872
          %vm1914 = vweird.f32 %v1908
          %vm1915 = vmor %vm1913, %vm1914
          %v1916 = vsel %vm1915, %v1908, %v1912
          %v1917 = vand.u32 2147483647, %v1872
          %vm1918 = vcmp.eq.f32.partialorder %v1917, 8.507059e+37
          %v1919 = vand.u32 %v1872, 2147483648
          %v1920 = vor.u32 1.1754944e-38, %v1919
          %v1921 = vsel %vm1918, %v1920, %v1916
          %v1922 = vmul.f32 1.0, %v1921
          %v1923 = vrcp.pop %v1873
          %v1924 = vmul.f32 %v1873, %v1923
          %v1925 = vsub.f32 1.0, %v1924
          %v1926 = vmul.f32 %v1923, %v1925
          %v1927 = vadd.f32 %v1923, %v1926
          %vm1928 = vweird.f32 %v1873
          %vm1929 = vweird.f32 %v1923
          %vm1930 = vmor %vm1928, %vm1929
          %v1931 = vsel %vm1930, %v1923, %v1927
          %v1932 = vand.u32 2147483647, %v1873
          %vm1933 = vcmp.eq.f32.partialorder %v1932, 8.507059e+37
          %v1934 = vand.u32 %v1873, 2147483648
          %v1935 = vor.u32 1.1754944e-38, %v1934
          %v1936 = vsel %vm1933, %v1935, %v1931
          %v1937 = vmul.f32 1.0, %v1936
          %v1938 = vrcp.pop %v1874
          %v1939 = vmul.f32 %v1874, %v1938
          %v1940 = vsub.f32 1.0, %v1939
          %v1941 = vmul.f32 %v1938, %v1940
          %v1942 = vadd.f32 %v1938, %v1941
          %vm1943 = vweird.f32 %v1874
          %vm1944 = vweird.f32 %v1938
          %vm1945 = vmor %vm1943, %vm1944
          %v1946 = vsel %vm1945, %v1938, %v1942
          %v1947 = vand.u32 2147483647, %v1874
          %vm1948 = vcmp.eq.f32.partialorder %v1947, 8.507059e+37
          %v1949 = vand.u32 %v1874, 2147483648
          %v1950 = vor.u32 1.1754944e-38, %v1949
          %v1951 = vsel %vm1948, %v1950, %v1946
          %v1952 = vmul.f32 1.0, %v1951
          %v1953 = vrcp.pop %v1875
          %v1954 = vmul.f32 %v1875, %v1953
          %v1955 = vsub.f32 1.0, %v1954
          %v1956 = vmul.f32 %v1953, %v1955
          %v1957 = vadd.f32 %v1953, %v1956
          %vm1958 = vweird.f32 %v1875
          %vm1959 = vweird.f32 %v1953
          %vm1960 = vmor %vm1958, %vm1959
          %v1961 = vsel %vm1960, %v1953, %v1957
          %v1962 = vand.u32 2147483647, %v1875
          %vm1963 = vcmp.eq.f32.partialorder %v1962, 8.507059e+37
          %v1964 = vand.u32 %v1875, 2147483648
          %v1965 = vor.u32 1.1754944e-38, %v1964
          %v1966 = vsel %vm1963, %v1965, %v1961
          %v1967 = vmul.f32 1.0, %v1966
          %v1968 = vrcp.pop %v1876
          %v1969 = vmul.f32 %v1876, %v1968
          %v1970 = vsub.f32 1.0, %v1969
          %v1971 = vmul.f32 %v1968, %v1970
          %v1972 = vadd.f32 %v1968, %v1971
          %vm1973 = vweird.f32 %v1876
          %vm1974 = vweird.f32 %v1968
          %vm1975 = vmor %vm1973, %vm1974
          %v1976 = vsel %vm1975, %v1968, %v1972
          %v1977 = vand.u32 2147483647, %v1876
          %vm1978 = vcmp.eq.f32.partialorder %v1977, 8.507059e+37
          %v1979 = vand.u32 %v1876, 2147483648
          %v1980 = vor.u32 1.1754944e-38, %v1979
          %v1981 = vsel %vm1978, %v1980, %v1976
          %v1982 = vmul.f32 1.0, %v1981
          %v1983 = vrcp.pop %v1877
          %v1984 = vmul.f32 %v1877, %v1983
          %v1985 = vsub.f32 1.0, %v1984
          %v1986 = vmul.f32 %v1983, %v1985
          %v1987 = vadd.f32 %v1983, %v1986
          %vm1988 = vweird.f32 %v1877
          %vm1989 = vweird.f32 %v1983
          %vm1990 = vmor %vm1988, %vm1989
          %v1991 = vsel %vm1990, %v1983, %v1987
          %v1992 = vand.u32 2147483647, %v1877
          %vm1993 = vcmp.eq.f32.partialorder %v1992, 8.507059e+37
          %v1994 = vand.u32 %v1877, 2147483648
          %v1995 = vor.u32 1.1754944e-38, %v1994
          %v1996 = vsel %vm1993, %v1995, %v1991
          %v1997 = vmul.f32 1.0, %v1996
          %v1998 = vmul.f32 %v1830, %v1892
          %v1999 = vmul.f32 %v1831, %v1907
          %v2000 = vmul.f32 %v1832, %v1922
          %v2001 = vmul.f32 %v1833, %v1937
          %v2002 = vmul.f32 %v1834, %v1952
          %v2003 = vmul.f32 %v1835, %v1967
          %v2004 = vmul.f32 %v1836, %v1982
          %v2005 = vmul.f32 %v1837, %v1997
          %2006 = vst [vmem:[#allocation3] sm:$0xff] %v1998
          %2007 = vst [vmem:[#allocation3 + $0x8] sm:$0xff] %v1999
          %2008 = vst [vmem:[#allocation3 + $0x10] sm:$0xff] %v2000
          %2009 = vst [vmem:[#allocation3 + $0x18] sm:$0xff] %v2001
          %2010 = vst [vmem:[#allocation3 + $0x20] sm:$0xff] %v2002
          %2011 = vst [vmem:[#allocation3 + $0x28] sm:$0xff] %v2003
          %2012 = vst [vmem:[#allocation3 + $0x30] sm:$0xff] %v2004
          %2013 = vst [vmem:[#allocation3 + $0x38] sm:$0xff] %v2005
        $region176: #{arhead_forward.5} parent=107 // pred_fallthru
          _
        %v2014 = vld [vmem:[#allocation2] sm:$0xff]
        %v2015 = vld [vmem:[#allocation2 + $0x8] sm:$0xff]
        %v2016 = vld [vmem:[#allocation2 + $0x10] sm:$0xff]
        %v2017 = vld [vmem:[#allocation2 + $0x18] sm:$0xff]
        %v2018 = vld [vmem:[#allocation2 + $0x20] sm:$0xff]
        %v2019 = vld [vmem:[#allocation2 + $0x28] sm:$0xff]
        %v2020 = vld [vmem:[#allocation2 + $0x30] sm:$0xff]
        %v2021 = vld [vmem:[#allocation2 + $0x38] sm:$0xff]
        %v2022 = vld [vmem:[#allocation3] sm:$0xff]
        %v2023 = vld [vmem:[#allocation3 + $0x8] sm:$0xff]
        %v2024 = vld [vmem:[#allocation3 + $0x10] sm:$0xff]
        %v2025 = vld [vmem:[#allocation3 + $0x18] sm:$0xff]
        %v2026 = vld [vmem:[#allocation3 + $0x20] sm:$0xff]
        %v2027 = vld [vmem:[#allocation3 + $0x28] sm:$0xff]
        %v2028 = vld [vmem:[#allocation3 + $0x30] sm:$0xff]
        %v2029 = vld [vmem:[#allocation3 + $0x38] sm:$0xff]
        %s2030 = smul.u32 %s44, 192
        %s2031 = smul.addr %s2030, 4
        %s2032 = scalar_lea.vmem [#allocation18], %s2031
        %v2033 = vld [vmem:[%s2032] sm:$0xff]
        %v2034 = vld [vmem:[%s2032 + $0x8] sm:$0xff]
        %v2035 = vld [vmem:[%s2032 + $0x10] sm:$0xff]
        %v2036 = vld [vmem:[%s2032 + $0x18] sm:$0xff]
        %v2037 = vld [vmem:[%s2032 + $0x20] sm:$0xff]
        %v2038 = vld [vmem:[%s2032 + $0x28] sm:$0xff]
        %v2039 = vld [vmem:[%s2032 + $0x30] sm:$0xff]
        %v2040 = vld [vmem:[%s2032 + $0x38] sm:$0xff]
        %v2041 = vld [vmem:[%s2032 + $0x40] sm:$0xff]
        %v2042 = vld [vmem:[%s2032 + $0x48] sm:$0xff]
        %v2043 = vld [vmem:[%s2032 + $0x50] sm:$0xff]
        %v2044 = vld [vmem:[%s2032 + $0x58] sm:$0xff]
        %v2045 = vld [vmem:[%s2032 + $0x60] sm:$0xff]
        %v2046 = vld [vmem:[%s2032 + $0x68] sm:$0xff]
        %v2047 = vld [vmem:[%s2032 + $0x70] sm:$0xff]
        %v2048 = vld [vmem:[%s2032 + $0x78] sm:$0xff]
        %v2049 = vld [vmem:[%s2032 + $0x80] sm:$0xff]
        %v2050 = vld [vmem:[%s2032 + $0x88] sm:$0xff]
        %v2051 = vld [vmem:[%s2032 + $0x90] sm:$0xff]
        %v2052 = vld [vmem:[%s2032 + $0x98] sm:$0xff]
        %v2053 = vld [vmem:[%s2032 + $0xa0] sm:$0xff]
        %v2054 = vld [vmem:[%s2032 + $0xa8] sm:$0xff]
        %v2055 = vld [vmem:[%s2032 + $0xb0] sm:$0xff]
        %v2056 = vld [vmem:[%s2032 + $0xb8] sm:$0xff]
        %v2057 = vld [vmem:[%s2032 + $0xc0] sm:$0xff]
        %v2058 = vld [vmem:[%s2032 + $0xc8] sm:$0xff]
        %v2059 = vld [vmem:[%s2032 + $0xd0] sm:$0xff]
        %v2060 = vld [vmem:[%s2032 + $0xd8] sm:$0xff]
        %v2061 = vld [vmem:[%s2032 + $0xe0] sm:$0xff]
        %v2062 = vld [vmem:[%s2032 + $0xe8] sm:$0xff]
        %v2063 = vld [vmem:[%s2032 + $0xf0] sm:$0xff]
        %v2064 = vld [vmem:[%s2032 + $0xf8] sm:$0xff]
        %v2065 = vld [vmem:[%s2032 + $0x100] sm:$0xff]
        %v2066 = vld [vmem:[%s2032 + $0x108] sm:$0xff]
        %v2067 = vld [vmem:[%s2032 + $0x110] sm:$0xff]
        %v2068 = vld [vmem:[%s2032 + $0x118] sm:$0xff]
        %v2069 = vld [vmem:[%s2032 + $0x120] sm:$0xff]
        %v2070 = vld [vmem:[%s2032 + $0x128] sm:$0xff]
        %v2071 = vld [vmem:[%s2032 + $0x130] sm:$0xff]
        %v2072 = vld [vmem:[%s2032 + $0x138] sm:$0xff]
        %v2073 = vld [vmem:[%s2032 + $0x140] sm:$0xff]
        %v2074 = vld [vmem:[%s2032 + $0x148] sm:$0xff]
        %v2075 = vld [vmem:[%s2032 + $0x150] sm:$0xff]
        %v2076 = vld [vmem:[%s2032 + $0x158] sm:$0xff]
        %v2077 = vld [vmem:[%s2032 + $0x160] sm:$0xff]
        %v2078 = vld [vmem:[%s2032 + $0x168] sm:$0xff]
        %v2079 = vld [vmem:[%s2032 + $0x170] sm:$0xff]
        %v2080 = vld [vmem:[%s2032 + $0x178] sm:$0xff]
        %v2081 = vld [vmem:[%s2032 + $0x180] sm:$0xff]
        %v2082 = vld [vmem:[%s2032 + $0x188] sm:$0xff]
        %v2083 = vld [vmem:[%s2032 + $0x190] sm:$0xff]
        %v2084 = vld [vmem:[%s2032 + $0x198] sm:$0xff]
        %v2085 = vld [vmem:[%s2032 + $0x1a0] sm:$0xff]
        %v2086 = vld [vmem:[%s2032 + $0x1a8] sm:$0xff]
        %v2087 = vld [vmem:[%s2032 + $0x1b0] sm:$0xff]
        %v2088 = vld [vmem:[%s2032 + $0x1b8] sm:$0xff]
        %v2089 = vld [vmem:[%s2032 + $0x1c0] sm:$0xff]
        %v2090 = vld [vmem:[%s2032 + $0x1c8] sm:$0xff]
        %v2091 = vld [vmem:[%s2032 + $0x1d0] sm:$0xff]
        %v2092 = vld [vmem:[%s2032 + $0x1d8] sm:$0xff]
        %v2093 = vld [vmem:[%s2032 + $0x1e0] sm:$0xff]
        %v2094 = vld [vmem:[%s2032 + $0x1e8] sm:$0xff]
        %v2095 = vld [vmem:[%s2032 + $0x1f0] sm:$0xff]
        %v2096 = vld [vmem:[%s2032 + $0x1f8] sm:$0xff]
        %v2097 = vld [vmem:[%s2032 + $0x200] sm:$0xff]
        %v2098 = vld [vmem:[%s2032 + $0x208] sm:$0xff]
        %v2099 = vld [vmem:[%s2032 + $0x210] sm:$0xff]
        %v2100 = vld [vmem:[%s2032 + $0x218] sm:$0xff]
        %v2101 = vld [vmem:[%s2032 + $0x220] sm:$0xff]
        %v2102 = vld [vmem:[%s2032 + $0x228] sm:$0xff]
        %v2103 = vld [vmem:[%s2032 + $0x230] sm:$0xff]
        %v2104 = vld [vmem:[%s2032 + $0x238] sm:$0xff]
        %v2105 = vld [vmem:[%s2032 + $0x240] sm:$0xff]
        %v2106 = vld [vmem:[%s2032 + $0x248] sm:$0xff]
        %v2107 = vld [vmem:[%s2032 + $0x250] sm:$0xff]
        %v2108 = vld [vmem:[%s2032 + $0x258] sm:$0xff]
        %v2109 = vld [vmem:[%s2032 + $0x260] sm:$0xff]
        %v2110 = vld [vmem:[%s2032 + $0x268] sm:$0xff]
        %v2111 = vld [vmem:[%s2032 + $0x270] sm:$0xff]
        %v2112 = vld [vmem:[%s2032 + $0x278] sm:$0xff]
        %v2113 = vld [vmem:[%s2032 + $0x280] sm:$0xff]
        %v2114 = vld [vmem:[%s2032 + $0x288] sm:$0xff]
        %v2115 = vld [vmem:[%s2032 + $0x290] sm:$0xff]
        %v2116 = vld [vmem:[%s2032 + $0x298] sm:$0xff]
        %v2117 = vld [vmem:[%s2032 + $0x2a0] sm:$0xff]
        %v2118 = vld [vmem:[%s2032 + $0x2a8] sm:$0xff]
        %v2119 = vld [vmem:[%s2032 + $0x2b0] sm:$0xff]
        %v2120 = vld [vmem:[%s2032 + $0x2b8] sm:$0xff]
        %v2121 = vld [vmem:[%s2032 + $0x2c0] sm:$0xff]
        %v2122 = vld [vmem:[%s2032 + $0x2c8] sm:$0xff]
        %v2123 = vld [vmem:[%s2032 + $0x2d0] sm:$0xff]
        %v2124 = vld [vmem:[%s2032 + $0x2d8] sm:$0xff]
        %v2125 = vld [vmem:[%s2032 + $0x2e0] sm:$0xff]
        %v2126 = vld [vmem:[%s2032 + $0x2e8] sm:$0xff]
        %v2127 = vld [vmem:[%s2032 + $0x2f0] sm:$0xff]
        %v2128 = vld [vmem:[%s2032 + $0x2f8] sm:$0xff]
        %v2129 = vpack.c.bf16 %v2024, %v2022
        %v2130 = vpack.c.bf16 %v2025, %v2023
        %v2131 = vpack.c.bf16 %v2028, %v2026
        %v2132 = vpack.c.bf16 %v2029, %v2027
        %s2133 = smul.u32 %s44, 6
        %s2134 = scalar_lea.vmem [#allocation19], %s2133
        %v2135 = vld [vmem:[%s2134] sm:$0x3f]
        %v2137 = vperm.slane %v2135, 0
        %v2138 = vperm.slane %v2135, 1
        %v2139 = vperm.slane %v2135, 2
        %v2140 = vperm.slane %v2135, 3
        %v2141 = vperm.slane %v2135, 4
        %v2142 = vperm.slane %v2135, 5
        %v2245 = vunpack.c.l.b16 %v2033
        %v2246 = vunpack.c.h.b16 %v2033
        %v2247 = vunpack.c.l.b16 %v2034
        %v2248 = vunpack.c.h.b16 %v2034
        %v2249 = vunpack.c.l.b16 %v2035
        %v2250 = vunpack.c.h.b16 %v2035
        %v2251 = vunpack.c.l.b16 %v2036
        %v2252 = vunpack.c.h.b16 %v2036
        %v2253 = vunpack.c.l.b16 %v2037
        %v2254 = vunpack.c.h.b16 %v2037
        %v2255 = vunpack.c.l.b16 %v2038
        %v2256 = vunpack.c.h.b16 %v2038
        %v2257 = vunpack.c.l.b16 %v2039
        %v2258 = vunpack.c.h.b16 %v2039
        %v2259 = vunpack.c.l.b16 %v2040
        %v2260 = vunpack.c.h.b16 %v2040
        %v2261 = vunpack.c.l.b16 %v2041
        %v2262 = vunpack.c.h.b16 %v2041
        %v2263 = vunpack.c.l.b16 %v2042
        %v2264 = vunpack.c.h.b16 %v2042
        %v2265 = vunpack.c.l.b16 %v2043
        %v2266 = vunpack.c.h.b16 %v2043
        %v2267 = vunpack.c.l.b16 %v2044
        %v2268 = vunpack.c.h.b16 %v2044
        %v2269 = vunpack.c.l.b16 %v2045
        %v2270 = vunpack.c.h.b16 %v2045
        %v2271 = vunpack.c.l.b16 %v2046
        %v2272 = vunpack.c.h.b16 %v2046
        %v2273 = vunpack.c.l.b16 %v2047
        %v2274 = vunpack.c.h.b16 %v2047
        %v2275 = vunpack.c.l.b16 %v2048
        %v2276 = vunpack.c.h.b16 %v2048
        %v2277 = vunpack.c.l.b16 %v2049
        %v2278 = vunpack.c.h.b16 %v2049
        %v2279 = vunpack.c.l.b16 %v2050
        %v2280 = vunpack.c.h.b16 %v2050
        %v2281 = vunpack.c.l.b16 %v2051
        %v2282 = vunpack.c.h.b16 %v2051
        %v2283 = vunpack.c.l.b16 %v2052
        %v2284 = vunpack.c.h.b16 %v2052
        %v2285 = vunpack.c.l.b16 %v2053
        %v2286 = vunpack.c.h.b16 %v2053
        %v2287 = vunpack.c.l.b16 %v2054
        %v2288 = vunpack.c.h.b16 %v2054
        %v2289 = vunpack.c.l.b16 %v2055
        %v2290 = vunpack.c.h.b16 %v2055
        %v2291 = vunpack.c.l.b16 %v2056
        %v2292 = vunpack.c.h.b16 %v2056
        %v2293 = vunpack.c.l.b16 %v2057
        %v2294 = vunpack.c.h.b16 %v2057
        %v2295 = vunpack.c.l.b16 %v2058
        %v2296 = vunpack.c.h.b16 %v2058
        %v2297 = vunpack.c.l.b16 %v2059
        %v2298 = vunpack.c.h.b16 %v2059
        %v2299 = vunpack.c.l.b16 %v2060
        %v2300 = vunpack.c.h.b16 %v2060
        %v2301 = vunpack.c.l.b16 %v2061
        %v2302 = vunpack.c.h.b16 %v2061
        %v2303 = vunpack.c.l.b16 %v2062
        %v2304 = vunpack.c.h.b16 %v2062
        %v2305 = vunpack.c.l.b16 %v2063
        %v2306 = vunpack.c.h.b16 %v2063
        %v2307 = vunpack.c.l.b16 %v2064
        %v2308 = vunpack.c.h.b16 %v2064
        %v2309 = vunpack.c.l.b16 %v2065
        %v2310 = vunpack.c.h.b16 %v2065
        %v2311 = vunpack.c.l.b16 %v2066
        %v2312 = vunpack.c.h.b16 %v2066
        %v2313 = vunpack.c.l.b16 %v2067
        %v2314 = vunpack.c.h.b16 %v2067
        %v2315 = vunpack.c.l.b16 %v2068
        %v2316 = vunpack.c.h.b16 %v2068
        %v2317 = vunpack.c.l.b16 %v2069
        %v2318 = vunpack.c.h.b16 %v2069
        %v2319 = vunpack.c.l.b16 %v2070
        %v2320 = vunpack.c.h.b16 %v2070
        %v2321 = vunpack.c.l.b16 %v2071
        %v2322 = vunpack.c.h.b16 %v2071
        %v2323 = vunpack.c.l.b16 %v2072
        %v2324 = vunpack.c.h.b16 %v2072
        %v2325 = vunpack.c.l.b16 %v2073
        %v2326 = vunpack.c.h.b16 %v2073
        %v2327 = vunpack.c.l.b16 %v2074
        %v2328 = vunpack.c.h.b16 %v2074
        %v2329 = vunpack.c.l.b16 %v2075
        %v2330 = vunpack.c.h.b16 %v2075
        %v2331 = vunpack.c.l.b16 %v2076
        %v2332 = vunpack.c.h.b16 %v2076
        %v2333 = vunpack.c.l.b16 %v2077
        %v2334 = vunpack.c.h.b16 %v2077
        %v2335 = vunpack.c.l.b16 %v2078
        %v2336 = vunpack.c.h.b16 %v2078
        %v2337 = vunpack.c.l.b16 %v2079
        %v2338 = vunpack.c.h.b16 %v2079
        %v2339 = vunpack.c.l.b16 %v2080
        %v2340 = vunpack.c.h.b16 %v2080
        %v2341 = vunpack.c.l.b16 %v2081
        %v2342 = vunpack.c.h.b16 %v2081
        %v2343 = vunpack.c.l.b16 %v2082
        %v2344 = vunpack.c.h.b16 %v2082
        %v2345 = vunpack.c.l.b16 %v2083
        %v2346 = vunpack.c.h.b16 %v2083
        %v2347 = vunpack.c.l.b16 %v2084
        %v2348 = vunpack.c.h.b16 %v2084
        %v2349 = vunpack.c.l.b16 %v2085
        %v2350 = vunpack.c.h.b16 %v2085
        %v2351 = vunpack.c.l.b16 %v2086
        %v2352 = vunpack.c.h.b16 %v2086
        %v2353 = vunpack.c.l.b16 %v2087
        %v2354 = vunpack.c.h.b16 %v2087
        %v2355 = vunpack.c.l.b16 %v2088
        %v2356 = vunpack.c.h.b16 %v2088
        %v2357 = vunpack.c.l.b16 %v2089
        %v2358 = vunpack.c.h.b16 %v2089
        %v2359 = vunpack.c.l.b16 %v2090
        %v2360 = vunpack.c.h.b16 %v2090
        %v2361 = vunpack.c.l.b16 %v2091
        %v2362 = vunpack.c.h.b16 %v2091
        %v2363 = vunpack.c.l.b16 %v2092
        %v2364 = vunpack.c.h.b16 %v2092
        %v2365 = vunpack.c.l.b16 %v2093
        %v2366 = vunpack.c.h.b16 %v2093
        %v2367 = vunpack.c.l.b16 %v2094
        %v2368 = vunpack.c.h.b16 %v2094
        %v2369 = vunpack.c.l.b16 %v2095
        %v2370 = vunpack.c.h.b16 %v2095
        %v2371 = vunpack.c.l.b16 %v2096
        %v2372 = vunpack.c.h.b16 %v2096
        %v2373 = vunpack.c.l.b16 %v2097
        %v2374 = vunpack.c.h.b16 %v2097
        %v2375 = vunpack.c.l.b16 %v2098
        %v2376 = vunpack.c.h.b16 %v2098
        %v2377 = vunpack.c.l.b16 %v2099
        %v2378 = vunpack.c.h.b16 %v2099
        %v2379 = vunpack.c.l.b16 %v2100
        %v2380 = vunpack.c.h.b16 %v2100
        %v2381 = vunpack.c.l.b16 %v2101
        %v2382 = vunpack.c.h.b16 %v2101
        %v2383 = vunpack.c.l.b16 %v2102
        %v2384 = vunpack.c.h.b16 %v2102
        %v2385 = vunpack.c.l.b16 %v2103
        %v2386 = vunpack.c.h.b16 %v2103
        %v2387 = vunpack.c.l.b16 %v2104
        %v2388 = vunpack.c.h.b16 %v2104
        %v2389 = vunpack.c.l.b16 %v2105
        %v2390 = vunpack.c.h.b16 %v2105
        %v2391 = vunpack.c.l.b16 %v2106
        %v2392 = vunpack.c.h.b16 %v2106
        %v2393 = vunpack.c.l.b16 %v2107
        %v2394 = vunpack.c.h.b16 %v2107
        %v2395 = vunpack.c.l.b16 %v2108
        %v2396 = vunpack.c.h.b16 %v2108
        %v2397 = vunpack.c.l.b16 %v2109
        %v2398 = vunpack.c.h.b16 %v2109
        %v2399 = vunpack.c.l.b16 %v2110
        %v2400 = vunpack.c.h.b16 %v2110
        %v2401 = vunpack.c.l.b16 %v2111
        %v2402 = vunpack.c.h.b16 %v2111
        %v2403 = vunpack.c.l.b16 %v2112
        %v2404 = vunpack.c.h.b16 %v2112
        %v2405 = vunpack.c.l.b16 %v2113
        %v2406 = vunpack.c.h.b16 %v2113
        %v2407 = vunpack.c.l.b16 %v2114
        %v2408 = vunpack.c.h.b16 %v2114
        %v2409 = vunpack.c.l.b16 %v2115
        %v2410 = vunpack.c.h.b16 %v2115
        %v2411 = vunpack.c.l.b16 %v2116
        %v2412 = vunpack.c.h.b16 %v2116
        %v2413 = vunpack.c.l.b16 %v2117
        %v2414 = vunpack.c.h.b16 %v2117
        %v2415 = vunpack.c.l.b16 %v2118
        %v2416 = vunpack.c.h.b16 %v2118
        %v2417 = vunpack.c.l.b16 %v2119
        %v2418 = vunpack.c.h.b16 %v2119
        %v2419 = vunpack.c.l.b16 %v2120
        %v2420 = vunpack.c.h.b16 %v2120
        %v2421 = vunpack.c.l.b16 %v2121
        %v2422 = vunpack.c.h.b16 %v2121
        %v2423 = vunpack.c.l.b16 %v2122
        %v2424 = vunpack.c.h.b16 %v2122
        %v2425 = vunpack.c.l.b16 %v2123
        %v2426 = vunpack.c.h.b16 %v2123
        %v2427 = vunpack.c.l.b16 %v2124
        %v2428 = vunpack.c.h.b16 %v2124
        %v2429 = vunpack.c.l.b16 %v2125
        %v2430 = vunpack.c.h.b16 %v2125
        %v2431 = vunpack.c.l.b16 %v2126
        %v2432 = vunpack.c.h.b16 %v2126
        %v2433 = vunpack.c.l.b16 %v2127
        %v2434 = vunpack.c.h.b16 %v2127
        %v2435 = vunpack.c.l.b16 %v2128
        %v2436 = vunpack.c.h.b16 %v2128
        %v2437 = vpack.c.b16 %v2251, %v2245
        %v2438 = vpack.c.b16 %v2252, %v2246
        %v2439 = vpack.c.b16 %v2253, %v2247
        %v2440 = vpack.c.b16 %v2254, %v2248
        %v2441 = vpack.c.b16 %v2255, %v2249
        %v2442 = vpack.c.b16 %v2256, %v2250
        %v2443 = vpack.c.b16 %v2263, %v2257
        %v2444 = vpack.c.b16 %v2264, %v2258
        %v2445 = vpack.c.b16 %v2265, %v2259
        %v2446 = vpack.c.b16 %v2266, %v2260
        %v2447 = vpack.c.b16 %v2267, %v2261
        %v2448 = vpack.c.b16 %v2268, %v2262
        %v2449 = vpack.c.b16 %v2275, %v2269
        %v2450 = vpack.c.b16 %v2276, %v2270
        %v2451 = vpack.c.b16 %v2277, %v2271
        %v2452 = vpack.c.b16 %v2278, %v2272
        %v2453 = vpack.c.b16 %v2279, %v2273
        %v2454 = vpack.c.b16 %v2280, %v2274
        %v2455 = vpack.c.b16 %v2287, %v2281
        %v2456 = vpack.c.b16 %v2288, %v2282
        %v2457 = vpack.c.b16 %v2289, %v2283
        %v2458 = vpack.c.b16 %v2290, %v2284
        %v2459 = vpack.c.b16 %v2291, %v2285
        %v2460 = vpack.c.b16 %v2292, %v2286
        %v2461 = vpack.c.b16 %v2299, %v2293
        %v2462 = vpack.c.b16 %v2300, %v2294
        %v2463 = vpack.c.b16 %v2301, %v2295
        %v2464 = vpack.c.b16 %v2302, %v2296
        %v2465 = vpack.c.b16 %v2303, %v2297
        %v2466 = vpack.c.b16 %v2304, %v2298
        %v2467 = vpack.c.b16 %v2311, %v2305
        %v2468 = vpack.c.b16 %v2312, %v2306
        %v2469 = vpack.c.b16 %v2313, %v2307
        %v2470 = vpack.c.b16 %v2314, %v2308
        %v2471 = vpack.c.b16 %v2315, %v2309
        %v2472 = vpack.c.b16 %v2316, %v2310
        %v2473 = vpack.c.b16 %v2323, %v2317
        %v2474 = vpack.c.b16 %v2324, %v2318
        %v2475 = vpack.c.b16 %v2325, %v2319
        %v2476 = vpack.c.b16 %v2326, %v2320
        %v2477 = vpack.c.b16 %v2327, %v2321
        %v2478 = vpack.c.b16 %v2328, %v2322
        %v2479 = vpack.c.b16 %v2335, %v2329
        %v2480 = vpack.c.b16 %v2336, %v2330
        %v2481 = vpack.c.b16 %v2337, %v2331
        %v2482 = vpack.c.b16 %v2338, %v2332
        %v2483 = vpack.c.b16 %v2339, %v2333
        %v2484 = vpack.c.b16 %v2340, %v2334
        %v2485 = vpack.c.b16 %v2347, %v2341
        %v2486 = vpack.c.b16 %v2348, %v2342
        %v2487 = vpack.c.b16 %v2349, %v2343
        %v2488 = vpack.c.b16 %v2350, %v2344
        %v2489 = vpack.c.b16 %v2351, %v2345
        %v2490 = vpack.c.b16 %v2352, %v2346
        %v2491 = vpack.c.b16 %v2359, %v2353
        %v2492 = vpack.c.b16 %v2360, %v2354
        %v2493 = vpack.c.b16 %v2361, %v2355
        %v2494 = vpack.c.b16 %v2362, %v2356
        %v2495 = vpack.c.b16 %v2363, %v2357
        %v2496 = vpack.c.b16 %v2364, %v2358
        %v2497 = vpack.c.b16 %v2371, %v2365
        %v2498 = vpack.c.b16 %v2372, %v2366
        %v2499 = vpack.c.b16 %v2373, %v2367
        %v2500 = vpack.c.b16 %v2374, %v2368
        %v2501 = vpack.c.b16 %v2375, %v2369
        %v2502 = vpack.c.b16 %v2376, %v2370
        %v2503 = vpack.c.b16 %v2383, %v2377
        %v2504 = vpack.c.b16 %v2384, %v2378
        %v2505 = vpack.c.b16 %v2385, %v2379
        %v2506 = vpack.c.b16 %v2386, %v2380
        %v2507 = vpack.c.b16 %v2387, %v2381
        %v2508 = vpack.c.b16 %v2388, %v2382
        %v2509 = vpack.c.b16 %v2395, %v2389
        %v2510 = vpack.c.b16 %v2396, %v2390
        %v2511 = vpack.c.b16 %v2397, %v2391
        %v2512 = vpack.c.b16 %v2398, %v2392
        %v2513 = vpack.c.b16 %v2399, %v2393
        %v2514 = vpack.c.b16 %v2400, %v2394
        %v2515 = vpack.c.b16 %v2407, %v2401
        %v2516 = vpack.c.b16 %v2408, %v2402
        %v2517 = vpack.c.b16 %v2409, %v2403
        %v2518 = vpack.c.b16 %v2410, %v2404
        %v2519 = vpack.c.b16 %v2411, %v2405
        %v2520 = vpack.c.b16 %v2412, %v2406
        %v2521 = vpack.c.b16 %v2419, %v2413
        %v2522 = vpack.c.b16 %v2420, %v2414
        %v2523 = vpack.c.b16 %v2421, %v2415
        %v2524 = vpack.c.b16 %v2422, %v2416
        %v2525 = vpack.c.b16 %v2423, %v2417
        %v2526 = vpack.c.b16 %v2424, %v2418
        %v2527 = vpack.c.b16 %v2431, %v2425
        %v2528 = vpack.c.b16 %v2432, %v2426
        %v2529 = vpack.c.b16 %v2433, %v2427
        %v2530 = vpack.c.b16 %v2434, %v2428
        %v2531 = vpack.c.b16 %v2435, %v2429
        %v2532 = vpack.c.b16 %v2436, %v2430
        %2629 = vmatpush.bf16.msra.mxu0 %v2479
        %2630 = vmatpush.bf16.msra.mxu0 %v2473
        %2631 = vmatpush.bf16.msra.mxu0 %v2467
        %2632 = vmatpush.bf16.msra.mxu0 %v2461
        %2633 = vmatpush.bf16.msra.mxu0 %v2455
        %2634 = vmatpush.bf16.msra.mxu0 %v2449
        %2635 = vmatpush.bf16.msra.mxu0 %v2443
        %2636 = vmatpush.bf16.msra.mxu0 %v2437
        %2637 = vmatmul.bf16.gmra.mxu0 %v2129
        %v2638 = vpop.f32.mrf.mxu0
        %v2639 = vadd.f32 %v2137, %v2638
        %v2640 = vpop.f32.mrf.mxu0
        %v2641 = vadd.f32 %v2137, %v2640
        %2642 = vmatmul.bf16.gmra.mxu0 %v2131
        %v2643 = vpop.f32.mrf.mxu0
        %v2644 = vadd.f32 %v2137, %v2643
        %v2645 = vpop.f32.mrf.mxu0
        %v2646 = vadd.f32 %v2137, %v2645
        %2647 = vdwg.mxu0
        %2648 = vmatpush.bf16.msra.mxu0 %v2527
        %2649 = vmatpush.bf16.msra.mxu0 %v2521
        %2650 = vmatpush.bf16.msra.mxu0 %v2515
        %2651 = vmatpush.bf16.msra.mxu0 %v2509
        %2652 = vmatpush.bf16.msra.mxu0 %v2503
        %2653 = vmatpush.bf16.msra.mxu0 %v2497
        %2654 = vmatpush.bf16.msra.mxu0 %v2491
        %2655 = vmatpush.bf16.msra.mxu0 %v2485
        %2656 = vmatmul.bf16.gmra.mxu0 %v2130
        %v2657 = vpop.f32.mrf.mxu0
        %v2658 = vadd.f32 %v2639, %v2657
        %v2659 = vpop.f32.mrf.mxu0
        %v2660 = vadd.f32 %v2641, %v2659
        %2661 = vmatmul.bf16.gmra.mxu0 %v2132
        %v2662 = vpop.f32.mrf.mxu0
        %v2663 = vadd.f32 %v2644, %v2662
        %v2664 = vpop.f32.mrf.mxu0
        %v2665 = vadd.f32 %v2646, %v2664
        %2666 = vdwg.mxu0
        %2667 = vmatpush.bf16.msra.mxu0 %v2480
        %2668 = vmatpush.bf16.msra.mxu0 %v2474
        %2669 = vmatpush.bf16.msra.mxu0 %v2468
        %2670 = vmatpush.bf16.msra.mxu0 %v2462
        %2671 = vmatpush.bf16.msra.mxu0 %v2456
        %2672 = vmatpush.bf16.msra.mxu0 %v2450
        %2673 = vmatpush.bf16.msra.mxu0 %v2444
        %2674 = vmatpush.bf16.msra.mxu0 %v2438
        %2675 = vmatmul.bf16.gmra.mxu0 %v2129
        %v2676 = vpop.f32.mrf.mxu0
        %v2677 = vadd.f32 %v2138, %v2676
        %v2678 = vpop.f32.mrf.mxu0
        %v2679 = vadd.f32 %v2138, %v2678
        %2680 = vmatmul.bf16.gmra.mxu0 %v2131
        %v2681 = vpop.f32.mrf.mxu0
        %v2682 = vadd.f32 %v2138, %v2681
        %v2683 = vpop.f32.mrf.mxu0
        %v2684 = vadd.f32 %v2138, %v2683
        %2685 = vdwg.mxu0
        %2686 = vmatpush.bf16.msra.mxu0 %v2528
        %2687 = vmatpush.bf16.msra.mxu0 %v2522
        %2688 = vmatpush.bf16.msra.mxu0 %v2516
        %2689 = vmatpush.bf16.msra.mxu0 %v2510
        %2690 = vmatpush.bf16.msra.mxu0 %v2504
        %2691 = vmatpush.bf16.msra.mxu0 %v2498
        %2692 = vmatpush.bf16.msra.mxu0 %v2492
        %2693 = vmatpush.bf16.msra.mxu0 %v2486
        %2694 = vmatmul.bf16.gmra.mxu0 %v2130
        %v2695 = vpop.f32.mrf.mxu0
        %v2696 = vadd.f32 %v2677, %v2695
        %v2697 = vpop.f32.mrf.mxu0
        %v2698 = vadd.f32 %v2679, %v2697
        %2699 = vmatmul.bf16.gmra.mxu0 %v2132
        %v2700 = vpop.f32.mrf.mxu0
        %v2701 = vadd.f32 %v2682, %v2700
        %v2702 = vpop.f32.mrf.mxu0
        %v2703 = vadd.f32 %v2684, %v2702
        %2704 = vdwg.mxu0
        %2705 = vmatpush.bf16.msra.mxu0 %v2481
        %2706 = vmatpush.bf16.msra.mxu0 %v2475
        %2707 = vmatpush.bf16.msra.mxu0 %v2469
        %2708 = vmatpush.bf16.msra.mxu0 %v2463
        %2709 = vmatpush.bf16.msra.mxu0 %v2457
        %2710 = vmatpush.bf16.msra.mxu0 %v2451
        %2711 = vmatpush.bf16.msra.mxu0 %v2445
        %2712 = vmatpush.bf16.msra.mxu0 %v2439
        %2713 = vmatmul.bf16.gmra.mxu0 %v2129
        %v2714 = vpop.f32.mrf.mxu0
        %v2715 = vadd.f32 %v2139, %v2714
        %v2716 = vpop.f32.mrf.mxu0
        %v2717 = vadd.f32 %v2139, %v2716
        %2718 = vmatmul.bf16.gmra.mxu0 %v2131
        %v2719 = vpop.f32.mrf.mxu0
        %v2720 = vadd.f32 %v2139, %v2719
        %v2721 = vpop.f32.mrf.mxu0
        %v2722 = vadd.f32 %v2139, %v2721
        %2723 = vdwg.mxu0
        %2724 = vmatpush.bf16.msra.mxu0 %v2529
        %2725 = vmatpush.bf16.msra.mxu0 %v2523
        %2726 = vmatpush.bf16.msra.mxu0 %v2517
        %2727 = vmatpush.bf16.msra.mxu0 %v2511
        %2728 = vmatpush.bf16.msra.mxu0 %v2505
        %2729 = vmatpush.bf16.msra.mxu0 %v2499
        %2730 = vmatpush.bf16.msra.mxu0 %v2493
        %2731 = vmatpush.bf16.msra.mxu0 %v2487
        %2732 = vmatmul.bf16.gmra.mxu0 %v2130
        %v2733 = vpop.f32.mrf.mxu0
        %v2734 = vadd.f32 %v2715, %v2733
        %v2735 = vpop.f32.mrf.mxu0
        %v2736 = vadd.f32 %v2717, %v2735
        %2737 = vmatmul.bf16.gmra.mxu0 %v2132
        %v2738 = vpop.f32.mrf.mxu0
        %v2739 = vadd.f32 %v2720, %v2738
        %v2740 = vpop.f32.mrf.mxu0
        %v2741 = vadd.f32 %v2722, %v2740
        %2742 = vdwg.mxu0
        %2743 = vmatpush.bf16.msra.mxu0 %v2482
        %2744 = vmatpush.bf16.msra.mxu0 %v2476
        %2745 = vmatpush.bf16.msra.mxu0 %v2470
        %2746 = vmatpush.bf16.msra.mxu0 %v2464
        %2747 = vmatpush.bf16.msra.mxu0 %v2458
        %2748 = vmatpush.bf16.msra.mxu0 %v2452
        %2749 = vmatpush.bf16.msra.mxu0 %v2446
        %2750 = vmatpush.bf16.msra.mxu0 %v2440
        %2751 = vmatmul.bf16.gmra.mxu0 %v2129
        %v2752 = vpop.f32.mrf.mxu0
        %v2753 = vadd.f32 %v2140, %v2752
        %v2754 = vpop.f32.mrf.mxu0
        %v2755 = vadd.f32 %v2140, %v2754
        %2756 = vmatmul.bf16.gmra.mxu0 %v2131
        %v2757 = vpop.f32.mrf.mxu0
        %v2758 = vadd.f32 %v2140, %v2757
        %v2759 = vpop.f32.mrf.mxu0
        %v2760 = vadd.f32 %v2140, %v2759
        %2761 = vdwg.mxu0
        %2762 = vmatpush.bf16.msra.mxu0 %v2530
        %2763 = vmatpush.bf16.msra.mxu0 %v2524
        %2764 = vmatpush.bf16.msra.mxu0 %v2518
        %2765 = vmatpush.bf16.msra.mxu0 %v2512
        %2766 = vmatpush.bf16.msra.mxu0 %v2506
        %2767 = vmatpush.bf16.msra.mxu0 %v2500
        %2768 = vmatpush.bf16.msra.mxu0 %v2494
        %2769 = vmatpush.bf16.msra.mxu0 %v2488
        %2770 = vmatmul.bf16.gmra.mxu0 %v2130
        %v2771 = vpop.f32.mrf.mxu0
        %v2772 = vadd.f32 %v2753, %v2771
        %v2773 = vpop.f32.mrf.mxu0
        %v2774 = vadd.f32 %v2755, %v2773
        %2775 = vmatmul.bf16.gmra.mxu0 %v2132
        %v2776 = vpop.f32.mrf.mxu0
        %v2777 = vadd.f32 %v2758, %v2776
        %v2778 = vpop.f32.mrf.mxu0
        %v2779 = vadd.f32 %v2760, %v2778
        %2780 = vdwg.mxu0
        %2781 = vmatpush.bf16.msra.mxu0 %v2483
        %2782 = vmatpush.bf16.msra.mxu0 %v2477
        %2783 = vmatpush.bf16.msra.mxu0 %v2471
        %2784 = vmatpush.bf16.msra.mxu0 %v2465
        %2785 = vmatpush.bf16.msra.mxu0 %v2459
        %2786 = vmatpush.bf16.msra.mxu0 %v2453
        %2787 = vmatpush.bf16.msra.mxu0 %v2447
        %2788 = vmatpush.bf16.msra.mxu0 %v2441
        %2789 = vmatmul.bf16.gmra.mxu0 %v2129
        %v2790 = vpop.f32.mrf.mxu0
        %v2791 = vadd.f32 %v2141, %v2790
        %v2792 = vpop.f32.mrf.mxu0
        %v2793 = vadd.f32 %v2141, %v2792
        %2794 = vmatmul.bf16.gmra.mxu0 %v2131
        %v2795 = vpop.f32.mrf.mxu0
        %v2796 = vadd.f32 %v2141, %v2795
        %v2797 = vpop.f32.mrf.mxu0
        %v2798 = vadd.f32 %v2141, %v2797
        %2799 = vdwg.mxu0
        %2800 = vmatpush.bf16.msra.mxu0 %v2531
        %2801 = vmatpush.bf16.msra.mxu0 %v2525
        %2802 = vmatpush.bf16.msra.mxu0 %v2519
        %2803 = vmatpush.bf16.msra.mxu0 %v2513
        %2804 = vmatpush.bf16.msra.mxu0 %v2507
        %2805 = vmatpush.bf16.msra.mxu0 %v2501
        %2806 = vmatpush.bf16.msra.mxu0 %v2495
        %2807 = vmatpush.bf16.msra.mxu0 %v2489
        %2808 = vmatmul.bf16.gmra.mxu0 %v2130
        %v2809 = vpop.f32.mrf.mxu0
        %v2810 = vadd.f32 %v2791, %v2809
        %v2811 = vpop.f32.mrf.mxu0
        %v2812 = vadd.f32 %v2793, %v2811
        %2813 = vmatmul.bf16.gmra.mxu0 %v2132
        %v2814 = vpop.f32.mrf.mxu0
        %v2815 = vadd.f32 %v2796, %v2814
        %v2816 = vpop.f32.mrf.mxu0
        %v2817 = vadd.f32 %v2798, %v2816
        %2818 = vdwg.mxu0
        %2819 = vmatpush.bf16.msra.mxu0 %v2484
        %2820 = vmatpush.bf16.msra.mxu0 %v2478
        %2821 = vmatpush.bf16.msra.mxu0 %v2472
        %2822 = vmatpush.bf16.msra.mxu0 %v2466
        %2823 = vmatpush.bf16.msra.mxu0 %v2460
        %2824 = vmatpush.bf16.msra.mxu0 %v2454
        %2825 = vmatpush.bf16.msra.mxu0 %v2448
        %2826 = vmatpush.bf16.msra.mxu0 %v2442
        %2827 = vmatmul.bf16.gmra.mxu0 %v2129
        %v2828 = vpop.f32.mrf.mxu0
        %v2829 = vadd.f32 %v2142, %v2828
        %v2830 = vpop.f32.mrf.mxu0
        %v2831 = vadd.f32 %v2142, %v2830
        %2832 = vmatmul.bf16.gmra.mxu0 %v2131
        %v2833 = vpop.f32.mrf.mxu0
        %v2834 = vadd.f32 %v2142, %v2833
        %v2835 = vpop.f32.mrf.mxu0
        %v2836 = vadd.f32 %v2142, %v2835
        %2837 = vdwg.mxu0
        %2838 = vmatpush.bf16.msra.mxu0 %v2532
        %2839 = vmatpush.bf16.msra.mxu0 %v2526
        %2840 = vmatpush.bf16.msra.mxu0 %v2520
        %2841 = vmatpush.bf16.msra.mxu0 %v2514
        %2842 = vmatpush.bf16.msra.mxu0 %v2508
        %2843 = vmatpush.bf16.msra.mxu0 %v2502
        %2844 = vmatpush.bf16.msra.mxu0 %v2496
        %2845 = vmatpush.bf16.msra.mxu0 %v2490
        %2846 = vmatmul.bf16.gmra.mxu0 %v2130
        %v2847 = vpop.f32.mrf.mxu0
        %v2848 = vadd.f32 %v2829, %v2847
        %v2849 = vpop.f32.mrf.mxu0
        %v2850 = vadd.f32 %v2831, %v2849
        %2851 = vmatmul.bf16.gmra.mxu0 %v2132
        %v2852 = vpop.f32.mrf.mxu0
        %v2853 = vadd.f32 %v2834, %v2852
        %v2854 = vpop.f32.mrf.mxu0
        %v2855 = vadd.f32 %v2836, %v2854
        %2856 = vdwg.mxu0
        %v2857 = vadd.f32 %v2014, %v2015
        %2858 = vadd.xlane.f32.xlu0 %v2857
        %v2859 = vpop.xlane.xlu0 %2858
        %v2860 = vadd.f32 %v2016, %v2017
        %2861 = vadd.xlane.f32.xlu0 %v2860
        %v2862 = vpop.xlane.xlu0 %2861
        %v2863 = vadd.f32 %v2018, %v2019
        %2864 = vadd.xlane.f32.xlu0 %v2863
        %v2865 = vpop.xlane.xlu0 %2864
        %v2866 = vadd.f32 %v2020, %v2021
        %2867 = vadd.xlane.f32.xlu0 %v2866
        %v2868 = vpop.xlane.xlu0 %2867
        %v2869 = vrcp.pop 256.0
        %v2870 = vmul.f32 256.0, %v2869
        %v2871 = vsub.f32 1.0, %v2870
        %v2872 = vmul.f32 %v2869, %v2871
        %v2873 = vadd.f32 %v2869, %v2872
        %vm2874 = vweird.f32 %v2869
        %v2875 = vsel %vm2874, %v2869, %v2873
        %v2876 = vmul.f32 %v2859, %v2875
        %v2877 = vmul.f32 %v2862, %v2875
        %v2878 = vmul.f32 %v2865, %v2875
        %v2879 = vmul.f32 %v2868, %v2875
        %v2880 = vsub.f32 %v2014, %v2876
        %v2881 = vsub.f32 %v2015, %v2876
        %v2882 = vsub.f32 %v2016, %v2877
        %v2883 = vsub.f32 %v2017, %v2877
        %v2884 = vsub.f32 %v2018, %v2878
        %v2885 = vsub.f32 %v2019, %v2878
        %v2886 = vsub.f32 %v2020, %v2879
        %v2887 = vsub.f32 %v2021, %v2879
        %v2888 = vmul.f32 %v2880, %v2880
        %v2889 = vmul.f32 %v2881, %v2881
        %v2890 = vmul.f32 %v2882, %v2882
        %v2891 = vmul.f32 %v2883, %v2883
        %v2892 = vmul.f32 %v2884, %v2884
        %v2893 = vmul.f32 %v2885, %v2885
        %v2894 = vmul.f32 %v2886, %v2886
        %v2895 = vmul.f32 %v2887, %v2887
        %v2896 = vadd.f32 %v2888, %v2889
        %2897 = vadd.xlane.f32.xlu0 %v2896
        %v2898 = vpop.xlane.xlu0 %2897
        %v2899 = vadd.f32 %v2890, %v2891
        %2900 = vadd.xlane.f32.xlu0 %v2899
        %v2901 = vpop.xlane.xlu0 %2900
        %v2902 = vadd.f32 %v2892, %v2893
        %2903 = vadd.xlane.f32.xlu0 %v2902
        %v2904 = vpop.xlane.xlu0 %2903
        %v2905 = vadd.f32 %v2894, %v2895
        %2906 = vadd.xlane.f32.xlu0 %v2905
        %v2907 = vpop.xlane.xlu0 %2906
        %v2908 = vmul.f32 %v2898, %v2875
        %v2909 = vmul.f32 %v2901, %v2875
        %v2910 = vmul.f32 %v2904, %v2875
        %v2911 = vmul.f32 %v2907, %v2875
        %v2912 = vadd.f32 %v2908, 1e-06
        %v2913 = vadd.f32 %v2909, 1e-06
        %v2914 = vadd.f32 %v2910, 1e-06
        %v2915 = vadd.f32 %v2911, 1e-06
        %v2916 = vrsqrt.pop %v2912
        %v2917 = vmul.f32 %v2916, %v2912
        %v2918 = vmul.f32 %v2917, %v2916
        %v2919 = vmul.f32 0.5, %v2918
        %v2920 = vsub.f32 1.5, %v2919
        %v2921 = vmul.f32 %v2916, %v2920
        %vm2922 = vweird.f32 %v2912
        %vm2923 = vweird.f32 %v2916
        %vm2924 = vmor %vm2922, %vm2923
        %v2925 = vsel %vm2924, %v2916, %v2921
        %v2926 = vrsqrt.pop %v2913
        %v2927 = vmul.f32 %v2926, %v2913
        %v2928 = vmul.f32 %v2927, %v2926
        %v2929 = vmul.f32 0.5, %v2928
        %v2930 = vsub.f32 1.5, %v2929
        %v2931 = vmul.f32 %v2926, %v2930
        %vm2932 = vweird.f32 %v2913
        %vm2933 = vweird.f32 %v2926
        %vm2934 = vmor %vm2932, %vm2933
        %v2935 = vsel %vm2934, %v2926, %v2931
        %v2936 = vrsqrt.pop %v2914
        %v2937 = vmul.f32 %v2936, %v2914
        %v2938 = vmul.f32 %v2937, %v2936
        %v2939 = vmul.f32 0.5, %v2938
        %v2940 = vsub.f32 1.5, %v2939
        %v2941 = vmul.f32 %v2936, %v2940
        %vm2942 = vweird.f32 %v2914
        %vm2943 = vweird.f32 %v2936
        %vm2944 = vmor %vm2942, %vm2943
        %v2945 = vsel %vm2944, %v2936, %v2941
        %v2946 = vrsqrt.pop %v2915
        %v2947 = vmul.f32 %v2946, %v2915
        %v2948 = vmul.f32 %v2947, %v2946
        %v2949 = vmul.f32 0.5, %v2948
        %v2950 = vsub.f32 1.5, %v2949
        %v2951 = vmul.f32 %v2946, %v2950
        %vm2952 = vweird.f32 %v2915
        %vm2953 = vweird.f32 %v2946
        %vm2954 = vmor %vm2952, %vm2953
        %v2955 = vsel %vm2954, %v2946, %v2951
        %v2956 = vmul.f32 %v2880, %v2925
        %v2957 = vmul.f32 %v2881, %v2925
        %v2958 = vmul.f32 %v2882, %v2935
        %v2959 = vmul.f32 %v2883, %v2935
        %v2960 = vmul.f32 %v2884, %v2945
        %v2961 = vmul.f32 %v2885, %v2945
        %v2962 = vmul.f32 %v2886, %v2955
        %v2963 = vmul.f32 %v2887, %v2955
        %v2964 = vadd.f32 %v2734, 1.0
        %v2965 = vadd.f32 %v2772, 1.0
        %v2966 = vadd.f32 %v2736, 1.0
        %v2967 = vadd.f32 %v2774, 1.0
        %v2968 = vadd.f32 %v2739, 1.0
        %v2969 = vadd.f32 %v2777, 1.0
        %v2970 = vadd.f32 %v2741, 1.0
        %v2971 = vadd.f32 %v2779, 1.0
        %v2972 = vmul.f32 %v2956, %v2964
        %v2973 = vmul.f32 %v2957, %v2965
        %v2974 = vmul.f32 %v2958, %v2966
        %v2975 = vmul.f32 %v2959, %v2967
        %v2976 = vmul.f32 %v2960, %v2968
        %v2977 = vmul.f32 %v2961, %v2969
        %v2978 = vmul.f32 %v2962, %v2970
        %v2979 = vmul.f32 %v2963, %v2971
        %v2980 = vadd.f32 %v2972, %v2658
        %v2981 = vadd.f32 %v2973, %v2696
        %v2982 = vadd.f32 %v2974, %v2660
        %v2983 = vadd.f32 %v2975, %v2698
        %v2984 = vadd.f32 %v2976, %v2663
        %v2985 = vadd.f32 %v2977, %v2701
        %v2986 = vadd.f32 %v2978, %v2665
        %v2987 = vadd.f32 %v2979, %v2703
        %s2988 = smul.u32 %s44, 64
        %s2989 = smul.addr %s2988, 4
        %s2990 = scalar_lea.vmem [#allocation21], %s2989
        %v2991 = vld [vmem:[%s2990] sm:$0xff]
        %v2992 = vld [vmem:[%s2990 + $0x8] sm:$0xff]
        %v2993 = vld [vmem:[%s2990 + $0x10] sm:$0xff]
        %v2994 = vld [vmem:[%s2990 + $0x18] sm:$0xff]
        %v2995 = vld [vmem:[%s2990 + $0x20] sm:$0xff]
        %v2996 = vld [vmem:[%s2990 + $0x28] sm:$0xff]
        %v2997 = vld [vmem:[%s2990 + $0x30] sm:$0xff]
        %v2998 = vld [vmem:[%s2990 + $0x38] sm:$0xff]
        %v2999 = vld [vmem:[%s2990 + $0x40] sm:$0xff]
        %v3000 = vld [vmem:[%s2990 + $0x48] sm:$0xff]
        %v3001 = vld [vmem:[%s2990 + $0x50] sm:$0xff]
        %v3002 = vld [vmem:[%s2990 + $0x58] sm:$0xff]
        %v3003 = vld [vmem:[%s2990 + $0x60] sm:$0xff]
        %v3004 = vld [vmem:[%s2990 + $0x68] sm:$0xff]
        %v3005 = vld [vmem:[%s2990 + $0x70] sm:$0xff]
        %v3006 = vld [vmem:[%s2990 + $0x78] sm:$0xff]
        %v3007 = vld [vmem:[%s2990 + $0x80] sm:$0xff]
        %v3008 = vld [vmem:[%s2990 + $0x88] sm:$0xff]
        %v3009 = vld [vmem:[%s2990 + $0x90] sm:$0xff]
        %v3010 = vld [vmem:[%s2990 + $0x98] sm:$0xff]
        %v3011 = vld [vmem:[%s2990 + $0xa0] sm:$0xff]
        %v3012 = vld [vmem:[%s2990 + $0xa8] sm:$0xff]
        %v3013 = vld [vmem:[%s2990 + $0xb0] sm:$0xff]
        %v3014 = vld [vmem:[%s2990 + $0xb8] sm:$0xff]
        %v3015 = vld [vmem:[%s2990 + $0xc0] sm:$0xff]
        %v3016 = vld [vmem:[%s2990 + $0xc8] sm:$0xff]
        %v3017 = vld [vmem:[%s2990 + $0xd0] sm:$0xff]
        %v3018 = vld [vmem:[%s2990 + $0xd8] sm:$0xff]
        %v3019 = vld [vmem:[%s2990 + $0xe0] sm:$0xff]
        %v3020 = vld [vmem:[%s2990 + $0xe8] sm:$0xff]
        %v3021 = vld [vmem:[%s2990 + $0xf0] sm:$0xff]
        %v3022 = vld [vmem:[%s2990 + $0xf8] sm:$0xff]
        %v3023 = vpack.c.bf16 %v2982, %v2980
        %v3024 = vpack.c.bf16 %v2983, %v2981
        %v3025 = vpack.c.bf16 %v2986, %v2984
        %v3026 = vpack.c.bf16 %v2987, %v2985
        %s3027 = smul.u32 %s44, 2
        %s3028 = scalar_lea.vmem [#allocation22], %s3027
        %v3029 = vld [vmem:[%s3028] sm:$0x3]
        %v3031 = vperm.slane %v3029, 0
        %v3032 = vperm.slane %v3029, 1
        %v3067 = vunpack.c.l.b16 %v2991
        %v3068 = vunpack.c.h.b16 %v2991
        %v3069 = vunpack.c.l.b16 %v2992
        %v3070 = vunpack.c.h.b16 %v2992
        %v3071 = vunpack.c.l.b16 %v2993
        %v3072 = vunpack.c.h.b16 %v2993
        %v3073 = vunpack.c.l.b16 %v2994
        %v3074 = vunpack.c.h.b16 %v2994
        %v3075 = vunpack.c.l.b16 %v2995
        %v3076 = vunpack.c.h.b16 %v2995
        %v3077 = vunpack.c.l.b16 %v2996
        %v3078 = vunpack.c.h.b16 %v2996
        %v3079 = vunpack.c.l.b16 %v2997
        %v3080 = vunpack.c.h.b16 %v2997
        %v3081 = vunpack.c.l.b16 %v2998
        %v3082 = vunpack.c.h.b16 %v2998
        %v3083 = vunpack.c.l.b16 %v2999
        %v3084 = vunpack.c.h.b16 %v2999
        %v3085 = vunpack.c.l.b16 %v3000
        %v3086 = vunpack.c.h.b16 %v3000
        %v3087 = vunpack.c.l.b16 %v3001
        %v3088 = vunpack.c.h.b16 %v3001
        %v3089 = vunpack.c.l.b16 %v3002
        %v3090 = vunpack.c.h.b16 %v3002
        %v3091 = vunpack.c.l.b16 %v3003
        %v3092 = vunpack.c.h.b16 %v3003
        %v3093 = vunpack.c.l.b16 %v3004
        %v3094 = vunpack.c.h.b16 %v3004
        %v3095 = vunpack.c.l.b16 %v3005
        %v3096 = vunpack.c.h.b16 %v3005
        %v3097 = vunpack.c.l.b16 %v3006
        %v3098 = vunpack.c.h.b16 %v3006
        %v3099 = vunpack.c.l.b16 %v3007
        %v3100 = vunpack.c.h.b16 %v3007
        %v3101 = vunpack.c.l.b16 %v3008
        %v3102 = vunpack.c.h.b16 %v3008
        %v3103 = vunpack.c.l.b16 %v3009
        %v3104 = vunpack.c.h.b16 %v3009
        %v3105 = vunpack.c.l.b16 %v3010
        %v3106 = vunpack.c.h.b16 %v3010
        %v3107 = vunpack.c.l.b16 %v3011
        %v3108 = vunpack.c.h.b16 %v3011
        %v3109 = vunpack.c.l.b16 %v3012
        %v3110 = vunpack.c.h.b16 %v3012
        %v3111 = vunpack.c.l.b16 %v3013
        %v3112 = vunpack.c.h.b16 %v3013
        %v3113 = vunpack.c.l.b16 %v3014
        %v3114 = vunpack.c.h.b16 %v3014
        %v3115 = vunpack.c.l.b16 %v3015
        %v3116 = vunpack.c.h.b16 %v3015
        %v3117 = vunpack.c.l.b16 %v3016
        %v3118 = vunpack.c.h.b16 %v3016
        %v3119 = vunpack.c.l.b16 %v3017
        %v3120 = vunpack.c.h.b16 %v3017
        %v3121 = vunpack.c.l.b16 %v3018
        %v3122 = vunpack.c.h.b16 %v3018
        %v3123 = vunpack.c.l.b16 %v3019
        %v3124 = vunpack.c.h.b16 %v3019
        %v3125 = vunpack.c.l.b16 %v3020
        %v3126 = vunpack.c.h.b16 %v3020
        %v3127 = vunpack.c.l.b16 %v3021
        %v3128 = vunpack.c.h.b16 %v3021
        %v3129 = vunpack.c.l.b16 %v3022
        %v3130 = vunpack.c.h.b16 %v3022
        %v3131 = vpack.c.b16 %v3069, %v3067
        %v3132 = vpack.c.b16 %v3070, %v3068
        %v3133 = vpack.c.b16 %v3073, %v3071
        %v3134 = vpack.c.b16 %v3074, %v3072
        %v3135 = vpack.c.b16 %v3077, %v3075
        %v3136 = vpack.c.b16 %v3078, %v3076
        %v3137 = vpack.c.b16 %v3081, %v3079
        %v3138 = vpack.c.b16 %v3082, %v3080
        %v3139 = vpack.c.b16 %v3085, %v3083
        %v3140 = vpack.c.b16 %v3086, %v3084
        %v3141 = vpack.c.b16 %v3089, %v3087
        %v3142 = vpack.c.b16 %v3090, %v3088
        %v3143 = vpack.c.b16 %v3093, %v3091
        %v3144 = vpack.c.b16 %v3094, %v3092
        %v3145 = vpack.c.b16 %v3097, %v3095
        %v3146 = vpack.c.b16 %v3098, %v3096
        %v3147 = vpack.c.b16 %v3101, %v3099
        %v3148 = vpack.c.b16 %v3102, %v3100
        %v3149 = vpack.c.b16 %v3105, %v3103
        %v3150 = vpack.c.b16 %v3106, %v3104
        %v3151 = vpack.c.b16 %v3109, %v3107
        %v3152 = vpack.c.b16 %v3110, %v3108
        %v3153 = vpack.c.b16 %v3113, %v3111
        %v3154 = vpack.c.b16 %v3114, %v3112
        %v3155 = vpack.c.b16 %v3117, %v3115
        %v3156 = vpack.c.b16 %v3118, %v3116
        %v3157 = vpack.c.b16 %v3121, %v3119
        %v3158 = vpack.c.b16 %v3122, %v3120
        %v3159 = vpack.c.b16 %v3125, %v3123
        %v3160 = vpack.c.b16 %v3126, %v3124
        %v3161 = vpack.c.b16 %v3129, %v3127
        %v3162 = vpack.c.b16 %v3130, %v3128
        %3195 = vmatpush.bf16.msra.mxu0 %v3145
        %3196 = vmatpush.bf16.msra.mxu0 %v3143
        %3197 = vmatpush.bf16.msra.mxu0 %v3141
        %3198 = vmatpush.bf16.msra.mxu0 %v3139
        %3199 = vmatpush.bf16.msra.mxu0 %v3137
        %3200 = vmatpush.bf16.msra.mxu0 %v3135
        %3201 = vmatpush.bf16.msra.mxu0 %v3133
        %3202 = vmatpush.bf16.msra.mxu0 %v3131
        %3203 = vmatmul.bf16.gmra.mxu0 %v3023
        %v3204 = vpop.f32.mrf.mxu0
        %v3205 = vadd.f32 %v3031, %v3204
        %v3206 = vpop.f32.mrf.mxu0
        %v3207 = vadd.f32 %v3031, %v3206
        %3208 = vmatmul.bf16.gmra.mxu0 %v3025
        %v3209 = vpop.f32.mrf.mxu0
        %v3210 = vadd.f32 %v3031, %v3209
        %v3211 = vpop.f32.mrf.mxu0
        %v3212 = vadd.f32 %v3031, %v3211
        %3213 = vdwg.mxu0
        %3214 = vmatpush.bf16.msra.mxu0 %v3161
        %3215 = vmatpush.bf16.msra.mxu0 %v3159
        %3216 = vmatpush.bf16.msra.mxu0 %v3157
        %3217 = vmatpush.bf16.msra.mxu0 %v3155
        %3218 = vmatpush.bf16.msra.mxu0 %v3153
        %3219 = vmatpush.bf16.msra.mxu0 %v3151
        %3220 = vmatpush.bf16.msra.mxu0 %v3149
        %3221 = vmatpush.bf16.msra.mxu0 %v3147
        %3222 = vmatmul.bf16.gmra.mxu0 %v3024
        %v3223 = vpop.f32.mrf.mxu0
        %v3224 = vadd.f32 %v3205, %v3223
        %v3225 = vpop.f32.mrf.mxu0
        %v3226 = vadd.f32 %v3207, %v3225
        %3227 = vmatmul.bf16.gmra.mxu0 %v3026
        %v3228 = vpop.f32.mrf.mxu0
        %v3229 = vadd.f32 %v3210, %v3228
        %v3230 = vpop.f32.mrf.mxu0
        %v3231 = vadd.f32 %v3212, %v3230
        %3232 = vdwg.mxu0
        %3233 = vmatpush.bf16.msra.mxu0 %v3146
        %3234 = vmatpush.bf16.msra.mxu0 %v3144
        %3235 = vmatpush.bf16.msra.mxu0 %v3142
        %3236 = vmatpush.bf16.msra.mxu0 %v3140
        %3237 = vmatpush.bf16.msra.mxu0 %v3138
        %3238 = vmatpush.bf16.msra.mxu0 %v3136
        %3239 = vmatpush.bf16.msra.mxu0 %v3134
        %3240 = vmatpush.bf16.msra.mxu0 %v3132
        %3241 = vmatmul.bf16.gmra.mxu0 %v3023
        %v3242 = vpop.f32.mrf.mxu0
        %v3243 = vadd.f32 %v3032, %v3242
        %v3244 = vpop.f32.mrf.mxu0
        %v3245 = vadd.f32 %v3032, %v3244
        %3246 = vmatmul.bf16.gmra.mxu0 %v3025
        %v3247 = vpop.f32.mrf.mxu0
        %v3248 = vadd.f32 %v3032, %v3247
        %v3249 = vpop.f32.mrf.mxu0
        %v3250 = vadd.f32 %v3032, %v3249
        %3251 = vdwg.mxu0
        %3252 = vmatpush.bf16.msra.mxu0 %v3162
        %3253 = vmatpush.bf16.msra.mxu0 %v3160
        %3254 = vmatpush.bf16.msra.mxu0 %v3158
        %3255 = vmatpush.bf16.msra.mxu0 %v3156
        %3256 = vmatpush.bf16.msra.mxu0 %v3154
        %3257 = vmatpush.bf16.msra.mxu0 %v3152
        %3258 = vmatpush.bf16.msra.mxu0 %v3150
        %3259 = vmatpush.bf16.msra.mxu0 %v3148
        %3260 = vmatmul.bf16.gmra.mxu0 %v3024
        %v3261 = vpop.f32.mrf.mxu0
        %v3262 = vadd.f32 %v3243, %v3261
        %v3263 = vpop.f32.mrf.mxu0
        %v3264 = vadd.f32 %v3245, %v3263
        %3265 = vmatmul.bf16.gmra.mxu0 %v3026
        %v3266 = vpop.f32.mrf.mxu0
        %v3267 = vadd.f32 %v3248, %v3266
        %v3268 = vpop.f32.mrf.mxu0
        %v3269 = vadd.f32 %v3250, %v3268
        %3270 = vdwg.mxu0
        %v3271 = vxor.u32 %v3224, 2147483648
        %v3272 = vxor.u32 %v3262, 2147483648
        %v3273 = vxor.u32 %v3226, 2147483648
        %v3274 = vxor.u32 %v3264, 2147483648
        %v3275 = vxor.u32 %v3229, 2147483648
        %v3276 = vxor.u32 %v3267, 2147483648
        %v3277 = vxor.u32 %v3231, 2147483648
        %v3278 = vxor.u32 %v3269, 2147483648
        %v3279 = vmul.f32 %v3271, 1.442695
        %v3280 = vpow.pop %v3279
        %v3281 = vmul.f32 %v3272, 1.442695
        %v3282 = vpow.pop %v3281
        %v3283 = vmul.f32 %v3273, 1.442695
        %v3284 = vpow.pop %v3283
        %v3285 = vmul.f32 %v3274, 1.442695
        %v3286 = vpow.pop %v3285
        %v3287 = vmul.f32 %v3275, 1.442695
        %v3288 = vpow.pop %v3287
        %v3289 = vmul.f32 %v3276, 1.442695
        %v3290 = vpow.pop %v3289
        %v3291 = vmul.f32 %v3277, 1.442695
        %v3292 = vpow.pop %v3291
        %v3293 = vmul.f32 %v3278, 1.442695
        %v3294 = vpow.pop %v3293
        %v3295 = vadd.f32 %v3280, 1.0
        %v3296 = vadd.f32 %v3282, 1.0
        %v3297 = vadd.f32 %v3284, 1.0
        %v3298 = vadd.f32 %v3286, 1.0
        %v3299 = vadd.f32 %v3288, 1.0
        %v3300 = vadd.f32 %v3290, 1.0
        %v3301 = vadd.f32 %v3292, 1.0
        %v3302 = vadd.f32 %v3294, 1.0
        %v3303 = vrcp.pop %v3295
        %v3304 = vmul.f32 %v3295, %v3303
        %v3305 = vsub.f32 1.0, %v3304
        %v3306 = vmul.f32 %v3303, %v3305
        %v3307 = vadd.f32 %v3303, %v3306
        %vm3308 = vweird.f32 %v3295
        %vm3309 = vweird.f32 %v3303
        %vm3310 = vmor %vm3308, %vm3309
        %v3311 = vsel %vm3310, %v3303, %v3307
        %v3312 = vand.u32 2147483647, %v3295
        %vm3313 = vcmp.eq.f32.partialorder %v3312, 8.507059e+37
        %v3314 = vand.u32 %v3295, 2147483648
        %v3315 = vor.u32 1.1754944e-38, %v3314
        %v3316 = vsel %vm3313, %v3315, %v3311
        %v3317 = vmul.f32 1.0, %v3316
        %v3318 = vrcp.pop %v3296
        %v3319 = vmul.f32 %v3296, %v3318
        %v3320 = vsub.f32 1.0, %v3319
        %v3321 = vmul.f32 %v3318, %v3320
        %v3322 = vadd.f32 %v3318, %v3321
        %vm3323 = vweird.f32 %v3296
        %vm3324 = vweird.f32 %v3318
        %vm3325 = vmor %vm3323, %vm3324
        %v3326 = vsel %vm3325, %v3318, %v3322
        %v3327 = vand.u32 2147483647, %v3296
        %vm3328 = vcmp.eq.f32.partialorder %v3327, 8.507059e+37
        %v3329 = vand.u32 %v3296, 2147483648
        %v3330 = vor.u32 1.1754944e-38, %v3329
        %v3331 = vsel %vm3328, %v3330, %v3326
        %v3332 = vmul.f32 1.0, %v3331
        %v3333 = vrcp.pop %v3297
        %v3334 = vmul.f32 %v3297, %v3333
        %v3335 = vsub.f32 1.0, %v3334
        %v3336 = vmul.f32 %v3333, %v3335
        %v3337 = vadd.f32 %v3333, %v3336
        %vm3338 = vweird.f32 %v3297
        %vm3339 = vweird.f32 %v3333
        %vm3340 = vmor %vm3338, %vm3339
        %v3341 = vsel %vm3340, %v3333, %v3337
        %v3342 = vand.u32 2147483647, %v3297
        %vm3343 = vcmp.eq.f32.partialorder %v3342, 8.507059e+37
        %v3344 = vand.u32 %v3297, 2147483648
        %v3345 = vor.u32 1.1754944e-38, %v3344
        %v3346 = vsel %vm3343, %v3345, %v3341
        %v3347 = vmul.f32 1.0, %v3346
        %v3348 = vrcp.pop %v3298
        %v3349 = vmul.f32 %v3298, %v3348
        %v3350 = vsub.f32 1.0, %v3349
        %v3351 = vmul.f32 %v3348, %v3350
        %v3352 = vadd.f32 %v3348, %v3351
        %vm3353 = vweird.f32 %v3298
        %vm3354 = vweird.f32 %v3348
        %vm3355 = vmor %vm3353, %vm3354
        %v3356 = vsel %vm3355, %v3348, %v3352
        %v3357 = vand.u32 2147483647, %v3298
        %vm3358 = vcmp.eq.f32.partialorder %v3357, 8.507059e+37
        %v3359 = vand.u32 %v3298, 2147483648
        %v3360 = vor.u32 1.1754944e-38, %v3359
        %v3361 = vsel %vm3358, %v3360, %v3356
        %v3362 = vmul.f32 1.0, %v3361
        %v3363 = vrcp.pop %v3299
        %v3364 = vmul.f32 %v3299, %v3363
        %v3365 = vsub.f32 1.0, %v3364
        %v3366 = vmul.f32 %v3363, %v3365
        %v3367 = vadd.f32 %v3363, %v3366
        %vm3368 = vweird.f32 %v3299
        %vm3369 = vweird.f32 %v3363
        %vm3370 = vmor %vm3368, %vm3369
        %v3371 = vsel %vm3370, %v3363, %v3367
        %v3372 = vand.u32 2147483647, %v3299
        %vm3373 = vcmp.eq.f32.partialorder %v3372, 8.507059e+37
        %v3374 = vand.u32 %v3299, 2147483648
        %v3375 = vor.u32 1.1754944e-38, %v3374
        %v3376 = vsel %vm3373, %v3375, %v3371
        %v3377 = vmul.f32 1.0, %v3376
        %v3378 = vrcp.pop %v3300
        %v3379 = vmul.f32 %v3300, %v3378
        %v3380 = vsub.f32 1.0, %v3379
        %v3381 = vmul.f32 %v3378, %v3380
        %v3382 = vadd.f32 %v3378, %v3381
        %vm3383 = vweird.f32 %v3300
        %vm3384 = vweird.f32 %v3378
        %vm3385 = vmor %vm3383, %vm3384
        %v3386 = vsel %vm3385, %v3378, %v3382
        %v3387 = vand.u32 2147483647, %v3300
        %vm3388 = vcmp.eq.f32.partialorder %v3387, 8.507059e+37
        %v3389 = vand.u32 %v3300, 2147483648
        %v3390 = vor.u32 1.1754944e-38, %v3389
        %v3391 = vsel %vm3388, %v3390, %v3386
        %v3392 = vmul.f32 1.0, %v3391
        %v3393 = vrcp.pop %v3301
        %v3394 = vmul.f32 %v3301, %v3393
        %v3395 = vsub.f32 1.0, %v3394
        %v3396 = vmul.f32 %v3393, %v3395
        %v3397 = vadd.f32 %v3393, %v3396
        %vm3398 = vweird.f32 %v3301
        %vm3399 = vweird.f32 %v3393
        %vm3400 = vmor %vm3398, %vm3399
        %v3401 = vsel %vm3400, %v3393, %v3397
        %v3402 = vand.u32 2147483647, %v3301
        %vm3403 = vcmp.eq.f32.partialorder %v3402, 8.507059e+37
        %v3404 = vand.u32 %v3301, 2147483648
        %v3405 = vor.u32 1.1754944e-38, %v3404
        %v3406 = vsel %vm3403, %v3405, %v3401
        %v3407 = vmul.f32 1.0, %v3406
        %v3408 = vrcp.pop %v3302
        %v3409 = vmul.f32 %v3302, %v3408
        %v3410 = vsub.f32 1.0, %v3409
        %v3411 = vmul.f32 %v3408, %v3410
        %v3412 = vadd.f32 %v3408, %v3411
        %vm3413 = vweird.f32 %v3302
        %vm3414 = vweird.f32 %v3408
        %vm3415 = vmor %vm3413, %vm3414
        %v3416 = vsel %vm3415, %v3408, %v3412
        %v3417 = vand.u32 2147483647, %v3302
        %vm3418 = vcmp.eq.f32.partialorder %v3417, 8.507059e+37
        %v3419 = vand.u32 %v3302, 2147483648
        %v3420 = vor.u32 1.1754944e-38, %v3419
        %v3421 = vsel %vm3418, %v3420, %v3416
        %v3422 = vmul.f32 1.0, %v3421
        %v3423 = vmul.f32 %v3224, %v3317
        %v3424 = vmul.f32 %v3262, %v3332
        %v3425 = vmul.f32 %v3226, %v3347
        %v3426 = vmul.f32 %v3264, %v3362
        %v3427 = vmul.f32 %v3229, %v3377
        %v3428 = vmul.f32 %v3267, %v3392
        %v3429 = vmul.f32 %v3231, %v3407
        %v3430 = vmul.f32 %v3269, %v3422
        %s3431 = smul.addr %s2988, 4
        %s3432 = scalar_lea.vmem [#allocation24], %s3431
        %v3433 = vld [vmem:[%s3432] sm:$0xff]
        %v3434 = vld [vmem:[%s3432 + $0x8] sm:$0xff]
        %v3435 = vld [vmem:[%s3432 + $0x10] sm:$0xff]
        %v3436 = vld [vmem:[%s3432 + $0x18] sm:$0xff]
        %v3437 = vld [vmem:[%s3432 + $0x20] sm:$0xff]
        %v3438 = vld [vmem:[%s3432 + $0x28] sm:$0xff]
        %v3439 = vld [vmem:[%s3432 + $0x30] sm:$0xff]
        %v3440 = vld [vmem:[%s3432 + $0x38] sm:$0xff]
        %v3441 = vld [vmem:[%s3432 + $0x40] sm:$0xff]
        %v3442 = vld [vmem:[%s3432 + $0x48] sm:$0xff]
        %v3443 = vld [vmem:[%s3432 + $0x50] sm:$0xff]
        %v3444 = vld [vmem:[%s3432 + $0x58] sm:$0xff]
        %v3445 = vld [vmem:[%s3432 + $0x60] sm:$0xff]
        %v3446 = vld [vmem:[%s3432 + $0x68] sm:$0xff]
        %v3447 = vld [vmem:[%s3432 + $0x70] sm:$0xff]
        %v3448 = vld [vmem:[%s3432 + $0x78] sm:$0xff]
        %v3449 = vld [vmem:[%s3432 + $0x80] sm:$0xff]
        %v3450 = vld [vmem:[%s3432 + $0x88] sm:$0xff]
        %v3451 = vld [vmem:[%s3432 + $0x90] sm:$0xff]
        %v3452 = vld [vmem:[%s3432 + $0x98] sm:$0xff]
        %v3453 = vld [vmem:[%s3432 + $0xa0] sm:$0xff]
        %v3454 = vld [vmem:[%s3432 + $0xa8] sm:$0xff]
        %v3455 = vld [vmem:[%s3432 + $0xb0] sm:$0xff]
        %v3456 = vld [vmem:[%s3432 + $0xb8] sm:$0xff]
        %v3457 = vld [vmem:[%s3432 + $0xc0] sm:$0xff]
        %v3458 = vld [vmem:[%s3432 + $0xc8] sm:$0xff]
        %v3459 = vld [vmem:[%s3432 + $0xd0] sm:$0xff]
        %v3460 = vld [vmem:[%s3432 + $0xd8] sm:$0xff]
        %v3461 = vld [vmem:[%s3432 + $0xe0] sm:$0xff]
        %v3462 = vld [vmem:[%s3432 + $0xe8] sm:$0xff]
        %v3463 = vld [vmem:[%s3432 + $0xf0] sm:$0xff]
        %v3464 = vld [vmem:[%s3432 + $0xf8] sm:$0xff]
        %v3465 = vpack.c.bf16 %v3425, %v3423
        %v3466 = vpack.c.bf16 %v3426, %v3424
        %v3467 = vpack.c.bf16 %v3429, %v3427
        %v3468 = vpack.c.bf16 %v3430, %v3428
        %s3469 = scalar_lea.vmem [#allocation25], %s3027
        %v3470 = vld [vmem:[%s3469] sm:$0x3]
        %v3472 = vperm.slane %v3470, 0
        %v3473 = vperm.slane %v3470, 1
        %v3508 = vunpack.c.l.b16 %v3433
        %v3509 = vunpack.c.h.b16 %v3433
        %v3510 = vunpack.c.l.b16 %v3434
        %v3511 = vunpack.c.h.b16 %v3434
        %v3512 = vunpack.c.l.b16 %v3435
        %v3513 = vunpack.c.h.b16 %v3435
        %v3514 = vunpack.c.l.b16 %v3436
        %v3515 = vunpack.c.h.b16 %v3436
        %v3516 = vunpack.c.l.b16 %v3437
        %v3517 = vunpack.c.h.b16 %v3437
        %v3518 = vunpack.c.l.b16 %v3438
        %v3519 = vunpack.c.h.b16 %v3438
        %v3520 = vunpack.c.l.b16 %v3439
        %v3521 = vunpack.c.h.b16 %v3439
        %v3522 = vunpack.c.l.b16 %v3440
        %v3523 = vunpack.c.h.b16 %v3440
        %v3524 = vunpack.c.l.b16 %v3441
        %v3525 = vunpack.c.h.b16 %v3441
        %v3526 = vunpack.c.l.b16 %v3442
        %v3527 = vunpack.c.h.b16 %v3442
        %v3528 = vunpack.c.l.b16 %v3443
        %v3529 = vunpack.c.h.b16 %v3443
        %v3530 = vunpack.c.l.b16 %v3444
        %v3531 = vunpack.c.h.b16 %v3444
        %v3532 = vunpack.c.l.b16 %v3445
        %v3533 = vunpack.c.h.b16 %v3445
        %v3534 = vunpack.c.l.b16 %v3446
        %v3535 = vunpack.c.h.b16 %v3446
        %v3536 = vunpack.c.l.b16 %v3447
        %v3537 = vunpack.c.h.b16 %v3447
        %v3538 = vunpack.c.l.b16 %v3448
        %v3539 = vunpack.c.h.b16 %v3448
        %v3540 = vunpack.c.l.b16 %v3449
        %v3541 = vunpack.c.h.b16 %v3449
        %v3542 = vunpack.c.l.b16 %v3450
        %v3543 = vunpack.c.h.b16 %v3450
        %v3544 = vunpack.c.l.b16 %v3451
        %v3545 = vunpack.c.h.b16 %v3451
        %v3546 = vunpack.c.l.b16 %v3452
        %v3547 = vunpack.c.h.b16 %v3452
        %v3548 = vunpack.c.l.b16 %v3453
        %v3549 = vunpack.c.h.b16 %v3453
        %v3550 = vunpack.c.l.b16 %v3454
        %v3551 = vunpack.c.h.b16 %v3454
        %v3552 = vunpack.c.l.b16 %v3455
        %v3553 = vunpack.c.h.b16 %v3455
        %v3554 = vunpack.c.l.b16 %v3456
        %v3555 = vunpack.c.h.b16 %v3456
        %v3556 = vunpack.c.l.b16 %v3457
        %v3557 = vunpack.c.h.b16 %v3457
        %v3558 = vunpack.c.l.b16 %v3458
        %v3559 = vunpack.c.h.b16 %v3458
        %v3560 = vunpack.c.l.b16 %v3459
        %v3561 = vunpack.c.h.b16 %v3459
        %v3562 = vunpack.c.l.b16 %v3460
        %v3563 = vunpack.c.h.b16 %v3460
        %v3564 = vunpack.c.l.b16 %v3461
        %v3565 = vunpack.c.h.b16 %v3461
        %v3566 = vunpack.c.l.b16 %v3462
        %v3567 = vunpack.c.h.b16 %v3462
        %v3568 = vunpack.c.l.b16 %v3463
        %v3569 = vunpack.c.h.b16 %v3463
        %v3570 = vunpack.c.l.b16 %v3464
        %v3571 = vunpack.c.h.b16 %v3464
        %v3572 = vpack.c.b16 %v3510, %v3508
        %v3573 = vpack.c.b16 %v3511, %v3509
        %v3574 = vpack.c.b16 %v3514, %v3512
        %v3575 = vpack.c.b16 %v3515, %v3513
        %v3576 = vpack.c.b16 %v3518, %v3516
        %v3577 = vpack.c.b16 %v3519, %v3517
        %v3578 = vpack.c.b16 %v3522, %v3520
        %v3579 = vpack.c.b16 %v3523, %v3521
        %v3580 = vpack.c.b16 %v3526, %v3524
        %v3581 = vpack.c.b16 %v3527, %v3525
        %v3582 = vpack.c.b16 %v3530, %v3528
        %v3583 = vpack.c.b16 %v3531, %v3529
        %v3584 = vpack.c.b16 %v3534, %v3532
        %v3585 = vpack.c.b16 %v3535, %v3533
        %v3586 = vpack.c.b16 %v3538, %v3536
        %v3587 = vpack.c.b16 %v3539, %v3537
        %v3588 = vpack.c.b16 %v3542, %v3540
        %v3589 = vpack.c.b16 %v3543, %v3541
        %v3590 = vpack.c.b16 %v3546, %v3544
        %v3591 = vpack.c.b16 %v3547, %v3545
        %v3592 = vpack.c.b16 %v3550, %v3548
        %v3593 = vpack.c.b16 %v3551, %v3549
        %v3594 = vpack.c.b16 %v3554, %v3552
        %v3595 = vpack.c.b16 %v3555, %v3553
        %v3596 = vpack.c.b16 %v3558, %v3556
        %v3597 = vpack.c.b16 %v3559, %v3557
        %v3598 = vpack.c.b16 %v3562, %v3560
        %v3599 = vpack.c.b16 %v3563, %v3561
        %v3600 = vpack.c.b16 %v3566, %v3564
        %v3601 = vpack.c.b16 %v3567, %v3565
        %v3602 = vpack.c.b16 %v3570, %v3568
        %v3603 = vpack.c.b16 %v3571, %v3569
        %3636 = vmatpush.bf16.msra.mxu0 %v3586
        %3637 = vmatpush.bf16.msra.mxu0 %v3584
        %3638 = vmatpush.bf16.msra.mxu0 %v3582
        %3639 = vmatpush.bf16.msra.mxu0 %v3580
        %3640 = vmatpush.bf16.msra.mxu0 %v3578
        %3641 = vmatpush.bf16.msra.mxu0 %v3576
        %3642 = vmatpush.bf16.msra.mxu0 %v3574
        %3643 = vmatpush.bf16.msra.mxu0 %v3572
        %3644 = vmatmul.bf16.gmra.mxu0 %v3465
        %v3645 = vpop.f32.mrf.mxu0
        %v3646 = vadd.f32 %v3472, %v3645
        %v3647 = vpop.f32.mrf.mxu0
        %v3648 = vadd.f32 %v3472, %v3647
        %3649 = vmatmul.bf16.gmra.mxu0 %v3467
        %v3650 = vpop.f32.mrf.mxu0
        %v3651 = vadd.f32 %v3472, %v3650
        %v3652 = vpop.f32.mrf.mxu0
        %v3653 = vadd.f32 %v3472, %v3652
        %3654 = vdwg.mxu0
        %3655 = vmatpush.bf16.msra.mxu0 %v3602
        %3656 = vmatpush.bf16.msra.mxu0 %v3600
        %3657 = vmatpush.bf16.msra.mxu0 %v3598
        %3658 = vmatpush.bf16.msra.mxu0 %v3596
        %3659 = vmatpush.bf16.msra.mxu0 %v3594
        %3660 = vmatpush.bf16.msra.mxu0 %v3592
        %3661 = vmatpush.bf16.msra.mxu0 %v3590
        %3662 = vmatpush.bf16.msra.mxu0 %v3588
        %3663 = vmatmul.bf16.gmra.mxu0 %v3466
        %v3664 = vpop.f32.mrf.mxu0
        %v3665 = vadd.f32 %v3646, %v3664
        %v3666 = vpop.f32.mrf.mxu0
        %v3667 = vadd.f32 %v3648, %v3666
        %3668 = vmatmul.bf16.gmra.mxu0 %v3468
        %v3669 = vpop.f32.mrf.mxu0
        %v3670 = vadd.f32 %v3651, %v3669
        %v3671 = vpop.f32.mrf.mxu0
        %v3672 = vadd.f32 %v3653, %v3671
        %3673 = vdwg.mxu0
        %3674 = vmatpush.bf16.msra.mxu0 %v3587
        %3675 = vmatpush.bf16.msra.mxu0 %v3585
        %3676 = vmatpush.bf16.msra.mxu0 %v3583
        %3677 = vmatpush.bf16.msra.mxu0 %v3581
        %3678 = vmatpush.bf16.msra.mxu0 %v3579
        %3679 = vmatpush.bf16.msra.mxu0 %v3577
        %3680 = vmatpush.bf16.msra.mxu0 %v3575
        %3681 = vmatpush.bf16.msra.mxu0 %v3573
        %3682 = vmatmul.bf16.gmra.mxu0 %v3465
        %v3683 = vpop.f32.mrf.mxu0
        %v3684 = vadd.f32 %v3473, %v3683
        %v3685 = vpop.f32.mrf.mxu0
        %v3686 = vadd.f32 %v3473, %v3685
        %3687 = vmatmul.bf16.gmra.mxu0 %v3467
        %v3688 = vpop.f32.mrf.mxu0
        %v3689 = vadd.f32 %v3473, %v3688
        %v3690 = vpop.f32.mrf.mxu0
        %v3691 = vadd.f32 %v3473, %v3690
        %3692 = vdwg.mxu0
        %3693 = vmatpush.bf16.msra.mxu0 %v3603
        %3694 = vmatpush.bf16.msra.mxu0 %v3601
        %3695 = vmatpush.bf16.msra.mxu0 %v3599
        %3696 = vmatpush.bf16.msra.mxu0 %v3597
        %3697 = vmatpush.bf16.msra.mxu0 %v3595
        %3698 = vmatpush.bf16.msra.mxu0 %v3593
        %3699 = vmatpush.bf16.msra.mxu0 %v3591
        %3700 = vmatpush.bf16.msra.mxu0 %v3589
        %3701 = vmatmul.bf16.gmra.mxu0 %v3466
        %v3702 = vpop.f32.mrf.mxu0
        %v3703 = vadd.f32 %v3684, %v3702
        %v3704 = vpop.f32.mrf.mxu0
        %v3705 = vadd.f32 %v3686, %v3704
        %3706 = vmatmul.bf16.gmra.mxu0 %v3468
        %v3707 = vpop.f32.mrf.mxu0
        %v3708 = vadd.f32 %v3689, %v3707
        %v3709 = vpop.f32.mrf.mxu0
        %v3710 = vadd.f32 %v3691, %v3709
        %3711 = vdwg.mxu0
        %v3712 = vmul.f32 %v2810, %v3665
        %v3713 = vmul.f32 %v2848, %v3703
        %v3714 = vmul.f32 %v2812, %v3667
        %v3715 = vmul.f32 %v2850, %v3705
        %v3716 = vmul.f32 %v2815, %v3670
        %v3717 = vmul.f32 %v2853, %v3708
        %v3718 = vmul.f32 %v2817, %v3672
        %v3719 = vmul.f32 %v2855, %v3710
        %v3720 = vadd.f32 %v2014, %v3712
        %v3721 = vadd.f32 %v2015, %v3713
        %v3722 = vadd.f32 %v2016, %v3714
        %v3723 = vadd.f32 %v2017, %v3715
        %v3724 = vadd.f32 %v2018, %v3716
        %v3725 = vadd.f32 %v2019, %v3717
        %v3726 = vadd.f32 %v2020, %v3718
        %v3727 = vadd.f32 %v2021, %v3719
        %3728 = vst [vmem:[#allocation2] sm:$0xff] %v3720
        %3729 = vst [vmem:[#allocation2 + $0x8] sm:$0xff] %v3721
        %3730 = vst [vmem:[#allocation2 + $0x10] sm:$0xff] %v3722
        %3731 = vst [vmem:[#allocation2 + $0x18] sm:$0xff] %v3723
        %3732 = vst [vmem:[#allocation2 + $0x20] sm:$0xff] %v3724
        %3733 = vst [vmem:[#allocation2 + $0x28] sm:$0xff] %v3725
        %3734 = vst [vmem:[#allocation2 + $0x30] sm:$0xff] %v3726
        %3735 = vst [vmem:[#allocation2 + $0x38] sm:$0xff] %v3727
        %p3736 = scmp.eq.s32.totalorder %s44, 5
        // Predicated region
        $region177: #{arhead_forward.5} parent=107 // pred_check
          %p3737 = pneg %p3736
        $region178: #{arhead_forward.5} parent=107 // pred_check_branch
          %3739 = sbr.rel (%p3737) target = $region180
        $region179: #{arhead_forward.5} parent=107 // pred_region
          %v3740 = vld [vmem:[#allocation27] sm:$0xff]
          %v3741 = vld [vmem:[#allocation27 + $0x8] sm:$0xff]
          %v3742 = vld [vmem:[#allocation27 + $0x10] sm:$0xff]
          %v3743 = vld [vmem:[#allocation27 + $0x18] sm:$0xff]
          %v3744 = vld [vmem:[#allocation27 + $0x20] sm:$0xff]
          %v3745 = vld [vmem:[#allocation27 + $0x28] sm:$0xff]
          %v3746 = vld [vmem:[#allocation27 + $0x30] sm:$0xff]
          %v3747 = vld [vmem:[#allocation27 + $0x38] sm:$0xff]
          %v3748 = vld [vmem:[#allocation27 + $0x40] sm:$0xff]
          %v3749 = vld [vmem:[#allocation27 + $0x48] sm:$0xff]
          %v3750 = vld [vmem:[#allocation27 + $0x50] sm:$0xff]
          %v3751 = vld [vmem:[#allocation27 + $0x58] sm:$0xff]
          %v3752 = vld [vmem:[#allocation27 + $0x60] sm:$0xff]
          %v3753 = vld [vmem:[#allocation27 + $0x68] sm:$0xff]
          %v3754 = vld [vmem:[#allocation27 + $0x70] sm:$0xff]
          %v3755 = vld [vmem:[#allocation27 + $0x78] sm:$0xff]
          %v3756 = vld [vmem:[#allocation27 + $0x80] sm:$0xff]
          %v3757 = vld [vmem:[#allocation27 + $0x88] sm:$0xff]
          %v3758 = vld [vmem:[#allocation27 + $0x90] sm:$0xff]
          %v3759 = vld [vmem:[#allocation27 + $0x98] sm:$0xff]
          %v3760 = vld [vmem:[#allocation27 + $0xa0] sm:$0xff]
          %v3761 = vld [vmem:[#allocation27 + $0xa8] sm:$0xff]
          %v3762 = vld [vmem:[#allocation27 + $0xb0] sm:$0xff]
          %v3763 = vld [vmem:[#allocation27 + $0xb8] sm:$0xff]
          %v3764 = vld [vmem:[#allocation27 + $0xc0] sm:$0xff]
          %v3765 = vld [vmem:[#allocation27 + $0xc8] sm:$0xff]
          %v3766 = vld [vmem:[#allocation27 + $0xd0] sm:$0xff]
          %v3767 = vld [vmem:[#allocation27 + $0xd8] sm:$0xff]
          %v3768 = vld [vmem:[#allocation27 + $0xe0] sm:$0xff]
          %v3769 = vld [vmem:[#allocation27 + $0xe8] sm:$0xff]
          %v3770 = vld [vmem:[#allocation27 + $0xf0] sm:$0xff]
          %v3771 = vld [vmem:[#allocation27 + $0xf8] sm:$0xff]
          %v3772 = vld [vmem:[#allocation27 + $0x100] sm:$0xff]
          %v3773 = vld [vmem:[#allocation27 + $0x108] sm:$0xff]
          %v3774 = vld [vmem:[#allocation27 + $0x110] sm:$0xff]
          %v3775 = vld [vmem:[#allocation27 + $0x118] sm:$0xff]
          %v3776 = vld [vmem:[#allocation27 + $0x120] sm:$0xff]
          %v3777 = vld [vmem:[#allocation27 + $0x128] sm:$0xff]
          %v3778 = vld [vmem:[#allocation27 + $0x130] sm:$0xff]
          %v3779 = vld [vmem:[#allocation27 + $0x138] sm:$0xff]
          %v3780 = vld [vmem:[#allocation27 + $0x140] sm:$0xff]
          %v3781 = vld [vmem:[#allocation27 + $0x148] sm:$0xff]
          %v3782 = vld [vmem:[#allocation27 + $0x150] sm:$0xff]
          %v3783 = vld [vmem:[#allocation27 + $0x158] sm:$0xff]
          %v3784 = vld [vmem:[#allocation27 + $0x160] sm:$0xff]
          %v3785 = vld [vmem:[#allocation27 + $0x168] sm:$0xff]
          %v3786 = vld [vmem:[#allocation27 + $0x170] sm:$0xff]
          %v3787 = vld [vmem:[#allocation27 + $0x178] sm:$0xff]
          %v3788 = vld [vmem:[#allocation27 + $0x180] sm:$0xff]
          %v3789 = vld [vmem:[#allocation27 + $0x188] sm:$0xff]
          %v3790 = vld [vmem:[#allocation27 + $0x190] sm:$0xff]
          %v3791 = vld [vmem:[#allocation27 + $0x198] sm:$0xff]
          %v3792 = vld [vmem:[#allocation27 + $0x1a0] sm:$0xff]
          %v3793 = vld [vmem:[#allocation27 + $0x1a8] sm:$0xff]
          %v3794 = vld [vmem:[#allocation27 + $0x1b0] sm:$0xff]
          %v3795 = vld [vmem:[#allocation27 + $0x1b8] sm:$0xff]
          %v3796 = vld [vmem:[#allocation27 + $0x1c0] sm:$0xff]
          %v3797 = vld [vmem:[#allocation27 + $0x1c8] sm:$0xff]
          %v3798 = vld [vmem:[#allocation27 + $0x1d0] sm:$0xff]
          %v3799 = vld [vmem:[#allocation27 + $0x1d8] sm:$0xff]
          %v3800 = vld [vmem:[#allocation27 + $0x1e0] sm:$0xff]
          %v3801 = vld [vmem:[#allocation27 + $0x1e8] sm:$0xff]
          %v3802 = vld [vmem:[#allocation27 + $0x1f0] sm:$0xff]
          %v3803 = vld [vmem:[#allocation27 + $0x1f8] sm:$0xff]
          %v3804 = vld [vmem:[#allocation28] sm:$0xf]
          %v3806 = vperm.slane %v3804, 0
          %v3807 = vperm.slane %v3804, 1
          %v3808 = vperm.slane %v3804, 2
          %v3809 = vperm.slane %v3804, 3
          %v3878 = vunpack.c.l.b16 %v3740
          %v3879 = vunpack.c.h.b16 %v3740
          %v3880 = vunpack.c.l.b16 %v3741
          %v3881 = vunpack.c.h.b16 %v3741
          %v3882 = vunpack.c.l.b16 %v3742
          %v3883 = vunpack.c.h.b16 %v3742
          %v3884 = vunpack.c.l.b16 %v3743
          %v3885 = vunpack.c.h.b16 %v3743
          %v3886 = vunpack.c.l.b16 %v3744
          %v3887 = vunpack.c.h.b16 %v3744
          %v3888 = vunpack.c.l.b16 %v3745
          %v3889 = vunpack.c.h.b16 %v3745
          %v3890 = vunpack.c.l.b16 %v3746
          %v3891 = vunpack.c.h.b16 %v3746
          %v3892 = vunpack.c.l.b16 %v3747
          %v3893 = vunpack.c.h.b16 %v3747
          %v3894 = vunpack.c.l.b16 %v3748
          %v3895 = vunpack.c.h.b16 %v3748
          %v3896 = vunpack.c.l.b16 %v3749
          %v3897 = vunpack.c.h.b16 %v3749
          %v3898 = vunpack.c.l.b16 %v3750
          %v3899 = vunpack.c.h.b16 %v3750
          %v3900 = vunpack.c.l.b16 %v3751
          %v3901 = vunpack.c.h.b16 %v3751
          %v3902 = vunpack.c.l.b16 %v3752
          %v3903 = vunpack.c.h.b16 %v3752
          %v3904 = vunpack.c.l.b16 %v3753
          %v3905 = vunpack.c.h.b16 %v3753
          %v3906 = vunpack.c.l.b16 %v3754
          %v3907 = vunpack.c.h.b16 %v3754
          %v3908 = vunpack.c.l.b16 %v3755
          %v3909 = vunpack.c.h.b16 %v3755
          %v3910 = vunpack.c.l.b16 %v3756
          %v3911 = vunpack.c.h.b16 %v3756
          %v3912 = vunpack.c.l.b16 %v3757
          %v3913 = vunpack.c.h.b16 %v3757
          %v3914 = vunpack.c.l.b16 %v3758
          %v3915 = vunpack.c.h.b16 %v3758
          %v3916 = vunpack.c.l.b16 %v3759
          %v3917 = vunpack.c.h.b16 %v3759
          %v3918 = vunpack.c.l.b16 %v3760
          %v3919 = vunpack.c.h.b16 %v3760
          %v3920 = vunpack.c.l.b16 %v3761
          %v3921 = vunpack.c.h.b16 %v3761
          %v3922 = vunpack.c.l.b16 %v3762
          %v3923 = vunpack.c.h.b16 %v3762
          %v3924 = vunpack.c.l.b16 %v3763
          %v3925 = vunpack.c.h.b16 %v3763
          %v3926 = vunpack.c.l.b16 %v3764
          %v3927 = vunpack.c.h.b16 %v3764
          %v3928 = vunpack.c.l.b16 %v3765
          %v3929 = vunpack.c.h.b16 %v3765
          %v3930 = vunpack.c.l.b16 %v3766
          %v3931 = vunpack.c.h.b16 %v3766
          %v3932 = vunpack.c.l.b16 %v3767
          %v3933 = vunpack.c.h.b16 %v3767
          %v3934 = vunpack.c.l.b16 %v3768
          %v3935 = vunpack.c.h.b16 %v3768
          %v3936 = vunpack.c.l.b16 %v3769
          %v3937 = vunpack.c.h.b16 %v3769
          %v3938 = vunpack.c.l.b16 %v3770
          %v3939 = vunpack.c.h.b16 %v3770
          %v3940 = vunpack.c.l.b16 %v3771
          %v3941 = vunpack.c.h.b16 %v3771
          %v3942 = vunpack.c.l.b16 %v3772
          %v3943 = vunpack.c.h.b16 %v3772
          %v3944 = vunpack.c.l.b16 %v3773
          %v3945 = vunpack.c.h.b16 %v3773
          %v3946 = vunpack.c.l.b16 %v3774
          %v3947 = vunpack.c.h.b16 %v3774
          %v3948 = vunpack.c.l.b16 %v3775
          %v3949 = vunpack.c.h.b16 %v3775
          %v3950 = vunpack.c.l.b16 %v3776
          %v3951 = vunpack.c.h.b16 %v3776
          %v3952 = vunpack.c.l.b16 %v3777
          %v3953 = vunpack.c.h.b16 %v3777
          %v3954 = vunpack.c.l.b16 %v3778
          %v3955 = vunpack.c.h.b16 %v3778
          %v3956 = vunpack.c.l.b16 %v3779
          %v3957 = vunpack.c.h.b16 %v3779
          %v3958 = vunpack.c.l.b16 %v3780
          %v3959 = vunpack.c.h.b16 %v3780
          %v3960 = vunpack.c.l.b16 %v3781
          %v3961 = vunpack.c.h.b16 %v3781
          %v3962 = vunpack.c.l.b16 %v3782
          %v3963 = vunpack.c.h.b16 %v3782
          %v3964 = vunpack.c.l.b16 %v3783
          %v3965 = vunpack.c.h.b16 %v3783
          %v3966 = vunpack.c.l.b16 %v3784
          %v3967 = vunpack.c.h.b16 %v3784
          %v3968 = vunpack.c.l.b16 %v3785
          %v3969 = vunpack.c.h.b16 %v3785
          %v3970 = vunpack.c.l.b16 %v3786
          %v3971 = vunpack.c.h.b16 %v3786
          %v3972 = vunpack.c.l.b16 %v3787
          %v3973 = vunpack.c.h.b16 %v3787
          %v3974 = vunpack.c.l.b16 %v3788
          %v3975 = vunpack.c.h.b16 %v3788
          %v3976 = vunpack.c.l.b16 %v3789
          %v3977 = vunpack.c.h.b16 %v3789
          %v3978 = vunpack.c.l.b16 %v3790
          %v3979 = vunpack.c.h.b16 %v3790
          %v3980 = vunpack.c.l.b16 %v3791
          %v3981 = vunpack.c.h.b16 %v3791
          %v3982 = vunpack.c.l.b16 %v3792
          %v3983 = vunpack.c.h.b16 %v3792
          %v3984 = vunpack.c.l.b16 %v3793
          %v3985 = vunpack.c.h.b16 %v3793
          %v3986 = vunpack.c.l.b16 %v3794
          %v3987 = vunpack.c.h.b16 %v3794
          %v3988 = vunpack.c.l.b16 %v3795
          %v3989 = vunpack.c.h.b16 %v3795
          %v3990 = vunpack.c.l.b16 %v3796
          %v3991 = vunpack.c.h.b16 %v3796
          %v3992 = vunpack.c.l.b16 %v3797
          %v3993 = vunpack.c.h.b16 %v3797
          %v3994 = vunpack.c.l.b16 %v3798
          %v3995 = vunpack.c.h.b16 %v3798
          %v3996 = vunpack.c.l.b16 %v3799
          %v3997 = vunpack.c.h.b16 %v3799
          %v3998 = vunpack.c.l.b16 %v3800
          %v3999 = vunpack.c.h.b16 %v3800
          %v4000 = vunpack.c.l.b16 %v3801
          %v4001 = vunpack.c.h.b16 %v3801
          %v4002 = vunpack.c.l.b16 %v3802
          %v4003 = vunpack.c.h.b16 %v3802
          %v4004 = vunpack.c.l.b16 %v3803
          %v4005 = vunpack.c.h.b16 %v3803
          %v4006 = vpack.c.b16 %v3882, %v3878
          %v4007 = vpack.c.b16 %v3883, %v3879
          %v4008 = vpack.c.b16 %v3884, %v3880
          %v4009 = vpack.c.b16 %v3885, %v3881
          %v4010 = vpack.c.b16 %v3890, %v3886
          %v4011 = vpack.c.b16 %v3891, %v3887
          %v4012 = vpack.c.b16 %v3892, %v3888
          %v4013 = vpack.c.b16 %v3893, %v3889
          %v4014 = vpack.c.b16 %v3898, %v3894
          %v4015 = vpack.c.b16 %v3899, %v3895
          %v4016 = vpack.c.b16 %v3900, %v3896
          %v4017 = vpack.c.b16 %v3901, %v3897
          %v4018 = vpack.c.b16 %v3906, %v3902
          %v4019 = vpack.c.b16 %v3907, %v3903
          %v4020 = vpack.c.b16 %v3908, %v3904
          %v4021 = vpack.c.b16 %v3909, %v3905
          %v4022 = vpack.c.b16 %v3914, %v3910
          %v4023 = vpack.c.b16 %v3915, %v3911
          %v4024 = vpack.c.b16 %v3916, %v3912
          %v4025 = vpack.c.b16 %v3917, %v3913
          %v4026 = vpack.c.b16 %v3922, %v3918
          %v4027 = vpack.c.b16 %v3923, %v3919
          %v4028 = vpack.c.b16 %v3924, %v3920
          %v4029 = vpack.c.b16 %v3925, %v3921
          %v4030 = vpack.c.b16 %v3930, %v3926
          %v4031 = vpack.c.b16 %v3931, %v3927
          %v4032 = vpack.c.b16 %v3932, %v3928
          %v4033 = vpack.c.b16 %v3933, %v3929
          %v4034 = vpack.c.b16 %v3938, %v3934
          %v4035 = vpack.c.b16 %v3939, %v3935
          %v4036 = vpack.c.b16 %v3940, %v3936
          %v4037 = vpack.c.b16 %v3941, %v3937
          %v4038 = vpack.c.b16 %v3946, %v3942
          %v4039 = vpack.c.b16 %v3947, %v3943
          %v4040 = vpack.c.b16 %v3948, %v3944
          %v4041 = vpack.c.b16 %v3949, %v3945
          %v4042 = vpack.c.b16 %v3954, %v3950
          %v4043 = vpack.c.b16 %v3955, %v3951
          %v4044 = vpack.c.b16 %v3956, %v3952
          %v4045 = vpack.c.b16 %v3957, %v3953
          %v4046 = vpack.c.b16 %v3962, %v3958
          %v4047 = vpack.c.b16 %v3963, %v3959
          %v4048 = vpack.c.b16 %v3964, %v3960
          %v4049 = vpack.c.b16 %v3965, %v3961
          %v4050 = vpack.c.b16 %v3970, %v3966
          %v4051 = vpack.c.b16 %v3971, %v3967
          %v4052 = vpack.c.b16 %v3972, %v3968
          %v4053 = vpack.c.b16 %v3973, %v3969
          %v4054 = vpack.c.b16 %v3978, %v3974
          %v4055 = vpack.c.b16 %v3979, %v3975
          %v4056 = vpack.c.b16 %v3980, %v3976
          %v4057 = vpack.c.b16 %v3981, %v3977
          %v4058 = vpack.c.b16 %v3986, %v3982
          %v4059 = vpack.c.b16 %v3987, %v3983
          %v4060 = vpack.c.b16 %v3988, %v3984
          %v4061 = vpack.c.b16 %v3989, %v3985
          %v4062 = vpack.c.b16 %v3994, %v3990
          %v4063 = vpack.c.b16 %v3995, %v3991
          %v4064 = vpack.c.b16 %v3996, %v3992
          %v4065 = vpack.c.b16 %v3997, %v3993
          %v4066 = vpack.c.b16 %v4002, %v3998
          %v4067 = vpack.c.b16 %v4003, %v3999
          %v4068 = vpack.c.b16 %v4004, %v4000
          %v4069 = vpack.c.b16 %v4005, %v4001
          %4134 = vmatpush.bf16.msra.mxu0 %v4034
          %4135 = vmatpush.bf16.msra.mxu0 %v4030
          %4136 = vmatpush.bf16.msra.mxu0 %v4026
          %4137 = vmatpush.bf16.msra.mxu0 %v4022
          %4138 = vmatpush.bf16.msra.mxu0 %v4018
          %4139 = vmatpush.bf16.msra.mxu0 %v4014
          %4140 = vmatpush.bf16.msra.mxu0 %v4010
          %4141 = vmatpush.bf16.msra.mxu0 %v4006
          %4142 = vmatmul.bf16.gmra.mxu0 %v2129
          %v4143 = vpop.f32.mrf.mxu0
          %v4144 = vadd.f32 %v3806, %v4143
          %v4145 = vpop.f32.mrf.mxu0
          %v4146 = vadd.f32 %v3806, %v4145
          %4147 = vmatmul.bf16.gmra.mxu0 %v2131
          %v4148 = vpop.f32.mrf.mxu0
          %v4149 = vadd.f32 %v3806, %v4148
          %v4150 = vpop.f32.mrf.mxu0
          %v4151 = vadd.f32 %v3806, %v4150
          %4152 = vdwg.mxu0
          %4153 = vmatpush.bf16.msra.mxu0 %v4066
          %4154 = vmatpush.bf16.msra.mxu0 %v4062
          %4155 = vmatpush.bf16.msra.mxu0 %v4058
          %4156 = vmatpush.bf16.msra.mxu0 %v4054
          %4157 = vmatpush.bf16.msra.mxu0 %v4050
          %4158 = vmatpush.bf16.msra.mxu0 %v4046
          %4159 = vmatpush.bf16.msra.mxu0 %v4042
          %4160 = vmatpush.bf16.msra.mxu0 %v4038
          %4161 = vmatmul.bf16.gmra.mxu0 %v2130
          %v4162 = vpop.f32.mrf.mxu0
          %v4163 = vadd.f32 %v4144, %v4162
          %v4164 = vpop.f32.mrf.mxu0
          %v4165 = vadd.f32 %v4146, %v4164
          %4166 = vmatmul.bf16.gmra.mxu0 %v2132
          %v4167 = vpop.f32.mrf.mxu0
          %v4168 = vadd.f32 %v4149, %v4167
          %v4169 = vpop.f32.mrf.mxu0
          %v4170 = vadd.f32 %v4151, %v4169
          %4171 = vdwg.mxu0
          %4172 = vmatpush.bf16.msra.mxu0 %v4035
          %4173 = vmatpush.bf16.msra.mxu0 %v4031
          %4174 = vmatpush.bf16.msra.mxu0 %v4027
          %4175 = vmatpush.bf16.msra.mxu0 %v4023
          %4176 = vmatpush.bf16.msra.mxu0 %v4019
          %4177 = vmatpush.bf16.msra.mxu0 %v4015
          %4178 = vmatpush.bf16.msra.mxu0 %v4011
          %4179 = vmatpush.bf16.msra.mxu0 %v4007
          %4180 = vmatmul.bf16.gmra.mxu0 %v2129
          %v4181 = vpop.f32.mrf.mxu0
          %v4182 = vadd.f32 %v3807, %v4181
          %v4183 = vpop.f32.mrf.mxu0
          %v4184 = vadd.f32 %v3807, %v4183
          %4185 = vmatmul.bf16.gmra.mxu0 %v2131
          %v4186 = vpop.f32.mrf.mxu0
          %v4187 = vadd.f32 %v3807, %v4186
          %v4188 = vpop.f32.mrf.mxu0
          %v4189 = vadd.f32 %v3807, %v4188
          %4190 = vdwg.mxu0
          %4191 = vmatpush.bf16.msra.mxu0 %v4067
          %4192 = vmatpush.bf16.msra.mxu0 %v4063
          %4193 = vmatpush.bf16.msra.mxu0 %v4059
          %4194 = vmatpush.bf16.msra.mxu0 %v4055
          %4195 = vmatpush.bf16.msra.mxu0 %v4051
          %4196 = vmatpush.bf16.msra.mxu0 %v4047
          %4197 = vmatpush.bf16.msra.mxu0 %v4043
          %4198 = vmatpush.bf16.msra.mxu0 %v4039
          %4199 = vmatmul.bf16.gmra.mxu0 %v2130
          %v4200 = vpop.f32.mrf.mxu0
          %v4201 = vadd.f32 %v4182, %v4200
          %v4202 = vpop.f32.mrf.mxu0
          %v4203 = vadd.f32 %v4184, %v4202
          %4204 = vmatmul.bf16.gmra.mxu0 %v2132
          %v4205 = vpop.f32.mrf.mxu0
          %v4206 = vadd.f32 %v4187, %v4205
          %v4207 = vpop.f32.mrf.mxu0
          %v4208 = vadd.f32 %v4189, %v4207
          %4209 = vdwg.mxu0
          %4210 = vmatpush.bf16.msra.mxu0 %v4036
          %4211 = vmatpush.bf16.msra.mxu0 %v4032
          %4212 = vmatpush.bf16.msra.mxu0 %v4028
          %4213 = vmatpush.bf16.msra.mxu0 %v4024
          %4214 = vmatpush.bf16.msra.mxu0 %v4020
          %4215 = vmatpush.bf16.msra.mxu0 %v4016
          %4216 = vmatpush.bf16.msra.mxu0 %v4012
          %4217 = vmatpush.bf16.msra.mxu0 %v4008
          %4218 = vmatmul.bf16.gmra.mxu0 %v2129
          %v4219 = vpop.f32.mrf.mxu0
          %v4220 = vadd.f32 %v3808, %v4219
          %v4221 = vpop.f32.mrf.mxu0
          %v4222 = vadd.f32 %v3808, %v4221
          %4223 = vmatmul.bf16.gmra.mxu0 %v2131
          %v4224 = vpop.f32.mrf.mxu0
          %v4225 = vadd.f32 %v3808, %v4224
          %v4226 = vpop.f32.mrf.mxu0
          %v4227 = vadd.f32 %v3808, %v4226
          %4228 = vdwg.mxu0
          %4229 = vmatpush.bf16.msra.mxu0 %v4068
          %4230 = vmatpush.bf16.msra.mxu0 %v4064
          %4231 = vmatpush.bf16.msra.mxu0 %v4060
          %4232 = vmatpush.bf16.msra.mxu0 %v4056
          %4233 = vmatpush.bf16.msra.mxu0 %v4052
          %4234 = vmatpush.bf16.msra.mxu0 %v4048
          %4235 = vmatpush.bf16.msra.mxu0 %v4044
          %4236 = vmatpush.bf16.msra.mxu0 %v4040
          %4237 = vmatmul.bf16.gmra.mxu0 %v2130
          %v4238 = vpop.f32.mrf.mxu0
          %v4239 = vadd.f32 %v4220, %v4238
          %v4240 = vpop.f32.mrf.mxu0
          %v4241 = vadd.f32 %v4222, %v4240
          %4242 = vmatmul.bf16.gmra.mxu0 %v2132
          %v4243 = vpop.f32.mrf.mxu0
          %v4244 = vadd.f32 %v4225, %v4243
          %v4245 = vpop.f32.mrf.mxu0
          %v4246 = vadd.f32 %v4227, %v4245
          %4247 = vdwg.mxu0
          %4248 = vmatpush.bf16.msra.mxu0 %v4037
          %4249 = vmatpush.bf16.msra.mxu0 %v4033
          %4250 = vmatpush.bf16.msra.mxu0 %v4029
          %4251 = vmatpush.bf16.msra.mxu0 %v4025
          %4252 = vmatpush.bf16.msra.mxu0 %v4021
          %4253 = vmatpush.bf16.msra.mxu0 %v4017
          %4254 = vmatpush.bf16.msra.mxu0 %v4013
          %4255 = vmatpush.bf16.msra.mxu0 %v4009
          %4256 = vmatmul.bf16.gmra.mxu0 %v2129
          %v4257 = vpop.f32.mrf.mxu0
          %v4258 = vadd.f32 %v3809, %v4257
          %v4259 = vpop.f32.mrf.mxu0
          %v4260 = vadd.f32 %v3809, %v4259
          %4261 = vmatmul.bf16.gmra.mxu0 %v2131
          %v4262 = vpop.f32.mrf.mxu0
          %v4263 = vadd.f32 %v3809, %v4262
          %v4264 = vpop.f32.mrf.mxu0
          %v4265 = vadd.f32 %v3809, %v4264
          %4266 = vdwg.mxu0
          %4267 = vmatpush.bf16.msra.mxu0 %v4069
          %4268 = vmatpush.bf16.msra.mxu0 %v4065
          %4269 = vmatpush.bf16.msra.mxu0 %v4061
          %4270 = vmatpush.bf16.msra.mxu0 %v4057
          %4271 = vmatpush.bf16.msra.mxu0 %v4053
          %4272 = vmatpush.bf16.msra.mxu0 %v4049
          %4273 = vmatpush.bf16.msra.mxu0 %v4045
          %4274 = vmatpush.bf16.msra.mxu0 %v4041
          %4275 = vmatmul.bf16.gmra.mxu0 %v2130
          %v4276 = vpop.f32.mrf.mxu0
          %v4277 = vadd.f32 %v4258, %v4276
          %v4278 = vpop.f32.mrf.mxu0
          %v4279 = vadd.f32 %v4260, %v4278
          %4280 = vmatmul.bf16.gmra.mxu0 %v2132
          %v4281 = vpop.f32.mrf.mxu0
          %v4282 = vadd.f32 %v4263, %v4281
          %v4283 = vpop.f32.mrf.mxu0
          %v4284 = vadd.f32 %v4265, %v4283
          %4285 = vdwg.mxu0
          %v4286 = vadd.f32 %v3720, %v3721
          %4287 = vadd.xlane.f32.xlu0 %v4286
          %v4288 = vpop.xlane.xlu0 %4287
          %v4289 = vadd.f32 %v3722, %v3723
          %4290 = vadd.xlane.f32.xlu0 %v4289
          %v4291 = vpop.xlane.xlu0 %4290
          %v4292 = vadd.f32 %v3724, %v3725
          %4293 = vadd.xlane.f32.xlu0 %v4292
          %v4294 = vpop.xlane.xlu0 %4293
          %v4295 = vadd.f32 %v3726, %v3727
          %4296 = vadd.xlane.f32.xlu0 %v4295
          %v4297 = vpop.xlane.xlu0 %4296
          %v4298 = vmul.f32 %v4288, %v2875
          %v4299 = vmul.f32 %v4291, %v2875
          %v4300 = vmul.f32 %v4294, %v2875
          %v4301 = vmul.f32 %v4297, %v2875
          %v4302 = vsub.f32 %v3720, %v4298
          %v4303 = vsub.f32 %v3721, %v4298
          %v4304 = vsub.f32 %v3722, %v4299
          %v4305 = vsub.f32 %v3723, %v4299
          %v4306 = vsub.f32 %v3724, %v4300
          %v4307 = vsub.f32 %v3725, %v4300
          %v4308 = vsub.f32 %v3726, %v4301
          %v4309 = vsub.f32 %v3727, %v4301
          %v4310 = vmul.f32 %v4302, %v4302
          %v4311 = vmul.f32 %v4303, %v4303
          %v4312 = vmul.f32 %v4304, %v4304
          %v4313 = vmul.f32 %v4305, %v4305
          %v4314 = vmul.f32 %v4306, %v4306
          %v4315 = vmul.f32 %v4307, %v4307
          %v4316 = vmul.f32 %v4308, %v4308
          %v4317 = vmul.f32 %v4309, %v4309
          %v4318 = vadd.f32 %v4310, %v4311
          %4319 = vadd.xlane.f32.xlu0 %v4318
          %v4320 = vpop.xlane.xlu0 %4319
          %v4321 = vadd.f32 %v4312, %v4313
          %4322 = vadd.xlane.f32.xlu0 %v4321
          %v4323 = vpop.xlane.xlu0 %4322
          %v4324 = vadd.f32 %v4314, %v4315
          %4325 = vadd.xlane.f32.xlu0 %v4324
          %v4326 = vpop.xlane.xlu0 %4325
          %v4327 = vadd.f32 %v4316, %v4317
          %4328 = vadd.xlane.f32.xlu0 %v4327
          %v4329 = vpop.xlane.xlu0 %4328
          %v4330 = vmul.f32 %v4320, %v2875
          %v4331 = vmul.f32 %v4323, %v2875
          %v4332 = vmul.f32 %v4326, %v2875
          %v4333 = vmul.f32 %v4329, %v2875
          %v4334 = vadd.f32 %v4330, 1e-06
          %v4335 = vadd.f32 %v4331, 1e-06
          %v4336 = vadd.f32 %v4332, 1e-06
          %v4337 = vadd.f32 %v4333, 1e-06
          %v4338 = vrsqrt.pop %v4334
          %v4339 = vmul.f32 %v4338, %v4334
          %v4340 = vmul.f32 %v4339, %v4338
          %v4341 = vmul.f32 0.5, %v4340
          %v4342 = vsub.f32 1.5, %v4341
          %v4343 = vmul.f32 %v4338, %v4342
          %vm4344 = vweird.f32 %v4334
          %vm4345 = vweird.f32 %v4338
          %vm4346 = vmor %vm4344, %vm4345
          %v4347 = vsel %vm4346, %v4338, %v4343
          %v4348 = vrsqrt.pop %v4335
          %v4349 = vmul.f32 %v4348, %v4335
          %v4350 = vmul.f32 %v4349, %v4348
          %v4351 = vmul.f32 0.5, %v4350
          %v4352 = vsub.f32 1.5, %v4351
          %v4353 = vmul.f32 %v4348, %v4352
          %vm4354 = vweird.f32 %v4335
          %vm4355 = vweird.f32 %v4348
          %vm4356 = vmor %vm4354, %vm4355
          %v4357 = vsel %vm4356, %v4348, %v4353
          %v4358 = vrsqrt.pop %v4336
          %v4359 = vmul.f32 %v4358, %v4336
          %v4360 = vmul.f32 %v4359, %v4358
          %v4361 = vmul.f32 0.5, %v4360
          %v4362 = vsub.f32 1.5, %v4361
          %v4363 = vmul.f32 %v4358, %v4362
          %vm4364 = vweird.f32 %v4336
          %vm4365 = vweird.f32 %v4358
          %vm4366 = vmor %vm4364, %vm4365
          %v4367 = vsel %vm4366, %v4358, %v4363
          %v4368 = vrsqrt.pop %v4337
          %v4369 = vmul.f32 %v4368, %v4337
          %v4370 = vmul.f32 %v4369, %v4368
          %v4371 = vmul.f32 0.5, %v4370
          %v4372 = vsub.f32 1.5, %v4371
          %v4373 = vmul.f32 %v4368, %v4372
          %vm4374 = vweird.f32 %v4337
          %vm4375 = vweird.f32 %v4368
          %vm4376 = vmor %vm4374, %vm4375
          %v4377 = vsel %vm4376, %v4368, %v4373
          %v4378 = vmul.f32 %v4302, %v4347
          %v4379 = vmul.f32 %v4303, %v4347
          %v4380 = vmul.f32 %v4304, %v4357
          %v4381 = vmul.f32 %v4305, %v4357
          %v4382 = vmul.f32 %v4306, %v4367
          %v4383 = vmul.f32 %v4307, %v4367
          %v4384 = vmul.f32 %v4308, %v4377
          %v4385 = vmul.f32 %v4309, %v4377
          %v4386 = vadd.f32 %v4239, 1.0
          %v4387 = vadd.f32 %v4277, 1.0
          %v4388 = vadd.f32 %v4241, 1.0
          %v4389 = vadd.f32 %v4279, 1.0
          %v4390 = vadd.f32 %v4244, 1.0
          %v4391 = vadd.f32 %v4282, 1.0
          %v4392 = vadd.f32 %v4246, 1.0
          %v4393 = vadd.f32 %v4284, 1.0
          %v4394 = vmul.f32 %v4378, %v4386
          %v4395 = vmul.f32 %v4379, %v4387
          %v4396 = vmul.f32 %v4380, %v4388
          %v4397 = vmul.f32 %v4381, %v4389
          %v4398 = vmul.f32 %v4382, %v4390
          %v4399 = vmul.f32 %v4383, %v4391
          %v4400 = vmul.f32 %v4384, %v4392
          %v4401 = vmul.f32 %v4385, %v4393
          %v4402 = vadd.f32 %v4394, %v4163
          %v4403 = vadd.f32 %v4395, %v4201
          %v4404 = vadd.f32 %v4396, %v4165
          %v4405 = vadd.f32 %v4397, %v4203
          %v4406 = vadd.f32 %v4398, %v4168
          %v4407 = vadd.f32 %v4399, %v4206
          %v4408 = vadd.f32 %v4400, %v4170
          %v4409 = vadd.f32 %v4401, %v4208
          %v4410 = vld [vmem:[%s20] sm:$0xf]
          %v4411 = vld [vmem:[%s20 + $0x4] sm:$0xf]
          %v4412 = vld [vmem:[%s20 + $0x8] sm:$0xf]
          %v4413 = vld [vmem:[%s20 + $0xc] sm:$0xf]
          %v4414 = vld [vmem:[%s20 + $0x10] sm:$0xf]
          %v4415 = vld [vmem:[%s20 + $0x14] sm:$0xf]
          %v4416 = vld [vmem:[%s20 + $0x18] sm:$0xf]
          %v4417 = vld [vmem:[%s20 + $0x1c] sm:$0xf]
          %v4418 = vld [vmem:[%s20 + $0x20] sm:$0xf]
          %v4419 = vld [vmem:[%s20 + $0x24] sm:$0xf]
          %v4420 = vld [vmem:[%s20 + $0x28] sm:$0xf]
          %v4421 = vld [vmem:[%s20 + $0x2c] sm:$0xf]
          %v4422 = vld [vmem:[%s20 + $0x30] sm:$0xf]
          %v4423 = vld [vmem:[%s20 + $0x34] sm:$0xf]
          %v4424 = vld [vmem:[%s20 + $0x38] sm:$0xf]
          %v4425 = vld [vmem:[%s20 + $0x3c] sm:$0xf]
          %v4426 = vld [vmem:[%s20 + $0x40] sm:$0xf]
          %v4427 = vld [vmem:[%s20 + $0x44] sm:$0xf]
          %v4428 = vld [vmem:[%s20 + $0x48] sm:$0xf]
          %v4429 = vld [vmem:[%s20 + $0x4c] sm:$0xf]
          %v4430 = vld [vmem:[%s20 + $0x50] sm:$0xf]
          %v4431 = vld [vmem:[%s20 + $0x54] sm:$0xf]
          %v4432 = vld [vmem:[%s20 + $0x58] sm:$0xf]
          %v4433 = vld [vmem:[%s20 + $0x5c] sm:$0xf]
          %v4434 = vld [vmem:[%s20 + $0x60] sm:$0xf]
          %v4435 = vld [vmem:[%s20 + $0x64] sm:$0xf]
          %v4436 = vld [vmem:[%s20 + $0x68] sm:$0xf]
          %v4437 = vld [vmem:[%s20 + $0x6c] sm:$0xf]
          %v4438 = vld [vmem:[%s20 + $0x70] sm:$0xf]
          %v4439 = vld [vmem:[%s20 + $0x74] sm:$0xf]
          %v4440 = vld [vmem:[%s20 + $0x78] sm:$0xf]
          %v4441 = vld [vmem:[%s20 + $0x7c] sm:$0xf]
          %v4442 = vpack.c.bf16 %v4404, %v4402
          %v4443 = vpack.c.bf16 %v4405, %v4403
          %v4444 = vpack.c.bf16 %v4408, %v4406
          %v4445 = vpack.c.bf16 %v4409, %v4407
          %v4446 = vld [vmem:[#allocation4] sm:$0x1]
          %v4448 = vperm.slane %v4446, 0
          %v4482 = vunpack.c.l.b16 %v4410
          %v4483 = vunpack.c.l.b16 %v4411
          %v4484 = vunpack.c.l.b16 %v4412
          %v4485 = vunpack.c.l.b16 %v4413
          %v4486 = vunpack.c.l.b16 %v4414
          %v4487 = vunpack.c.l.b16 %v4415
          %v4488 = vunpack.c.l.b16 %v4416
          %v4489 = vunpack.c.l.b16 %v4417
          %v4490 = vunpack.c.l.b16 %v4418
          %v4491 = vunpack.c.l.b16 %v4419
          %v4492 = vunpack.c.l.b16 %v4420
          %v4493 = vunpack.c.l.b16 %v4421
          %v4494 = vunpack.c.l.b16 %v4422
          %v4495 = vunpack.c.l.b16 %v4423
          %v4496 = vunpack.c.l.b16 %v4424
          %v4497 = vunpack.c.l.b16 %v4425
          %v4498 = vunpack.c.l.b16 %v4426
          %v4499 = vunpack.c.l.b16 %v4427
          %v4500 = vunpack.c.l.b16 %v4428
          %v4501 = vunpack.c.l.b16 %v4429
          %v4502 = vunpack.c.l.b16 %v4430
          %v4503 = vunpack.c.l.b16 %v4431
          %v4504 = vunpack.c.l.b16 %v4432
          %v4505 = vunpack.c.l.b16 %v4433
          %v4506 = vunpack.c.l.b16 %v4434
          %v4507 = vunpack.c.l.b16 %v4435
          %v4508 = vunpack.c.l.b16 %v4436
          %v4509 = vunpack.c.l.b16 %v4437
          %v4510 = vunpack.c.l.b16 %v4438
          %v4511 = vunpack.c.l.b16 %v4439
          %v4512 = vunpack.c.l.b16 %v4440
          %v4513 = vunpack.c.l.b16 %v4441
          %v4514 = vpack.c.b16 %v4483, %v4482
          %v4515 = vpack.c.b16 %v4485, %v4484
          %v4516 = vpack.c.b16 %v4487, %v4486
          %v4517 = vpack.c.b16 %v4489, %v4488
          %v4518 = vpack.c.b16 %v4491, %v4490
          %v4519 = vpack.c.b16 %v4493, %v4492
          %v4520 = vpack.c.b16 %v4495, %v4494
          %v4521 = vpack.c.b16 %v4497, %v4496
          %v4522 = vpack.c.b16 %v4499, %v4498
          %v4523 = vpack.c.b16 %v4501, %v4500
          %v4524 = vpack.c.b16 %v4503, %v4502
          %v4525 = vpack.c.b16 %v4505, %v4504
          %v4526 = vpack.c.b16 %v4507, %v4506
          %v4527 = vpack.c.b16 %v4509, %v4508
          %v4528 = vpack.c.b16 %v4511, %v4510
          %v4529 = vpack.c.b16 %v4513, %v4512
          %4546 = vmatpush.bf16.msra.mxu0 %v4521
          %4547 = vmatpush.bf16.msra.mxu0 %v4520
          %4548 = vmatpush.bf16.msra.mxu0 %v4519
          %4549 = vmatpush.bf16.msra.mxu0 %v4518
          %4550 = vmatpush.bf16.msra.mxu0 %v4517
          %4551 = vmatpush.bf16.msra.mxu0 %v4516
          %4552 = vmatpush.bf16.msra.mxu0 %v4515
          %4553 = vmatpush.bf16.msra.mxu0 %v4514
          %4554 = vmatmul.bf16.gmra.mxu0 %v4442
          %v4555 = vpop.f32.mrf.mxu0
          %v4556 = vadd.f32 %v4448, %v4555
          %v4557 = vpop.f32.mrf.mxu0
          %v4558 = vadd.f32 %v4448, %v4557
          %4559 = vmatmul.bf16.gmra.mxu0 %v4444
          %v4560 = vpop.f32.mrf.mxu0
          %v4561 = vadd.f32 %v4448, %v4560
          %v4562 = vpop.f32.mrf.mxu0
          %v4563 = vadd.f32 %v4448, %v4562
          %4564 = vdwg.mxu0
          %4565 = vmatpush.bf16.msra.mxu0 %v4529
          %4566 = vmatpush.bf16.msra.mxu0 %v4528
          %4567 = vmatpush.bf16.msra.mxu0 %v4527
          %4568 = vmatpush.bf16.msra.mxu0 %v4526
          %4569 = vmatpush.bf16.msra.mxu0 %v4525
          %4570 = vmatpush.bf16.msra.mxu0 %v4524
          %4571 = vmatpush.bf16.msra.mxu0 %v4523
          %4572 = vmatpush.bf16.msra.mxu0 %v4522
          %4573 = vmatmul.bf16.gmra.mxu0 %v4443
          %v4574 = vpop.f32.mrf.mxu0
          %v4575 = vadd.f32 %v4556, %v4574
          %v4576 = vpop.f32.mrf.mxu0
          %v4577 = vadd.f32 %v4558, %v4576
          %4578 = vmatmul.bf16.gmra.mxu0 %v4445
          %v4579 = vpop.f32.mrf.mxu0
          %v4580 = vadd.f32 %v4561, %v4579
          %v4581 = vpop.f32.mrf.mxu0
          %v4582 = vadd.f32 %v4563, %v4581
          %4583 = vdwg.mxu0
          %v4584 = vld [vmem:[%s3] sm:$0xff]
          %v4585 = vld [vmem:[%s3 + $0x8] sm:$0xff]
          %v4586 = vld [vmem:[%s3 + $0x10] sm:$0xff]
          %v4587 = vld [vmem:[%s3 + $0x18] sm:$0xff]
          %v4588 = vsub.f32 %v4575, %v4584
          %v4589 = vsub.f32 %v4577, %v4585
          %v4590 = vsub.f32 %v4580, %v4586
          %v4591 = vsub.f32 %v4582, %v4587
          %v4592 = vmul.f32 %v4588, %v4588
          %v4593 = vmul.f32 %v4589, %v4589
          %v4594 = vmul.f32 %v4590, %v4590
          %v4595 = vmul.f32 %v4591, %v4591
          %v4596 = vlaneseq
          %v4597 = vshrl.u32 %v4596, 7
          %v4598 = vlaneseq
          %v4599 = vand.u32 %v4598, 127
          %v4600 = vmul.u32 %v4597, 16
          %vm4601 = vcmp.ge.s32.totalorder %v4599, %v4600
          %v4602 = vadd.s32 %v4597, 1
          %v4603 = vmul.u32 %v4602, 16
          %vm4604 = vcmp.lt.s32.totalorder %v4599, %v4603
          %vm4605 = vmand %vm4601, %vm4604
          %v4606 = vsel %vm4605, 0.0625, 0.0
          %vm4607 = vcmask 261120
          %v4609 = vsel %vm4607, %v4606, 0
          %4611 = vmatpush.msra.mxu0 0.0
          %4612 = vmatpush.msra.mxu0 0.0
          %4613 = vmatpush.msra.mxu0 0.0
          %4614 = vmatpush.msra.mxu0 0.0
          %4615 = vmatpush.msra.mxu0 0.0
          %4616 = vmatpush.msra.mxu0 0.0
          %4617 = vmatpush.msra.mxu0 0.0
          %4618 = vmatpush.msra.mxu0 0.0
          %4619 = vmatpush.msra.mxu0 0.0
          %4620 = vmatpush.msra.mxu0 0.0
          %4621 = vmatpush.msra.mxu0 0.0
          %4622 = vmatpush.msra.mxu0 0.0
          %4623 = vmatpush.msra.mxu0 %v4595
          %4624 = vmatpush.msra.mxu0 %v4594
          %4625 = vmatpush.msra.mxu0 %v4593
          %4626 = vmatpush.msra.mxu0 %v4592
          %4627 = vmatmul.f32.gmra.mxu0 %v4609
          %v4628 = vpop.f32.mrf.mxu0
          %v4629 = vadd.f32 0.0, %v4628
          %4630 = vdwg.mxu0
          %vm4631 = vcmask 1024
          %4632 = vst.msk [vmem:[%s22] sm:$0x3] %vm4631, %v4629
        $region180: #{arhead_forward.5} parent=107 // pred_fallthru
          _
        // Predicated region
        $region181: #{arhead_forward.5} parent=107 // pred_check
          %p4633 = pneg %p519
        $region182: #{arhead_forward.5} parent=107 // pred_check_branch
          %4635 = sbr.rel (%p4633) target = $region184
        $region183: #{arhead_forward.5} parent=107 // pred_region
          _
        $region184: #{arhead_forward.5} parent=107 // pred_fallthru
          _
        // Predicated region
        $region185: #{arhead_forward.5} parent=107 // pred_check
          %p4636 = pneg %p519
        $region186: #{arhead_forward.5} parent=107 // pred_check_branch
          %4638 = sbr.rel (%p4636) target = $region188
        $region187: #{arhead_forward.5} parent=107 // pred_region
          _
        $region188: #{arhead_forward.5} parent=107 // pred_fallthru
          _
      $region108: #{arhead_forward.5} parent=5 // pred_fallthru
        _
      %p4639 = scmp.le.s32.totalorder 2, %s39
      // Predicated region
      $region189: #{arhead_forward.5} parent=5 // pred_check
        %p4640 = pneg %p4639
      $region190: #{arhead_forward.5} parent=5 // pred_check_branch
        %4642 = sbr.rel (%p4640) target = $region192
      $region191: #{arhead_forward.5} parent=5 // pred_region
        %s4643 = ssub.s32 %s39, 2
      $region192: #{arhead_forward.5} parent=5 // pred_fallthru
        _
    $region6: #{arhead_forward.5} parent=1 // loop_footer
      %s43 = sadd.s32 1, %s39
    $region7: #{arhead_forward.5} parent=1 // loop_footer_branch
      %38 = sbr.rel target = $region3
    $region8: #{arhead_forward.5} parent=1 // loop_exit
      _
    %4644 = vsyncpa [#allocation6], 1
    %s4645 = scalar_lea.sflag [#allocation6], 1
    %4646 = vsyncpa %s4645, 1
    %4647 = vsyncpa [#allocation8], 1
    %4648 = vsyncpa [#allocation11], 1
    %4649 = vsyncpa [#allocation14], 1
    %4650 = vsyncpa [#allocation17], 1
    %4651 = vsyncpa [#allocation20], 1
    %4652 = vsyncpa [#allocation23], 1
    %4653 = vsyncpa [#allocation26], 1
    %4654 = vsyncpa [#allocation29], 1

</llo_original>
